<compile_context>
chip_gen: v5e
topology: v5e:2x2
jax: 0.10.0
libtpu: 0.0.40
codegen_flags: <defaults>
</compile_context>

<pallas_src>
import functools

import jax
import jax.numpy as jnp
import numpy as np
from jax import lax
from jax.experimental import pallas as pl
from jax.experimental.pallas import tpu as pltpu

KH = KW = 5  # conv kernel size (both convs)

_dot = functools.partial(jnp.dot, preferred_element_type=jnp.float32,
                         precision=lax.Precision.HIGHEST)


# ------------------------------ fused kernel --------------------------------

def _cnn2_fused_kernel(x_ref, w1t_ref, b1p_ref, s1e_ref, s1o_ref,
                       w2t_ref, b2p_ref, s2e_ref, s2o_ref,
                       wf1_ref, bf1_ref, wf2_ref, bf2_ref,
                       o_ref,
                       hp1_scr, p1_scr, hp2_scr, flat_scr):
    """Whole CNN2Layer forward for one batch block.

    x_ref  : (Nb, Cin, H, W)          VMEM  (PyTorch NCHW, W on lanes)
    w1t_ref: (Cin, KH, W, Cout*Wo1)   VMEM  banded-Toeplitz conv1 weights
    b1p_ref: (1, Cout*Wo1)            VMEM  conv1 bias, lane-packed
    s1e/s1o: (Cout*Wo1, Cout*Wp1)     VMEM  block-diag even/odd W-pool selectors
    w2t_ref: (KH, Cout*Wp1, Cout*Wo2) VMEM  banded-Toeplitz conv2 weights
    b2p_ref: (1, Cout*Wo2)            VMEM
    s2e/s2o: (Cout*Wo2, Cout*Wp2)     VMEM
    wf1_ref: (Cout*Hp2*Wp2, F1)       VMEM  fc1 weights, rows permuted to (h,c,w)
    bf1_ref: (1, F1)   wf2_ref: (F1, F2)   bf2_ref: (1, F2)
    o_ref  : (1, Nb, F2)              VMEM
    """
    Nb, Cin, H, W = x_ref.shape
    Ho1, Wo1 = H - KH + 1, W - KW + 1
    Hp1, Wp1 = Ho1 // 2, Wo1 // 2
    Ho2, Wo2 = Hp1 - KH + 1, Wp1 - KW + 1
    Hp2, Wp2 = Ho2 // 2, Wo2 // 2
    Cout = w1t_ref.shape[3] // Wo1
    CW1, CP1 = Cout * Wo1, Cout * Wp1
    CW2, CP2 = Cout * Wo2, Cout * Wp2

    # ---- conv1: Cin*KH banded-Toeplitz MXU matmuls, channel-packed output ---
    acc1 = jnp.broadcast_to(b1p_ref[...], (Nb * Ho1, CW1))
    for ci in range(Cin):
        for kh in range(KH):
            lhs = x_ref[:, ci, pl.ds(kh, Ho1), :].reshape(Nb * Ho1, W)
            acc1 = acc1 + _dot(lhs, w1t_ref[ci, kh])
    a1 = jnp.maximum(acc1, 0.0)                       # (Nb*Ho1, Cout*Wo1)

    # ---- relu + pool1, W (lane) direction: two exact selection matmuls -----
    pw1 = jnp.maximum(_dot(a1, s1e_ref[...]), _dot(a1, s1o_ref[...]))
    hp1_scr[...] = pw1.reshape(Nb, Ho1, CP1)          # single staging store

    # ---- pool1, H (sublane) direction: strided pair-max, one store ----------
    p1_scr[...] = jnp.maximum(hp1_scr[:, pl.ds(0, Hp1, 2), :],
                              hp1_scr[:, pl.ds(1, Hp1, 2), :])

    # ---- conv2: KH banded-Toeplitz MXU matmuls over (ci, w) lanes -----------
    acc2 = jnp.broadcast_to(b2p_ref[...], (Nb * Ho2, CW2))
    for kh in range(KH):
        lhs = p1_scr[:, pl.ds(kh, Ho2), :].reshape(Nb * Ho2, CP1)
        acc2 = acc2 + _dot(lhs, w2t_ref[kh])
    a2 = jnp.maximum(acc2, 0.0)                       # (Nb*Ho2, Cout*Wo2)

    # ---- relu + pool2, W direction ------------------------------------------
    pw2 = jnp.maximum(_dot(a2, s2e_ref[...]), _dot(a2, s2o_ref[...]))
    hp2_scr[...] = pw2.reshape(Nb, Ho2, CP2)

    # ---- pool2 H direction fused with the (c,h,w)->lane flatten -------------
    for h in range(Hp2):
        row = jnp.maximum(hp2_scr[:, 2 * h, :], hp2_scr[:, 2 * h + 1, :])
        flat_scr[:, pl.ds(h * CP2, CP2)] = row        # lane-packed (Nb, 96)

    # ---- fc1 (single MXU dot) -> relu -> fc2 ---------------------------------
    flat = flat_scr[...]
    h1 = jnp.maximum(_dot(flat, wf1_ref[...]) + bf1_ref[...], 0.0)
    out = _dot(h1, wf2_ref[...]) + bf2_ref[...]
    o_ref[...] = out.reshape(o_ref.shape).astype(o_ref.dtype)


# --------------------------- host-side weight packing -----------------------

def pack_params(params, input_hw):
    """Pre-pack PyTorch-layout parameters into the kernel's MXU layouts."""
    H, W = input_hw
    w1 = np.asarray(params["conv1_w_oihw"], np.float32)
    b1 = np.asarray(params["conv1_b"], np.float32)
    w2 = np.asarray(params["conv2_w_oihw"], np.float32)
    b2 = np.asarray(params["conv2_b"], np.float32)
    fc1w = np.asarray(params["fc1_w"], np.float32)
    fc1b = np.asarray(params["fc1_b"], np.float32)
    fc2w = np.asarray(params["fc2_w"], np.float32)
    fc2b = np.asarray(params["fc2_b"], np.float32)

    Cout, Cin = w1.shape[0], w1.shape[1]
    assert w1.shape[2:] == (KH, KW) and w2.shape == (Cout, Cout, KH, KW)
    Ho1, Wo1 = H - KH + 1, W - KW + 1
    Hp1, Wp1 = Ho1 // 2, Wo1 // 2
    Ho2, Wo2 = Hp1 - KH + 1, Wp1 - KW + 1
    Hp2, Wp2 = Ho2 // 2, Wo2 // 2
    assert fc1w.shape[0] == Cout * Hp2 * Wp2

    # conv1: per-(ci,kh) banded Toeplitz; output lane = co*Wo1 + w_out.
    w1t = np.zeros((Cin, KH, W, Cout * Wo1), np.float32)
    for ci in range(Cin):
        for kh in range(KH):
            for co in range(Cout):
                for wo in range(Wo1):
                    w1t[ci, kh, wo:wo + KW, co * Wo1 + wo] = w1[co, ci, kh, :]
    b1p = np.repeat(b1, Wo1)[None, :]

    # conv2: contraction lane = ci*Wp1 + w_in, output lane = co*Wo2 + w_out.
    w2t = np.zeros((KH, Cout * Wp1, Cout * Wo2), np.float32)
    for kh in range(KH):
        for co in range(Cout):
            for ci in range(Cout):
                for wo in range(Wo2):
                    w2t[kh, ci * Wp1 + wo:ci * Wp1 + wo + KW, co * Wo2 + wo] = \
                        w2[co, ci, kh, :]
    b2p = np.repeat(b2, Wo2)[None, :]

    # exact 0/1 block-diagonal even/odd column selectors for the W-direction pool.
    def selectors(win, wp):
        se = np.zeros((Cout * win, Cout * wp), np.float32)
        so = np.zeros((Cout * win, Cout * wp), np.float32)
        for c in range(Cout):
            for w in range(wp):
                se[c * win + 2 * w, c * wp + w] = 1.0
                so[c * win + 2 * w + 1, c * wp + w] = 1.0
        return se, so

    s1e, s1o = selectors(Wo1, Wp1)
    s2e, s2o = selectors(Wo2, Wp2)

    # fc1 rows reordered from PyTorch (c, h, w) flatten to the kernel's
    # (h, c, w) lane-packed flatten.
    fc1wp = fc1w.reshape(Cout, Hp2, Wp2, -1).transpose(1, 0, 2, 3)
    fc1wp = fc1wp.reshape(Cout * Hp2 * Wp2, -1)

    to = lambda a: jnp.asarray(a, jnp.float32)
    return dict(w1t=to(w1t), b1p=to(b1p), s1e=to(s1e), s1o=to(s1o),
                w2t=to(w2t), b2p=to(b2p), s2e=to(s2e), s2o=to(s2o),
                fc1w=to(fc1wp), fc1b=to(fc1b[None, :]),
                fc2w=to(fc2w), fc2b=to(fc2b[None, :]))


# ------------------------------ host wrapper ---------------------------------

def cnn2layer_forward(x_nchw, packed, *, batch_block=None):
    N, Cin, H, W = x_nchw.shape
    Ho1, Wo1 = H - KH + 1, W - KW + 1
    Hp1, Wp1 = Ho1 // 2, Wo1 // 2
    Ho2, Wo2 = Hp1 - KH + 1, Wp1 - KW + 1
    Hp2, Wp2 = Ho2 // 2, Wo2 // 2
    Cout = packed["w1t"].shape[3] // Wo1
    F2 = packed["fc2w"].shape[1]

    # Fail loudly on shapes the kernel's layout assumptions do not cover.
    assert Ho1 % 2 == 0 and Wo1 % 2 == 0 and Ho2 % 2 == 0 and Wo2 % 2 == 0, \
        "2x2/2 pooling requires even conv output dims"
    assert Ho1 % 8 == 0 and Ho2 % 8 == 0, \
        "conv output heights must be sublane (8) multiples (MNIST 28x28 config)"
    # TODO(synk): support the non-MNIST (32x32, intermediate_size=5) config by
    # padding conv output heights to sublane multiples.

    if batch_block is None:
        batch_block = 8 if (N >= 8 and N % 8 == 0) else 1
    assert N % batch_block == 0
    NB, G = batch_block, N // batch_block

    def rep(a):  # full-array, grid-invariant block for weights
        nd = a.ndim
        return pl.BlockSpec(a.shape, lambda i: (0,) * nd)

    weights = (packed["w1t"], packed["b1p"], packed["s1e"], packed["s1o"],
               packed["w2t"], packed["b2p"], packed["s2e"], packed["s2o"],
               packed["fc1w"], packed["fc1b"], packed["fc2w"], packed["fc2b"])

    out = pl.pallas_call(
        _cnn2_fused_kernel,
        grid=(G,),
        out_shape=jax.ShapeDtypeStruct((G, NB, F2), jnp.float32),
        in_specs=[pl.BlockSpec((NB, Cin, H, W), lambda i: (i, 0, 0, 0))]
                 + [rep(a) for a in weights],
        out_specs=pl.BlockSpec((1, NB, F2), lambda i: (i, 0, 0)),
        scratch_shapes=[
            pltpu.VMEM((NB, Ho1, Cout * Wp1), jnp.float32),   # pool1 W-pooled staging
            pltpu.VMEM((NB, Hp1, Cout * Wp1), jnp.float32),   # pooled conv1 (lane-packed)
            pltpu.VMEM((NB, Ho2, Cout * Wp2), jnp.float32),   # pool2 W-pooled staging
            pltpu.VMEM((NB, Cout * Hp2 * Wp2), jnp.float32),  # lane-packed fc1 flatten
        ],
        compiler_params=pltpu.CompilerParams(
            dimension_semantics=("parallel",),   # batch grid -> uses v7x's 2nd TC
            vmem_limit_bytes=32 * 1024 * 1024,
        ),
    )(x_nchw, *weights)
    return out.reshape(N, F2)


# ----------------------------- plain-JAX reference ---------------------------

def reference_forward(x_nchw, params):
    dn = ("NCHW", "OIHW", "NCHW")
    hp = lax.Precision.HIGHEST

    def pool(y):
        return lax.reduce_window(y, -jnp.inf, lax.max,
                                 (1, 1, 2, 2), (1, 1, 2, 2), "VALID")

    y = lax.conv_general_dilated(x_nchw, params["conv1_w_oihw"], (1, 1), "VALID",
                                 dimension_numbers=dn, precision=hp)
    y = pool(jnp.maximum(y + params["conv1_b"][None, :, None, None], 0.0))
    y = lax.conv_general_dilated(y, params["conv2_w_oihw"], (1, 1), "VALID",
                                 dimension_numbers=dn, precision=hp)
    y = pool(jnp.maximum(y + params["conv2_b"][None, :, None, None], 0.0))
    y = y.reshape(y.shape[0], -1)
    y = jnp.maximum(jnp.dot(y, params["fc1_w"], precision=hp) + params["fc1_b"], 0.0)
    return jnp.dot(y, params["fc2_w"], precision=hp) + params["fc2_b"]


# ------------------------------------ main -----------------------------------

if __name__ == "__main__":
    # CNN2Layer(in_channels=1, output_size=10, data_type='mnist', n_feature=6)
    in_channels, n_feature, output_size = 1, 6, 10
    batch, H, W = 2, 28, 28   # mnist => intermediate_size 4 => 28x28 input

    key = jax.random.PRNGKey(0)
    ks = jax.random.split(key, 9)
    params = {
        "conv1_w_oihw": 0.1 * jax.random.normal(ks[0], (n_feature, in_channels, KH, KW), jnp.float32),
        "conv1_b":      0.1 * jax.random.normal(ks[1], (n_feature,), jnp.float32),
        "conv2_w_oihw": 0.1 * jax.random.normal(ks[2], (n_feature, n_feature, KH, KW), jnp.float32),
        "conv2_b":      0.1 * jax.random.normal(ks[3], (n_feature,), jnp.float32),
        "fc1_w":        0.1 * jax.random.normal(ks[4], (n_feature * 4 * 4, 50), jnp.float32),
        "fc1_b":        0.1 * jax.random.normal(ks[5], (50,), jnp.float32),
        "fc2_w":        0.1 * jax.random.normal(ks[6], (50, output_size), jnp.float32),
        "fc2_b":        0.1 * jax.random.normal(ks[7], (output_size,), jnp.float32),
    }
    x = jax.random.normal(ks[8], (batch, in_channels, H, W), jnp.float32)

    packed = pack_params(params, (H, W))
    out = jax.block_until_ready(cnn2layer_forward(x, packed))
    assert out.shape == (batch, output_size), out.shape

    ref = jax.block_until_ready(reference_forward(x, params))
    np.testing.assert_allclose(np.asarray(out), np.asarray(ref), rtol=2e-2, atol=2e-3)

    print("KERNEL_OK")
</pallas_src>

<mosaic_0001>
module attributes {stable_mosaic.version = 11 : i64} {
  func.func @_cnn2_fused_kernel(%arg0: i32, %arg1: memref<1x1x28x28xf32, #tpu.memory_space<vmem>>, %arg2: memref<1x5x28x144xf32, #tpu.memory_space<vmem>>, %arg3: memref<1x144xf32, #tpu.memory_space<vmem>>, %arg4: memref<144x72xf32, #tpu.memory_space<vmem>>, %arg5: memref<144x72xf32, #tpu.memory_space<vmem>>, %arg6: memref<5x72x48xf32, #tpu.memory_space<vmem>>, %arg7: memref<1x48xf32, #tpu.memory_space<vmem>>, %arg8: memref<48x24xf32, #tpu.memory_space<vmem>>, %arg9: memref<48x24xf32, #tpu.memory_space<vmem>>, %arg10: memref<96x50xf32, #tpu.memory_space<vmem>>, %arg11: memref<1x50xf32, #tpu.memory_space<vmem>>, %arg12: memref<50x10xf32, #tpu.memory_space<vmem>>, %arg13: memref<1x10xf32, #tpu.memory_space<vmem>>, %arg14: memref<1x1x10xf32, #tpu.memory_space<vmem>>, %arg15: memref<1x24x72xf32, #tpu.memory_space<vmem>>, %arg16: memref<1x12x72xf32, #tpu.memory_space<vmem>>, %arg17: memref<1x8x24xf32, #tpu.memory_space<vmem>>, %arg18: memref<1x96xf32, #tpu.memory_space<vmem>>) attributes {dimension_semantics = [#tpu.dimension_semantics<parallel>], iteration_bounds = array<i64: 2>, scalar_prefetch = 0 : i64, scratch_operands = 4 : i64, tpu.core_type = #tpu.core_type<tc>, window_params = [{transform_indices = @transform_0, window_bounds = array<i64: 1, 1, 28, 28>}, {pipeline_mode = #tpu.pipeline_mode<synchronous>, transform_indices = @transform_1, window_bounds = array<i64: 1, 5, 28, 144>}, {pipeline_mode = #tpu.pipeline_mode<synchronous>, transform_indices = @transform_2, window_bounds = array<i64: 1, 144>}, {pipeline_mode = #tpu.pipeline_mode<synchronous>, transform_indices = @transform_3, window_bounds = array<i64: 144, 72>}, {pipeline_mode = #tpu.pipeline_mode<synchronous>, transform_indices = @transform_4, window_bounds = array<i64: 144, 72>}, {pipeline_mode = #tpu.pipeline_mode<synchronous>, transform_indices = @transform_5, window_bounds = array<i64: 5, 72, 48>}, {pipeline_mode = #tpu.pipeline_mode<synchronous>, transform_indices = @transform_6, window_bounds = array<i64: 1, 48>}, {pipeline_mode = #tpu.pipeline_mode<synchronous>, transform_indices = @transform_7, window_bounds = array<i64: 48, 24>}, {pipeline_mode = #tpu.pipeline_mode<synchronous>, transform_indices = @transform_8, window_bounds = array<i64: 48, 24>}, {pipeline_mode = #tpu.pipeline_mode<synchronous>, transform_indices = @transform_9, window_bounds = array<i64: 96, 50>}, {pipeline_mode = #tpu.pipeline_mode<synchronous>, transform_indices = @transform_10, window_bounds = array<i64: 1, 50>}, {pipeline_mode = #tpu.pipeline_mode<synchronous>, transform_indices = @transform_11, window_bounds = array<i64: 50, 10>}, {pipeline_mode = #tpu.pipeline_mode<synchronous>, transform_indices = @transform_12, window_bounds = array<i64: 1, 10>}, {transform_indices = @transform_13, window_bounds = array<i64: 1, 1, 10>}]} {
    %c0 = arith.constant 0 : index
    %c0_0 = arith.constant 0 : index
    %0 = vector.load %arg3[%c0, %c0_0] : memref<1x144xf32, #tpu.memory_space<vmem>>, vector<1x144xf32>
    %1 = vector.shape_cast %0 : vector<1x144xf32> to vector<1x144xf32>
    %2 = vector.broadcast %1 : vector<1x144xf32> to vector<24x144xf32>
    %c0_1 = arith.constant 0 : index
    %c0_2 = arith.constant 0 : index
    %c0_3 = arith.constant 0 : index
    %c0_4 = arith.constant 0 : index
    %3 = vector.load %arg1[%c0_1, %c0_2, %c0_3, %c0_4] : memref<1x1x28x28xf32, #tpu.memory_space<vmem>>, vector<1x1x24x28xf32>
    %4 = vector.shape_cast %3 : vector<1x1x24x28xf32> to vector<1x24x28xf32>
    %5 = vector.shape_cast %4 : vector<1x24x28xf32> to vector<24x28xf32>
    %c0_5 = arith.constant 0 : index
    %c0_6 = arith.constant 0 : index
    %c0_7 = arith.constant 0 : index
    %c0_8 = arith.constant 0 : index
    %6 = vector.load %arg2[%c0_5, %c0_6, %c0_7, %c0_8] : memref<1x5x28x144xf32, #tpu.memory_space<vmem>>, vector<1x1x28x144xf32>
    %7 = vector.shape_cast %6 : vector<1x1x28x144xf32> to vector<28x144xf32>
    %cst = arith.constant dense<0.000000e+00> : vector<24x144xf32>
    %8 = tpu.matmul %5, %7, %cst {dimension_numbers = #tpu.dot_dimension_numbers<[1], [0], [0], [1], [0, 0, 1, 1], [], []>, precision = #tpu.contract_precision<fp32>} : vector<24x28xf32>, vector<28x144xf32>, vector<24x144xf32> -> vector<24x144xf32>
    %9 = arith.addf %2, %8 : vector<24x144xf32>
    %c0_9 = arith.constant 0 : index
    %c0_10 = arith.constant 0 : index
    %c1 = arith.constant 1 : index
    %c0_11 = arith.constant 0 : index
    %10 = vector.load %arg1[%c0_9, %c0_10, %c1, %c0_11] : memref<1x1x28x28xf32, #tpu.memory_space<vmem>>, vector<1x1x24x28xf32>
    %11 = vector.shape_cast %10 : vector<1x1x24x28xf32> to vector<1x24x28xf32>
    %12 = vector.shape_cast %11 : vector<1x24x28xf32> to vector<24x28xf32>
    %c0_12 = arith.constant 0 : index
    %c1_13 = arith.constant 1 : index
    %c0_14 = arith.constant 0 : index
    %c0_15 = arith.constant 0 : index
    %13 = vector.load %arg2[%c0_12, %c1_13, %c0_14, %c0_15] : memref<1x5x28x144xf32, #tpu.memory_space<vmem>>, vector<1x1x28x144xf32>
    %14 = vector.shape_cast %13 : vector<1x1x28x144xf32> to vector<28x144xf32>
    %cst_16 = arith.constant dense<0.000000e+00> : vector<24x144xf32>
    %15 = tpu.matmul %12, %14, %cst_16 {dimension_numbers = #tpu.dot_dimension_numbers<[1], [0], [0], [1], [0, 0, 1, 1], [], []>, precision = #tpu.contract_precision<fp32>} : vector<24x28xf32>, vector<28x144xf32>, vector<24x144xf32> -> vector<24x144xf32>
    %16 = arith.addf %9, %15 : vector<24x144xf32>
    %c0_17 = arith.constant 0 : index
    %c0_18 = arith.constant 0 : index
    %c2 = arith.constant 2 : index
    %c0_19 = arith.constant 0 : index
    %17 = vector.load %arg1[%c0_17, %c0_18, %c2, %c0_19] : memref<1x1x28x28xf32, #tpu.memory_space<vmem>>, vector<1x1x24x28xf32>
    %18 = vector.shape_cast %17 : vector<1x1x24x28xf32> to vector<1x24x28xf32>
    %19 = vector.shape_cast %18 : vector<1x24x28xf32> to vector<24x28xf32>
    %c0_20 = arith.constant 0 : index
    %c2_21 = arith.constant 2 : index
    %c0_22 = arith.constant 0 : index
    %c0_23 = arith.constant 0 : index
    %20 = vector.load %arg2[%c0_20, %c2_21, %c0_22, %c0_23] : memref<1x5x28x144xf32, #tpu.memory_space<vmem>>, vector<1x1x28x144xf32>
    %21 = vector.shape_cast %20 : vector<1x1x28x144xf32> to vector<28x144xf32>
    %cst_24 = arith.constant dense<0.000000e+00> : vector<24x144xf32>
    %22 = tpu.matmul %19, %21, %cst_24 {dimension_numbers = #tpu.dot_dimension_numbers<[1], [0], [0], [1], [0, 0, 1, 1], [], []>, precision = #tpu.contract_precision<fp32>} : vector<24x28xf32>, vector<28x144xf32>, vector<24x144xf32> -> vector<24x144xf32>
    %23 = arith.addf %16, %22 : vector<24x144xf32>
    %c0_25 = arith.constant 0 : index
    %c0_26 = arith.constant 0 : index
    %c3 = arith.constant 3 : index
    %c0_27 = arith.constant 0 : index
    %24 = vector.load %arg1[%c0_25, %c0_26, %c3, %c0_27] : memref<1x1x28x28xf32, #tpu.memory_space<vmem>>, vector<1x1x24x28xf32>
    %25 = vector.shape_cast %24 : vector<1x1x24x28xf32> to vector<1x24x28xf32>
    %26 = vector.shape_cast %25 : vector<1x24x28xf32> to vector<24x28xf32>
    %c0_28 = arith.constant 0 : index
    %c3_29 = arith.constant 3 : index
    %c0_30 = arith.constant 0 : index
    %c0_31 = arith.constant 0 : index
    %27 = vector.load %arg2[%c0_28, %c3_29, %c0_30, %c0_31] : memref<1x5x28x144xf32, #tpu.memory_space<vmem>>, vector<1x1x28x144xf32>
    %28 = vector.shape_cast %27 : vector<1x1x28x144xf32> to vector<28x144xf32>
    %cst_32 = arith.constant dense<0.000000e+00> : vector<24x144xf32>
    %29 = tpu.matmul %26, %28, %cst_32 {dimension_numbers = #tpu.dot_dimension_numbers<[1], [0], [0], [1], [0, 0, 1, 1], [], []>, precision = #tpu.contract_precision<fp32>} : vector<24x28xf32>, vector<28x144xf32>, vector<24x144xf32> -> vector<24x144xf32>
    %30 = arith.addf %23, %29 : vector<24x144xf32>
    %c0_33 = arith.constant 0 : index
    %c0_34 = arith.constant 0 : index
    %c4 = arith.constant 4 : index
    %c0_35 = arith.constant 0 : index
    %31 = vector.load %arg1[%c0_33, %c0_34, %c4, %c0_35] : memref<1x1x28x28xf32, #tpu.memory_space<vmem>>, vector<1x1x24x28xf32>
    %32 = vector.shape_cast %31 : vector<1x1x24x28xf32> to vector<1x24x28xf32>
    %33 = vector.shape_cast %32 : vector<1x24x28xf32> to vector<24x28xf32>
    %c0_36 = arith.constant 0 : index
    %c4_37 = arith.constant 4 : index
    %c0_38 = arith.constant 0 : index
    %c0_39 = arith.constant 0 : index
    %34 = vector.load %arg2[%c0_36, %c4_37, %c0_38, %c0_39] : memref<1x5x28x144xf32, #tpu.memory_space<vmem>>, vector<1x1x28x144xf32>
    %35 = vector.shape_cast %34 : vector<1x1x28x144xf32> to vector<28x144xf32>
    %cst_40 = arith.constant dense<0.000000e+00> : vector<24x144xf32>
    %36 = tpu.matmul %33, %35, %cst_40 {dimension_numbers = #tpu.dot_dimension_numbers<[1], [0], [0], [1], [0, 0, 1, 1], [], []>, precision = #tpu.contract_precision<fp32>} : vector<24x28xf32>, vector<28x144xf32>, vector<24x144xf32> -> vector<24x144xf32>
    %37 = arith.addf %30, %36 : vector<24x144xf32>
    %cst_41 = arith.constant 0.000000e+00 : f32
    %38 = vector.broadcast %cst_41 : f32 to vector<24x144xf32>
    %39 = arith.maximumf %37, %38 : vector<24x144xf32>
    %c0_42 = arith.constant 0 : index
    %c0_43 = arith.constant 0 : index
    %40 = vector.load %arg4[%c0_42, %c0_43] : memref<144x72xf32, #tpu.memory_space<vmem>>, vector<144x72xf32>
    %cst_44 = arith.constant dense<0.000000e+00> : vector<24x72xf32>
    %41 = tpu.matmul %39, %40, %cst_44 {dimension_numbers = #tpu.dot_dimension_numbers<[1], [0], [0], [1], [0, 0, 1, 1], [], []>, precision = #tpu.contract_precision<fp32>} : vector<24x144xf32>, vector<144x72xf32>, vector<24x72xf32> -> vector<24x72xf32>
    %c0_45 = arith.constant 0 : index
    %c0_46 = arith.constant 0 : index
    %42 = vector.load %arg5[%c0_45, %c0_46] : memref<144x72xf32, #tpu.memory_space<vmem>>, vector<144x72xf32>
    %cst_47 = arith.constant dense<0.000000e+00> : vector<24x72xf32>
    %43 = tpu.matmul %39, %42, %cst_47 {dimension_numbers = #tpu.dot_dimension_numbers<[1], [0], [0], [1], [0, 0, 1, 1], [], []>, precision = #tpu.contract_precision<fp32>} : vector<24x144xf32>, vector<144x72xf32>, vector<24x72xf32> -> vector<24x72xf32>
    %44 = arith.maximumf %41, %43 : vector<24x72xf32>
    %45 = vector.shape_cast %44 : vector<24x72xf32> to vector<1x24x72xf32>
    %c0_48 = arith.constant 0 : index
    %c0_49 = arith.constant 0 : index
    %c0_50 = arith.constant 0 : index
    %46 = vector.load %arg15[%c0_48, %c0_49, %c0_50] : memref<1x24x72xf32, #tpu.memory_space<vmem>>, vector<1x24x72xf32>
    tpu.vector_store %arg15[%c0_48, %c0_49, %c0_50], %45 {strides = array<i32>} : memref<1x24x72xf32, #tpu.memory_space<vmem>>, vector<1x24x72xf32>,
    %c0_51 = arith.constant 0 : index
    %c0_52 = arith.constant 0 : index
    %c0_53 = arith.constant 0 : index
    %47 = tpu.strided_load %arg15[%c0_51, %c0_52, %c0_53] {strides = array<i32: 1, 2, 1>} : memref<1x24x72xf32, #tpu.memory_space<vmem>>, vector<1x12x72xf32>
    %c0_54 = arith.constant 0 : index
    %c1_55 = arith.constant 1 : index
    %c0_56 = arith.constant 0 : index
    %48 = tpu.strided_load %arg15[%c0_54, %c1_55, %c0_56] {strides = array<i32: 1, 2, 1>} : memref<1x24x72xf32, #tpu.memory_space<vmem>>, vector<1x12x72xf32>
    %49 = arith.maximumf %47, %48 : vector<1x12x72xf32>
    %c0_57 = arith.constant 0 : index
    %c0_58 = arith.constant 0 : index
    %c0_59 = arith.constant 0 : index
    %50 = vector.load %arg16[%c0_57, %c0_58, %c0_59] : memref<1x12x72xf32, #tpu.memory_space<vmem>>, vector<1x12x72xf32>
    tpu.vector_store %arg16[%c0_57, %c0_58, %c0_59], %49 {strides = array<i32>} : memref<1x12x72xf32, #tpu.memory_space<vmem>>, vector<1x12x72xf32>,
    %c0_60 = arith.constant 0 : index
    %c0_61 = arith.constant 0 : index
    %51 = vector.load %arg7[%c0_60, %c0_61] : memref<1x48xf32, #tpu.memory_space<vmem>>, vector<1x48xf32>
    %52 = vector.shape_cast %51 : vector<1x48xf32> to vector<1x48xf32>
    %53 = vector.broadcast %52 : vector<1x48xf32> to vector<8x48xf32>
    %c0_62 = arith.constant 0 : index
    %c0_63 = arith.constant 0 : index
    %c0_64 = arith.constant 0 : index
    %54 = vector.load %arg16[%c0_62, %c0_63, %c0_64] : memref<1x12x72xf32, #tpu.memory_space<vmem>>, vector<1x8x72xf32>
    %55 = vector.shape_cast %54 : vector<1x8x72xf32> to vector<8x72xf32>
    %c0_65 = arith.constant 0 : index
    %c0_66 = arith.constant 0 : index
    %c0_67 = arith.constant 0 : index
    %56 = vector.load %arg6[%c0_65, %c0_66, %c0_67] : memref<5x72x48xf32, #tpu.memory_space<vmem>>, vector<1x72x48xf32>
    %57 = vector.shape_cast %56 : vector<1x72x48xf32> to vector<72x48xf32>
    %cst_68 = arith.constant dense<0.000000e+00> : vector<8x48xf32>
    %58 = tpu.matmul %55, %57, %cst_68 {dimension_numbers = #tpu.dot_dimension_numbers<[1], [0], [0], [1], [0, 0, 1, 1], [], []>, precision = #tpu.contract_precision<fp32>} : vector<8x72xf32>, vector<72x48xf32>, vector<8x48xf32> -> vector<8x48xf32>
    %59 = arith.addf %53, %58 : vector<8x48xf32>
    %c0_69 = arith.constant 0 : index
    %c1_70 = arith.constant 1 : index
    %c0_71 = arith.constant 0 : index
    %60 = vector.load %arg16[%c0_69, %c1_70, %c0_71] : memref<1x12x72xf32, #tpu.memory_space<vmem>>, vector<1x8x72xf32>
    %61 = vector.shape_cast %60 : vector<1x8x72xf32> to vector<8x72xf32>
    %c1_72 = arith.constant 1 : index
    %c0_73 = arith.constant 0 : index
    %c0_74 = arith.constant 0 : index
    %62 = vector.load %arg6[%c1_72, %c0_73, %c0_74] : memref<5x72x48xf32, #tpu.memory_space<vmem>>, vector<1x72x48xf32>
    %63 = vector.shape_cast %62 : vector<1x72x48xf32> to vector<72x48xf32>
    %cst_75 = arith.constant dense<0.000000e+00> : vector<8x48xf32>
    %64 = tpu.matmul %61, %63, %cst_75 {dimension_numbers = #tpu.dot_dimension_numbers<[1], [0], [0], [1], [0, 0, 1, 1], [], []>, precision = #tpu.contract_precision<fp32>} : vector<8x72xf32>, vector<72x48xf32>, vector<8x48xf32> -> vector<8x48xf32>
    %65 = arith.addf %59, %64 : vector<8x48xf32>
    %c0_76 = arith.constant 0 : index
    %c2_77 = arith.constant 2 : index
    %c0_78 = arith.constant 0 : index
    %66 = vector.load %arg16[%c0_76, %c2_77, %c0_78] : memref<1x12x72xf32, #tpu.memory_space<vmem>>, vector<1x8x72xf32>
    %67 = vector.shape_cast %66 : vector<1x8x72xf32> to vector<8x72xf32>
    %c2_79 = arith.constant 2 : index
    %c0_80 = arith.constant 0 : index
    %c0_81 = arith.constant 0 : index
    %68 = vector.load %arg6[%c2_79, %c0_80, %c0_81] : memref<5x72x48xf32, #tpu.memory_space<vmem>>, vector<1x72x48xf32>
    %69 = vector.shape_cast %68 : vector<1x72x48xf32> to vector<72x48xf32>
    %cst_82 = arith.constant dense<0.000000e+00> : vector<8x48xf32>
    %70 = tpu.matmul %67, %69, %cst_82 {dimension_numbers = #tpu.dot_dimension_numbers<[1], [0], [0], [1], [0, 0, 1, 1], [], []>, precision = #tpu.contract_precision<fp32>} : vector<8x72xf32>, vector<72x48xf32>, vector<8x48xf32> -> vector<8x48xf32>
    %71 = arith.addf %65, %70 : vector<8x48xf32>
    %c0_83 = arith.constant 0 : index
    %c3_84 = arith.constant 3 : index
    %c0_85 = arith.constant 0 : index
    %72 = vector.load %arg16[%c0_83, %c3_84, %c0_85] : memref<1x12x72xf32, #tpu.memory_space<vmem>>, vector<1x8x72xf32>
    %73 = vector.shape_cast %72 : vector<1x8x72xf32> to vector<8x72xf32>
    %c3_86 = arith.constant 3 : index
    %c0_87 = arith.constant 0 : index
    %c0_88 = arith.constant 0 : index
    %74 = vector.load %arg6[%c3_86, %c0_87, %c0_88] : memref<5x72x48xf32, #tpu.memory_space<vmem>>, vector<1x72x48xf32>
    %75 = vector.shape_cast %74 : vector<1x72x48xf32> to vector<72x48xf32>
    %cst_89 = arith.constant dense<0.000000e+00> : vector<8x48xf32>
    %76 = tpu.matmul %73, %75, %cst_89 {dimension_numbers = #tpu.dot_dimension_numbers<[1], [0], [0], [1], [0, 0, 1, 1], [], []>, precision = #tpu.contract_precision<fp32>} : vector<8x72xf32>, vector<72x48xf32>, vector<8x48xf32> -> vector<8x48xf32>
    %77 = arith.addf %71, %76 : vector<8x48xf32>
    %c0_90 = arith.constant 0 : index
    %c4_91 = arith.constant 4 : index
    %c0_92 = arith.constant 0 : index
    %78 = vector.load %arg16[%c0_90, %c4_91, %c0_92] : memref<1x12x72xf32, #tpu.memory_space<vmem>>, vector<1x8x72xf32>
    %79 = vector.shape_cast %78 : vector<1x8x72xf32> to vector<8x72xf32>
    %c4_93 = arith.constant 4 : index
    %c0_94 = arith.constant 0 : index
    %c0_95 = arith.constant 0 : index
    %80 = vector.load %arg6[%c4_93, %c0_94, %c0_95] : memref<5x72x48xf32, #tpu.memory_space<vmem>>, vector<1x72x48xf32>
    %81 = vector.shape_cast %80 : vector<1x72x48xf32> to vector<72x48xf32>
    %cst_96 = arith.constant dense<0.000000e+00> : vector<8x48xf32>
    %82 = tpu.matmul %79, %81, %cst_96 {dimension_numbers = #tpu.dot_dimension_numbers<[1], [0], [0], [1], [0, 0, 1, 1], [], []>, precision = #tpu.contract_precision<fp32>} : vector<8x72xf32>, vector<72x48xf32>, vector<8x48xf32> -> vector<8x48xf32>
    %83 = arith.addf %77, %82 : vector<8x48xf32>
    %cst_97 = arith.constant 0.000000e+00 : f32
    %84 = vector.broadcast %cst_97 : f32 to vector<8x48xf32>
    %85 = arith.maximumf %83, %84 : vector<8x48xf32>
    %c0_98 = arith.constant 0 : index
    %c0_99 = arith.constant 0 : index
    %86 = vector.load %arg8[%c0_98, %c0_99] : memref<48x24xf32, #tpu.memory_space<vmem>>, vector<48x24xf32>
    %cst_100 = arith.constant dense<0.000000e+00> : vector<8x24xf32>
    %87 = tpu.matmul %85, %86, %cst_100 {dimension_numbers = #tpu.dot_dimension_numbers<[1], [0], [0], [1], [0, 0, 1, 1], [], []>, precision = #tpu.contract_precision<fp32>} : vector<8x48xf32>, vector<48x24xf32>, vector<8x24xf32> -> vector<8x24xf32>
    %c0_101 = arith.constant 0 : index
    %c0_102 = arith.constant 0 : index
    %88 = vector.load %arg9[%c0_101, %c0_102] : memref<48x24xf32, #tpu.memory_space<vmem>>, vector<48x24xf32>
    %cst_103 = arith.constant dense<0.000000e+00> : vector<8x24xf32>
    %89 = tpu.matmul %85, %88, %cst_103 {dimension_numbers = #tpu.dot_dimension_numbers<[1], [0], [0], [1], [0, 0, 1, 1], [], []>, precision = #tpu.contract_precision<fp32>} : vector<8x48xf32>, vector<48x24xf32>, vector<8x24xf32> -> vector<8x24xf32>
    %90 = arith.maximumf %87, %89 : vector<8x24xf32>
    %91 = vector.shape_cast %90 : vector<8x24xf32> to vector<1x8x24xf32>
    %c0_104 = arith.constant 0 : index
    %c0_105 = arith.constant 0 : index
    %c0_106 = arith.constant 0 : index
    %92 = vector.load %arg17[%c0_104, %c0_105, %c0_106] : memref<1x8x24xf32, #tpu.memory_space<vmem>>, vector<1x8x24xf32>
    tpu.vector_store %arg17[%c0_104, %c0_105, %c0_106], %91 {strides = array<i32>} : memref<1x8x24xf32, #tpu.memory_space<vmem>>, vector<1x8x24xf32>,
    %c0_107 = arith.constant 0 : index
    %c0_108 = arith.constant 0 : index
    %c0_109 = arith.constant 0 : index
    %93 = vector.load %arg17[%c0_107, %c0_108, %c0_109] : memref<1x8x24xf32, #tpu.memory_space<vmem>>, vector<1x1x24xf32>
    %94 = vector.shape_cast %93 : vector<1x1x24xf32> to vector<1x24xf32>
    %c0_110 = arith.constant 0 : index
    %c1_111 = arith.constant 1 : index
    %c0_112 = arith.constant 0 : index
    %95 = vector.load %arg17[%c0_110, %c1_111, %c0_112] : memref<1x8x24xf32, #tpu.memory_space<vmem>>, vector<1x1x24xf32>
    %96 = vector.shape_cast %95 : vector<1x1x24xf32> to vector<1x24xf32>
    %97 = arith.maximumf %94, %96 : vector<1x24xf32>
    %c0_113 = arith.constant 0 : index
    %c0_114 = arith.constant 0 : index
    %98 = vector.load %arg18[%c0_113, %c0_114] : memref<1x96xf32, #tpu.memory_space<vmem>>, vector<1x24xf32>
    tpu.vector_store %arg18[%c0_113, %c0_114], %97 {strides = array<i32>} : memref<1x96xf32, #tpu.memory_space<vmem>>, vector<1x24xf32>,
    %c0_115 = arith.constant 0 : index
    %c2_116 = arith.constant 2 : index
    %c0_117 = arith.constant 0 : index
    %99 = vector.load %arg17[%c0_115, %c2_116, %c0_117] : memref<1x8x24xf32, #tpu.memory_space<vmem>>, vector<1x1x24xf32>
    %100 = vector.shape_cast %99 : vector<1x1x24xf32> to vector<1x24xf32>
    %c0_118 = arith.constant 0 : index
    %c3_119 = arith.constant 3 : index
    %c0_120 = arith.constant 0 : index
    %101 = vector.load %arg17[%c0_118, %c3_119, %c0_120] : memref<1x8x24xf32, #tpu.memory_space<vmem>>, vector<1x1x24xf32>
    %102 = vector.shape_cast %101 : vector<1x1x24xf32> to vector<1x24xf32>
    %103 = arith.maximumf %100, %102 : vector<1x24xf32>
    %c0_121 = arith.constant 0 : index
    %c24 = arith.constant 24 : index
    %104 = vector.load %arg18[%c0_121, %c24] : memref<1x96xf32, #tpu.memory_space<vmem>>, vector<1x24xf32>
    tpu.vector_store %arg18[%c0_121, %c24], %103 {strides = array<i32>} : memref<1x96xf32, #tpu.memory_space<vmem>>, vector<1x24xf32>,
    %c0_122 = arith.constant 0 : index
    %c4_123 = arith.constant 4 : index
    %c0_124 = arith.constant 0 : index
    %105 = vector.load %arg17[%c0_122, %c4_123, %c0_124] : memref<1x8x24xf32, #tpu.memory_space<vmem>>, vector<1x1x24xf32>
    %106 = vector.shape_cast %105 : vector<1x1x24xf32> to vector<1x24xf32>
    %c0_125 = arith.constant 0 : index
    %c5 = arith.constant 5 : index
    %c0_126 = arith.constant 0 : index
    %107 = vector.load %arg17[%c0_125, %c5, %c0_126] : memref<1x8x24xf32, #tpu.memory_space<vmem>>, vector<1x1x24xf32>
    %108 = vector.shape_cast %107 : vector<1x1x24xf32> to vector<1x24xf32>
    %109 = arith.maximumf %106, %108 : vector<1x24xf32>
    %c0_127 = arith.constant 0 : index
    %c48 = arith.constant 48 : index
    %110 = vector.load %arg18[%c0_127, %c48] : memref<1x96xf32, #tpu.memory_space<vmem>>, vector<1x24xf32>
    tpu.vector_store %arg18[%c0_127, %c48], %109 {strides = array<i32>} : memref<1x96xf32, #tpu.memory_space<vmem>>, vector<1x24xf32>,
    %c0_128 = arith.constant 0 : index
    %c6 = arith.constant 6 : index
    %c0_129 = arith.constant 0 : index
    %111 = vector.load %arg17[%c0_128, %c6, %c0_129] : memref<1x8x24xf32, #tpu.memory_space<vmem>>, vector<1x1x24xf32>
    %112 = vector.shape_cast %111 : vector<1x1x24xf32> to vector<1x24xf32>
    %c0_130 = arith.constant 0 : index
    %c7 = arith.constant 7 : index
    %c0_131 = arith.constant 0 : index
    %113 = vector.load %arg17[%c0_130, %c7, %c0_131] : memref<1x8x24xf32, #tpu.memory_space<vmem>>, vector<1x1x24xf32>
    %114 = vector.shape_cast %113 : vector<1x1x24xf32> to vector<1x24xf32>
    %115 = arith.maximumf %112, %114 : vector<1x24xf32>
    %c0_132 = arith.constant 0 : index
    %c72 = arith.constant 72 : index
    %116 = vector.load %arg18[%c0_132, %c72] : memref<1x96xf32, #tpu.memory_space<vmem>>, vector<1x24xf32>
    tpu.vector_store %arg18[%c0_132, %c72], %115 {strides = array<i32>} : memref<1x96xf32, #tpu.memory_space<vmem>>, vector<1x24xf32>,
    %c0_133 = arith.constant 0 : index
    %c0_134 = arith.constant 0 : index
    %117 = vector.load %arg18[%c0_133, %c0_134] : memref<1x96xf32, #tpu.memory_space<vmem>>, vector<1x96xf32>
    %c0_135 = arith.constant 0 : index
    %c0_136 = arith.constant 0 : index
    %118 = vector.load %arg10[%c0_135, %c0_136] : memref<96x50xf32, #tpu.memory_space<vmem>>, vector<96x50xf32>
    %cst_137 = arith.constant dense<0.000000e+00> : vector<1x50xf32>
    %119 = tpu.matmul %117, %118, %cst_137 {dimension_numbers = #tpu.dot_dimension_numbers<[1], [0], [0], [1], [0, 0, 1, 1], [], []>, precision = #tpu.contract_precision<fp32>} : vector<1x96xf32>, vector<96x50xf32>, vector<1x50xf32> -> vector<1x50xf32>
    %c0_138 = arith.constant 0 : index
    %c0_139 = arith.constant 0 : index
    %120 = vector.load %arg11[%c0_138, %c0_139] : memref<1x50xf32, #tpu.memory_space<vmem>>, vector<1x50xf32>
    %121 = arith.addf %119, %120 : vector<1x50xf32>
    %cst_140 = arith.constant 0.000000e+00 : f32
    %122 = vector.broadcast %cst_140 : f32 to vector<1x50xf32>
    %123 = arith.maximumf %121, %122 : vector<1x50xf32>
    %c0_141 = arith.constant 0 : index
    %c0_142 = arith.constant 0 : index
    %124 = vector.load %arg12[%c0_141, %c0_142] : memref<50x10xf32, #tpu.memory_space<vmem>>, vector<50x10xf32>
    %cst_143 = arith.constant dense<0.000000e+00> : vector<1x10xf32>
    %125 = tpu.matmul %123, %124, %cst_143 {dimension_numbers = #tpu.dot_dimension_numbers<[1], [0], [0], [1], [0, 0, 1, 1], [], []>, precision = #tpu.contract_precision<fp32>} : vector<1x50xf32>, vector<50x10xf32>, vector<1x10xf32> -> vector<1x10xf32>
    %c0_144 = arith.constant 0 : index
    %c0_145 = arith.constant 0 : index
    %126 = vector.load %arg13[%c0_144, %c0_145] : memref<1x10xf32, #tpu.memory_space<vmem>>, vector<1x10xf32>
    %127 = arith.addf %125, %126 : vector<1x10xf32>
    %128 = vector.shape_cast %127 : vector<1x10xf32> to vector<1x1x10xf32>
    %c0_146 = arith.constant 0 : index
    %c0_147 = arith.constant 0 : index
    %c0_148 = arith.constant 0 : index
    %129 = vector.load %arg14[%c0_146, %c0_147, %c0_148] : memref<1x1x10xf32, #tpu.memory_space<vmem>>, vector<1x1x10xf32>
    tpu.vector_store %arg14[%c0_146, %c0_147, %c0_148], %128 {strides = array<i32>} : memref<1x1x10xf32, #tpu.memory_space<vmem>>, vector<1x1x10xf32>,
    return
  }
  func.func @transform_0(%arg0: i32) -> (i32, i32, i32, i32) {
    %c0_i32 = arith.constant 0 : i32
    %c0_i32_0 = arith.constant 0 : i32
    %c0_i32_1 = arith.constant 0 : i32
    %c0_i32_2 = arith.constant 0 : i32
    return %arg0, %c0_i32, %c0_i32_0, %c0_i32_1 : i32, i32, i32, i32
  }
  func.func @transform_1(%arg0: i32) -> (i32, i32, i32, i32) {
    %c0_i32 = arith.constant 0 : i32
    %c0_i32_0 = arith.constant 0 : i32
    %c0_i32_1 = arith.constant 0 : i32
    %c0_i32_2 = arith.constant 0 : i32
    %c0_i32_3 = arith.constant 0 : i32
    return %c0_i32, %c0_i32_0, %c0_i32_1, %c0_i32_2 : i32, i32, i32, i32
  }
  func.func @transform_2(%arg0: i32) -> (i32, i32) {
    %c0_i32 = arith.constant 0 : i32
    %c0_i32_0 = arith.constant 0 : i32
    %c0_i32_1 = arith.constant 0 : i32
    return %c0_i32, %c0_i32_0 : i32, i32
  }
  func.func @transform_3(%arg0: i32) -> (i32, i32) {
    %c0_i32 = arith.constant 0 : i32
    %c0_i32_0 = arith.constant 0 : i32
    %c0_i32_1 = arith.constant 0 : i32
    return %c0_i32, %c0_i32_0 : i32, i32
  }
  func.func @transform_4(%arg0: i32) -> (i32, i32) {
    %c0_i32 = arith.constant 0 : i32
    %c0_i32_0 = arith.constant 0 : i32
    %c0_i32_1 = arith.constant 0 : i32
    return %c0_i32, %c0_i32_0 : i32, i32
  }
  func.func @transform_5(%arg0: i32) -> (i32, i32, i32) {
    %c0_i32 = arith.constant 0 : i32
    %c0_i32_0 = arith.constant 0 : i32
    %c0_i32_1 = arith.constant 0 : i32
    %c0_i32_2 = arith.constant 0 : i32
    return %c0_i32, %c0_i32_0, %c0_i32_1 : i32, i32, i32
  }
  func.func @transform_6(%arg0: i32) -> (i32, i32) {
    %c0_i32 = arith.constant 0 : i32
    %c0_i32_0 = arith.constant 0 : i32
    %c0_i32_1 = arith.constant 0 : i32
    return %c0_i32, %c0_i32_0 : i32, i32
  }
  func.func @transform_7(%arg0: i32) -> (i32, i32) {
    %c0_i32 = arith.constant 0 : i32
    %c0_i32_0 = arith.constant 0 : i32
    %c0_i32_1 = arith.constant 0 : i32
    return %c0_i32, %c0_i32_0 : i32, i32
  }
  func.func @transform_8(%arg0: i32) -> (i32, i32) {
    %c0_i32 = arith.constant 0 : i32
    %c0_i32_0 = arith.constant 0 : i32
    %c0_i32_1 = arith.constant 0 : i32
    return %c0_i32, %c0_i32_0 : i32, i32
  }
  func.func @transform_9(%arg0: i32) -> (i32, i32) {
    %c0_i32 = arith.constant 0 : i32
    %c0_i32_0 = arith.constant 0 : i32
    %c0_i32_1 = arith.constant 0 : i32
    return %c0_i32, %c0_i32_0 : i32, i32
  }
  func.func @transform_10(%arg0: i32) -> (i32, i32) {
    %c0_i32 = arith.constant 0 : i32
    %c0_i32_0 = arith.constant 0 : i32
    %c0_i32_1 = arith.constant 0 : i32
    return %c0_i32, %c0_i32_0 : i32, i32
  }
  func.func @transform_11(%arg0: i32) -> (i32, i32) {
    %c0_i32 = arith.constant 0 : i32
    %c0_i32_0 = arith.constant 0 : i32
    %c0_i32_1 = arith.constant 0 : i32
    return %c0_i32, %c0_i32_0 : i32, i32
  }
  func.func @transform_12(%arg0: i32) -> (i32, i32) {
    %c0_i32 = arith.constant 0 : i32
    %c0_i32_0 = arith.constant 0 : i32
    %c0_i32_1 = arith.constant 0 : i32
    return %c0_i32, %c0_i32_0 : i32, i32
  }
  func.func @transform_13(%arg0: i32) -> (i32, i32, i32) {
    %c0_i32 = arith.constant 0 : i32
    %c0_i32_0 = arith.constant 0 : i32
    %c0_i32_1 = arith.constant 0 : i32
    return %arg0, %c0_i32, %c0_i32_0 : i32, i32, i32
  }
}

</mosaic_0001>

<llo_original>
// kernel: tpu_custom_call.1
$region0: #{tpu_custom_call.1}
  #allocation0 [shape = 'u32[]', space=smem, size = 0x4, offset = 0x4, fixed_abs, tag = 'smem constant byte address 0x4 - core index']
  #allocation1 [shape = 'u32[72,128]{1,0:T(1,128)}', space=vmem, size = 0x9000, scoped, tag = 'internal scratch']
  #allocation2 [shape = 'f32[1,24,72]{2,1,0:T(8,128)}', space=vmem, size = 0x3000, scoped, tag = 'scratch operand']
  #allocation3 [shape = 'f32[1,12,72]{2,1,0:T(8,128)}', space=vmem, size = 0x2000, scoped, tag = 'scratch operand']
  #allocation4 [shape = 'f32[1,8,24]{2,1,0:T(8,128)}', space=vmem, size = 0x1000, scoped, tag = 'scratch operand']
  #allocation5 [shape = 'f32[1,96]{1,0:T(1,128)}', space=vmem, size = 0x200, scoped, tag = 'scratch operand']
  %s0 = inlined_call_operand.vmem [shape: f32[2,1,28,28], index: 0, kind: input, shape index: {}]
  %s1 = inlined_call_operand.vmem [shape: f32[1,5,28,144], index: 1, kind: input, shape index: {}]
  %s2 = inlined_call_operand.vmem [shape: f32[1,144], index: 2, kind: input, shape index: {}]
  %s3 = inlined_call_operand.vmem [shape: f32[144,72], index: 3, kind: input, shape index: {}]
  %s4 = inlined_call_operand.vmem [shape: f32[144,72], index: 4, kind: input, shape index: {}]
  %s5 = inlined_call_operand.vmem [shape: f32[5,72,48], index: 5, kind: input, shape index: {}]
  %s6 = inlined_call_operand.vmem [shape: f32[1,48], index: 6, kind: input, shape index: {}]
  %s7 = inlined_call_operand.vmem [shape: f32[48,24], index: 7, kind: input, shape index: {}]
  %s8 = inlined_call_operand.vmem [shape: f32[48,24], index: 8, kind: input, shape index: {}]
  %s9 = inlined_call_operand.vmem [shape: f32[96,50], index: 9, kind: input, shape index: {}]
  %s10 = inlined_call_operand.vmem [shape: f32[1,50], index: 10, kind: input, shape index: {}]
  %s11 = inlined_call_operand.vmem [shape: f32[50,10], index: 11, kind: input, shape index: {}]
  %s12 = inlined_call_operand.vmem [shape: f32[1,10], index: 12, kind: input, shape index: {}]
  %s13 = inlined_call_operand.hbm [shape: f32[2,1,10], index: 13, kind: output, shape index: {}]
  %s14 = sld [smem:[#allocation0]]
  $region85: #{tpu_custom_call.1} parent=0
    _
  %s16 = ssub.s32 1, %s14
  %s17 = scalar_select 0, %s16, %s14
  $region1: #{tpu_custom_call.1} parent=0
    #allocation6 [shape = 'u8[1024]{0}', space=vmem, size = 0x400, scoped, tag = 'output window, operand 0']
    #allocation7 [shape = 's32[2]{0}', space=sflag, size = 0x8, scoped, tag = 'scoped memory for tpu_custom_call.1']
    %18 = vsyncpa [#allocation7], 0
    %s19 = scalar_lea.sflag [#allocation7], 1
    %20 = vsyncpa %s19, 0
    loop: start=0, step=1, limit=4
    $region2: #{tpu_custom_call.1} parent=1 // loop_pre_header
      _
    $region3: #{tpu_custom_call.1} parent=1 // loop_header
      %s22 = sphi 0, %s26
      %p23 = scmp.ge.s32.totalorder %s22, 4
      %s32 = sphi 0, %s34
      %s35 = sphi 0, %s32
      %s36 = sphi 0, %s35
      %s52 = sphi 0, %s36
      %s56 = sphi 0, %s56
      %s58 = sphi 0, %s56
      %s59 = sphi 0, %s58
      %s73 = sphi 0, %s59
      %s77 = sphi 0, %s77
      %s79 = sphi 0, %s77
      %s80 = sphi 0, %s79
      %s94 = sphi 0, %s80
      %s98 = sphi 0, %s98
      %s100 = sphi 0, %s98
      %s101 = sphi 0, %s100
      %s115 = sphi 0, %s101
      %s119 = sphi 0, %s119
      %s121 = sphi 0, %s119
      %s122 = sphi 0, %s121
      %s136 = sphi 0, %s122
      %s140 = sphi 0, %s140
      %s142 = sphi 0, %s140
      %s143 = sphi 0, %s142
      %s157 = sphi 0, %s143
      %s161 = sphi 0, %s161
      %s163 = sphi 0, %s161
      %s164 = sphi 0, %s163
      %s178 = sphi 0, %s164
      %s182 = sphi 0, %s182
      %s184 = sphi 0, %s182
      %s185 = sphi 0, %s184
      %s199 = sphi 0, %s185
      %s203 = sphi 0, %s203
      %s205 = sphi 0, %s203
      %s206 = sphi 0, %s205
      %s220 = sphi 0, %s206
      %s224 = sphi 0, %s224
      %s226 = sphi 0, %s224
      %s227 = sphi 0, %s226
      %s241 = sphi 0, %s227
      %s245 = sphi 0, %s245
      %s247 = sphi 0, %s245
      %s248 = sphi 0, %s247
      %s262 = sphi 0, %s248
      %s266 = sphi 0, %s266
      %s268 = sphi 0, %s266
      %s269 = sphi 0, %s268
      %s283 = sphi 0, %s269
      %s287 = sphi 0, %s287
      %s289 = sphi 0, %s287
      %s290 = sphi 0, %s289
      %s304 = sphi 0, %s290
      %s310 = sphi 0, %s312
      %s313 = sphi 0, %s310
      %s314 = sphi 0, %s313
      %s330 = sphi 0, %s314
    $region4: #{tpu_custom_call.1} parent=1 // loop_header_branch
      %25 = sbr.rel (%p23) target = $region8
    $region5: #{tpu_custom_call.1} parent=1 // loop_body
      %s27 = ssub.s32 %s22, 1
      %s28 = ssub.s32 %s22, 2
      %s29 = sadd.s32 %s22, 1
      %s30 = ssub.s32 %s22, %s29
      %p31 = scmp.eq.s32.totalorder %s30, 0
      %s33 = sadd.s32 %s32, 1
      %s34 = scalar_select %p31, %s32, %s33
      %p37 = pneg %p31
      %p38 = scmp.eq.s32.totalorder %s22, 1
      %p39 = por %p37, %p38
      %p40 = scmp.ne.s32.totalorder %s32, %s35
      %p41 = scmp.eq.s32.totalorder %s22, 0
      %p42 = por %p40, %p41
      %p43 = scmp.ne.s32.totalorder %s32, %s35
      %p44 = scmp.eq.s32.totalorder %s27, 1
      %p45 = por %p43, %p44
      %p46 = scmp.ne.s32.totalorder %s35, %s36
      %p47 = scmp.eq.s32.totalorder %s27, 0
      %p48 = por %p46, %p47
      %p49 = scmp.ne.s32.totalorder %s35, %s36
      %p50 = scmp.eq.s32.totalorder %s28, 1
      %p51 = por %p49, %p50
      %p53 = scmp.ne.s32.totalorder %s36, %s52
      %p54 = scmp.eq.s32.totalorder %s28, 0
      %p55 = por %p53, %p54
      %s57 = sadd.s32 %s56, 1
      %p60 = scmp.eq.s32.totalorder %s22, 1
      %p61 = scmp.ne.s32.totalorder %s56, %s58
      %p62 = scmp.eq.s32.totalorder %s22, 0
      %p63 = por %p61, %p62
      %p64 = scmp.ne.s32.totalorder %s56, %s58
      %p65 = scmp.eq.s32.totalorder %s27, 1
      %p66 = por %p64, %p65
      %p67 = scmp.ne.s32.totalorder %s58, %s59
      %p68 = scmp.eq.s32.totalorder %s27, 0
      %p69 = por %p67, %p68
      %p70 = scmp.ne.s32.totalorder %s58, %s59
      %p71 = scmp.eq.s32.totalorder %s28, 1
      %p72 = por %p70, %p71
      %p74 = scmp.ne.s32.totalorder %s59, %s73
      %p75 = scmp.eq.s32.totalorder %s28, 0
      %p76 = por %p74, %p75
      %s78 = sadd.s32 %s77, 1
      %p81 = scmp.eq.s32.totalorder %s22, 1
      %p82 = scmp.ne.s32.totalorder %s77, %s79
      %p83 = scmp.eq.s32.totalorder %s22, 0
      %p84 = por %p82, %p83
      %p85 = scmp.ne.s32.totalorder %s77, %s79
      %p86 = scmp.eq.s32.totalorder %s27, 1
      %p87 = por %p85, %p86
      %p88 = scmp.ne.s32.totalorder %s79, %s80
      %p89 = scmp.eq.s32.totalorder %s27, 0
      %p90 = por %p88, %p89
      %p91 = scmp.ne.s32.totalorder %s79, %s80
      %p92 = scmp.eq.s32.totalorder %s28, 1
      %p93 = por %p91, %p92
      %p95 = scmp.ne.s32.totalorder %s80, %s94
      %p96 = scmp.eq.s32.totalorder %s28, 0
      %p97 = por %p95, %p96
      %s99 = sadd.s32 %s98, 1
      %p102 = scmp.eq.s32.totalorder %s22, 1
      %p103 = scmp.ne.s32.totalorder %s98, %s100
      %p104 = scmp.eq.s32.totalorder %s22, 0
      %p105 = por %p103, %p104
      %p106 = scmp.ne.s32.totalorder %s98, %s100
      %p107 = scmp.eq.s32.totalorder %s27, 1
      %p108 = por %p106, %p107
      %p109 = scmp.ne.s32.totalorder %s100, %s101
      %p110 = scmp.eq.s32.totalorder %s27, 0
      %p111 = por %p109, %p110
      %p112 = scmp.ne.s32.totalorder %s100, %s101
      %p113 = scmp.eq.s32.totalorder %s28, 1
      %p114 = por %p112, %p113
      %p116 = scmp.ne.s32.totalorder %s101, %s115
      %p117 = scmp.eq.s32.totalorder %s28, 0
      %p118 = por %p116, %p117
      %s120 = sadd.s32 %s119, 1
      %p123 = scmp.eq.s32.totalorder %s22, 1
      %p124 = scmp.ne.s32.totalorder %s119, %s121
      %p125 = scmp.eq.s32.totalorder %s22, 0
      %p126 = por %p124, %p125
      %p127 = scmp.ne.s32.totalorder %s119, %s121
      %p128 = scmp.eq.s32.totalorder %s27, 1
      %p129 = por %p127, %p128
      %p130 = scmp.ne.s32.totalorder %s121, %s122
      %p131 = scmp.eq.s32.totalorder %s27, 0
      %p132 = por %p130, %p131
      %p133 = scmp.ne.s32.totalorder %s121, %s122
      %p134 = scmp.eq.s32.totalorder %s28, 1
      %p135 = por %p133, %p134
      %p137 = scmp.ne.s32.totalorder %s122, %s136
      %p138 = scmp.eq.s32.totalorder %s28, 0
      %p139 = por %p137, %p138
      %s141 = sadd.s32 %s140, 1
      %p144 = scmp.eq.s32.totalorder %s22, 1
      %p145 = scmp.ne.s32.totalorder %s140, %s142
      %p146 = scmp.eq.s32.totalorder %s22, 0
      %p147 = por %p145, %p146
      %p148 = scmp.ne.s32.totalorder %s140, %s142
      %p149 = scmp.eq.s32.totalorder %s27, 1
      %p150 = por %p148, %p149
      %p151 = scmp.ne.s32.totalorder %s142, %s143
      %p152 = scmp.eq.s32.totalorder %s27, 0
      %p153 = por %p151, %p152
      %p154 = scmp.ne.s32.totalorder %s142, %s143
      %p155 = scmp.eq.s32.totalorder %s28, 1
      %p156 = por %p154, %p155
      %p158 = scmp.ne.s32.totalorder %s143, %s157
      %p159 = scmp.eq.s32.totalorder %s28, 0
      %p160 = por %p158, %p159
      %s162 = sadd.s32 %s161, 1
      %p165 = scmp.eq.s32.totalorder %s22, 1
      %p166 = scmp.ne.s32.totalorder %s161, %s163
      %p167 = scmp.eq.s32.totalorder %s22, 0
      %p168 = por %p166, %p167
      %p169 = scmp.ne.s32.totalorder %s161, %s163
      %p170 = scmp.eq.s32.totalorder %s27, 1
      %p171 = por %p169, %p170
      %p172 = scmp.ne.s32.totalorder %s163, %s164
      %p173 = scmp.eq.s32.totalorder %s27, 0
      %p174 = por %p172, %p173
      %p175 = scmp.ne.s32.totalorder %s163, %s164
      %p176 = scmp.eq.s32.totalorder %s28, 1
      %p177 = por %p175, %p176
      %p179 = scmp.ne.s32.totalorder %s164, %s178
      %p180 = scmp.eq.s32.totalorder %s28, 0
      %p181 = por %p179, %p180
      %s183 = sadd.s32 %s182, 1
      %p186 = scmp.eq.s32.totalorder %s22, 1
      %p187 = scmp.ne.s32.totalorder %s182, %s184
      %p188 = scmp.eq.s32.totalorder %s22, 0
      %p189 = por %p187, %p188
      %p190 = scmp.ne.s32.totalorder %s182, %s184
      %p191 = scmp.eq.s32.totalorder %s27, 1
      %p192 = por %p190, %p191
      %p193 = scmp.ne.s32.totalorder %s184, %s185
      %p194 = scmp.eq.s32.totalorder %s27, 0
      %p195 = por %p193, %p194
      %p196 = scmp.ne.s32.totalorder %s184, %s185
      %p197 = scmp.eq.s32.totalorder %s28, 1
      %p198 = por %p196, %p197
      %p200 = scmp.ne.s32.totalorder %s185, %s199
      %p201 = scmp.eq.s32.totalorder %s28, 0
      %p202 = por %p200, %p201
      %s204 = sadd.s32 %s203, 1
      %p207 = scmp.eq.s32.totalorder %s22, 1
      %p208 = scmp.ne.s32.totalorder %s203, %s205
      %p209 = scmp.eq.s32.totalorder %s22, 0
      %p210 = por %p208, %p209
      %p211 = scmp.ne.s32.totalorder %s203, %s205
      %p212 = scmp.eq.s32.totalorder %s27, 1
      %p213 = por %p211, %p212
      %p214 = scmp.ne.s32.totalorder %s205, %s206
      %p215 = scmp.eq.s32.totalorder %s27, 0
      %p216 = por %p214, %p215
      %p217 = scmp.ne.s32.totalorder %s205, %s206
      %p218 = scmp.eq.s32.totalorder %s28, 1
      %p219 = por %p217, %p218
      %p221 = scmp.ne.s32.totalorder %s206, %s220
      %p222 = scmp.eq.s32.totalorder %s28, 0
      %p223 = por %p221, %p222
      %s225 = sadd.s32 %s224, 1
      %p228 = scmp.eq.s32.totalorder %s22, 1
      %p229 = scmp.ne.s32.totalorder %s224, %s226
      %p230 = scmp.eq.s32.totalorder %s22, 0
      %p231 = por %p229, %p230
      %p232 = scmp.ne.s32.totalorder %s224, %s226
      %p233 = scmp.eq.s32.totalorder %s27, 1
      %p234 = por %p232, %p233
      %p235 = scmp.ne.s32.totalorder %s226, %s227
      %p236 = scmp.eq.s32.totalorder %s27, 0
      %p237 = por %p235, %p236
      %p238 = scmp.ne.s32.totalorder %s226, %s227
      %p239 = scmp.eq.s32.totalorder %s28, 1
      %p240 = por %p238, %p239
      %p242 = scmp.ne.s32.totalorder %s227, %s241
      %p243 = scmp.eq.s32.totalorder %s28, 0
      %p244 = por %p242, %p243
      %s246 = sadd.s32 %s245, 1
      %p249 = scmp.eq.s32.totalorder %s22, 1
      %p250 = scmp.ne.s32.totalorder %s245, %s247
      %p251 = scmp.eq.s32.totalorder %s22, 0
      %p252 = por %p250, %p251
      %p253 = scmp.ne.s32.totalorder %s245, %s247
      %p254 = scmp.eq.s32.totalorder %s27, 1
      %p255 = por %p253, %p254
      %p256 = scmp.ne.s32.totalorder %s247, %s248
      %p257 = scmp.eq.s32.totalorder %s27, 0
      %p258 = por %p256, %p257
      %p259 = scmp.ne.s32.totalorder %s247, %s248
      %p260 = scmp.eq.s32.totalorder %s28, 1
      %p261 = por %p259, %p260
      %p263 = scmp.ne.s32.totalorder %s248, %s262
      %p264 = scmp.eq.s32.totalorder %s28, 0
      %p265 = por %p263, %p264
      %s267 = sadd.s32 %s266, 1
      %p270 = scmp.eq.s32.totalorder %s22, 1
      %p271 = scmp.ne.s32.totalorder %s266, %s268
      %p272 = scmp.eq.s32.totalorder %s22, 0
      %p273 = por %p271, %p272
      %p274 = scmp.ne.s32.totalorder %s266, %s268
      %p275 = scmp.eq.s32.totalorder %s27, 1
      %p276 = por %p274, %p275
      %p277 = scmp.ne.s32.totalorder %s268, %s269
      %p278 = scmp.eq.s32.totalorder %s27, 0
      %p279 = por %p277, %p278
      %p280 = scmp.ne.s32.totalorder %s268, %s269
      %p281 = scmp.eq.s32.totalorder %s28, 1
      %p282 = por %p280, %p281
      %p284 = scmp.ne.s32.totalorder %s269, %s283
      %p285 = scmp.eq.s32.totalorder %s28, 0
      %p286 = por %p284, %p285
      %s288 = sadd.s32 %s287, 1
      %p291 = scmp.eq.s32.totalorder %s22, 1
      %p292 = scmp.ne.s32.totalorder %s287, %s289
      %p293 = scmp.eq.s32.totalorder %s22, 0
      %p294 = por %p292, %p293
      %p295 = scmp.ne.s32.totalorder %s287, %s289
      %p296 = scmp.eq.s32.totalorder %s27, 1
      %p297 = por %p295, %p296
      %p298 = scmp.ne.s32.totalorder %s289, %s290
      %p299 = scmp.eq.s32.totalorder %s27, 0
      %p300 = por %p298, %p299
      %p301 = scmp.ne.s32.totalorder %s289, %s290
      %p302 = scmp.eq.s32.totalorder %s28, 1
      %p303 = por %p301, %p302
      %p305 = scmp.ne.s32.totalorder %s290, %s304
      %p306 = scmp.eq.s32.totalorder %s28, 0
      %p307 = por %p305, %p306
      %s308 = ssub.s32 %s22, %s29
      %p309 = scmp.eq.s32.totalorder %s308, 0
      %s311 = sadd.s32 %s310, 1
      %s312 = scalar_select %p309, %s310, %s311
      %p315 = pneg %p309
      %p316 = scmp.eq.s32.totalorder %s22, 1
      %p317 = por %p315, %p316
      %p318 = scmp.ne.s32.totalorder %s310, %s313
      %p319 = scmp.eq.s32.totalorder %s22, 0
      %p320 = por %p318, %p319
      %p321 = scmp.ne.s32.totalorder %s310, %s313
      %p322 = scmp.eq.s32.totalorder %s27, 1
      %p323 = por %p321, %p322
      %p324 = scmp.ne.s32.totalorder %s313, %s314
      %p325 = scmp.eq.s32.totalorder %s27, 0
      %p326 = por %p324, %p325
      %p327 = scmp.ne.s32.totalorder %s313, %s314
      %p328 = scmp.eq.s32.totalorder %s28, 1
      %p329 = por %p327, %p328
      %p331 = scmp.ne.s32.totalorder %s314, %s330
      %p332 = scmp.eq.s32.totalorder %s28, 0
      %p333 = por %p331, %p332
      %p334 = scmp.le.s32.totalorder 1, %s22
      %p335 = scmp.lt.s32.totalorder %s22, 3
      %p336 = pnand %p334, %p335
      %p337 = pneg %p336
      // Predicated region
      $region9: #{tpu_custom_call.1} parent=5 // pred_check
        _
      $region10: #{tpu_custom_call.1} parent=5 // pred_check_branch
        %339 = sbr.rel (%p336) target = $region12
      $region11: #{tpu_custom_call.1} parent=5 // pred_region
        %s340 = ssub.s32 %s22, 1
        // Predicated region
        $region13: #{tpu_custom_call.1} parent=11 // pred_check
          %p341 = pneg %p69
        $region14: #{tpu_custom_call.1} parent=11 // pred_check_branch
          %343 = sbr.rel (%p341) target = $region16
        $region15: #{tpu_custom_call.1} parent=11 // pred_region
          _
        $region16: #{tpu_custom_call.1} parent=11 // pred_fallthru
          _
        // Predicated region
        $region17: #{tpu_custom_call.1} parent=11 // pred_check
          %p344 = pneg %p90
        $region18: #{tpu_custom_call.1} parent=11 // pred_check_branch
          %346 = sbr.rel (%p344) target = $region20
        $region19: #{tpu_custom_call.1} parent=11 // pred_region
          _
        $region20: #{tpu_custom_call.1} parent=11 // pred_fallthru
          _
        // Predicated region
        $region21: #{tpu_custom_call.1} parent=11 // pred_check
          %p347 = pneg %p111
        $region22: #{tpu_custom_call.1} parent=11 // pred_check_branch
          %349 = sbr.rel (%p347) target = $region24
        $region23: #{tpu_custom_call.1} parent=11 // pred_region
          _
        $region24: #{tpu_custom_call.1} parent=11 // pred_fallthru
          _
        // Predicated region
        $region25: #{tpu_custom_call.1} parent=11 // pred_check
          %p350 = pneg %p132
        $region26: #{tpu_custom_call.1} parent=11 // pred_check_branch
          %352 = sbr.rel (%p350) target = $region28
        $region27: #{tpu_custom_call.1} parent=11 // pred_region
          _
        $region28: #{tpu_custom_call.1} parent=11 // pred_fallthru
          _
        // Predicated region
        $region29: #{tpu_custom_call.1} parent=11 // pred_check
          %p353 = pneg %p153
        $region30: #{tpu_custom_call.1} parent=11 // pred_check_branch
          %355 = sbr.rel (%p353) target = $region32
        $region31: #{tpu_custom_call.1} parent=11 // pred_region
          _
        $region32: #{tpu_custom_call.1} parent=11 // pred_fallthru
          _
        // Predicated region
        $region33: #{tpu_custom_call.1} parent=11 // pred_check
          %p356 = pneg %p174
        $region34: #{tpu_custom_call.1} parent=11 // pred_check_branch
          %358 = sbr.rel (%p356) target = $region36
        $region35: #{tpu_custom_call.1} parent=11 // pred_region
          _
        $region36: #{tpu_custom_call.1} parent=11 // pred_fallthru
          _
        // Predicated region
        $region37: #{tpu_custom_call.1} parent=11 // pred_check
          %p359 = pneg %p195
        $region38: #{tpu_custom_call.1} parent=11 // pred_check_branch
          %361 = sbr.rel (%p359) target = $region40
        $region39: #{tpu_custom_call.1} parent=11 // pred_region
          _
        $region40: #{tpu_custom_call.1} parent=11 // pred_fallthru
          _
        // Predicated region
        $region41: #{tpu_custom_call.1} parent=11 // pred_check
          %p362 = pneg %p216
        $region42: #{tpu_custom_call.1} parent=11 // pred_check_branch
          %364 = sbr.rel (%p362) target = $region44
        $region43: #{tpu_custom_call.1} parent=11 // pred_region
          _
        $region44: #{tpu_custom_call.1} parent=11 // pred_fallthru
          _
        // Predicated region
        $region45: #{tpu_custom_call.1} parent=11 // pred_check
          %p365 = pneg %p237
        $region46: #{tpu_custom_call.1} parent=11 // pred_check_branch
          %367 = sbr.rel (%p365) target = $region48
        $region47: #{tpu_custom_call.1} parent=11 // pred_region
          _
        $region48: #{tpu_custom_call.1} parent=11 // pred_fallthru
          _
        // Predicated region
        $region49: #{tpu_custom_call.1} parent=11 // pred_check
          %p368 = pneg %p258
        $region50: #{tpu_custom_call.1} parent=11 // pred_check_branch
          %370 = sbr.rel (%p368) target = $region52
        $region51: #{tpu_custom_call.1} parent=11 // pred_region
          _
        $region52: #{tpu_custom_call.1} parent=11 // pred_fallthru
          _
        // Predicated region
        $region53: #{tpu_custom_call.1} parent=11 // pred_check
          %p371 = pneg %p279
        $region54: #{tpu_custom_call.1} parent=11 // pred_check_branch
          %373 = sbr.rel (%p371) target = $region56
        $region55: #{tpu_custom_call.1} parent=11 // pred_region
          _
        $region56: #{tpu_custom_call.1} parent=11 // pred_fallthru
          _
        // Predicated region
        $region57: #{tpu_custom_call.1} parent=11 // pred_check
          %p374 = pneg %p300
        $region58: #{tpu_custom_call.1} parent=11 // pred_check_branch
          %376 = sbr.rel (%p374) target = $region60
        $region59: #{tpu_custom_call.1} parent=11 // pred_region
          _
        $region60: #{tpu_custom_call.1} parent=11 // pred_fallthru
          _
      $region12: #{tpu_custom_call.1} parent=5 // pred_fallthru
        _
      %p377 = scmp.lt.s32.totalorder %s22, 2
      // Predicated region
      $region61: #{tpu_custom_call.1} parent=5 // pred_check
        %p378 = pneg %p377
      $region62: #{tpu_custom_call.1} parent=5 // pred_check_branch
        %380 = sbr.rel (%p378) target = $region64
      $region63: #{tpu_custom_call.1} parent=5 // pred_region
        // Predicated region
        $region65: #{tpu_custom_call.1} parent=63 // pred_check
          %p381 = pneg %p42
        $region66: #{tpu_custom_call.1} parent=63 // pred_check_branch
          %383 = sbr.rel (%p381) target = $region68
        $region67: #{tpu_custom_call.1} parent=63 // pred_region
          %p384 = scmp.lt.s32.totalorder %s22, 1
          %s385 = scalar_select %p384, %s22, 1
          %s386 = smul.addr %s385, 4
          %s387 = smul.addr %s386, 8
          %s388 = scalar_lea.vmem %s0, %s387
        $region68: #{tpu_custom_call.1} parent=63 // pred_fallthru
          _
      $region64: #{tpu_custom_call.1} parent=5 // pred_fallthru
        _
      %p389 = scmp.le.s32.totalorder 1, %s22
      %p390 = scmp.lt.s32.totalorder %s22, 3
      %p391 = pnand %p389, %p390
      %p392 = pneg %p391
      // Predicated region
      $region69: #{tpu_custom_call.1} parent=5 // pred_check
        _
      $region70: #{tpu_custom_call.1} parent=5 // pred_check_branch
        %394 = sbr.rel (%p391) target = $region72
      $region71: #{tpu_custom_call.1} parent=5 // pred_region
        %s395 = ssub.s32 %s22, 1
        %p396 = scmp.lt.s32.totalorder %s27, 1
        %s397 = scalar_select %p396, %s27, 1
        %s398 = smul.addr %s397, 4
        %s399 = smul.addr %s398, 8
        %s400 = scalar_lea.vmem %s0, %s399
        %p401 = pneg %p48
        %p402 = pneg %p45
        %p403 = pneg %p69
        %p404 = pneg %p66
        %p405 = pneg %p90
        %p406 = pneg %p87
        %p407 = pneg %p111
        %p408 = pneg %p108
        %p409 = pneg %p132
        %p410 = pneg %p129
        %p411 = pneg %p153
        %p412 = pneg %p150
        %p413 = pneg %p174
        %p414 = pneg %p171
        %p415 = pneg %p195
        %p416 = pneg %p192
        %p417 = pneg %p216
        %p418 = pneg %p213
        %p419 = pneg %p237
        %p420 = pneg %p234
        %p421 = pneg %p258
        %p422 = pneg %p255
        %p423 = pneg %p279
        %p424 = pneg %p276
        %p425 = pneg %p300
        %p426 = pneg %p297
        %p427 = pneg %p326
        %p428 = pneg %p323
        %s429 = sand.u32 %s313, 1
        %s430 = scalar_lea.sflag [#allocation7], %s429
        %s431 = sand.u32 %s313, 1
        %s432 = scalar_lea.vmem [#allocation6], %s431
        %p433 = scmp.lt.s32.totalorder %s27, 1
        %s434 = scalar_select %p433, %s27, 1
        %s435 = smul.addr %s434, 4
        %s436 = smul.addr %s435, 8
        %s437 = scalar_lea.vmem %s0, %s436
        %v438 = vld [vmem:[%s2] sm:$0x3]
        %v440 = vperm.slane %v438, 0
        %v441 = vperm.slane %v438, 1
        %v444 = vld [vmem:[%s437] sm:$0xff]
        %v445 = vld [vmem:[%s437 + $0x8] sm:$0xff]
        %v446 = vld [vmem:[%s437 + $0x10] sm:$0xff]
        %v447 = vld [vmem:[%s1] sm:$0xff]
        %v448 = vld [vmem:[%s1 + $0x8] sm:$0xff]
        %v449 = vld [vmem:[%s1 + $0x10] sm:$0xff]
        %v450 = vld [vmem:[%s1 + $0x18] sm:$0xff]
        %v451 = vld [vmem:[%s1 + $0x20] sm:$0xff]
        %v452 = vld [vmem:[%s1 + $0x28] sm:$0xff]
        %v453 = vld [vmem:[%s1 + $0x30] sm:$0xf]
        %v454 = vld [vmem:[%s1 + $0x38] sm:$0xf]
        %vm455 = vcmask 228352
        %v457 = vsel %vm455, %v444, 0
        %v460 = vsel %vm455, %v445, 0
        %v463 = vsel %vm455, %v446, 0
        %vm465 = vcmask 1043456
        %v467 = vsel %vm465, %v453, 0
        %v470 = vsel %vm465, %v454, 0
        %472 = vmatpush.msra.mxu0 0.0
        %473 = vmatpush.msra.mxu0 0.0
        %474 = vmatpush.msra.mxu0 0.0
        %475 = vmatpush.msra.mxu0 0.0
        %476 = vmatpush.msra.mxu0 0.0
        %477 = vmatpush.msra.mxu0 0.0
        %478 = vmatpush.msra.mxu0 0.0
        %479 = vmatpush.msra.mxu0 0.0
        %480 = vmatpush.msra.mxu0 0.0
        %481 = vmatpush.msra.mxu0 0.0
        %482 = vmatpush.msra.mxu0 0.0
        %483 = vmatpush.msra.mxu0 0.0
        %v484 = vand.u32 %v467, 4294901760
        %485 = vmatpush.msra.mxu0 %v484
        %v486 = vand.u32 %v451, 4294901760
        %487 = vmatpush.msra.mxu0 %v486
        %v488 = vand.u32 %v449, 4294901760
        %489 = vmatpush.msra.mxu0 %v488
        %v490 = vand.u32 %v447, 4294901760
        %491 = vmatpush.msra.mxu0 %v490
        %v492 = vand.u32 %v457, 4294901760
        %v493 = vsub.f32 %v457, %v492
        %v494 = vand.u32 %v493, 4294901760
        %v495 = vsub.f32 %v493, %v494
        %v496 = vand.u32 %v495, 4294901760
        %497 = vmatmul.f32.gmra.mxu0 %v496
        %v498 = vpop.f32.mrf.mxu0
        %v499 = vadd.f32 0.0, %v498
        %v500 = vand.u32 %v460, 4294901760
        %v501 = vsub.f32 %v460, %v500
        %v502 = vand.u32 %v501, 4294901760
        %v503 = vsub.f32 %v501, %v502
        %v504 = vand.u32 %v503, 4294901760
        %505 = vmatmul.f32.gmra.mxu0 %v504
        %v506 = vpop.f32.mrf.mxu0
        %v507 = vadd.f32 0.0, %v506
        %v508 = vand.u32 %v463, 4294901760
        %v509 = vsub.f32 %v463, %v508
        %v510 = vand.u32 %v509, 4294901760
        %v511 = vsub.f32 %v509, %v510
        %v512 = vand.u32 %v511, 4294901760
        %513 = vmatmul.f32.gmra.mxu0 %v512
        %v514 = vpop.f32.mrf.mxu0
        %v515 = vadd.f32 0.0, %v514
        %516 = vdwg.mxu0
        %517 = vmatpush.msra.mxu0 0.0
        %518 = vmatpush.msra.mxu0 0.0
        %519 = vmatpush.msra.mxu0 0.0
        %520 = vmatpush.msra.mxu0 0.0
        %521 = vmatpush.msra.mxu0 0.0
        %522 = vmatpush.msra.mxu0 0.0
        %523 = vmatpush.msra.mxu0 0.0
        %524 = vmatpush.msra.mxu0 0.0
        %525 = vmatpush.msra.mxu0 0.0
        %526 = vmatpush.msra.mxu0 0.0
        %527 = vmatpush.msra.mxu0 0.0
        %528 = vmatpush.msra.mxu0 0.0
        %v529 = vand.u32 %v467, 4294901760
        %v530 = vsub.f32 %v467, %v529
        %v531 = vand.u32 %v530, 4294901760
        %v532 = vsub.f32 %v530, %v531
        %v533 = vand.u32 %v532, 4294901760
        %534 = vmatpush.msra.mxu0 %v533
        %v535 = vand.u32 %v451, 4294901760
        %v536 = vsub.f32 %v451, %v535
        %v537 = vand.u32 %v536, 4294901760
        %v538 = vsub.f32 %v536, %v537
        %v539 = vand.u32 %v538, 4294901760
        %540 = vmatpush.msra.mxu0 %v539
        %v541 = vand.u32 %v449, 4294901760
        %v542 = vsub.f32 %v449, %v541
        %v543 = vand.u32 %v542, 4294901760
        %v544 = vsub.f32 %v542, %v543
        %v545 = vand.u32 %v544, 4294901760
        %546 = vmatpush.msra.mxu0 %v545
        %v547 = vand.u32 %v447, 4294901760
        %v548 = vsub.f32 %v447, %v547
        %v549 = vand.u32 %v548, 4294901760
        %v550 = vsub.f32 %v548, %v549
        %v551 = vand.u32 %v550, 4294901760
        %552 = vmatpush.msra.mxu0 %v551
        %v553 = vand.u32 %v457, 4294901760
        %554 = vmatmul.f32.gmra.mxu0 %v553
        %v555 = vpop.f32.mrf.mxu0
        %v556 = vadd.f32 %v499, %v555
        %v557 = vand.u32 %v460, 4294901760
        %558 = vmatmul.f32.gmra.mxu0 %v557
        %v559 = vpop.f32.mrf.mxu0
        %v560 = vadd.f32 %v507, %v559
        %v561 = vand.u32 %v463, 4294901760
        %562 = vmatmul.f32.gmra.mxu0 %v561
        %v563 = vpop.f32.mrf.mxu0
        %v564 = vadd.f32 %v515, %v563
        %565 = vdwg.mxu0
        %566 = vmatpush.msra.mxu0 0.0
        %567 = vmatpush.msra.mxu0 0.0
        %568 = vmatpush.msra.mxu0 0.0
        %569 = vmatpush.msra.mxu0 0.0
        %570 = vmatpush.msra.mxu0 0.0
        %571 = vmatpush.msra.mxu0 0.0
        %572 = vmatpush.msra.mxu0 0.0
        %573 = vmatpush.msra.mxu0 0.0
        %574 = vmatpush.msra.mxu0 0.0
        %575 = vmatpush.msra.mxu0 0.0
        %576 = vmatpush.msra.mxu0 0.0
        %577 = vmatpush.msra.mxu0 0.0
        %v578 = vand.u32 %v467, 4294901760
        %v579 = vsub.f32 %v467, %v578
        %580 = vmatpush.msra.mxu0 %v579
        %v581 = vand.u32 %v451, 4294901760
        %v582 = vsub.f32 %v451, %v581
        %583 = vmatpush.msra.mxu0 %v582
        %v584 = vand.u32 %v449, 4294901760
        %v585 = vsub.f32 %v449, %v584
        %586 = vmatpush.msra.mxu0 %v585
        %v587 = vand.u32 %v447, 4294901760
        %v588 = vsub.f32 %v447, %v587
        %589 = vmatpush.msra.mxu0 %v588
        %v590 = vand.u32 %v457, 4294901760
        %v591 = vsub.f32 %v457, %v590
        %592 = vmatmul.f32.gmra.mxu0 %v591
        %v593 = vpop.f32.mrf.mxu0
        %v594 = vadd.f32 %v556, %v593
        %v595 = vand.u32 %v460, 4294901760
        %v596 = vsub.f32 %v460, %v595
        %597 = vmatmul.f32.gmra.mxu0 %v596
        %v598 = vpop.f32.mrf.mxu0
        %v599 = vadd.f32 %v560, %v598
        %v600 = vand.u32 %v463, 4294901760
        %v601 = vsub.f32 %v463, %v600
        %602 = vmatmul.f32.gmra.mxu0 %v601
        %v603 = vpop.f32.mrf.mxu0
        %v604 = vadd.f32 %v564, %v603
        %605 = vdwg.mxu0
        %606 = vmatpush.msra.mxu0 0.0
        %607 = vmatpush.msra.mxu0 0.0
        %608 = vmatpush.msra.mxu0 0.0
        %609 = vmatpush.msra.mxu0 0.0
        %610 = vmatpush.msra.mxu0 0.0
        %611 = vmatpush.msra.mxu0 0.0
        %612 = vmatpush.msra.mxu0 0.0
        %613 = vmatpush.msra.mxu0 0.0
        %614 = vmatpush.msra.mxu0 0.0
        %615 = vmatpush.msra.mxu0 0.0
        %616 = vmatpush.msra.mxu0 0.0
        %617 = vmatpush.msra.mxu0 0.0
        %v618 = vand.u32 %v467, 4294901760
        %619 = vmatpush.msra.mxu0 %v618
        %v620 = vand.u32 %v451, 4294901760
        %621 = vmatpush.msra.mxu0 %v620
        %v622 = vand.u32 %v449, 4294901760
        %623 = vmatpush.msra.mxu0 %v622
        %v624 = vand.u32 %v447, 4294901760
        %625 = vmatpush.msra.mxu0 %v624
        %v626 = vand.u32 %v457, 4294901760
        %v627 = vsub.f32 %v457, %v626
        %v628 = vand.u32 %v627, 4294901760
        %629 = vmatmul.f32.gmra.mxu0 %v628
        %v630 = vpop.f32.mrf.mxu0
        %v631 = vadd.f32 %v594, %v630
        %v632 = vand.u32 %v460, 4294901760
        %v633 = vsub.f32 %v460, %v632
        %v634 = vand.u32 %v633, 4294901760
        %635 = vmatmul.f32.gmra.mxu0 %v634
        %v636 = vpop.f32.mrf.mxu0
        %v637 = vadd.f32 %v599, %v636
        %v638 = vand.u32 %v463, 4294901760
        %v639 = vsub.f32 %v463, %v638
        %v640 = vand.u32 %v639, 4294901760
        %641 = vmatmul.f32.gmra.mxu0 %v640
        %v642 = vpop.f32.mrf.mxu0
        %v643 = vadd.f32 %v604, %v642
        %644 = vdwg.mxu0
        %645 = vmatpush.msra.mxu0 0.0
        %646 = vmatpush.msra.mxu0 0.0
        %647 = vmatpush.msra.mxu0 0.0
        %648 = vmatpush.msra.mxu0 0.0
        %649 = vmatpush.msra.mxu0 0.0
        %650 = vmatpush.msra.mxu0 0.0
        %651 = vmatpush.msra.mxu0 0.0
        %652 = vmatpush.msra.mxu0 0.0
        %653 = vmatpush.msra.mxu0 0.0
        %654 = vmatpush.msra.mxu0 0.0
        %655 = vmatpush.msra.mxu0 0.0
        %656 = vmatpush.msra.mxu0 0.0
        %v657 = vand.u32 %v467, 4294901760
        %v658 = vsub.f32 %v467, %v657
        %v659 = vand.u32 %v658, 4294901760
        %660 = vmatpush.msra.mxu0 %v659
        %v661 = vand.u32 %v451, 4294901760
        %v662 = vsub.f32 %v451, %v661
        %v663 = vand.u32 %v662, 4294901760
        %664 = vmatpush.msra.mxu0 %v663
        %v665 = vand.u32 %v449, 4294901760
        %v666 = vsub.f32 %v449, %v665
        %v667 = vand.u32 %v666, 4294901760
        %668 = vmatpush.msra.mxu0 %v667
        %v669 = vand.u32 %v447, 4294901760
        %v670 = vsub.f32 %v447, %v669
        %v671 = vand.u32 %v670, 4294901760
        %672 = vmatpush.msra.mxu0 %v671
        %v673 = vand.u32 %v457, 4294901760
        %674 = vmatmul.f32.gmra.mxu0 %v673
        %v675 = vpop.f32.mrf.mxu0
        %v676 = vadd.f32 %v631, %v675
        %v677 = vand.u32 %v460, 4294901760
        %678 = vmatmul.f32.gmra.mxu0 %v677
        %v679 = vpop.f32.mrf.mxu0
        %v680 = vadd.f32 %v637, %v679
        %v681 = vand.u32 %v463, 4294901760
        %682 = vmatmul.f32.gmra.mxu0 %v681
        %v683 = vpop.f32.mrf.mxu0
        %v684 = vadd.f32 %v643, %v683
        %685 = vdwg.mxu0
        %686 = vmatpush.msra.mxu0 0.0
        %687 = vmatpush.msra.mxu0 0.0
        %688 = vmatpush.msra.mxu0 0.0
        %689 = vmatpush.msra.mxu0 0.0
        %690 = vmatpush.msra.mxu0 0.0
        %691 = vmatpush.msra.mxu0 0.0
        %692 = vmatpush.msra.mxu0 0.0
        %693 = vmatpush.msra.mxu0 0.0
        %694 = vmatpush.msra.mxu0 0.0
        %695 = vmatpush.msra.mxu0 0.0
        %696 = vmatpush.msra.mxu0 0.0
        %697 = vmatpush.msra.mxu0 0.0
        %v698 = vand.u32 %v467, 4294901760
        %699 = vmatpush.msra.mxu0 %v698
        %v700 = vand.u32 %v451, 4294901760
        %701 = vmatpush.msra.mxu0 %v700
        %v702 = vand.u32 %v449, 4294901760
        %703 = vmatpush.msra.mxu0 %v702
        %v704 = vand.u32 %v447, 4294901760
        %705 = vmatpush.msra.mxu0 %v704
        %v706 = vand.u32 %v457, 4294901760
        %707 = vmatmul.f32.gmra.mxu0 %v706
        %v708 = vpop.f32.mrf.mxu0
        %v709 = vadd.f32 %v676, %v708
        %v710 = vand.u32 %v460, 4294901760
        %711 = vmatmul.f32.gmra.mxu0 %v710
        %v712 = vpop.f32.mrf.mxu0
        %v713 = vadd.f32 %v680, %v712
        %v714 = vand.u32 %v463, 4294901760
        %715 = vmatmul.f32.gmra.mxu0 %v714
        %v716 = vpop.f32.mrf.mxu0
        %v717 = vadd.f32 %v684, %v716
        %718 = vdwg.mxu0
        %719 = vmatpush.msra.mxu0 0.0
        %720 = vmatpush.msra.mxu0 0.0
        %721 = vmatpush.msra.mxu0 0.0
        %722 = vmatpush.msra.mxu0 0.0
        %723 = vmatpush.msra.mxu0 0.0
        %724 = vmatpush.msra.mxu0 0.0
        %725 = vmatpush.msra.mxu0 0.0
        %726 = vmatpush.msra.mxu0 0.0
        %727 = vmatpush.msra.mxu0 0.0
        %728 = vmatpush.msra.mxu0 0.0
        %729 = vmatpush.msra.mxu0 0.0
        %730 = vmatpush.msra.mxu0 0.0
        %v731 = vand.u32 %v470, 4294901760
        %732 = vmatpush.msra.mxu0 %v731
        %v733 = vand.u32 %v452, 4294901760
        %734 = vmatpush.msra.mxu0 %v733
        %v735 = vand.u32 %v450, 4294901760
        %736 = vmatpush.msra.mxu0 %v735
        %v737 = vand.u32 %v448, 4294901760
        %738 = vmatpush.msra.mxu0 %v737
        %v739 = vand.u32 %v457, 4294901760
        %v740 = vsub.f32 %v457, %v739
        %v741 = vand.u32 %v740, 4294901760
        %v742 = vsub.f32 %v740, %v741
        %v743 = vand.u32 %v742, 4294901760
        %744 = vmatmul.f32.gmra.mxu0 %v743
        %v745 = vpop.f32.mrf.mxu0
        %v746 = vadd.f32 0.0, %v745
        %v747 = vand.u32 %v460, 4294901760
        %v748 = vsub.f32 %v460, %v747
        %v749 = vand.u32 %v748, 4294901760
        %v750 = vsub.f32 %v748, %v749
        %v751 = vand.u32 %v750, 4294901760
        %752 = vmatmul.f32.gmra.mxu0 %v751
        %v753 = vpop.f32.mrf.mxu0
        %v754 = vadd.f32 0.0, %v753
        %v755 = vand.u32 %v463, 4294901760
        %v756 = vsub.f32 %v463, %v755
        %v757 = vand.u32 %v756, 4294901760
        %v758 = vsub.f32 %v756, %v757
        %v759 = vand.u32 %v758, 4294901760
        %760 = vmatmul.f32.gmra.mxu0 %v759
        %v761 = vpop.f32.mrf.mxu0
        %v762 = vadd.f32 0.0, %v761
        %763 = vdwg.mxu0
        %764 = vmatpush.msra.mxu0 0.0
        %765 = vmatpush.msra.mxu0 0.0
        %766 = vmatpush.msra.mxu0 0.0
        %767 = vmatpush.msra.mxu0 0.0
        %768 = vmatpush.msra.mxu0 0.0
        %769 = vmatpush.msra.mxu0 0.0
        %770 = vmatpush.msra.mxu0 0.0
        %771 = vmatpush.msra.mxu0 0.0
        %772 = vmatpush.msra.mxu0 0.0
        %773 = vmatpush.msra.mxu0 0.0
        %774 = vmatpush.msra.mxu0 0.0
        %775 = vmatpush.msra.mxu0 0.0
        %v776 = vand.u32 %v470, 4294901760
        %v777 = vsub.f32 %v470, %v776
        %v778 = vand.u32 %v777, 4294901760
        %v779 = vsub.f32 %v777, %v778
        %v780 = vand.u32 %v779, 4294901760
        %781 = vmatpush.msra.mxu0 %v780
        %v782 = vand.u32 %v452, 4294901760
        %v783 = vsub.f32 %v452, %v782
        %v784 = vand.u32 %v783, 4294901760
        %v785 = vsub.f32 %v783, %v784
        %v786 = vand.u32 %v785, 4294901760
        %787 = vmatpush.msra.mxu0 %v786
        %v788 = vand.u32 %v450, 4294901760
        %v789 = vsub.f32 %v450, %v788
        %v790 = vand.u32 %v789, 4294901760
        %v791 = vsub.f32 %v789, %v790
        %v792 = vand.u32 %v791, 4294901760
        %793 = vmatpush.msra.mxu0 %v792
        %v794 = vand.u32 %v448, 4294901760
        %v795 = vsub.f32 %v448, %v794
        %v796 = vand.u32 %v795, 4294901760
        %v797 = vsub.f32 %v795, %v796
        %v798 = vand.u32 %v797, 4294901760
        %799 = vmatpush.msra.mxu0 %v798
        %v800 = vand.u32 %v457, 4294901760
        %801 = vmatmul.f32.gmra.mxu0 %v800
        %v802 = vpop.f32.mrf.mxu0
        %v803 = vadd.f32 %v746, %v802
        %v804 = vand.u32 %v460, 4294901760
        %805 = vmatmul.f32.gmra.mxu0 %v804
        %v806 = vpop.f32.mrf.mxu0
        %v807 = vadd.f32 %v754, %v806
        %v808 = vand.u32 %v463, 4294901760
        %809 = vmatmul.f32.gmra.mxu0 %v808
        %v810 = vpop.f32.mrf.mxu0
        %v811 = vadd.f32 %v762, %v810
        %812 = vdwg.mxu0
        %813 = vmatpush.msra.mxu0 0.0
        %814 = vmatpush.msra.mxu0 0.0
        %815 = vmatpush.msra.mxu0 0.0
        %816 = vmatpush.msra.mxu0 0.0
        %817 = vmatpush.msra.mxu0 0.0
        %818 = vmatpush.msra.mxu0 0.0
        %819 = vmatpush.msra.mxu0 0.0
        %820 = vmatpush.msra.mxu0 0.0
        %821 = vmatpush.msra.mxu0 0.0
        %822 = vmatpush.msra.mxu0 0.0
        %823 = vmatpush.msra.mxu0 0.0
        %824 = vmatpush.msra.mxu0 0.0
        %v825 = vand.u32 %v470, 4294901760
        %v826 = vsub.f32 %v470, %v825
        %827 = vmatpush.msra.mxu0 %v826
        %v828 = vand.u32 %v452, 4294901760
        %v829 = vsub.f32 %v452, %v828
        %830 = vmatpush.msra.mxu0 %v829
        %v831 = vand.u32 %v450, 4294901760
        %v832 = vsub.f32 %v450, %v831
        %833 = vmatpush.msra.mxu0 %v832
        %v834 = vand.u32 %v448, 4294901760
        %v835 = vsub.f32 %v448, %v834
        %836 = vmatpush.msra.mxu0 %v835
        %v837 = vand.u32 %v457, 4294901760
        %v838 = vsub.f32 %v457, %v837
        %839 = vmatmul.f32.gmra.mxu0 %v838
        %v840 = vpop.f32.mrf.mxu0
        %v841 = vadd.f32 %v803, %v840
        %v842 = vand.u32 %v460, 4294901760
        %v843 = vsub.f32 %v460, %v842
        %844 = vmatmul.f32.gmra.mxu0 %v843
        %v845 = vpop.f32.mrf.mxu0
        %v846 = vadd.f32 %v807, %v845
        %v847 = vand.u32 %v463, 4294901760
        %v848 = vsub.f32 %v463, %v847
        %849 = vmatmul.f32.gmra.mxu0 %v848
        %v850 = vpop.f32.mrf.mxu0
        %v851 = vadd.f32 %v811, %v850
        %852 = vdwg.mxu0
        %853 = vmatpush.msra.mxu0 0.0
        %854 = vmatpush.msra.mxu0 0.0
        %855 = vmatpush.msra.mxu0 0.0
        %856 = vmatpush.msra.mxu0 0.0
        %857 = vmatpush.msra.mxu0 0.0
        %858 = vmatpush.msra.mxu0 0.0
        %859 = vmatpush.msra.mxu0 0.0
        %860 = vmatpush.msra.mxu0 0.0
        %861 = vmatpush.msra.mxu0 0.0
        %862 = vmatpush.msra.mxu0 0.0
        %863 = vmatpush.msra.mxu0 0.0
        %864 = vmatpush.msra.mxu0 0.0
        %v865 = vand.u32 %v470, 4294901760
        %866 = vmatpush.msra.mxu0 %v865
        %v867 = vand.u32 %v452, 4294901760
        %868 = vmatpush.msra.mxu0 %v867
        %v869 = vand.u32 %v450, 4294901760
        %870 = vmatpush.msra.mxu0 %v869
        %v871 = vand.u32 %v448, 4294901760
        %872 = vmatpush.msra.mxu0 %v871
        %v873 = vand.u32 %v457, 4294901760
        %v874 = vsub.f32 %v457, %v873
        %v875 = vand.u32 %v874, 4294901760
        %876 = vmatmul.f32.gmra.mxu0 %v875
        %v877 = vpop.f32.mrf.mxu0
        %v878 = vadd.f32 %v841, %v877
        %v879 = vand.u32 %v460, 4294901760
        %v880 = vsub.f32 %v460, %v879
        %v881 = vand.u32 %v880, 4294901760
        %882 = vmatmul.f32.gmra.mxu0 %v881
        %v883 = vpop.f32.mrf.mxu0
        %v884 = vadd.f32 %v846, %v883
        %v885 = vand.u32 %v463, 4294901760
        %v886 = vsub.f32 %v463, %v885
        %v887 = vand.u32 %v886, 4294901760
        %888 = vmatmul.f32.gmra.mxu0 %v887
        %v889 = vpop.f32.mrf.mxu0
        %v890 = vadd.f32 %v851, %v889
        %891 = vdwg.mxu0
        %892 = vmatpush.msra.mxu0 0.0
        %893 = vmatpush.msra.mxu0 0.0
        %894 = vmatpush.msra.mxu0 0.0
        %895 = vmatpush.msra.mxu0 0.0
        %896 = vmatpush.msra.mxu0 0.0
        %897 = vmatpush.msra.mxu0 0.0
        %898 = vmatpush.msra.mxu0 0.0
        %899 = vmatpush.msra.mxu0 0.0
        %900 = vmatpush.msra.mxu0 0.0
        %901 = vmatpush.msra.mxu0 0.0
        %902 = vmatpush.msra.mxu0 0.0
        %903 = vmatpush.msra.mxu0 0.0
        %v904 = vand.u32 %v470, 4294901760
        %v905 = vsub.f32 %v470, %v904
        %v906 = vand.u32 %v905, 4294901760
        %907 = vmatpush.msra.mxu0 %v906
        %v908 = vand.u32 %v452, 4294901760
        %v909 = vsub.f32 %v452, %v908
        %v910 = vand.u32 %v909, 4294901760
        %911 = vmatpush.msra.mxu0 %v910
        %v912 = vand.u32 %v450, 4294901760
        %v913 = vsub.f32 %v450, %v912
        %v914 = vand.u32 %v913, 4294901760
        %915 = vmatpush.msra.mxu0 %v914
        %v916 = vand.u32 %v448, 4294901760
        %v917 = vsub.f32 %v448, %v916
        %v918 = vand.u32 %v917, 4294901760
        %919 = vmatpush.msra.mxu0 %v918
        %v920 = vand.u32 %v457, 4294901760
        %921 = vmatmul.f32.gmra.mxu0 %v920
        %v922 = vpop.f32.mrf.mxu0
        %v923 = vadd.f32 %v878, %v922
        %v924 = vand.u32 %v460, 4294901760
        %925 = vmatmul.f32.gmra.mxu0 %v924
        %v926 = vpop.f32.mrf.mxu0
        %v927 = vadd.f32 %v884, %v926
        %v928 = vand.u32 %v463, 4294901760
        %929 = vmatmul.f32.gmra.mxu0 %v928
        %v930 = vpop.f32.mrf.mxu0
        %v931 = vadd.f32 %v890, %v930
        %932 = vdwg.mxu0
        %933 = vmatpush.msra.mxu0 0.0
        %934 = vmatpush.msra.mxu0 0.0
        %935 = vmatpush.msra.mxu0 0.0
        %936 = vmatpush.msra.mxu0 0.0
        %937 = vmatpush.msra.mxu0 0.0
        %938 = vmatpush.msra.mxu0 0.0
        %939 = vmatpush.msra.mxu0 0.0
        %940 = vmatpush.msra.mxu0 0.0
        %941 = vmatpush.msra.mxu0 0.0
        %942 = vmatpush.msra.mxu0 0.0
        %943 = vmatpush.msra.mxu0 0.0
        %944 = vmatpush.msra.mxu0 0.0
        %v945 = vand.u32 %v470, 4294901760
        %946 = vmatpush.msra.mxu0 %v945
        %v947 = vand.u32 %v452, 4294901760
        %948 = vmatpush.msra.mxu0 %v947
        %v949 = vand.u32 %v450, 4294901760
        %950 = vmatpush.msra.mxu0 %v949
        %v951 = vand.u32 %v448, 4294901760
        %952 = vmatpush.msra.mxu0 %v951
        %v953 = vand.u32 %v457, 4294901760
        %954 = vmatmul.f32.gmra.mxu0 %v953
        %v955 = vpop.f32.mrf.mxu0
        %v956 = vadd.f32 %v923, %v955
        %v957 = vand.u32 %v460, 4294901760
        %958 = vmatmul.f32.gmra.mxu0 %v957
        %v959 = vpop.f32.mrf.mxu0
        %v960 = vadd.f32 %v927, %v959
        %v961 = vand.u32 %v463, 4294901760
        %962 = vmatmul.f32.gmra.mxu0 %v961
        %v963 = vpop.f32.mrf.mxu0
        %v964 = vadd.f32 %v931, %v963
        %965 = vdwg.mxu0
        %v966 = vadd.f32 %v440, %v709
        %v967 = vadd.f32 %v441, %v956
        %v968 = vadd.f32 %v440, %v713
        %v969 = vadd.f32 %v441, %v960
        %v970 = vadd.f32 %v440, %v717
        %v971 = vadd.f32 %v441, %v964
        %v972 = vld [vmem:[%s437 + $0x1] sm:$0xff]
        %v973 = vld [vmem:[%s437 + $0x9] sm:$0xff]
        %v974 = vld [vmem:[%s437 + $0x11] sm:$0xff]
        %s975 = scalar_lea.vmem %s1, 64
        %v976 = vld [vmem:[%s975] sm:$0xff]
        %v977 = vld [vmem:[%s975 + $0x8] sm:$0xff]
        %v978 = vld [vmem:[%s975 + $0x10] sm:$0xff]
        %v979 = vld [vmem:[%s975 + $0x18] sm:$0xff]
        %v980 = vld [vmem:[%s975 + $0x20] sm:$0xff]
        %v981 = vld [vmem:[%s975 + $0x28] sm:$0xff]
        %v982 = vld [vmem:[%s975 + $0x30] sm:$0xf]
        %v983 = vld [vmem:[%s975 + $0x38] sm:$0xf]
        %v985 = vsel %vm455, %v972, 0
        %v988 = vsel %vm455, %v973, 0
        %v991 = vsel %vm455, %v974, 0
        %v994 = vsel %vm465, %v982, 0
        %v997 = vsel %vm465, %v983, 0
        %999 = vmatpush.msra.mxu0 0.0
        %1000 = vmatpush.msra.mxu0 0.0
        %1001 = vmatpush.msra.mxu0 0.0
        %1002 = vmatpush.msra.mxu0 0.0
        %1003 = vmatpush.msra.mxu0 0.0
        %1004 = vmatpush.msra.mxu0 0.0
        %1005 = vmatpush.msra.mxu0 0.0
        %1006 = vmatpush.msra.mxu0 0.0
        %1007 = vmatpush.msra.mxu0 0.0
        %1008 = vmatpush.msra.mxu0 0.0
        %1009 = vmatpush.msra.mxu0 0.0
        %1010 = vmatpush.msra.mxu0 0.0
        %v1011 = vand.u32 %v994, 4294901760
        %1012 = vmatpush.msra.mxu0 %v1011
        %v1013 = vand.u32 %v980, 4294901760
        %1014 = vmatpush.msra.mxu0 %v1013
        %v1015 = vand.u32 %v978, 4294901760
        %1016 = vmatpush.msra.mxu0 %v1015
        %v1017 = vand.u32 %v976, 4294901760
        %1018 = vmatpush.msra.mxu0 %v1017
        %v1019 = vand.u32 %v985, 4294901760
        %v1020 = vsub.f32 %v985, %v1019
        %v1021 = vand.u32 %v1020, 4294901760
        %v1022 = vsub.f32 %v1020, %v1021
        %v1023 = vand.u32 %v1022, 4294901760
        %1024 = vmatmul.f32.gmra.mxu0 %v1023
        %v1025 = vpop.f32.mrf.mxu0
        %v1026 = vadd.f32 0.0, %v1025
        %v1027 = vand.u32 %v988, 4294901760
        %v1028 = vsub.f32 %v988, %v1027
        %v1029 = vand.u32 %v1028, 4294901760
        %v1030 = vsub.f32 %v1028, %v1029
        %v1031 = vand.u32 %v1030, 4294901760
        %1032 = vmatmul.f32.gmra.mxu0 %v1031
        %v1033 = vpop.f32.mrf.mxu0
        %v1034 = vadd.f32 0.0, %v1033
        %v1035 = vand.u32 %v991, 4294901760
        %v1036 = vsub.f32 %v991, %v1035
        %v1037 = vand.u32 %v1036, 4294901760
        %v1038 = vsub.f32 %v1036, %v1037
        %v1039 = vand.u32 %v1038, 4294901760
        %1040 = vmatmul.f32.gmra.mxu0 %v1039
        %v1041 = vpop.f32.mrf.mxu0
        %v1042 = vadd.f32 0.0, %v1041
        %1043 = vdwg.mxu0
        %1044 = vmatpush.msra.mxu0 0.0
        %1045 = vmatpush.msra.mxu0 0.0
        %1046 = vmatpush.msra.mxu0 0.0
        %1047 = vmatpush.msra.mxu0 0.0
        %1048 = vmatpush.msra.mxu0 0.0
        %1049 = vmatpush.msra.mxu0 0.0
        %1050 = vmatpush.msra.mxu0 0.0
        %1051 = vmatpush.msra.mxu0 0.0
        %1052 = vmatpush.msra.mxu0 0.0
        %1053 = vmatpush.msra.mxu0 0.0
        %1054 = vmatpush.msra.mxu0 0.0
        %1055 = vmatpush.msra.mxu0 0.0
        %v1056 = vand.u32 %v994, 4294901760
        %v1057 = vsub.f32 %v994, %v1056
        %v1058 = vand.u32 %v1057, 4294901760
        %v1059 = vsub.f32 %v1057, %v1058
        %v1060 = vand.u32 %v1059, 4294901760
        %1061 = vmatpush.msra.mxu0 %v1060
        %v1062 = vand.u32 %v980, 4294901760
        %v1063 = vsub.f32 %v980, %v1062
        %v1064 = vand.u32 %v1063, 4294901760
        %v1065 = vsub.f32 %v1063, %v1064
        %v1066 = vand.u32 %v1065, 4294901760
        %1067 = vmatpush.msra.mxu0 %v1066
        %v1068 = vand.u32 %v978, 4294901760
        %v1069 = vsub.f32 %v978, %v1068
        %v1070 = vand.u32 %v1069, 4294901760
        %v1071 = vsub.f32 %v1069, %v1070
        %v1072 = vand.u32 %v1071, 4294901760
        %1073 = vmatpush.msra.mxu0 %v1072
        %v1074 = vand.u32 %v976, 4294901760
        %v1075 = vsub.f32 %v976, %v1074
        %v1076 = vand.u32 %v1075, 4294901760
        %v1077 = vsub.f32 %v1075, %v1076
        %v1078 = vand.u32 %v1077, 4294901760
        %1079 = vmatpush.msra.mxu0 %v1078
        %v1080 = vand.u32 %v985, 4294901760
        %1081 = vmatmul.f32.gmra.mxu0 %v1080
        %v1082 = vpop.f32.mrf.mxu0
        %v1083 = vadd.f32 %v1026, %v1082
        %v1084 = vand.u32 %v988, 4294901760
        %1085 = vmatmul.f32.gmra.mxu0 %v1084
        %v1086 = vpop.f32.mrf.mxu0
        %v1087 = vadd.f32 %v1034, %v1086
        %v1088 = vand.u32 %v991, 4294901760
        %1089 = vmatmul.f32.gmra.mxu0 %v1088
        %v1090 = vpop.f32.mrf.mxu0
        %v1091 = vadd.f32 %v1042, %v1090
        %1092 = vdwg.mxu0
        %1093 = vmatpush.msra.mxu0 0.0
        %1094 = vmatpush.msra.mxu0 0.0
        %1095 = vmatpush.msra.mxu0 0.0
        %1096 = vmatpush.msra.mxu0 0.0
        %1097 = vmatpush.msra.mxu0 0.0
        %1098 = vmatpush.msra.mxu0 0.0
        %1099 = vmatpush.msra.mxu0 0.0
        %1100 = vmatpush.msra.mxu0 0.0
        %1101 = vmatpush.msra.mxu0 0.0
        %1102 = vmatpush.msra.mxu0 0.0
        %1103 = vmatpush.msra.mxu0 0.0
        %1104 = vmatpush.msra.mxu0 0.0
        %v1105 = vand.u32 %v994, 4294901760
        %v1106 = vsub.f32 %v994, %v1105
        %1107 = vmatpush.msra.mxu0 %v1106
        %v1108 = vand.u32 %v980, 4294901760
        %v1109 = vsub.f32 %v980, %v1108
        %1110 = vmatpush.msra.mxu0 %v1109
        %v1111 = vand.u32 %v978, 4294901760
        %v1112 = vsub.f32 %v978, %v1111
        %1113 = vmatpush.msra.mxu0 %v1112
        %v1114 = vand.u32 %v976, 4294901760
        %v1115 = vsub.f32 %v976, %v1114
        %1116 = vmatpush.msra.mxu0 %v1115
        %v1117 = vand.u32 %v985, 4294901760
        %v1118 = vsub.f32 %v985, %v1117
        %1119 = vmatmul.f32.gmra.mxu0 %v1118
        %v1120 = vpop.f32.mrf.mxu0
        %v1121 = vadd.f32 %v1083, %v1120
        %v1122 = vand.u32 %v988, 4294901760
        %v1123 = vsub.f32 %v988, %v1122
        %1124 = vmatmul.f32.gmra.mxu0 %v1123
        %v1125 = vpop.f32.mrf.mxu0
        %v1126 = vadd.f32 %v1087, %v1125
        %v1127 = vand.u32 %v991, 4294901760
        %v1128 = vsub.f32 %v991, %v1127
        %1129 = vmatmul.f32.gmra.mxu0 %v1128
        %v1130 = vpop.f32.mrf.mxu0
        %v1131 = vadd.f32 %v1091, %v1130
        %1132 = vdwg.mxu0
        %1133 = vmatpush.msra.mxu0 0.0
        %1134 = vmatpush.msra.mxu0 0.0
        %1135 = vmatpush.msra.mxu0 0.0
        %1136 = vmatpush.msra.mxu0 0.0
        %1137 = vmatpush.msra.mxu0 0.0
        %1138 = vmatpush.msra.mxu0 0.0
        %1139 = vmatpush.msra.mxu0 0.0
        %1140 = vmatpush.msra.mxu0 0.0
        %1141 = vmatpush.msra.mxu0 0.0
        %1142 = vmatpush.msra.mxu0 0.0
        %1143 = vmatpush.msra.mxu0 0.0
        %1144 = vmatpush.msra.mxu0 0.0
        %v1145 = vand.u32 %v994, 4294901760
        %1146 = vmatpush.msra.mxu0 %v1145
        %v1147 = vand.u32 %v980, 4294901760
        %1148 = vmatpush.msra.mxu0 %v1147
        %v1149 = vand.u32 %v978, 4294901760
        %1150 = vmatpush.msra.mxu0 %v1149
        %v1151 = vand.u32 %v976, 4294901760
        %1152 = vmatpush.msra.mxu0 %v1151
        %v1153 = vand.u32 %v985, 4294901760
        %v1154 = vsub.f32 %v985, %v1153
        %v1155 = vand.u32 %v1154, 4294901760
        %1156 = vmatmul.f32.gmra.mxu0 %v1155
        %v1157 = vpop.f32.mrf.mxu0
        %v1158 = vadd.f32 %v1121, %v1157
        %v1159 = vand.u32 %v988, 4294901760
        %v1160 = vsub.f32 %v988, %v1159
        %v1161 = vand.u32 %v1160, 4294901760
        %1162 = vmatmul.f32.gmra.mxu0 %v1161
        %v1163 = vpop.f32.mrf.mxu0
        %v1164 = vadd.f32 %v1126, %v1163
        %v1165 = vand.u32 %v991, 4294901760
        %v1166 = vsub.f32 %v991, %v1165
        %v1167 = vand.u32 %v1166, 4294901760
        %1168 = vmatmul.f32.gmra.mxu0 %v1167
        %v1169 = vpop.f32.mrf.mxu0
        %v1170 = vadd.f32 %v1131, %v1169
        %1171 = vdwg.mxu0
        %1172 = vmatpush.msra.mxu0 0.0
        %1173 = vmatpush.msra.mxu0 0.0
        %1174 = vmatpush.msra.mxu0 0.0
        %1175 = vmatpush.msra.mxu0 0.0
        %1176 = vmatpush.msra.mxu0 0.0
        %1177 = vmatpush.msra.mxu0 0.0
        %1178 = vmatpush.msra.mxu0 0.0
        %1179 = vmatpush.msra.mxu0 0.0
        %1180 = vmatpush.msra.mxu0 0.0
        %1181 = vmatpush.msra.mxu0 0.0
        %1182 = vmatpush.msra.mxu0 0.0
        %1183 = vmatpush.msra.mxu0 0.0
        %v1184 = vand.u32 %v994, 4294901760
        %v1185 = vsub.f32 %v994, %v1184
        %v1186 = vand.u32 %v1185, 4294901760
        %1187 = vmatpush.msra.mxu0 %v1186
        %v1188 = vand.u32 %v980, 4294901760
        %v1189 = vsub.f32 %v980, %v1188
        %v1190 = vand.u32 %v1189, 4294901760
        %1191 = vmatpush.msra.mxu0 %v1190
        %v1192 = vand.u32 %v978, 4294901760
        %v1193 = vsub.f32 %v978, %v1192
        %v1194 = vand.u32 %v1193, 4294901760
        %1195 = vmatpush.msra.mxu0 %v1194
        %v1196 = vand.u32 %v976, 4294901760
        %v1197 = vsub.f32 %v976, %v1196
        %v1198 = vand.u32 %v1197, 4294901760
        %1199 = vmatpush.msra.mxu0 %v1198
        %v1200 = vand.u32 %v985, 4294901760
        %1201 = vmatmul.f32.gmra.mxu0 %v1200
        %v1202 = vpop.f32.mrf.mxu0
        %v1203 = vadd.f32 %v1158, %v1202
        %v1204 = vand.u32 %v988, 4294901760
        %1205 = vmatmul.f32.gmra.mxu0 %v1204
        %v1206 = vpop.f32.mrf.mxu0
        %v1207 = vadd.f32 %v1164, %v1206
        %v1208 = vand.u32 %v991, 4294901760
        %1209 = vmatmul.f32.gmra.mxu0 %v1208
        %v1210 = vpop.f32.mrf.mxu0
        %v1211 = vadd.f32 %v1170, %v1210
        %1212 = vdwg.mxu0
        %1213 = vmatpush.msra.mxu0 0.0
        %1214 = vmatpush.msra.mxu0 0.0
        %1215 = vmatpush.msra.mxu0 0.0
        %1216 = vmatpush.msra.mxu0 0.0
        %1217 = vmatpush.msra.mxu0 0.0
        %1218 = vmatpush.msra.mxu0 0.0
        %1219 = vmatpush.msra.mxu0 0.0
        %1220 = vmatpush.msra.mxu0 0.0
        %1221 = vmatpush.msra.mxu0 0.0
        %1222 = vmatpush.msra.mxu0 0.0
        %1223 = vmatpush.msra.mxu0 0.0
        %1224 = vmatpush.msra.mxu0 0.0
        %v1225 = vand.u32 %v994, 4294901760
        %1226 = vmatpush.msra.mxu0 %v1225
        %v1227 = vand.u32 %v980, 4294901760
        %1228 = vmatpush.msra.mxu0 %v1227
        %v1229 = vand.u32 %v978, 4294901760
        %1230 = vmatpush.msra.mxu0 %v1229
        %v1231 = vand.u32 %v976, 4294901760
        %1232 = vmatpush.msra.mxu0 %v1231
        %v1233 = vand.u32 %v985, 4294901760
        %1234 = vmatmul.f32.gmra.mxu0 %v1233
        %v1235 = vpop.f32.mrf.mxu0
        %v1236 = vadd.f32 %v1203, %v1235
        %v1237 = vand.u32 %v988, 4294901760
        %1238 = vmatmul.f32.gmra.mxu0 %v1237
        %v1239 = vpop.f32.mrf.mxu0
        %v1240 = vadd.f32 %v1207, %v1239
        %v1241 = vand.u32 %v991, 4294901760
        %1242 = vmatmul.f32.gmra.mxu0 %v1241
        %v1243 = vpop.f32.mrf.mxu0
        %v1244 = vadd.f32 %v1211, %v1243
        %1245 = vdwg.mxu0
        %1246 = vmatpush.msra.mxu0 0.0
        %1247 = vmatpush.msra.mxu0 0.0
        %1248 = vmatpush.msra.mxu0 0.0
        %1249 = vmatpush.msra.mxu0 0.0
        %1250 = vmatpush.msra.mxu0 0.0
        %1251 = vmatpush.msra.mxu0 0.0
        %1252 = vmatpush.msra.mxu0 0.0
        %1253 = vmatpush.msra.mxu0 0.0
        %1254 = vmatpush.msra.mxu0 0.0
        %1255 = vmatpush.msra.mxu0 0.0
        %1256 = vmatpush.msra.mxu0 0.0
        %1257 = vmatpush.msra.mxu0 0.0
        %v1258 = vand.u32 %v997, 4294901760
        %1259 = vmatpush.msra.mxu0 %v1258
        %v1260 = vand.u32 %v981, 4294901760
        %1261 = vmatpush.msra.mxu0 %v1260
        %v1262 = vand.u32 %v979, 4294901760
        %1263 = vmatpush.msra.mxu0 %v1262
        %v1264 = vand.u32 %v977, 4294901760
        %1265 = vmatpush.msra.mxu0 %v1264
        %v1266 = vand.u32 %v985, 4294901760
        %v1267 = vsub.f32 %v985, %v1266
        %v1268 = vand.u32 %v1267, 4294901760
        %v1269 = vsub.f32 %v1267, %v1268
        %v1270 = vand.u32 %v1269, 4294901760
        %1271 = vmatmul.f32.gmra.mxu0 %v1270
        %v1272 = vpop.f32.mrf.mxu0
        %v1273 = vadd.f32 0.0, %v1272
        %v1274 = vand.u32 %v988, 4294901760
        %v1275 = vsub.f32 %v988, %v1274
        %v1276 = vand.u32 %v1275, 4294901760
        %v1277 = vsub.f32 %v1275, %v1276
        %v1278 = vand.u32 %v1277, 4294901760
        %1279 = vmatmul.f32.gmra.mxu0 %v1278
        %v1280 = vpop.f32.mrf.mxu0
        %v1281 = vadd.f32 0.0, %v1280
        %v1282 = vand.u32 %v991, 4294901760
        %v1283 = vsub.f32 %v991, %v1282
        %v1284 = vand.u32 %v1283, 4294901760
        %v1285 = vsub.f32 %v1283, %v1284
        %v1286 = vand.u32 %v1285, 4294901760
        %1287 = vmatmul.f32.gmra.mxu0 %v1286
        %v1288 = vpop.f32.mrf.mxu0
        %v1289 = vadd.f32 0.0, %v1288
        %1290 = vdwg.mxu0
        %1291 = vmatpush.msra.mxu0 0.0
        %1292 = vmatpush.msra.mxu0 0.0
        %1293 = vmatpush.msra.mxu0 0.0
        %1294 = vmatpush.msra.mxu0 0.0
        %1295 = vmatpush.msra.mxu0 0.0
        %1296 = vmatpush.msra.mxu0 0.0
        %1297 = vmatpush.msra.mxu0 0.0
        %1298 = vmatpush.msra.mxu0 0.0
        %1299 = vmatpush.msra.mxu0 0.0
        %1300 = vmatpush.msra.mxu0 0.0
        %1301 = vmatpush.msra.mxu0 0.0
        %1302 = vmatpush.msra.mxu0 0.0
        %v1303 = vand.u32 %v997, 4294901760
        %v1304 = vsub.f32 %v997, %v1303
        %v1305 = vand.u32 %v1304, 4294901760
        %v1306 = vsub.f32 %v1304, %v1305
        %v1307 = vand.u32 %v1306, 4294901760
        %1308 = vmatpush.msra.mxu0 %v1307
        %v1309 = vand.u32 %v981, 4294901760
        %v1310 = vsub.f32 %v981, %v1309
        %v1311 = vand.u32 %v1310, 4294901760
        %v1312 = vsub.f32 %v1310, %v1311
        %v1313 = vand.u32 %v1312, 4294901760
        %1314 = vmatpush.msra.mxu0 %v1313
        %v1315 = vand.u32 %v979, 4294901760
        %v1316 = vsub.f32 %v979, %v1315
        %v1317 = vand.u32 %v1316, 4294901760
        %v1318 = vsub.f32 %v1316, %v1317
        %v1319 = vand.u32 %v1318, 4294901760
        %1320 = vmatpush.msra.mxu0 %v1319
        %v1321 = vand.u32 %v977, 4294901760
        %v1322 = vsub.f32 %v977, %v1321
        %v1323 = vand.u32 %v1322, 4294901760
        %v1324 = vsub.f32 %v1322, %v1323
        %v1325 = vand.u32 %v1324, 4294901760
        %1326 = vmatpush.msra.mxu0 %v1325
        %v1327 = vand.u32 %v985, 4294901760
        %1328 = vmatmul.f32.gmra.mxu0 %v1327
        %v1329 = vpop.f32.mrf.mxu0
        %v1330 = vadd.f32 %v1273, %v1329
        %v1331 = vand.u32 %v988, 4294901760
        %1332 = vmatmul.f32.gmra.mxu0 %v1331
        %v1333 = vpop.f32.mrf.mxu0
        %v1334 = vadd.f32 %v1281, %v1333
        %v1335 = vand.u32 %v991, 4294901760
        %1336 = vmatmul.f32.gmra.mxu0 %v1335
        %v1337 = vpop.f32.mrf.mxu0
        %v1338 = vadd.f32 %v1289, %v1337
        %1339 = vdwg.mxu0
        %1340 = vmatpush.msra.mxu0 0.0
        %1341 = vmatpush.msra.mxu0 0.0
        %1342 = vmatpush.msra.mxu0 0.0
        %1343 = vmatpush.msra.mxu0 0.0
        %1344 = vmatpush.msra.mxu0 0.0
        %1345 = vmatpush.msra.mxu0 0.0
        %1346 = vmatpush.msra.mxu0 0.0
        %1347 = vmatpush.msra.mxu0 0.0
        %1348 = vmatpush.msra.mxu0 0.0
        %1349 = vmatpush.msra.mxu0 0.0
        %1350 = vmatpush.msra.mxu0 0.0
        %1351 = vmatpush.msra.mxu0 0.0
        %v1352 = vand.u32 %v997, 4294901760
        %v1353 = vsub.f32 %v997, %v1352
        %1354 = vmatpush.msra.mxu0 %v1353
        %v1355 = vand.u32 %v981, 4294901760
        %v1356 = vsub.f32 %v981, %v1355
        %1357 = vmatpush.msra.mxu0 %v1356
        %v1358 = vand.u32 %v979, 4294901760
        %v1359 = vsub.f32 %v979, %v1358
        %1360 = vmatpush.msra.mxu0 %v1359
        %v1361 = vand.u32 %v977, 4294901760
        %v1362 = vsub.f32 %v977, %v1361
        %1363 = vmatpush.msra.mxu0 %v1362
        %v1364 = vand.u32 %v985, 4294901760
        %v1365 = vsub.f32 %v985, %v1364
        %1366 = vmatmul.f32.gmra.mxu0 %v1365
        %v1367 = vpop.f32.mrf.mxu0
        %v1368 = vadd.f32 %v1330, %v1367
        %v1369 = vand.u32 %v988, 4294901760
        %v1370 = vsub.f32 %v988, %v1369
        %1371 = vmatmul.f32.gmra.mxu0 %v1370
        %v1372 = vpop.f32.mrf.mxu0
        %v1373 = vadd.f32 %v1334, %v1372
        %v1374 = vand.u32 %v991, 4294901760
        %v1375 = vsub.f32 %v991, %v1374
        %1376 = vmatmul.f32.gmra.mxu0 %v1375
        %v1377 = vpop.f32.mrf.mxu0
        %v1378 = vadd.f32 %v1338, %v1377
        %1379 = vdwg.mxu0
        %1380 = vmatpush.msra.mxu0 0.0
        %1381 = vmatpush.msra.mxu0 0.0
        %1382 = vmatpush.msra.mxu0 0.0
        %1383 = vmatpush.msra.mxu0 0.0
        %1384 = vmatpush.msra.mxu0 0.0
        %1385 = vmatpush.msra.mxu0 0.0
        %1386 = vmatpush.msra.mxu0 0.0
        %1387 = vmatpush.msra.mxu0 0.0
        %1388 = vmatpush.msra.mxu0 0.0
        %1389 = vmatpush.msra.mxu0 0.0
        %1390 = vmatpush.msra.mxu0 0.0
        %1391 = vmatpush.msra.mxu0 0.0
        %v1392 = vand.u32 %v997, 4294901760
        %1393 = vmatpush.msra.mxu0 %v1392
        %v1394 = vand.u32 %v981, 4294901760
        %1395 = vmatpush.msra.mxu0 %v1394
        %v1396 = vand.u32 %v979, 4294901760
        %1397 = vmatpush.msra.mxu0 %v1396
        %v1398 = vand.u32 %v977, 4294901760
        %1399 = vmatpush.msra.mxu0 %v1398
        %v1400 = vand.u32 %v985, 4294901760
        %v1401 = vsub.f32 %v985, %v1400
        %v1402 = vand.u32 %v1401, 4294901760
        %1403 = vmatmul.f32.gmra.mxu0 %v1402
        %v1404 = vpop.f32.mrf.mxu0
        %v1405 = vadd.f32 %v1368, %v1404
        %v1406 = vand.u32 %v988, 4294901760
        %v1407 = vsub.f32 %v988, %v1406
        %v1408 = vand.u32 %v1407, 4294901760
        %1409 = vmatmul.f32.gmra.mxu0 %v1408
        %v1410 = vpop.f32.mrf.mxu0
        %v1411 = vadd.f32 %v1373, %v1410
        %v1412 = vand.u32 %v991, 4294901760
        %v1413 = vsub.f32 %v991, %v1412
        %v1414 = vand.u32 %v1413, 4294901760
        %1415 = vmatmul.f32.gmra.mxu0 %v1414
        %v1416 = vpop.f32.mrf.mxu0
        %v1417 = vadd.f32 %v1378, %v1416
        %1418 = vdwg.mxu0
        %1419 = vmatpush.msra.mxu0 0.0
        %1420 = vmatpush.msra.mxu0 0.0
        %1421 = vmatpush.msra.mxu0 0.0
        %1422 = vmatpush.msra.mxu0 0.0
        %1423 = vmatpush.msra.mxu0 0.0
        %1424 = vmatpush.msra.mxu0 0.0
        %1425 = vmatpush.msra.mxu0 0.0
        %1426 = vmatpush.msra.mxu0 0.0
        %1427 = vmatpush.msra.mxu0 0.0
        %1428 = vmatpush.msra.mxu0 0.0
        %1429 = vmatpush.msra.mxu0 0.0
        %1430 = vmatpush.msra.mxu0 0.0
        %v1431 = vand.u32 %v997, 4294901760
        %v1432 = vsub.f32 %v997, %v1431
        %v1433 = vand.u32 %v1432, 4294901760
        %1434 = vmatpush.msra.mxu0 %v1433
        %v1435 = vand.u32 %v981, 4294901760
        %v1436 = vsub.f32 %v981, %v1435
        %v1437 = vand.u32 %v1436, 4294901760
        %1438 = vmatpush.msra.mxu0 %v1437
        %v1439 = vand.u32 %v979, 4294901760
        %v1440 = vsub.f32 %v979, %v1439
        %v1441 = vand.u32 %v1440, 4294901760
        %1442 = vmatpush.msra.mxu0 %v1441
        %v1443 = vand.u32 %v977, 4294901760
        %v1444 = vsub.f32 %v977, %v1443
        %v1445 = vand.u32 %v1444, 4294901760
        %1446 = vmatpush.msra.mxu0 %v1445
        %v1447 = vand.u32 %v985, 4294901760
        %1448 = vmatmul.f32.gmra.mxu0 %v1447
        %v1449 = vpop.f32.mrf.mxu0
        %v1450 = vadd.f32 %v1405, %v1449
        %v1451 = vand.u32 %v988, 4294901760
        %1452 = vmatmul.f32.gmra.mxu0 %v1451
        %v1453 = vpop.f32.mrf.mxu0
        %v1454 = vadd.f32 %v1411, %v1453
        %v1455 = vand.u32 %v991, 4294901760
        %1456 = vmatmul.f32.gmra.mxu0 %v1455
        %v1457 = vpop.f32.mrf.mxu0
        %v1458 = vadd.f32 %v1417, %v1457
        %1459 = vdwg.mxu0
        %1460 = vmatpush.msra.mxu0 0.0
        %1461 = vmatpush.msra.mxu0 0.0
        %1462 = vmatpush.msra.mxu0 0.0
        %1463 = vmatpush.msra.mxu0 0.0
        %1464 = vmatpush.msra.mxu0 0.0
        %1465 = vmatpush.msra.mxu0 0.0
        %1466 = vmatpush.msra.mxu0 0.0
        %1467 = vmatpush.msra.mxu0 0.0
        %1468 = vmatpush.msra.mxu0 0.0
        %1469 = vmatpush.msra.mxu0 0.0
        %1470 = vmatpush.msra.mxu0 0.0
        %1471 = vmatpush.msra.mxu0 0.0
        %v1472 = vand.u32 %v997, 4294901760
        %1473 = vmatpush.msra.mxu0 %v1472
        %v1474 = vand.u32 %v981, 4294901760
        %1475 = vmatpush.msra.mxu0 %v1474
        %v1476 = vand.u32 %v979, 4294901760
        %1477 = vmatpush.msra.mxu0 %v1476
        %v1478 = vand.u32 %v977, 4294901760
        %1479 = vmatpush.msra.mxu0 %v1478
        %v1480 = vand.u32 %v985, 4294901760
        %1481 = vmatmul.f32.gmra.mxu0 %v1480
        %v1482 = vpop.f32.mrf.mxu0
        %v1483 = vadd.f32 %v1450, %v1482
        %v1484 = vand.u32 %v988, 4294901760
        %1485 = vmatmul.f32.gmra.mxu0 %v1484
        %v1486 = vpop.f32.mrf.mxu0
        %v1487 = vadd.f32 %v1454, %v1486
        %v1488 = vand.u32 %v991, 4294901760
        %1489 = vmatmul.f32.gmra.mxu0 %v1488
        %v1490 = vpop.f32.mrf.mxu0
        %v1491 = vadd.f32 %v1458, %v1490
        %1492 = vdwg.mxu0
        %v1493 = vadd.f32 %v966, %v1236
        %v1494 = vadd.f32 %v967, %v1483
        %v1495 = vadd.f32 %v968, %v1240
        %v1496 = vadd.f32 %v969, %v1487
        %v1497 = vadd.f32 %v970, %v1244
        %v1498 = vadd.f32 %v971, %v1491
        %v1499 = vld [vmem:[%s437 + $0x2] sm:$0xff]
        %v1500 = vld [vmem:[%s437 + $0xa] sm:$0xff]
        %v1501 = vld [vmem:[%s437 + $0x12] sm:$0xff]
        %s1502 = scalar_lea.vmem %s1, 128
        %v1503 = vld [vmem:[%s1502] sm:$0xff]
        %v1504 = vld [vmem:[%s1502 + $0x8] sm:$0xff]
        %v1505 = vld [vmem:[%s1502 + $0x10] sm:$0xff]
        %v1506 = vld [vmem:[%s1502 + $0x18] sm:$0xff]
        %v1507 = vld [vmem:[%s1502 + $0x20] sm:$0xff]
        %v1508 = vld [vmem:[%s1502 + $0x28] sm:$0xff]
        %v1509 = vld [vmem:[%s1502 + $0x30] sm:$0xf]
        %v1510 = vld [vmem:[%s1502 + $0x38] sm:$0xf]
        %v1512 = vsel %vm455, %v1499, 0
        %v1515 = vsel %vm455, %v1500, 0
        %v1518 = vsel %vm455, %v1501, 0
        %v1521 = vsel %vm465, %v1509, 0
        %v1524 = vsel %vm465, %v1510, 0
        %1526 = vmatpush.msra.mxu0 0.0
        %1527 = vmatpush.msra.mxu0 0.0
        %1528 = vmatpush.msra.mxu0 0.0
        %1529 = vmatpush.msra.mxu0 0.0
        %1530 = vmatpush.msra.mxu0 0.0
        %1531 = vmatpush.msra.mxu0 0.0
        %1532 = vmatpush.msra.mxu0 0.0
        %1533 = vmatpush.msra.mxu0 0.0
        %1534 = vmatpush.msra.mxu0 0.0
        %1535 = vmatpush.msra.mxu0 0.0
        %1536 = vmatpush.msra.mxu0 0.0
        %1537 = vmatpush.msra.mxu0 0.0
        %v1538 = vand.u32 %v1521, 4294901760
        %1539 = vmatpush.msra.mxu0 %v1538
        %v1540 = vand.u32 %v1507, 4294901760
        %1541 = vmatpush.msra.mxu0 %v1540
        %v1542 = vand.u32 %v1505, 4294901760
        %1543 = vmatpush.msra.mxu0 %v1542
        %v1544 = vand.u32 %v1503, 4294901760
        %1545 = vmatpush.msra.mxu0 %v1544
        %v1546 = vand.u32 %v1512, 4294901760
        %v1547 = vsub.f32 %v1512, %v1546
        %v1548 = vand.u32 %v1547, 4294901760
        %v1549 = vsub.f32 %v1547, %v1548
        %v1550 = vand.u32 %v1549, 4294901760
        %1551 = vmatmul.f32.gmra.mxu0 %v1550
        %v1552 = vpop.f32.mrf.mxu0
        %v1553 = vadd.f32 0.0, %v1552
        %v1554 = vand.u32 %v1515, 4294901760
        %v1555 = vsub.f32 %v1515, %v1554
        %v1556 = vand.u32 %v1555, 4294901760
        %v1557 = vsub.f32 %v1555, %v1556
        %v1558 = vand.u32 %v1557, 4294901760
        %1559 = vmatmul.f32.gmra.mxu0 %v1558
        %v1560 = vpop.f32.mrf.mxu0
        %v1561 = vadd.f32 0.0, %v1560
        %v1562 = vand.u32 %v1518, 4294901760
        %v1563 = vsub.f32 %v1518, %v1562
        %v1564 = vand.u32 %v1563, 4294901760
        %v1565 = vsub.f32 %v1563, %v1564
        %v1566 = vand.u32 %v1565, 4294901760
        %1567 = vmatmul.f32.gmra.mxu0 %v1566
        %v1568 = vpop.f32.mrf.mxu0
        %v1569 = vadd.f32 0.0, %v1568
        %1570 = vdwg.mxu0
        %1571 = vmatpush.msra.mxu0 0.0
        %1572 = vmatpush.msra.mxu0 0.0
        %1573 = vmatpush.msra.mxu0 0.0
        %1574 = vmatpush.msra.mxu0 0.0
        %1575 = vmatpush.msra.mxu0 0.0
        %1576 = vmatpush.msra.mxu0 0.0
        %1577 = vmatpush.msra.mxu0 0.0
        %1578 = vmatpush.msra.mxu0 0.0
        %1579 = vmatpush.msra.mxu0 0.0
        %1580 = vmatpush.msra.mxu0 0.0
        %1581 = vmatpush.msra.mxu0 0.0
        %1582 = vmatpush.msra.mxu0 0.0
        %v1583 = vand.u32 %v1521, 4294901760
        %v1584 = vsub.f32 %v1521, %v1583
        %v1585 = vand.u32 %v1584, 4294901760
        %v1586 = vsub.f32 %v1584, %v1585
        %v1587 = vand.u32 %v1586, 4294901760
        %1588 = vmatpush.msra.mxu0 %v1587
        %v1589 = vand.u32 %v1507, 4294901760
        %v1590 = vsub.f32 %v1507, %v1589
        %v1591 = vand.u32 %v1590, 4294901760
        %v1592 = vsub.f32 %v1590, %v1591
        %v1593 = vand.u32 %v1592, 4294901760
        %1594 = vmatpush.msra.mxu0 %v1593
        %v1595 = vand.u32 %v1505, 4294901760
        %v1596 = vsub.f32 %v1505, %v1595
        %v1597 = vand.u32 %v1596, 4294901760
        %v1598 = vsub.f32 %v1596, %v1597
        %v1599 = vand.u32 %v1598, 4294901760
        %1600 = vmatpush.msra.mxu0 %v1599
        %v1601 = vand.u32 %v1503, 4294901760
        %v1602 = vsub.f32 %v1503, %v1601
        %v1603 = vand.u32 %v1602, 4294901760
        %v1604 = vsub.f32 %v1602, %v1603
        %v1605 = vand.u32 %v1604, 4294901760
        %1606 = vmatpush.msra.mxu0 %v1605
        %v1607 = vand.u32 %v1512, 4294901760
        %1608 = vmatmul.f32.gmra.mxu0 %v1607
        %v1609 = vpop.f32.mrf.mxu0
        %v1610 = vadd.f32 %v1553, %v1609
        %v1611 = vand.u32 %v1515, 4294901760
        %1612 = vmatmul.f32.gmra.mxu0 %v1611
        %v1613 = vpop.f32.mrf.mxu0
        %v1614 = vadd.f32 %v1561, %v1613
        %v1615 = vand.u32 %v1518, 4294901760
        %1616 = vmatmul.f32.gmra.mxu0 %v1615
        %v1617 = vpop.f32.mrf.mxu0
        %v1618 = vadd.f32 %v1569, %v1617
        %1619 = vdwg.mxu0
        %1620 = vmatpush.msra.mxu0 0.0
        %1621 = vmatpush.msra.mxu0 0.0
        %1622 = vmatpush.msra.mxu0 0.0
        %1623 = vmatpush.msra.mxu0 0.0
        %1624 = vmatpush.msra.mxu0 0.0
        %1625 = vmatpush.msra.mxu0 0.0
        %1626 = vmatpush.msra.mxu0 0.0
        %1627 = vmatpush.msra.mxu0 0.0
        %1628 = vmatpush.msra.mxu0 0.0
        %1629 = vmatpush.msra.mxu0 0.0
        %1630 = vmatpush.msra.mxu0 0.0
        %1631 = vmatpush.msra.mxu0 0.0
        %v1632 = vand.u32 %v1521, 4294901760
        %v1633 = vsub.f32 %v1521, %v1632
        %1634 = vmatpush.msra.mxu0 %v1633
        %v1635 = vand.u32 %v1507, 4294901760
        %v1636 = vsub.f32 %v1507, %v1635
        %1637 = vmatpush.msra.mxu0 %v1636
        %v1638 = vand.u32 %v1505, 4294901760
        %v1639 = vsub.f32 %v1505, %v1638
        %1640 = vmatpush.msra.mxu0 %v1639
        %v1641 = vand.u32 %v1503, 4294901760
        %v1642 = vsub.f32 %v1503, %v1641
        %1643 = vmatpush.msra.mxu0 %v1642
        %v1644 = vand.u32 %v1512, 4294901760
        %v1645 = vsub.f32 %v1512, %v1644
        %1646 = vmatmul.f32.gmra.mxu0 %v1645
        %v1647 = vpop.f32.mrf.mxu0
        %v1648 = vadd.f32 %v1610, %v1647
        %v1649 = vand.u32 %v1515, 4294901760
        %v1650 = vsub.f32 %v1515, %v1649
        %1651 = vmatmul.f32.gmra.mxu0 %v1650
        %v1652 = vpop.f32.mrf.mxu0
        %v1653 = vadd.f32 %v1614, %v1652
        %v1654 = vand.u32 %v1518, 4294901760
        %v1655 = vsub.f32 %v1518, %v1654
        %1656 = vmatmul.f32.gmra.mxu0 %v1655
        %v1657 = vpop.f32.mrf.mxu0
        %v1658 = vadd.f32 %v1618, %v1657
        %1659 = vdwg.mxu0
        %1660 = vmatpush.msra.mxu0 0.0
        %1661 = vmatpush.msra.mxu0 0.0
        %1662 = vmatpush.msra.mxu0 0.0
        %1663 = vmatpush.msra.mxu0 0.0
        %1664 = vmatpush.msra.mxu0 0.0
        %1665 = vmatpush.msra.mxu0 0.0
        %1666 = vmatpush.msra.mxu0 0.0
        %1667 = vmatpush.msra.mxu0 0.0
        %1668 = vmatpush.msra.mxu0 0.0
        %1669 = vmatpush.msra.mxu0 0.0
        %1670 = vmatpush.msra.mxu0 0.0
        %1671 = vmatpush.msra.mxu0 0.0
        %v1672 = vand.u32 %v1521, 4294901760
        %1673 = vmatpush.msra.mxu0 %v1672
        %v1674 = vand.u32 %v1507, 4294901760
        %1675 = vmatpush.msra.mxu0 %v1674
        %v1676 = vand.u32 %v1505, 4294901760
        %1677 = vmatpush.msra.mxu0 %v1676
        %v1678 = vand.u32 %v1503, 4294901760
        %1679 = vmatpush.msra.mxu0 %v1678
        %v1680 = vand.u32 %v1512, 4294901760
        %v1681 = vsub.f32 %v1512, %v1680
        %v1682 = vand.u32 %v1681, 4294901760
        %1683 = vmatmul.f32.gmra.mxu0 %v1682
        %v1684 = vpop.f32.mrf.mxu0
        %v1685 = vadd.f32 %v1648, %v1684
        %v1686 = vand.u32 %v1515, 4294901760
        %v1687 = vsub.f32 %v1515, %v1686
        %v1688 = vand.u32 %v1687, 4294901760
        %1689 = vmatmul.f32.gmra.mxu0 %v1688
        %v1690 = vpop.f32.mrf.mxu0
        %v1691 = vadd.f32 %v1653, %v1690
        %v1692 = vand.u32 %v1518, 4294901760
        %v1693 = vsub.f32 %v1518, %v1692
        %v1694 = vand.u32 %v1693, 4294901760
        %1695 = vmatmul.f32.gmra.mxu0 %v1694
        %v1696 = vpop.f32.mrf.mxu0
        %v1697 = vadd.f32 %v1658, %v1696
        %1698 = vdwg.mxu0
        %1699 = vmatpush.msra.mxu0 0.0
        %1700 = vmatpush.msra.mxu0 0.0
        %1701 = vmatpush.msra.mxu0 0.0
        %1702 = vmatpush.msra.mxu0 0.0
        %1703 = vmatpush.msra.mxu0 0.0
        %1704 = vmatpush.msra.mxu0 0.0
        %1705 = vmatpush.msra.mxu0 0.0
        %1706 = vmatpush.msra.mxu0 0.0
        %1707 = vmatpush.msra.mxu0 0.0
        %1708 = vmatpush.msra.mxu0 0.0
        %1709 = vmatpush.msra.mxu0 0.0
        %1710 = vmatpush.msra.mxu0 0.0
        %v1711 = vand.u32 %v1521, 4294901760
        %v1712 = vsub.f32 %v1521, %v1711
        %v1713 = vand.u32 %v1712, 4294901760
        %1714 = vmatpush.msra.mxu0 %v1713
        %v1715 = vand.u32 %v1507, 4294901760
        %v1716 = vsub.f32 %v1507, %v1715
        %v1717 = vand.u32 %v1716, 4294901760
        %1718 = vmatpush.msra.mxu0 %v1717
        %v1719 = vand.u32 %v1505, 4294901760
        %v1720 = vsub.f32 %v1505, %v1719
        %v1721 = vand.u32 %v1720, 4294901760
        %1722 = vmatpush.msra.mxu0 %v1721
        %v1723 = vand.u32 %v1503, 4294901760
        %v1724 = vsub.f32 %v1503, %v1723
        %v1725 = vand.u32 %v1724, 4294901760
        %1726 = vmatpush.msra.mxu0 %v1725
        %v1727 = vand.u32 %v1512, 4294901760
        %1728 = vmatmul.f32.gmra.mxu0 %v1727
        %v1729 = vpop.f32.mrf.mxu0
        %v1730 = vadd.f32 %v1685, %v1729
        %v1731 = vand.u32 %v1515, 4294901760
        %1732 = vmatmul.f32.gmra.mxu0 %v1731
        %v1733 = vpop.f32.mrf.mxu0
        %v1734 = vadd.f32 %v1691, %v1733
        %v1735 = vand.u32 %v1518, 4294901760
        %1736 = vmatmul.f32.gmra.mxu0 %v1735
        %v1737 = vpop.f32.mrf.mxu0
        %v1738 = vadd.f32 %v1697, %v1737
        %1739 = vdwg.mxu0
        %1740 = vmatpush.msra.mxu0 0.0
        %1741 = vmatpush.msra.mxu0 0.0
        %1742 = vmatpush.msra.mxu0 0.0
        %1743 = vmatpush.msra.mxu0 0.0
        %1744 = vmatpush.msra.mxu0 0.0
        %1745 = vmatpush.msra.mxu0 0.0
        %1746 = vmatpush.msra.mxu0 0.0
        %1747 = vmatpush.msra.mxu0 0.0
        %1748 = vmatpush.msra.mxu0 0.0
        %1749 = vmatpush.msra.mxu0 0.0
        %1750 = vmatpush.msra.mxu0 0.0
        %1751 = vmatpush.msra.mxu0 0.0
        %v1752 = vand.u32 %v1521, 4294901760
        %1753 = vmatpush.msra.mxu0 %v1752
        %v1754 = vand.u32 %v1507, 4294901760
        %1755 = vmatpush.msra.mxu0 %v1754
        %v1756 = vand.u32 %v1505, 4294901760
        %1757 = vmatpush.msra.mxu0 %v1756
        %v1758 = vand.u32 %v1503, 4294901760
        %1759 = vmatpush.msra.mxu0 %v1758
        %v1760 = vand.u32 %v1512, 4294901760
        %1761 = vmatmul.f32.gmra.mxu0 %v1760
        %v1762 = vpop.f32.mrf.mxu0
        %v1763 = vadd.f32 %v1730, %v1762
        %v1764 = vand.u32 %v1515, 4294901760
        %1765 = vmatmul.f32.gmra.mxu0 %v1764
        %v1766 = vpop.f32.mrf.mxu0
        %v1767 = vadd.f32 %v1734, %v1766
        %v1768 = vand.u32 %v1518, 4294901760
        %1769 = vmatmul.f32.gmra.mxu0 %v1768
        %v1770 = vpop.f32.mrf.mxu0
        %v1771 = vadd.f32 %v1738, %v1770
        %1772 = vdwg.mxu0
        %1773 = vmatpush.msra.mxu0 0.0
        %1774 = vmatpush.msra.mxu0 0.0
        %1775 = vmatpush.msra.mxu0 0.0
        %1776 = vmatpush.msra.mxu0 0.0
        %1777 = vmatpush.msra.mxu0 0.0
        %1778 = vmatpush.msra.mxu0 0.0
        %1779 = vmatpush.msra.mxu0 0.0
        %1780 = vmatpush.msra.mxu0 0.0
        %1781 = vmatpush.msra.mxu0 0.0
        %1782 = vmatpush.msra.mxu0 0.0
        %1783 = vmatpush.msra.mxu0 0.0
        %1784 = vmatpush.msra.mxu0 0.0
        %v1785 = vand.u32 %v1524, 4294901760
        %1786 = vmatpush.msra.mxu0 %v1785
        %v1787 = vand.u32 %v1508, 4294901760
        %1788 = vmatpush.msra.mxu0 %v1787
        %v1789 = vand.u32 %v1506, 4294901760
        %1790 = vmatpush.msra.mxu0 %v1789
        %v1791 = vand.u32 %v1504, 4294901760
        %1792 = vmatpush.msra.mxu0 %v1791
        %v1793 = vand.u32 %v1512, 4294901760
        %v1794 = vsub.f32 %v1512, %v1793
        %v1795 = vand.u32 %v1794, 4294901760
        %v1796 = vsub.f32 %v1794, %v1795
        %v1797 = vand.u32 %v1796, 4294901760
        %1798 = vmatmul.f32.gmra.mxu0 %v1797
        %v1799 = vpop.f32.mrf.mxu0
        %v1800 = vadd.f32 0.0, %v1799
        %v1801 = vand.u32 %v1515, 4294901760
        %v1802 = vsub.f32 %v1515, %v1801
        %v1803 = vand.u32 %v1802, 4294901760
        %v1804 = vsub.f32 %v1802, %v1803
        %v1805 = vand.u32 %v1804, 4294901760
        %1806 = vmatmul.f32.gmra.mxu0 %v1805
        %v1807 = vpop.f32.mrf.mxu0
        %v1808 = vadd.f32 0.0, %v1807
        %v1809 = vand.u32 %v1518, 4294901760
        %v1810 = vsub.f32 %v1518, %v1809
        %v1811 = vand.u32 %v1810, 4294901760
        %v1812 = vsub.f32 %v1810, %v1811
        %v1813 = vand.u32 %v1812, 4294901760
        %1814 = vmatmul.f32.gmra.mxu0 %v1813
        %v1815 = vpop.f32.mrf.mxu0
        %v1816 = vadd.f32 0.0, %v1815
        %1817 = vdwg.mxu0
        %1818 = vmatpush.msra.mxu0 0.0
        %1819 = vmatpush.msra.mxu0 0.0
        %1820 = vmatpush.msra.mxu0 0.0
        %1821 = vmatpush.msra.mxu0 0.0
        %1822 = vmatpush.msra.mxu0 0.0
        %1823 = vmatpush.msra.mxu0 0.0
        %1824 = vmatpush.msra.mxu0 0.0
        %1825 = vmatpush.msra.mxu0 0.0
        %1826 = vmatpush.msra.mxu0 0.0
        %1827 = vmatpush.msra.mxu0 0.0
        %1828 = vmatpush.msra.mxu0 0.0
        %1829 = vmatpush.msra.mxu0 0.0
        %v1830 = vand.u32 %v1524, 4294901760
        %v1831 = vsub.f32 %v1524, %v1830
        %v1832 = vand.u32 %v1831, 4294901760
        %v1833 = vsub.f32 %v1831, %v1832
        %v1834 = vand.u32 %v1833, 4294901760
        %1835 = vmatpush.msra.mxu0 %v1834
        %v1836 = vand.u32 %v1508, 4294901760
        %v1837 = vsub.f32 %v1508, %v1836
        %v1838 = vand.u32 %v1837, 4294901760
        %v1839 = vsub.f32 %v1837, %v1838
        %v1840 = vand.u32 %v1839, 4294901760
        %1841 = vmatpush.msra.mxu0 %v1840
        %v1842 = vand.u32 %v1506, 4294901760
        %v1843 = vsub.f32 %v1506, %v1842
        %v1844 = vand.u32 %v1843, 4294901760
        %v1845 = vsub.f32 %v1843, %v1844
        %v1846 = vand.u32 %v1845, 4294901760
        %1847 = vmatpush.msra.mxu0 %v1846
        %v1848 = vand.u32 %v1504, 4294901760
        %v1849 = vsub.f32 %v1504, %v1848
        %v1850 = vand.u32 %v1849, 4294901760
        %v1851 = vsub.f32 %v1849, %v1850
        %v1852 = vand.u32 %v1851, 4294901760
        %1853 = vmatpush.msra.mxu0 %v1852
        %v1854 = vand.u32 %v1512, 4294901760
        %1855 = vmatmul.f32.gmra.mxu0 %v1854
        %v1856 = vpop.f32.mrf.mxu0
        %v1857 = vadd.f32 %v1800, %v1856
        %v1858 = vand.u32 %v1515, 4294901760
        %1859 = vmatmul.f32.gmra.mxu0 %v1858
        %v1860 = vpop.f32.mrf.mxu0
        %v1861 = vadd.f32 %v1808, %v1860
        %v1862 = vand.u32 %v1518, 4294901760
        %1863 = vmatmul.f32.gmra.mxu0 %v1862
        %v1864 = vpop.f32.mrf.mxu0
        %v1865 = vadd.f32 %v1816, %v1864
        %1866 = vdwg.mxu0
        %1867 = vmatpush.msra.mxu0 0.0
        %1868 = vmatpush.msra.mxu0 0.0
        %1869 = vmatpush.msra.mxu0 0.0
        %1870 = vmatpush.msra.mxu0 0.0
        %1871 = vmatpush.msra.mxu0 0.0
        %1872 = vmatpush.msra.mxu0 0.0
        %1873 = vmatpush.msra.mxu0 0.0
        %1874 = vmatpush.msra.mxu0 0.0
        %1875 = vmatpush.msra.mxu0 0.0
        %1876 = vmatpush.msra.mxu0 0.0
        %1877 = vmatpush.msra.mxu0 0.0
        %1878 = vmatpush.msra.mxu0 0.0
        %v1879 = vand.u32 %v1524, 4294901760
        %v1880 = vsub.f32 %v1524, %v1879
        %1881 = vmatpush.msra.mxu0 %v1880
        %v1882 = vand.u32 %v1508, 4294901760
        %v1883 = vsub.f32 %v1508, %v1882
        %1884 = vmatpush.msra.mxu0 %v1883
        %v1885 = vand.u32 %v1506, 4294901760
        %v1886 = vsub.f32 %v1506, %v1885
        %1887 = vmatpush.msra.mxu0 %v1886
        %v1888 = vand.u32 %v1504, 4294901760
        %v1889 = vsub.f32 %v1504, %v1888
        %1890 = vmatpush.msra.mxu0 %v1889
        %v1891 = vand.u32 %v1512, 4294901760
        %v1892 = vsub.f32 %v1512, %v1891
        %1893 = vmatmul.f32.gmra.mxu0 %v1892
        %v1894 = vpop.f32.mrf.mxu0
        %v1895 = vadd.f32 %v1857, %v1894
        %v1896 = vand.u32 %v1515, 4294901760
        %v1897 = vsub.f32 %v1515, %v1896
        %1898 = vmatmul.f32.gmra.mxu0 %v1897
        %v1899 = vpop.f32.mrf.mxu0
        %v1900 = vadd.f32 %v1861, %v1899
        %v1901 = vand.u32 %v1518, 4294901760
        %v1902 = vsub.f32 %v1518, %v1901
        %1903 = vmatmul.f32.gmra.mxu0 %v1902
        %v1904 = vpop.f32.mrf.mxu0
        %v1905 = vadd.f32 %v1865, %v1904
        %1906 = vdwg.mxu0
        %1907 = vmatpush.msra.mxu0 0.0
        %1908 = vmatpush.msra.mxu0 0.0
        %1909 = vmatpush.msra.mxu0 0.0
        %1910 = vmatpush.msra.mxu0 0.0
        %1911 = vmatpush.msra.mxu0 0.0
        %1912 = vmatpush.msra.mxu0 0.0
        %1913 = vmatpush.msra.mxu0 0.0
        %1914 = vmatpush.msra.mxu0 0.0
        %1915 = vmatpush.msra.mxu0 0.0
        %1916 = vmatpush.msra.mxu0 0.0
        %1917 = vmatpush.msra.mxu0 0.0
        %1918 = vmatpush.msra.mxu0 0.0
        %v1919 = vand.u32 %v1524, 4294901760
        %1920 = vmatpush.msra.mxu0 %v1919
        %v1921 = vand.u32 %v1508, 4294901760
        %1922 = vmatpush.msra.mxu0 %v1921
        %v1923 = vand.u32 %v1506, 4294901760
        %1924 = vmatpush.msra.mxu0 %v1923
        %v1925 = vand.u32 %v1504, 4294901760
        %1926 = vmatpush.msra.mxu0 %v1925
        %v1927 = vand.u32 %v1512, 4294901760
        %v1928 = vsub.f32 %v1512, %v1927
        %v1929 = vand.u32 %v1928, 4294901760
        %1930 = vmatmul.f32.gmra.mxu0 %v1929
        %v1931 = vpop.f32.mrf.mxu0
        %v1932 = vadd.f32 %v1895, %v1931
        %v1933 = vand.u32 %v1515, 4294901760
        %v1934 = vsub.f32 %v1515, %v1933
        %v1935 = vand.u32 %v1934, 4294901760
        %1936 = vmatmul.f32.gmra.mxu0 %v1935
        %v1937 = vpop.f32.mrf.mxu0
        %v1938 = vadd.f32 %v1900, %v1937
        %v1939 = vand.u32 %v1518, 4294901760
        %v1940 = vsub.f32 %v1518, %v1939
        %v1941 = vand.u32 %v1940, 4294901760
        %1942 = vmatmul.f32.gmra.mxu0 %v1941
        %v1943 = vpop.f32.mrf.mxu0
        %v1944 = vadd.f32 %v1905, %v1943
        %1945 = vdwg.mxu0
        %1946 = vmatpush.msra.mxu0 0.0
        %1947 = vmatpush.msra.mxu0 0.0
        %1948 = vmatpush.msra.mxu0 0.0
        %1949 = vmatpush.msra.mxu0 0.0
        %1950 = vmatpush.msra.mxu0 0.0
        %1951 = vmatpush.msra.mxu0 0.0
        %1952 = vmatpush.msra.mxu0 0.0
        %1953 = vmatpush.msra.mxu0 0.0
        %1954 = vmatpush.msra.mxu0 0.0
        %1955 = vmatpush.msra.mxu0 0.0
        %1956 = vmatpush.msra.mxu0 0.0
        %1957 = vmatpush.msra.mxu0 0.0
        %v1958 = vand.u32 %v1524, 4294901760
        %v1959 = vsub.f32 %v1524, %v1958
        %v1960 = vand.u32 %v1959, 4294901760
        %1961 = vmatpush.msra.mxu0 %v1960
        %v1962 = vand.u32 %v1508, 4294901760
        %v1963 = vsub.f32 %v1508, %v1962
        %v1964 = vand.u32 %v1963, 4294901760
        %1965 = vmatpush.msra.mxu0 %v1964
        %v1966 = vand.u32 %v1506, 4294901760
        %v1967 = vsub.f32 %v1506, %v1966
        %v1968 = vand.u32 %v1967, 4294901760
        %1969 = vmatpush.msra.mxu0 %v1968
        %v1970 = vand.u32 %v1504, 4294901760
        %v1971 = vsub.f32 %v1504, %v1970
        %v1972 = vand.u32 %v1971, 4294901760
        %1973 = vmatpush.msra.mxu0 %v1972
        %v1974 = vand.u32 %v1512, 4294901760
        %1975 = vmatmul.f32.gmra.mxu0 %v1974
        %v1976 = vpop.f32.mrf.mxu0
        %v1977 = vadd.f32 %v1932, %v1976
        %v1978 = vand.u32 %v1515, 4294901760
        %1979 = vmatmul.f32.gmra.mxu0 %v1978
        %v1980 = vpop.f32.mrf.mxu0
        %v1981 = vadd.f32 %v1938, %v1980
        %v1982 = vand.u32 %v1518, 4294901760
        %1983 = vmatmul.f32.gmra.mxu0 %v1982
        %v1984 = vpop.f32.mrf.mxu0
        %v1985 = vadd.f32 %v1944, %v1984
        %1986 = vdwg.mxu0
        %1987 = vmatpush.msra.mxu0 0.0
        %1988 = vmatpush.msra.mxu0 0.0
        %1989 = vmatpush.msra.mxu0 0.0
        %1990 = vmatpush.msra.mxu0 0.0
        %1991 = vmatpush.msra.mxu0 0.0
        %1992 = vmatpush.msra.mxu0 0.0
        %1993 = vmatpush.msra.mxu0 0.0
        %1994 = vmatpush.msra.mxu0 0.0
        %1995 = vmatpush.msra.mxu0 0.0
        %1996 = vmatpush.msra.mxu0 0.0
        %1997 = vmatpush.msra.mxu0 0.0
        %1998 = vmatpush.msra.mxu0 0.0
        %v1999 = vand.u32 %v1524, 4294901760
        %2000 = vmatpush.msra.mxu0 %v1999
        %v2001 = vand.u32 %v1508, 4294901760
        %2002 = vmatpush.msra.mxu0 %v2001
        %v2003 = vand.u32 %v1506, 4294901760
        %2004 = vmatpush.msra.mxu0 %v2003
        %v2005 = vand.u32 %v1504, 4294901760
        %2006 = vmatpush.msra.mxu0 %v2005
        %v2007 = vand.u32 %v1512, 4294901760
        %2008 = vmatmul.f32.gmra.mxu0 %v2007
        %v2009 = vpop.f32.mrf.mxu0
        %v2010 = vadd.f32 %v1977, %v2009
        %v2011 = vand.u32 %v1515, 4294901760
        %2012 = vmatmul.f32.gmra.mxu0 %v2011
        %v2013 = vpop.f32.mrf.mxu0
        %v2014 = vadd.f32 %v1981, %v2013
        %v2015 = vand.u32 %v1518, 4294901760
        %2016 = vmatmul.f32.gmra.mxu0 %v2015
        %v2017 = vpop.f32.mrf.mxu0
        %v2018 = vadd.f32 %v1985, %v2017
        %2019 = vdwg.mxu0
        %v2020 = vadd.f32 %v1493, %v1763
        %v2021 = vadd.f32 %v1494, %v2010
        %v2022 = vadd.f32 %v1495, %v1767
        %v2023 = vadd.f32 %v1496, %v2014
        %v2024 = vadd.f32 %v1497, %v1771
        %v2025 = vadd.f32 %v1498, %v2018
        %v2026 = vld [vmem:[%s437 + $0x3] sm:$0xff]
        %v2027 = vld [vmem:[%s437 + $0xb] sm:$0xff]
        %v2028 = vld [vmem:[%s437 + $0x13] sm:$0xff]
        %s2029 = scalar_lea.vmem %s1, 192
        %v2030 = vld [vmem:[%s2029] sm:$0xff]
        %v2031 = vld [vmem:[%s2029 + $0x8] sm:$0xff]
        %v2032 = vld [vmem:[%s2029 + $0x10] sm:$0xff]
        %v2033 = vld [vmem:[%s2029 + $0x18] sm:$0xff]
        %v2034 = vld [vmem:[%s2029 + $0x20] sm:$0xff]
        %v2035 = vld [vmem:[%s2029 + $0x28] sm:$0xff]
        %v2036 = vld [vmem:[%s2029 + $0x30] sm:$0xf]
        %v2037 = vld [vmem:[%s2029 + $0x38] sm:$0xf]
        %v2039 = vsel %vm455, %v2026, 0
        %v2042 = vsel %vm455, %v2027, 0
        %v2045 = vsel %vm455, %v2028, 0
        %v2048 = vsel %vm465, %v2036, 0
        %v2051 = vsel %vm465, %v2037, 0
        %2053 = vmatpush.msra.mxu0 0.0
        %2054 = vmatpush.msra.mxu0 0.0
        %2055 = vmatpush.msra.mxu0 0.0
        %2056 = vmatpush.msra.mxu0 0.0
        %2057 = vmatpush.msra.mxu0 0.0
        %2058 = vmatpush.msra.mxu0 0.0
        %2059 = vmatpush.msra.mxu0 0.0
        %2060 = vmatpush.msra.mxu0 0.0
        %2061 = vmatpush.msra.mxu0 0.0
        %2062 = vmatpush.msra.mxu0 0.0
        %2063 = vmatpush.msra.mxu0 0.0
        %2064 = vmatpush.msra.mxu0 0.0
        %v2065 = vand.u32 %v2048, 4294901760
        %2066 = vmatpush.msra.mxu0 %v2065
        %v2067 = vand.u32 %v2034, 4294901760
        %2068 = vmatpush.msra.mxu0 %v2067
        %v2069 = vand.u32 %v2032, 4294901760
        %2070 = vmatpush.msra.mxu0 %v2069
        %v2071 = vand.u32 %v2030, 4294901760
        %2072 = vmatpush.msra.mxu0 %v2071
        %v2073 = vand.u32 %v2039, 4294901760
        %v2074 = vsub.f32 %v2039, %v2073
        %v2075 = vand.u32 %v2074, 4294901760
        %v2076 = vsub.f32 %v2074, %v2075
        %v2077 = vand.u32 %v2076, 4294901760
        %2078 = vmatmul.f32.gmra.mxu0 %v2077
        %v2079 = vpop.f32.mrf.mxu0
        %v2080 = vadd.f32 0.0, %v2079
        %v2081 = vand.u32 %v2042, 4294901760
        %v2082 = vsub.f32 %v2042, %v2081
        %v2083 = vand.u32 %v2082, 4294901760
        %v2084 = vsub.f32 %v2082, %v2083
        %v2085 = vand.u32 %v2084, 4294901760
        %2086 = vmatmul.f32.gmra.mxu0 %v2085
        %v2087 = vpop.f32.mrf.mxu0
        %v2088 = vadd.f32 0.0, %v2087
        %v2089 = vand.u32 %v2045, 4294901760
        %v2090 = vsub.f32 %v2045, %v2089
        %v2091 = vand.u32 %v2090, 4294901760
        %v2092 = vsub.f32 %v2090, %v2091
        %v2093 = vand.u32 %v2092, 4294901760
        %2094 = vmatmul.f32.gmra.mxu0 %v2093
        %v2095 = vpop.f32.mrf.mxu0
        %v2096 = vadd.f32 0.0, %v2095
        %2097 = vdwg.mxu0
        %2098 = vmatpush.msra.mxu0 0.0
        %2099 = vmatpush.msra.mxu0 0.0
        %2100 = vmatpush.msra.mxu0 0.0
        %2101 = vmatpush.msra.mxu0 0.0
        %2102 = vmatpush.msra.mxu0 0.0
        %2103 = vmatpush.msra.mxu0 0.0
        %2104 = vmatpush.msra.mxu0 0.0
        %2105 = vmatpush.msra.mxu0 0.0
        %2106 = vmatpush.msra.mxu0 0.0
        %2107 = vmatpush.msra.mxu0 0.0
        %2108 = vmatpush.msra.mxu0 0.0
        %2109 = vmatpush.msra.mxu0 0.0
        %v2110 = vand.u32 %v2048, 4294901760
        %v2111 = vsub.f32 %v2048, %v2110
        %v2112 = vand.u32 %v2111, 4294901760
        %v2113 = vsub.f32 %v2111, %v2112
        %v2114 = vand.u32 %v2113, 4294901760
        %2115 = vmatpush.msra.mxu0 %v2114
        %v2116 = vand.u32 %v2034, 4294901760
        %v2117 = vsub.f32 %v2034, %v2116
        %v2118 = vand.u32 %v2117, 4294901760
        %v2119 = vsub.f32 %v2117, %v2118
        %v2120 = vand.u32 %v2119, 4294901760
        %2121 = vmatpush.msra.mxu0 %v2120
        %v2122 = vand.u32 %v2032, 4294901760
        %v2123 = vsub.f32 %v2032, %v2122
        %v2124 = vand.u32 %v2123, 4294901760
        %v2125 = vsub.f32 %v2123, %v2124
        %v2126 = vand.u32 %v2125, 4294901760
        %2127 = vmatpush.msra.mxu0 %v2126
        %v2128 = vand.u32 %v2030, 4294901760
        %v2129 = vsub.f32 %v2030, %v2128
        %v2130 = vand.u32 %v2129, 4294901760
        %v2131 = vsub.f32 %v2129, %v2130
        %v2132 = vand.u32 %v2131, 4294901760
        %2133 = vmatpush.msra.mxu0 %v2132
        %v2134 = vand.u32 %v2039, 4294901760
        %2135 = vmatmul.f32.gmra.mxu0 %v2134
        %v2136 = vpop.f32.mrf.mxu0
        %v2137 = vadd.f32 %v2080, %v2136
        %v2138 = vand.u32 %v2042, 4294901760
        %2139 = vmatmul.f32.gmra.mxu0 %v2138
        %v2140 = vpop.f32.mrf.mxu0
        %v2141 = vadd.f32 %v2088, %v2140
        %v2142 = vand.u32 %v2045, 4294901760
        %2143 = vmatmul.f32.gmra.mxu0 %v2142
        %v2144 = vpop.f32.mrf.mxu0
        %v2145 = vadd.f32 %v2096, %v2144
        %2146 = vdwg.mxu0
        %2147 = vmatpush.msra.mxu0 0.0
        %2148 = vmatpush.msra.mxu0 0.0
        %2149 = vmatpush.msra.mxu0 0.0
        %2150 = vmatpush.msra.mxu0 0.0
        %2151 = vmatpush.msra.mxu0 0.0
        %2152 = vmatpush.msra.mxu0 0.0
        %2153 = vmatpush.msra.mxu0 0.0
        %2154 = vmatpush.msra.mxu0 0.0
        %2155 = vmatpush.msra.mxu0 0.0
        %2156 = vmatpush.msra.mxu0 0.0
        %2157 = vmatpush.msra.mxu0 0.0
        %2158 = vmatpush.msra.mxu0 0.0
        %v2159 = vand.u32 %v2048, 4294901760
        %v2160 = vsub.f32 %v2048, %v2159
        %2161 = vmatpush.msra.mxu0 %v2160
        %v2162 = vand.u32 %v2034, 4294901760
        %v2163 = vsub.f32 %v2034, %v2162
        %2164 = vmatpush.msra.mxu0 %v2163
        %v2165 = vand.u32 %v2032, 4294901760
        %v2166 = vsub.f32 %v2032, %v2165
        %2167 = vmatpush.msra.mxu0 %v2166
        %v2168 = vand.u32 %v2030, 4294901760
        %v2169 = vsub.f32 %v2030, %v2168
        %2170 = vmatpush.msra.mxu0 %v2169
        %v2171 = vand.u32 %v2039, 4294901760
        %v2172 = vsub.f32 %v2039, %v2171
        %2173 = vmatmul.f32.gmra.mxu0 %v2172
        %v2174 = vpop.f32.mrf.mxu0
        %v2175 = vadd.f32 %v2137, %v2174
        %v2176 = vand.u32 %v2042, 4294901760
        %v2177 = vsub.f32 %v2042, %v2176
        %2178 = vmatmul.f32.gmra.mxu0 %v2177
        %v2179 = vpop.f32.mrf.mxu0
        %v2180 = vadd.f32 %v2141, %v2179
        %v2181 = vand.u32 %v2045, 4294901760
        %v2182 = vsub.f32 %v2045, %v2181
        %2183 = vmatmul.f32.gmra.mxu0 %v2182
        %v2184 = vpop.f32.mrf.mxu0
        %v2185 = vadd.f32 %v2145, %v2184
        %2186 = vdwg.mxu0
        %2187 = vmatpush.msra.mxu0 0.0
        %2188 = vmatpush.msra.mxu0 0.0
        %2189 = vmatpush.msra.mxu0 0.0
        %2190 = vmatpush.msra.mxu0 0.0
        %2191 = vmatpush.msra.mxu0 0.0
        %2192 = vmatpush.msra.mxu0 0.0
        %2193 = vmatpush.msra.mxu0 0.0
        %2194 = vmatpush.msra.mxu0 0.0
        %2195 = vmatpush.msra.mxu0 0.0
        %2196 = vmatpush.msra.mxu0 0.0
        %2197 = vmatpush.msra.mxu0 0.0
        %2198 = vmatpush.msra.mxu0 0.0
        %v2199 = vand.u32 %v2048, 4294901760
        %2200 = vmatpush.msra.mxu0 %v2199
        %v2201 = vand.u32 %v2034, 4294901760
        %2202 = vmatpush.msra.mxu0 %v2201
        %v2203 = vand.u32 %v2032, 4294901760
        %2204 = vmatpush.msra.mxu0 %v2203
        %v2205 = vand.u32 %v2030, 4294901760
        %2206 = vmatpush.msra.mxu0 %v2205
        %v2207 = vand.u32 %v2039, 4294901760
        %v2208 = vsub.f32 %v2039, %v2207
        %v2209 = vand.u32 %v2208, 4294901760
        %2210 = vmatmul.f32.gmra.mxu0 %v2209
        %v2211 = vpop.f32.mrf.mxu0
        %v2212 = vadd.f32 %v2175, %v2211
        %v2213 = vand.u32 %v2042, 4294901760
        %v2214 = vsub.f32 %v2042, %v2213
        %v2215 = vand.u32 %v2214, 4294901760
        %2216 = vmatmul.f32.gmra.mxu0 %v2215
        %v2217 = vpop.f32.mrf.mxu0
        %v2218 = vadd.f32 %v2180, %v2217
        %v2219 = vand.u32 %v2045, 4294901760
        %v2220 = vsub.f32 %v2045, %v2219
        %v2221 = vand.u32 %v2220, 4294901760
        %2222 = vmatmul.f32.gmra.mxu0 %v2221
        %v2223 = vpop.f32.mrf.mxu0
        %v2224 = vadd.f32 %v2185, %v2223
        %2225 = vdwg.mxu0
        %2226 = vmatpush.msra.mxu0 0.0
        %2227 = vmatpush.msra.mxu0 0.0
        %2228 = vmatpush.msra.mxu0 0.0
        %2229 = vmatpush.msra.mxu0 0.0
        %2230 = vmatpush.msra.mxu0 0.0
        %2231 = vmatpush.msra.mxu0 0.0
        %2232 = vmatpush.msra.mxu0 0.0
        %2233 = vmatpush.msra.mxu0 0.0
        %2234 = vmatpush.msra.mxu0 0.0
        %2235 = vmatpush.msra.mxu0 0.0
        %2236 = vmatpush.msra.mxu0 0.0
        %2237 = vmatpush.msra.mxu0 0.0
        %v2238 = vand.u32 %v2048, 4294901760
        %v2239 = vsub.f32 %v2048, %v2238
        %v2240 = vand.u32 %v2239, 4294901760
        %2241 = vmatpush.msra.mxu0 %v2240
        %v2242 = vand.u32 %v2034, 4294901760
        %v2243 = vsub.f32 %v2034, %v2242
        %v2244 = vand.u32 %v2243, 4294901760
        %2245 = vmatpush.msra.mxu0 %v2244
        %v2246 = vand.u32 %v2032, 4294901760
        %v2247 = vsub.f32 %v2032, %v2246
        %v2248 = vand.u32 %v2247, 4294901760
        %2249 = vmatpush.msra.mxu0 %v2248
        %v2250 = vand.u32 %v2030, 4294901760
        %v2251 = vsub.f32 %v2030, %v2250
        %v2252 = vand.u32 %v2251, 4294901760
        %2253 = vmatpush.msra.mxu0 %v2252
        %v2254 = vand.u32 %v2039, 4294901760
        %2255 = vmatmul.f32.gmra.mxu0 %v2254
        %v2256 = vpop.f32.mrf.mxu0
        %v2257 = vadd.f32 %v2212, %v2256
        %v2258 = vand.u32 %v2042, 4294901760
        %2259 = vmatmul.f32.gmra.mxu0 %v2258
        %v2260 = vpop.f32.mrf.mxu0
        %v2261 = vadd.f32 %v2218, %v2260
        %v2262 = vand.u32 %v2045, 4294901760
        %2263 = vmatmul.f32.gmra.mxu0 %v2262
        %v2264 = vpop.f32.mrf.mxu0
        %v2265 = vadd.f32 %v2224, %v2264
        %2266 = vdwg.mxu0
        %2267 = vmatpush.msra.mxu0 0.0
        %2268 = vmatpush.msra.mxu0 0.0
        %2269 = vmatpush.msra.mxu0 0.0
        %2270 = vmatpush.msra.mxu0 0.0
        %2271 = vmatpush.msra.mxu0 0.0
        %2272 = vmatpush.msra.mxu0 0.0
        %2273 = vmatpush.msra.mxu0 0.0
        %2274 = vmatpush.msra.mxu0 0.0
        %2275 = vmatpush.msra.mxu0 0.0
        %2276 = vmatpush.msra.mxu0 0.0
        %2277 = vmatpush.msra.mxu0 0.0
        %2278 = vmatpush.msra.mxu0 0.0
        %v2279 = vand.u32 %v2048, 4294901760
        %2280 = vmatpush.msra.mxu0 %v2279
        %v2281 = vand.u32 %v2034, 4294901760
        %2282 = vmatpush.msra.mxu0 %v2281
        %v2283 = vand.u32 %v2032, 4294901760
        %2284 = vmatpush.msra.mxu0 %v2283
        %v2285 = vand.u32 %v2030, 4294901760
        %2286 = vmatpush.msra.mxu0 %v2285
        %v2287 = vand.u32 %v2039, 4294901760
        %2288 = vmatmul.f32.gmra.mxu0 %v2287
        %v2289 = vpop.f32.mrf.mxu0
        %v2290 = vadd.f32 %v2257, %v2289
        %v2291 = vand.u32 %v2042, 4294901760
        %2292 = vmatmul.f32.gmra.mxu0 %v2291
        %v2293 = vpop.f32.mrf.mxu0
        %v2294 = vadd.f32 %v2261, %v2293
        %v2295 = vand.u32 %v2045, 4294901760
        %2296 = vmatmul.f32.gmra.mxu0 %v2295
        %v2297 = vpop.f32.mrf.mxu0
        %v2298 = vadd.f32 %v2265, %v2297
        %2299 = vdwg.mxu0
        %2300 = vmatpush.msra.mxu0 0.0
        %2301 = vmatpush.msra.mxu0 0.0
        %2302 = vmatpush.msra.mxu0 0.0
        %2303 = vmatpush.msra.mxu0 0.0
        %2304 = vmatpush.msra.mxu0 0.0
        %2305 = vmatpush.msra.mxu0 0.0
        %2306 = vmatpush.msra.mxu0 0.0
        %2307 = vmatpush.msra.mxu0 0.0
        %2308 = vmatpush.msra.mxu0 0.0
        %2309 = vmatpush.msra.mxu0 0.0
        %2310 = vmatpush.msra.mxu0 0.0
        %2311 = vmatpush.msra.mxu0 0.0
        %v2312 = vand.u32 %v2051, 4294901760
        %2313 = vmatpush.msra.mxu0 %v2312
        %v2314 = vand.u32 %v2035, 4294901760
        %2315 = vmatpush.msra.mxu0 %v2314
        %v2316 = vand.u32 %v2033, 4294901760
        %2317 = vmatpush.msra.mxu0 %v2316
        %v2318 = vand.u32 %v2031, 4294901760
        %2319 = vmatpush.msra.mxu0 %v2318
        %v2320 = vand.u32 %v2039, 4294901760
        %v2321 = vsub.f32 %v2039, %v2320
        %v2322 = vand.u32 %v2321, 4294901760
        %v2323 = vsub.f32 %v2321, %v2322
        %v2324 = vand.u32 %v2323, 4294901760
        %2325 = vmatmul.f32.gmra.mxu0 %v2324
        %v2326 = vpop.f32.mrf.mxu0
        %v2327 = vadd.f32 0.0, %v2326
        %v2328 = vand.u32 %v2042, 4294901760
        %v2329 = vsub.f32 %v2042, %v2328
        %v2330 = vand.u32 %v2329, 4294901760
        %v2331 = vsub.f32 %v2329, %v2330
        %v2332 = vand.u32 %v2331, 4294901760
        %2333 = vmatmul.f32.gmra.mxu0 %v2332
        %v2334 = vpop.f32.mrf.mxu0
        %v2335 = vadd.f32 0.0, %v2334
        %v2336 = vand.u32 %v2045, 4294901760
        %v2337 = vsub.f32 %v2045, %v2336
        %v2338 = vand.u32 %v2337, 4294901760
        %v2339 = vsub.f32 %v2337, %v2338
        %v2340 = vand.u32 %v2339, 4294901760
        %2341 = vmatmul.f32.gmra.mxu0 %v2340
        %v2342 = vpop.f32.mrf.mxu0
        %v2343 = vadd.f32 0.0, %v2342
        %2344 = vdwg.mxu0
        %2345 = vmatpush.msra.mxu0 0.0
        %2346 = vmatpush.msra.mxu0 0.0
        %2347 = vmatpush.msra.mxu0 0.0
        %2348 = vmatpush.msra.mxu0 0.0
        %2349 = vmatpush.msra.mxu0 0.0
        %2350 = vmatpush.msra.mxu0 0.0
        %2351 = vmatpush.msra.mxu0 0.0
        %2352 = vmatpush.msra.mxu0 0.0
        %2353 = vmatpush.msra.mxu0 0.0
        %2354 = vmatpush.msra.mxu0 0.0
        %2355 = vmatpush.msra.mxu0 0.0
        %2356 = vmatpush.msra.mxu0 0.0
        %v2357 = vand.u32 %v2051, 4294901760
        %v2358 = vsub.f32 %v2051, %v2357
        %v2359 = vand.u32 %v2358, 4294901760
        %v2360 = vsub.f32 %v2358, %v2359
        %v2361 = vand.u32 %v2360, 4294901760
        %2362 = vmatpush.msra.mxu0 %v2361
        %v2363 = vand.u32 %v2035, 4294901760
        %v2364 = vsub.f32 %v2035, %v2363
        %v2365 = vand.u32 %v2364, 4294901760
        %v2366 = vsub.f32 %v2364, %v2365
        %v2367 = vand.u32 %v2366, 4294901760
        %2368 = vmatpush.msra.mxu0 %v2367
        %v2369 = vand.u32 %v2033, 4294901760
        %v2370 = vsub.f32 %v2033, %v2369
        %v2371 = vand.u32 %v2370, 4294901760
        %v2372 = vsub.f32 %v2370, %v2371
        %v2373 = vand.u32 %v2372, 4294901760
        %2374 = vmatpush.msra.mxu0 %v2373
        %v2375 = vand.u32 %v2031, 4294901760
        %v2376 = vsub.f32 %v2031, %v2375
        %v2377 = vand.u32 %v2376, 4294901760
        %v2378 = vsub.f32 %v2376, %v2377
        %v2379 = vand.u32 %v2378, 4294901760
        %2380 = vmatpush.msra.mxu0 %v2379
        %v2381 = vand.u32 %v2039, 4294901760
        %2382 = vmatmul.f32.gmra.mxu0 %v2381
        %v2383 = vpop.f32.mrf.mxu0
        %v2384 = vadd.f32 %v2327, %v2383
        %v2385 = vand.u32 %v2042, 4294901760
        %2386 = vmatmul.f32.gmra.mxu0 %v2385
        %v2387 = vpop.f32.mrf.mxu0
        %v2388 = vadd.f32 %v2335, %v2387
        %v2389 = vand.u32 %v2045, 4294901760
        %2390 = vmatmul.f32.gmra.mxu0 %v2389
        %v2391 = vpop.f32.mrf.mxu0
        %v2392 = vadd.f32 %v2343, %v2391
        %2393 = vdwg.mxu0
        %2394 = vmatpush.msra.mxu0 0.0
        %2395 = vmatpush.msra.mxu0 0.0
        %2396 = vmatpush.msra.mxu0 0.0
        %2397 = vmatpush.msra.mxu0 0.0
        %2398 = vmatpush.msra.mxu0 0.0
        %2399 = vmatpush.msra.mxu0 0.0
        %2400 = vmatpush.msra.mxu0 0.0
        %2401 = vmatpush.msra.mxu0 0.0
        %2402 = vmatpush.msra.mxu0 0.0
        %2403 = vmatpush.msra.mxu0 0.0
        %2404 = vmatpush.msra.mxu0 0.0
        %2405 = vmatpush.msra.mxu0 0.0
        %v2406 = vand.u32 %v2051, 4294901760
        %v2407 = vsub.f32 %v2051, %v2406
        %2408 = vmatpush.msra.mxu0 %v2407
        %v2409 = vand.u32 %v2035, 4294901760
        %v2410 = vsub.f32 %v2035, %v2409
        %2411 = vmatpush.msra.mxu0 %v2410
        %v2412 = vand.u32 %v2033, 4294901760
        %v2413 = vsub.f32 %v2033, %v2412
        %2414 = vmatpush.msra.mxu0 %v2413
        %v2415 = vand.u32 %v2031, 4294901760
        %v2416 = vsub.f32 %v2031, %v2415
        %2417 = vmatpush.msra.mxu0 %v2416
        %v2418 = vand.u32 %v2039, 4294901760
        %v2419 = vsub.f32 %v2039, %v2418
        %2420 = vmatmul.f32.gmra.mxu0 %v2419
        %v2421 = vpop.f32.mrf.mxu0
        %v2422 = vadd.f32 %v2384, %v2421
        %v2423 = vand.u32 %v2042, 4294901760
        %v2424 = vsub.f32 %v2042, %v2423
        %2425 = vmatmul.f32.gmra.mxu0 %v2424
        %v2426 = vpop.f32.mrf.mxu0
        %v2427 = vadd.f32 %v2388, %v2426
        %v2428 = vand.u32 %v2045, 4294901760
        %v2429 = vsub.f32 %v2045, %v2428
        %2430 = vmatmul.f32.gmra.mxu0 %v2429
        %v2431 = vpop.f32.mrf.mxu0
        %v2432 = vadd.f32 %v2392, %v2431
        %2433 = vdwg.mxu0
        %2434 = vmatpush.msra.mxu0 0.0
        %2435 = vmatpush.msra.mxu0 0.0
        %2436 = vmatpush.msra.mxu0 0.0
        %2437 = vmatpush.msra.mxu0 0.0
        %2438 = vmatpush.msra.mxu0 0.0
        %2439 = vmatpush.msra.mxu0 0.0
        %2440 = vmatpush.msra.mxu0 0.0
        %2441 = vmatpush.msra.mxu0 0.0
        %2442 = vmatpush.msra.mxu0 0.0
        %2443 = vmatpush.msra.mxu0 0.0
        %2444 = vmatpush.msra.mxu0 0.0
        %2445 = vmatpush.msra.mxu0 0.0
        %v2446 = vand.u32 %v2051, 4294901760
        %2447 = vmatpush.msra.mxu0 %v2446
        %v2448 = vand.u32 %v2035, 4294901760
        %2449 = vmatpush.msra.mxu0 %v2448
        %v2450 = vand.u32 %v2033, 4294901760
        %2451 = vmatpush.msra.mxu0 %v2450
        %v2452 = vand.u32 %v2031, 4294901760
        %2453 = vmatpush.msra.mxu0 %v2452
        %v2454 = vand.u32 %v2039, 4294901760
        %v2455 = vsub.f32 %v2039, %v2454
        %v2456 = vand.u32 %v2455, 4294901760
        %2457 = vmatmul.f32.gmra.mxu0 %v2456
        %v2458 = vpop.f32.mrf.mxu0
        %v2459 = vadd.f32 %v2422, %v2458
        %v2460 = vand.u32 %v2042, 4294901760
        %v2461 = vsub.f32 %v2042, %v2460
        %v2462 = vand.u32 %v2461, 4294901760
        %2463 = vmatmul.f32.gmra.mxu0 %v2462
        %v2464 = vpop.f32.mrf.mxu0
        %v2465 = vadd.f32 %v2427, %v2464
        %v2466 = vand.u32 %v2045, 4294901760
        %v2467 = vsub.f32 %v2045, %v2466
        %v2468 = vand.u32 %v2467, 4294901760
        %2469 = vmatmul.f32.gmra.mxu0 %v2468
        %v2470 = vpop.f32.mrf.mxu0
        %v2471 = vadd.f32 %v2432, %v2470
        %2472 = vdwg.mxu0
        %2473 = vmatpush.msra.mxu0 0.0
        %2474 = vmatpush.msra.mxu0 0.0
        %2475 = vmatpush.msra.mxu0 0.0
        %2476 = vmatpush.msra.mxu0 0.0
        %2477 = vmatpush.msra.mxu0 0.0
        %2478 = vmatpush.msra.mxu0 0.0
        %2479 = vmatpush.msra.mxu0 0.0
        %2480 = vmatpush.msra.mxu0 0.0
        %2481 = vmatpush.msra.mxu0 0.0
        %2482 = vmatpush.msra.mxu0 0.0
        %2483 = vmatpush.msra.mxu0 0.0
        %2484 = vmatpush.msra.mxu0 0.0
        %v2485 = vand.u32 %v2051, 4294901760
        %v2486 = vsub.f32 %v2051, %v2485
        %v2487 = vand.u32 %v2486, 4294901760
        %2488 = vmatpush.msra.mxu0 %v2487
        %v2489 = vand.u32 %v2035, 4294901760
        %v2490 = vsub.f32 %v2035, %v2489
        %v2491 = vand.u32 %v2490, 4294901760
        %2492 = vmatpush.msra.mxu0 %v2491
        %v2493 = vand.u32 %v2033, 4294901760
        %v2494 = vsub.f32 %v2033, %v2493
        %v2495 = vand.u32 %v2494, 4294901760
        %2496 = vmatpush.msra.mxu0 %v2495
        %v2497 = vand.u32 %v2031, 4294901760
        %v2498 = vsub.f32 %v2031, %v2497
        %v2499 = vand.u32 %v2498, 4294901760
        %2500 = vmatpush.msra.mxu0 %v2499
        %v2501 = vand.u32 %v2039, 4294901760
        %2502 = vmatmul.f32.gmra.mxu0 %v2501
        %v2503 = vpop.f32.mrf.mxu0
        %v2504 = vadd.f32 %v2459, %v2503
        %v2505 = vand.u32 %v2042, 4294901760
        %2506 = vmatmul.f32.gmra.mxu0 %v2505
        %v2507 = vpop.f32.mrf.mxu0
        %v2508 = vadd.f32 %v2465, %v2507
        %v2509 = vand.u32 %v2045, 4294901760
        %2510 = vmatmul.f32.gmra.mxu0 %v2509
        %v2511 = vpop.f32.mrf.mxu0
        %v2512 = vadd.f32 %v2471, %v2511
        %2513 = vdwg.mxu0
        %2514 = vmatpush.msra.mxu0 0.0
        %2515 = vmatpush.msra.mxu0 0.0
        %2516 = vmatpush.msra.mxu0 0.0
        %2517 = vmatpush.msra.mxu0 0.0
        %2518 = vmatpush.msra.mxu0 0.0
        %2519 = vmatpush.msra.mxu0 0.0
        %2520 = vmatpush.msra.mxu0 0.0
        %2521 = vmatpush.msra.mxu0 0.0
        %2522 = vmatpush.msra.mxu0 0.0
        %2523 = vmatpush.msra.mxu0 0.0
        %2524 = vmatpush.msra.mxu0 0.0
        %2525 = vmatpush.msra.mxu0 0.0
        %v2526 = vand.u32 %v2051, 4294901760
        %2527 = vmatpush.msra.mxu0 %v2526
        %v2528 = vand.u32 %v2035, 4294901760
        %2529 = vmatpush.msra.mxu0 %v2528
        %v2530 = vand.u32 %v2033, 4294901760
        %2531 = vmatpush.msra.mxu0 %v2530
        %v2532 = vand.u32 %v2031, 4294901760
        %2533 = vmatpush.msra.mxu0 %v2532
        %v2534 = vand.u32 %v2039, 4294901760
        %2535 = vmatmul.f32.gmra.mxu0 %v2534
        %v2536 = vpop.f32.mrf.mxu0
        %v2537 = vadd.f32 %v2504, %v2536
        %v2538 = vand.u32 %v2042, 4294901760
        %2539 = vmatmul.f32.gmra.mxu0 %v2538
        %v2540 = vpop.f32.mrf.mxu0
        %v2541 = vadd.f32 %v2508, %v2540
        %v2542 = vand.u32 %v2045, 4294901760
        %2543 = vmatmul.f32.gmra.mxu0 %v2542
        %v2544 = vpop.f32.mrf.mxu0
        %v2545 = vadd.f32 %v2512, %v2544
        %2546 = vdwg.mxu0
        %v2547 = vadd.f32 %v2020, %v2290
        %v2548 = vadd.f32 %v2021, %v2537
        %v2549 = vadd.f32 %v2022, %v2294
        %v2550 = vadd.f32 %v2023, %v2541
        %v2551 = vadd.f32 %v2024, %v2298
        %v2552 = vadd.f32 %v2025, %v2545
        %v2553 = vld [vmem:[%s437 + $0x4] sm:$0xff]
        %v2554 = vld [vmem:[%s437 + $0xc] sm:$0xff]
        %v2555 = vld [vmem:[%s437 + $0x14] sm:$0xff]
        %s2556 = scalar_lea.vmem %s1, 256
        %v2557 = vld [vmem:[%s2556] sm:$0xff]
        %v2558 = vld [vmem:[%s2556 + $0x8] sm:$0xff]
        %v2559 = vld [vmem:[%s2556 + $0x10] sm:$0xff]
        %v2560 = vld [vmem:[%s2556 + $0x18] sm:$0xff]
        %v2561 = vld [vmem:[%s2556 + $0x20] sm:$0xff]
        %v2562 = vld [vmem:[%s2556 + $0x28] sm:$0xff]
        %v2563 = vld [vmem:[%s2556 + $0x30] sm:$0xf]
        %v2564 = vld [vmem:[%s2556 + $0x38] sm:$0xf]
        %v2566 = vsel %vm455, %v2553, 0
        %v2569 = vsel %vm455, %v2554, 0
        %v2572 = vsel %vm455, %v2555, 0
        %v2575 = vsel %vm465, %v2563, 0
        %v2578 = vsel %vm465, %v2564, 0
        %2580 = vmatpush.msra.mxu0 0.0
        %2581 = vmatpush.msra.mxu0 0.0
        %2582 = vmatpush.msra.mxu0 0.0
        %2583 = vmatpush.msra.mxu0 0.0
        %2584 = vmatpush.msra.mxu0 0.0
        %2585 = vmatpush.msra.mxu0 0.0
        %2586 = vmatpush.msra.mxu0 0.0
        %2587 = vmatpush.msra.mxu0 0.0
        %2588 = vmatpush.msra.mxu0 0.0
        %2589 = vmatpush.msra.mxu0 0.0
        %2590 = vmatpush.msra.mxu0 0.0
        %2591 = vmatpush.msra.mxu0 0.0
        %v2592 = vand.u32 %v2575, 4294901760
        %2593 = vmatpush.msra.mxu0 %v2592
        %v2594 = vand.u32 %v2561, 4294901760
        %2595 = vmatpush.msra.mxu0 %v2594
        %v2596 = vand.u32 %v2559, 4294901760
        %2597 = vmatpush.msra.mxu0 %v2596
        %v2598 = vand.u32 %v2557, 4294901760
        %2599 = vmatpush.msra.mxu0 %v2598
        %v2600 = vand.u32 %v2566, 4294901760
        %v2601 = vsub.f32 %v2566, %v2600
        %v2602 = vand.u32 %v2601, 4294901760
        %v2603 = vsub.f32 %v2601, %v2602
        %v2604 = vand.u32 %v2603, 4294901760
        %2605 = vmatmul.f32.gmra.mxu0 %v2604
        %v2606 = vpop.f32.mrf.mxu0
        %v2607 = vadd.f32 0.0, %v2606
        %v2608 = vand.u32 %v2569, 4294901760
        %v2609 = vsub.f32 %v2569, %v2608
        %v2610 = vand.u32 %v2609, 4294901760
        %v2611 = vsub.f32 %v2609, %v2610
        %v2612 = vand.u32 %v2611, 4294901760
        %2613 = vmatmul.f32.gmra.mxu0 %v2612
        %v2614 = vpop.f32.mrf.mxu0
        %v2615 = vadd.f32 0.0, %v2614
        %v2616 = vand.u32 %v2572, 4294901760
        %v2617 = vsub.f32 %v2572, %v2616
        %v2618 = vand.u32 %v2617, 4294901760
        %v2619 = vsub.f32 %v2617, %v2618
        %v2620 = vand.u32 %v2619, 4294901760
        %2621 = vmatmul.f32.gmra.mxu0 %v2620
        %v2622 = vpop.f32.mrf.mxu0
        %v2623 = vadd.f32 0.0, %v2622
        %2624 = vdwg.mxu0
        %2625 = vmatpush.msra.mxu0 0.0
        %2626 = vmatpush.msra.mxu0 0.0
        %2627 = vmatpush.msra.mxu0 0.0
        %2628 = vmatpush.msra.mxu0 0.0
        %2629 = vmatpush.msra.mxu0 0.0
        %2630 = vmatpush.msra.mxu0 0.0
        %2631 = vmatpush.msra.mxu0 0.0
        %2632 = vmatpush.msra.mxu0 0.0
        %2633 = vmatpush.msra.mxu0 0.0
        %2634 = vmatpush.msra.mxu0 0.0
        %2635 = vmatpush.msra.mxu0 0.0
        %2636 = vmatpush.msra.mxu0 0.0
        %v2637 = vand.u32 %v2575, 4294901760
        %v2638 = vsub.f32 %v2575, %v2637
        %v2639 = vand.u32 %v2638, 4294901760
        %v2640 = vsub.f32 %v2638, %v2639
        %v2641 = vand.u32 %v2640, 4294901760
        %2642 = vmatpush.msra.mxu0 %v2641
        %v2643 = vand.u32 %v2561, 4294901760
        %v2644 = vsub.f32 %v2561, %v2643
        %v2645 = vand.u32 %v2644, 4294901760
        %v2646 = vsub.f32 %v2644, %v2645
        %v2647 = vand.u32 %v2646, 4294901760
        %2648 = vmatpush.msra.mxu0 %v2647
        %v2649 = vand.u32 %v2559, 4294901760
        %v2650 = vsub.f32 %v2559, %v2649
        %v2651 = vand.u32 %v2650, 4294901760
        %v2652 = vsub.f32 %v2650, %v2651
        %v2653 = vand.u32 %v2652, 4294901760
        %2654 = vmatpush.msra.mxu0 %v2653
        %v2655 = vand.u32 %v2557, 4294901760
        %v2656 = vsub.f32 %v2557, %v2655
        %v2657 = vand.u32 %v2656, 4294901760
        %v2658 = vsub.f32 %v2656, %v2657
        %v2659 = vand.u32 %v2658, 4294901760
        %2660 = vmatpush.msra.mxu0 %v2659
        %v2661 = vand.u32 %v2566, 4294901760
        %2662 = vmatmul.f32.gmra.mxu0 %v2661
        %v2663 = vpop.f32.mrf.mxu0
        %v2664 = vadd.f32 %v2607, %v2663
        %v2665 = vand.u32 %v2569, 4294901760
        %2666 = vmatmul.f32.gmra.mxu0 %v2665
        %v2667 = vpop.f32.mrf.mxu0
        %v2668 = vadd.f32 %v2615, %v2667
        %v2669 = vand.u32 %v2572, 4294901760
        %2670 = vmatmul.f32.gmra.mxu0 %v2669
        %v2671 = vpop.f32.mrf.mxu0
        %v2672 = vadd.f32 %v2623, %v2671
        %2673 = vdwg.mxu0
        %2674 = vmatpush.msra.mxu0 0.0
        %2675 = vmatpush.msra.mxu0 0.0
        %2676 = vmatpush.msra.mxu0 0.0
        %2677 = vmatpush.msra.mxu0 0.0
        %2678 = vmatpush.msra.mxu0 0.0
        %2679 = vmatpush.msra.mxu0 0.0
        %2680 = vmatpush.msra.mxu0 0.0
        %2681 = vmatpush.msra.mxu0 0.0
        %2682 = vmatpush.msra.mxu0 0.0
        %2683 = vmatpush.msra.mxu0 0.0
        %2684 = vmatpush.msra.mxu0 0.0
        %2685 = vmatpush.msra.mxu0 0.0
        %v2686 = vand.u32 %v2575, 4294901760
        %v2687 = vsub.f32 %v2575, %v2686
        %2688 = vmatpush.msra.mxu0 %v2687
        %v2689 = vand.u32 %v2561, 4294901760
        %v2690 = vsub.f32 %v2561, %v2689
        %2691 = vmatpush.msra.mxu0 %v2690
        %v2692 = vand.u32 %v2559, 4294901760
        %v2693 = vsub.f32 %v2559, %v2692
        %2694 = vmatpush.msra.mxu0 %v2693
        %v2695 = vand.u32 %v2557, 4294901760
        %v2696 = vsub.f32 %v2557, %v2695
        %2697 = vmatpush.msra.mxu0 %v2696
        %v2698 = vand.u32 %v2566, 4294901760
        %v2699 = vsub.f32 %v2566, %v2698
        %2700 = vmatmul.f32.gmra.mxu0 %v2699
        %v2701 = vpop.f32.mrf.mxu0
        %v2702 = vadd.f32 %v2664, %v2701
        %v2703 = vand.u32 %v2569, 4294901760
        %v2704 = vsub.f32 %v2569, %v2703
        %2705 = vmatmul.f32.gmra.mxu0 %v2704
        %v2706 = vpop.f32.mrf.mxu0
        %v2707 = vadd.f32 %v2668, %v2706
        %v2708 = vand.u32 %v2572, 4294901760
        %v2709 = vsub.f32 %v2572, %v2708
        %2710 = vmatmul.f32.gmra.mxu0 %v2709
        %v2711 = vpop.f32.mrf.mxu0
        %v2712 = vadd.f32 %v2672, %v2711
        %2713 = vdwg.mxu0
        %2714 = vmatpush.msra.mxu0 0.0
        %2715 = vmatpush.msra.mxu0 0.0
        %2716 = vmatpush.msra.mxu0 0.0
        %2717 = vmatpush.msra.mxu0 0.0
        %2718 = vmatpush.msra.mxu0 0.0
        %2719 = vmatpush.msra.mxu0 0.0
        %2720 = vmatpush.msra.mxu0 0.0
        %2721 = vmatpush.msra.mxu0 0.0
        %2722 = vmatpush.msra.mxu0 0.0
        %2723 = vmatpush.msra.mxu0 0.0
        %2724 = vmatpush.msra.mxu0 0.0
        %2725 = vmatpush.msra.mxu0 0.0
        %v2726 = vand.u32 %v2575, 4294901760
        %2727 = vmatpush.msra.mxu0 %v2726
        %v2728 = vand.u32 %v2561, 4294901760
        %2729 = vmatpush.msra.mxu0 %v2728
        %v2730 = vand.u32 %v2559, 4294901760
        %2731 = vmatpush.msra.mxu0 %v2730
        %v2732 = vand.u32 %v2557, 4294901760
        %2733 = vmatpush.msra.mxu0 %v2732
        %v2734 = vand.u32 %v2566, 4294901760
        %v2735 = vsub.f32 %v2566, %v2734
        %v2736 = vand.u32 %v2735, 4294901760
        %2737 = vmatmul.f32.gmra.mxu0 %v2736
        %v2738 = vpop.f32.mrf.mxu0
        %v2739 = vadd.f32 %v2702, %v2738
        %v2740 = vand.u32 %v2569, 4294901760
        %v2741 = vsub.f32 %v2569, %v2740
        %v2742 = vand.u32 %v2741, 4294901760
        %2743 = vmatmul.f32.gmra.mxu0 %v2742
        %v2744 = vpop.f32.mrf.mxu0
        %v2745 = vadd.f32 %v2707, %v2744
        %v2746 = vand.u32 %v2572, 4294901760
        %v2747 = vsub.f32 %v2572, %v2746
        %v2748 = vand.u32 %v2747, 4294901760
        %2749 = vmatmul.f32.gmra.mxu0 %v2748
        %v2750 = vpop.f32.mrf.mxu0
        %v2751 = vadd.f32 %v2712, %v2750
        %2752 = vdwg.mxu0
        %2753 = vmatpush.msra.mxu0 0.0
        %2754 = vmatpush.msra.mxu0 0.0
        %2755 = vmatpush.msra.mxu0 0.0
        %2756 = vmatpush.msra.mxu0 0.0
        %2757 = vmatpush.msra.mxu0 0.0
        %2758 = vmatpush.msra.mxu0 0.0
        %2759 = vmatpush.msra.mxu0 0.0
        %2760 = vmatpush.msra.mxu0 0.0
        %2761 = vmatpush.msra.mxu0 0.0
        %2762 = vmatpush.msra.mxu0 0.0
        %2763 = vmatpush.msra.mxu0 0.0
        %2764 = vmatpush.msra.mxu0 0.0
        %v2765 = vand.u32 %v2575, 4294901760
        %v2766 = vsub.f32 %v2575, %v2765
        %v2767 = vand.u32 %v2766, 4294901760
        %2768 = vmatpush.msra.mxu0 %v2767
        %v2769 = vand.u32 %v2561, 4294901760
        %v2770 = vsub.f32 %v2561, %v2769
        %v2771 = vand.u32 %v2770, 4294901760
        %2772 = vmatpush.msra.mxu0 %v2771
        %v2773 = vand.u32 %v2559, 4294901760
        %v2774 = vsub.f32 %v2559, %v2773
        %v2775 = vand.u32 %v2774, 4294901760
        %2776 = vmatpush.msra.mxu0 %v2775
        %v2777 = vand.u32 %v2557, 4294901760
        %v2778 = vsub.f32 %v2557, %v2777
        %v2779 = vand.u32 %v2778, 4294901760
        %2780 = vmatpush.msra.mxu0 %v2779
        %v2781 = vand.u32 %v2566, 4294901760
        %2782 = vmatmul.f32.gmra.mxu0 %v2781
        %v2783 = vpop.f32.mrf.mxu0
        %v2784 = vadd.f32 %v2739, %v2783
        %v2785 = vand.u32 %v2569, 4294901760
        %2786 = vmatmul.f32.gmra.mxu0 %v2785
        %v2787 = vpop.f32.mrf.mxu0
        %v2788 = vadd.f32 %v2745, %v2787
        %v2789 = vand.u32 %v2572, 4294901760
        %2790 = vmatmul.f32.gmra.mxu0 %v2789
        %v2791 = vpop.f32.mrf.mxu0
        %v2792 = vadd.f32 %v2751, %v2791
        %2793 = vdwg.mxu0
        %2794 = vmatpush.msra.mxu0 0.0
        %2795 = vmatpush.msra.mxu0 0.0
        %2796 = vmatpush.msra.mxu0 0.0
        %2797 = vmatpush.msra.mxu0 0.0
        %2798 = vmatpush.msra.mxu0 0.0
        %2799 = vmatpush.msra.mxu0 0.0
        %2800 = vmatpush.msra.mxu0 0.0
        %2801 = vmatpush.msra.mxu0 0.0
        %2802 = vmatpush.msra.mxu0 0.0
        %2803 = vmatpush.msra.mxu0 0.0
        %2804 = vmatpush.msra.mxu0 0.0
        %2805 = vmatpush.msra.mxu0 0.0
        %v2806 = vand.u32 %v2575, 4294901760
        %2807 = vmatpush.msra.mxu0 %v2806
        %v2808 = vand.u32 %v2561, 4294901760
        %2809 = vmatpush.msra.mxu0 %v2808
        %v2810 = vand.u32 %v2559, 4294901760
        %2811 = vmatpush.msra.mxu0 %v2810
        %v2812 = vand.u32 %v2557, 4294901760
        %2813 = vmatpush.msra.mxu0 %v2812
        %v2814 = vand.u32 %v2566, 4294901760
        %2815 = vmatmul.f32.gmra.mxu0 %v2814
        %v2816 = vpop.f32.mrf.mxu0
        %v2817 = vadd.f32 %v2784, %v2816
        %v2818 = vand.u32 %v2569, 4294901760
        %2819 = vmatmul.f32.gmra.mxu0 %v2818
        %v2820 = vpop.f32.mrf.mxu0
        %v2821 = vadd.f32 %v2788, %v2820
        %v2822 = vand.u32 %v2572, 4294901760
        %2823 = vmatmul.f32.gmra.mxu0 %v2822
        %v2824 = vpop.f32.mrf.mxu0
        %v2825 = vadd.f32 %v2792, %v2824
        %2826 = vdwg.mxu0
        %2827 = vmatpush.msra.mxu0 0.0
        %2828 = vmatpush.msra.mxu0 0.0
        %2829 = vmatpush.msra.mxu0 0.0
        %2830 = vmatpush.msra.mxu0 0.0
        %2831 = vmatpush.msra.mxu0 0.0
        %2832 = vmatpush.msra.mxu0 0.0
        %2833 = vmatpush.msra.mxu0 0.0
        %2834 = vmatpush.msra.mxu0 0.0
        %2835 = vmatpush.msra.mxu0 0.0
        %2836 = vmatpush.msra.mxu0 0.0
        %2837 = vmatpush.msra.mxu0 0.0
        %2838 = vmatpush.msra.mxu0 0.0
        %v2839 = vand.u32 %v2578, 4294901760
        %2840 = vmatpush.msra.mxu0 %v2839
        %v2841 = vand.u32 %v2562, 4294901760
        %2842 = vmatpush.msra.mxu0 %v2841
        %v2843 = vand.u32 %v2560, 4294901760
        %2844 = vmatpush.msra.mxu0 %v2843
        %v2845 = vand.u32 %v2558, 4294901760
        %2846 = vmatpush.msra.mxu0 %v2845
        %v2847 = vand.u32 %v2566, 4294901760
        %v2848 = vsub.f32 %v2566, %v2847
        %v2849 = vand.u32 %v2848, 4294901760
        %v2850 = vsub.f32 %v2848, %v2849
        %v2851 = vand.u32 %v2850, 4294901760
        %2852 = vmatmul.f32.gmra.mxu0 %v2851
        %v2853 = vpop.f32.mrf.mxu0
        %v2854 = vadd.f32 0.0, %v2853
        %v2855 = vand.u32 %v2569, 4294901760
        %v2856 = vsub.f32 %v2569, %v2855
        %v2857 = vand.u32 %v2856, 4294901760
        %v2858 = vsub.f32 %v2856, %v2857
        %v2859 = vand.u32 %v2858, 4294901760
        %2860 = vmatmul.f32.gmra.mxu0 %v2859
        %v2861 = vpop.f32.mrf.mxu0
        %v2862 = vadd.f32 0.0, %v2861
        %v2863 = vand.u32 %v2572, 4294901760
        %v2864 = vsub.f32 %v2572, %v2863
        %v2865 = vand.u32 %v2864, 4294901760
        %v2866 = vsub.f32 %v2864, %v2865
        %v2867 = vand.u32 %v2866, 4294901760
        %2868 = vmatmul.f32.gmra.mxu0 %v2867
        %v2869 = vpop.f32.mrf.mxu0
        %v2870 = vadd.f32 0.0, %v2869
        %2871 = vdwg.mxu0
        %2872 = vmatpush.msra.mxu0 0.0
        %2873 = vmatpush.msra.mxu0 0.0
        %2874 = vmatpush.msra.mxu0 0.0
        %2875 = vmatpush.msra.mxu0 0.0
        %2876 = vmatpush.msra.mxu0 0.0
        %2877 = vmatpush.msra.mxu0 0.0
        %2878 = vmatpush.msra.mxu0 0.0
        %2879 = vmatpush.msra.mxu0 0.0
        %2880 = vmatpush.msra.mxu0 0.0
        %2881 = vmatpush.msra.mxu0 0.0
        %2882 = vmatpush.msra.mxu0 0.0
        %2883 = vmatpush.msra.mxu0 0.0
        %v2884 = vand.u32 %v2578, 4294901760
        %v2885 = vsub.f32 %v2578, %v2884
        %v2886 = vand.u32 %v2885, 4294901760
        %v2887 = vsub.f32 %v2885, %v2886
        %v2888 = vand.u32 %v2887, 4294901760
        %2889 = vmatpush.msra.mxu0 %v2888
        %v2890 = vand.u32 %v2562, 4294901760
        %v2891 = vsub.f32 %v2562, %v2890
        %v2892 = vand.u32 %v2891, 4294901760
        %v2893 = vsub.f32 %v2891, %v2892
        %v2894 = vand.u32 %v2893, 4294901760
        %2895 = vmatpush.msra.mxu0 %v2894
        %v2896 = vand.u32 %v2560, 4294901760
        %v2897 = vsub.f32 %v2560, %v2896
        %v2898 = vand.u32 %v2897, 4294901760
        %v2899 = vsub.f32 %v2897, %v2898
        %v2900 = vand.u32 %v2899, 4294901760
        %2901 = vmatpush.msra.mxu0 %v2900
        %v2902 = vand.u32 %v2558, 4294901760
        %v2903 = vsub.f32 %v2558, %v2902
        %v2904 = vand.u32 %v2903, 4294901760
        %v2905 = vsub.f32 %v2903, %v2904
        %v2906 = vand.u32 %v2905, 4294901760
        %2907 = vmatpush.msra.mxu0 %v2906
        %v2908 = vand.u32 %v2566, 4294901760
        %2909 = vmatmul.f32.gmra.mxu0 %v2908
        %v2910 = vpop.f32.mrf.mxu0
        %v2911 = vadd.f32 %v2854, %v2910
        %v2912 = vand.u32 %v2569, 4294901760
        %2913 = vmatmul.f32.gmra.mxu0 %v2912
        %v2914 = vpop.f32.mrf.mxu0
        %v2915 = vadd.f32 %v2862, %v2914
        %v2916 = vand.u32 %v2572, 4294901760
        %2917 = vmatmul.f32.gmra.mxu0 %v2916
        %v2918 = vpop.f32.mrf.mxu0
        %v2919 = vadd.f32 %v2870, %v2918
        %2920 = vdwg.mxu0
        %2921 = vmatpush.msra.mxu0 0.0
        %2922 = vmatpush.msra.mxu0 0.0
        %2923 = vmatpush.msra.mxu0 0.0
        %2924 = vmatpush.msra.mxu0 0.0
        %2925 = vmatpush.msra.mxu0 0.0
        %2926 = vmatpush.msra.mxu0 0.0
        %2927 = vmatpush.msra.mxu0 0.0
        %2928 = vmatpush.msra.mxu0 0.0
        %2929 = vmatpush.msra.mxu0 0.0
        %2930 = vmatpush.msra.mxu0 0.0
        %2931 = vmatpush.msra.mxu0 0.0
        %2932 = vmatpush.msra.mxu0 0.0
        %v2933 = vand.u32 %v2578, 4294901760
        %v2934 = vsub.f32 %v2578, %v2933
        %2935 = vmatpush.msra.mxu0 %v2934
        %v2936 = vand.u32 %v2562, 4294901760
        %v2937 = vsub.f32 %v2562, %v2936
        %2938 = vmatpush.msra.mxu0 %v2937
        %v2939 = vand.u32 %v2560, 4294901760
        %v2940 = vsub.f32 %v2560, %v2939
        %2941 = vmatpush.msra.mxu0 %v2940
        %v2942 = vand.u32 %v2558, 4294901760
        %v2943 = vsub.f32 %v2558, %v2942
        %2944 = vmatpush.msra.mxu0 %v2943
        %v2945 = vand.u32 %v2566, 4294901760
        %v2946 = vsub.f32 %v2566, %v2945
        %2947 = vmatmul.f32.gmra.mxu0 %v2946
        %v2948 = vpop.f32.mrf.mxu0
        %v2949 = vadd.f32 %v2911, %v2948
        %v2950 = vand.u32 %v2569, 4294901760
        %v2951 = vsub.f32 %v2569, %v2950
        %2952 = vmatmul.f32.gmra.mxu0 %v2951
        %v2953 = vpop.f32.mrf.mxu0
        %v2954 = vadd.f32 %v2915, %v2953
        %v2955 = vand.u32 %v2572, 4294901760
        %v2956 = vsub.f32 %v2572, %v2955
        %2957 = vmatmul.f32.gmra.mxu0 %v2956
        %v2958 = vpop.f32.mrf.mxu0
        %v2959 = vadd.f32 %v2919, %v2958
        %2960 = vdwg.mxu0
        %2961 = vmatpush.msra.mxu0 0.0
        %2962 = vmatpush.msra.mxu0 0.0
        %2963 = vmatpush.msra.mxu0 0.0
        %2964 = vmatpush.msra.mxu0 0.0
        %2965 = vmatpush.msra.mxu0 0.0
        %2966 = vmatpush.msra.mxu0 0.0
        %2967 = vmatpush.msra.mxu0 0.0
        %2968 = vmatpush.msra.mxu0 0.0
        %2969 = vmatpush.msra.mxu0 0.0
        %2970 = vmatpush.msra.mxu0 0.0
        %2971 = vmatpush.msra.mxu0 0.0
        %2972 = vmatpush.msra.mxu0 0.0
        %v2973 = vand.u32 %v2578, 4294901760
        %2974 = vmatpush.msra.mxu0 %v2973
        %v2975 = vand.u32 %v2562, 4294901760
        %2976 = vmatpush.msra.mxu0 %v2975
        %v2977 = vand.u32 %v2560, 4294901760
        %2978 = vmatpush.msra.mxu0 %v2977
        %v2979 = vand.u32 %v2558, 4294901760
        %2980 = vmatpush.msra.mxu0 %v2979
        %v2981 = vand.u32 %v2566, 4294901760
        %v2982 = vsub.f32 %v2566, %v2981
        %v2983 = vand.u32 %v2982, 4294901760
        %2984 = vmatmul.f32.gmra.mxu0 %v2983
        %v2985 = vpop.f32.mrf.mxu0
        %v2986 = vadd.f32 %v2949, %v2985
        %v2987 = vand.u32 %v2569, 4294901760
        %v2988 = vsub.f32 %v2569, %v2987
        %v2989 = vand.u32 %v2988, 4294901760
        %2990 = vmatmul.f32.gmra.mxu0 %v2989
        %v2991 = vpop.f32.mrf.mxu0
        %v2992 = vadd.f32 %v2954, %v2991
        %v2993 = vand.u32 %v2572, 4294901760
        %v2994 = vsub.f32 %v2572, %v2993
        %v2995 = vand.u32 %v2994, 4294901760
        %2996 = vmatmul.f32.gmra.mxu0 %v2995
        %v2997 = vpop.f32.mrf.mxu0
        %v2998 = vadd.f32 %v2959, %v2997
        %2999 = vdwg.mxu0
        %3000 = vmatpush.msra.mxu0 0.0
        %3001 = vmatpush.msra.mxu0 0.0
        %3002 = vmatpush.msra.mxu0 0.0
        %3003 = vmatpush.msra.mxu0 0.0
        %3004 = vmatpush.msra.mxu0 0.0
        %3005 = vmatpush.msra.mxu0 0.0
        %3006 = vmatpush.msra.mxu0 0.0
        %3007 = vmatpush.msra.mxu0 0.0
        %3008 = vmatpush.msra.mxu0 0.0
        %3009 = vmatpush.msra.mxu0 0.0
        %3010 = vmatpush.msra.mxu0 0.0
        %3011 = vmatpush.msra.mxu0 0.0
        %v3012 = vand.u32 %v2578, 4294901760
        %v3013 = vsub.f32 %v2578, %v3012
        %v3014 = vand.u32 %v3013, 4294901760
        %3015 = vmatpush.msra.mxu0 %v3014
        %v3016 = vand.u32 %v2562, 4294901760
        %v3017 = vsub.f32 %v2562, %v3016
        %v3018 = vand.u32 %v3017, 4294901760
        %3019 = vmatpush.msra.mxu0 %v3018
        %v3020 = vand.u32 %v2560, 4294901760
        %v3021 = vsub.f32 %v2560, %v3020
        %v3022 = vand.u32 %v3021, 4294901760
        %3023 = vmatpush.msra.mxu0 %v3022
        %v3024 = vand.u32 %v2558, 4294901760
        %v3025 = vsub.f32 %v2558, %v3024
        %v3026 = vand.u32 %v3025, 4294901760
        %3027 = vmatpush.msra.mxu0 %v3026
        %v3028 = vand.u32 %v2566, 4294901760
        %3029 = vmatmul.f32.gmra.mxu0 %v3028
        %v3030 = vpop.f32.mrf.mxu0
        %v3031 = vadd.f32 %v2986, %v3030
        %v3032 = vand.u32 %v2569, 4294901760
        %3033 = vmatmul.f32.gmra.mxu0 %v3032
        %v3034 = vpop.f32.mrf.mxu0
        %v3035 = vadd.f32 %v2992, %v3034
        %v3036 = vand.u32 %v2572, 4294901760
        %3037 = vmatmul.f32.gmra.mxu0 %v3036
        %v3038 = vpop.f32.mrf.mxu0
        %v3039 = vadd.f32 %v2998, %v3038
        %3040 = vdwg.mxu0
        %3041 = vmatpush.msra.mxu0 0.0
        %3042 = vmatpush.msra.mxu0 0.0
        %3043 = vmatpush.msra.mxu0 0.0
        %3044 = vmatpush.msra.mxu0 0.0
        %3045 = vmatpush.msra.mxu0 0.0
        %3046 = vmatpush.msra.mxu0 0.0
        %3047 = vmatpush.msra.mxu0 0.0
        %3048 = vmatpush.msra.mxu0 0.0
        %3049 = vmatpush.msra.mxu0 0.0
        %3050 = vmatpush.msra.mxu0 0.0
        %3051 = vmatpush.msra.mxu0 0.0
        %3052 = vmatpush.msra.mxu0 0.0
        %v3053 = vand.u32 %v2578, 4294901760
        %3054 = vmatpush.msra.mxu0 %v3053
        %v3055 = vand.u32 %v2562, 4294901760
        %3056 = vmatpush.msra.mxu0 %v3055
        %v3057 = vand.u32 %v2560, 4294901760
        %3058 = vmatpush.msra.mxu0 %v3057
        %v3059 = vand.u32 %v2558, 4294901760
        %3060 = vmatpush.msra.mxu0 %v3059
        %v3061 = vand.u32 %v2566, 4294901760
        %3062 = vmatmul.f32.gmra.mxu0 %v3061
        %v3063 = vpop.f32.mrf.mxu0
        %v3064 = vadd.f32 %v3031, %v3063
        %v3065 = vand.u32 %v2569, 4294901760
        %3066 = vmatmul.f32.gmra.mxu0 %v3065
        %v3067 = vpop.f32.mrf.mxu0
        %v3068 = vadd.f32 %v3035, %v3067
        %v3069 = vand.u32 %v2572, 4294901760
        %3070 = vmatmul.f32.gmra.mxu0 %v3069
        %v3071 = vpop.f32.mrf.mxu0
        %v3072 = vadd.f32 %v3039, %v3071
        %3073 = vdwg.mxu0
        %v3074 = vadd.f32 %v2547, %v2817
        %v3075 = vadd.f32 %v2548, %v3064
        %v3076 = vadd.f32 %v2549, %v2821
        %v3077 = vadd.f32 %v2550, %v3068
        %v3078 = vadd.f32 %v2551, %v2825
        %v3079 = vadd.f32 %v2552, %v3072
        %v3080 = vmax.f32 %v3074, 0.0
        %v3081 = vmax.f32 %v3075, 0.0
        %v3082 = vmax.f32 %v3076, 0.0
        %v3083 = vmax.f32 %v3077, 0.0
        %v3084 = vmax.f32 %v3078, 0.0
        %v3085 = vmax.f32 %v3079, 0.0
        %v3086 = vld [vmem:[%s3] sm:$0xff]
        %v3087 = vld [vmem:[%s3 + $0x8] sm:$0xff]
        %v3088 = vld [vmem:[%s3 + $0x10] sm:$0xff]
        %v3089 = vld [vmem:[%s3 + $0x18] sm:$0xff]
        %v3090 = vld [vmem:[%s3 + $0x20] sm:$0xff]
        %v3091 = vld [vmem:[%s3 + $0x28] sm:$0xff]
        %v3092 = vld [vmem:[%s3 + $0x30] sm:$0xff]
        %v3093 = vld [vmem:[%s3 + $0x38] sm:$0xff]
        %v3094 = vld [vmem:[%s3 + $0x40] sm:$0xff]
        %v3095 = vld [vmem:[%s3 + $0x48] sm:$0xff]
        %v3096 = vld [vmem:[%s3 + $0x50] sm:$0xff]
        %v3097 = vld [vmem:[%s3 + $0x58] sm:$0xff]
        %v3098 = vld [vmem:[%s3 + $0x60] sm:$0xff]
        %v3099 = vld [vmem:[%s3 + $0x68] sm:$0xff]
        %v3100 = vld [vmem:[%s3 + $0x70] sm:$0xff]
        %v3101 = vld [vmem:[%s3 + $0x78] sm:$0xff]
        %v3102 = vld [vmem:[%s3 + $0x80] sm:$0xff]
        %v3103 = vld [vmem:[%s3 + $0x88] sm:$0xff]
        %vm3104 = vcmask 130048
        %v3106 = vsel %vm3104, %v3081, 0
        %v3109 = vsel %vm3104, %v3083, 0
        %v3112 = vsel %vm3104, %v3085, 0
        %v3114 = vand.u32 %v3101, 4294901760
        %3115 = vmatpush.msra.mxu0 %v3114
        %v3116 = vand.u32 %v3100, 4294901760
        %3117 = vmatpush.msra.mxu0 %v3116
        %v3118 = vand.u32 %v3099, 4294901760
        %3119 = vmatpush.msra.mxu0 %v3118
        %v3120 = vand.u32 %v3098, 4294901760
        %3121 = vmatpush.msra.mxu0 %v3120
        %v3122 = vand.u32 %v3097, 4294901760
        %3123 = vmatpush.msra.mxu0 %v3122
        %v3124 = vand.u32 %v3096, 4294901760
        %3125 = vmatpush.msra.mxu0 %v3124
        %v3126 = vand.u32 %v3095, 4294901760
        %3127 = vmatpush.msra.mxu0 %v3126
        %v3128 = vand.u32 %v3094, 4294901760
        %3129 = vmatpush.msra.mxu0 %v3128
        %v3130 = vand.u32 %v3093, 4294901760
        %3131 = vmatpush.msra.mxu0 %v3130
        %v3132 = vand.u32 %v3092, 4294901760
        %3133 = vmatpush.msra.mxu0 %v3132
        %v3134 = vand.u32 %v3091, 4294901760
        %3135 = vmatpush.msra.mxu0 %v3134
        %v3136 = vand.u32 %v3090, 4294901760
        %3137 = vmatpush.msra.mxu0 %v3136
        %v3138 = vand.u32 %v3089, 4294901760
        %3139 = vmatpush.msra.mxu0 %v3138
        %v3140 = vand.u32 %v3088, 4294901760
        %3141 = vmatpush.msra.mxu0 %v3140
        %v3142 = vand.u32 %v3087, 4294901760
        %3143 = vmatpush.msra.mxu0 %v3142
        %v3144 = vand.u32 %v3086, 4294901760
        %3145 = vmatpush.msra.mxu0 %v3144
        %v3146 = vand.u32 %v3080, 4294901760
        %v3147 = vsub.f32 %v3080, %v3146
        %v3148 = vand.u32 %v3147, 4294901760
        %v3149 = vsub.f32 %v3147, %v3148
        %v3150 = vand.u32 %v3149, 4294901760
        %3151 = vmatmul.f32.gmra.mxu0 %v3150
        %v3152 = vpop.f32.mrf.mxu0
        %v3153 = vadd.f32 0.0, %v3152
        %v3154 = vand.u32 %v3082, 4294901760
        %v3155 = vsub.f32 %v3082, %v3154
        %v3156 = vand.u32 %v3155, 4294901760
        %v3157 = vsub.f32 %v3155, %v3156
        %v3158 = vand.u32 %v3157, 4294901760
        %3159 = vmatmul.f32.gmra.mxu0 %v3158
        %v3160 = vpop.f32.mrf.mxu0
        %v3161 = vadd.f32 0.0, %v3160
        %v3162 = vand.u32 %v3084, 4294901760
        %v3163 = vsub.f32 %v3084, %v3162
        %v3164 = vand.u32 %v3163, 4294901760
        %v3165 = vsub.f32 %v3163, %v3164
        %v3166 = vand.u32 %v3165, 4294901760
        %3167 = vmatmul.f32.gmra.mxu0 %v3166
        %v3168 = vpop.f32.mrf.mxu0
        %v3169 = vadd.f32 0.0, %v3168
        %3170 = vdwg.mxu0
        %v3171 = vand.u32 %v3101, 4294901760
        %v3172 = vsub.f32 %v3101, %v3171
        %v3173 = vand.u32 %v3172, 4294901760
        %v3174 = vsub.f32 %v3172, %v3173
        %v3175 = vand.u32 %v3174, 4294901760
        %3176 = vmatpush.msra.mxu0 %v3175
        %v3177 = vand.u32 %v3100, 4294901760
        %v3178 = vsub.f32 %v3100, %v3177
        %v3179 = vand.u32 %v3178, 4294901760
        %v3180 = vsub.f32 %v3178, %v3179
        %v3181 = vand.u32 %v3180, 4294901760
        %3182 = vmatpush.msra.mxu0 %v3181
        %v3183 = vand.u32 %v3099, 4294901760
        %v3184 = vsub.f32 %v3099, %v3183
        %v3185 = vand.u32 %v3184, 4294901760
        %v3186 = vsub.f32 %v3184, %v3185
        %v3187 = vand.u32 %v3186, 4294901760
        %3188 = vmatpush.msra.mxu0 %v3187
        %v3189 = vand.u32 %v3098, 4294901760
        %v3190 = vsub.f32 %v3098, %v3189
        %v3191 = vand.u32 %v3190, 4294901760
        %v3192 = vsub.f32 %v3190, %v3191
        %v3193 = vand.u32 %v3192, 4294901760
        %3194 = vmatpush.msra.mxu0 %v3193
        %v3195 = vand.u32 %v3097, 4294901760
        %v3196 = vsub.f32 %v3097, %v3195
        %v3197 = vand.u32 %v3196, 4294901760
        %v3198 = vsub.f32 %v3196, %v3197
        %v3199 = vand.u32 %v3198, 4294901760
        %3200 = vmatpush.msra.mxu0 %v3199
        %v3201 = vand.u32 %v3096, 4294901760
        %v3202 = vsub.f32 %v3096, %v3201
        %v3203 = vand.u32 %v3202, 4294901760
        %v3204 = vsub.f32 %v3202, %v3203
        %v3205 = vand.u32 %v3204, 4294901760
        %3206 = vmatpush.msra.mxu0 %v3205
        %v3207 = vand.u32 %v3095, 4294901760
        %v3208 = vsub.f32 %v3095, %v3207
        %v3209 = vand.u32 %v3208, 4294901760
        %v3210 = vsub.f32 %v3208, %v3209
        %v3211 = vand.u32 %v3210, 4294901760
        %3212 = vmatpush.msra.mxu0 %v3211
        %v3213 = vand.u32 %v3094, 4294901760
        %v3214 = vsub.f32 %v3094, %v3213
        %v3215 = vand.u32 %v3214, 4294901760
        %v3216 = vsub.f32 %v3214, %v3215
        %v3217 = vand.u32 %v3216, 4294901760
        %3218 = vmatpush.msra.mxu0 %v3217
        %v3219 = vand.u32 %v3093, 4294901760
        %v3220 = vsub.f32 %v3093, %v3219
        %v3221 = vand.u32 %v3220, 4294901760
        %v3222 = vsub.f32 %v3220, %v3221
        %v3223 = vand.u32 %v3222, 4294901760
        %3224 = vmatpush.msra.mxu0 %v3223
        %v3225 = vand.u32 %v3092, 4294901760
        %v3226 = vsub.f32 %v3092, %v3225
        %v3227 = vand.u32 %v3226, 4294901760
        %v3228 = vsub.f32 %v3226, %v3227
        %v3229 = vand.u32 %v3228, 4294901760
        %3230 = vmatpush.msra.mxu0 %v3229
        %v3231 = vand.u32 %v3091, 4294901760
        %v3232 = vsub.f32 %v3091, %v3231
        %v3233 = vand.u32 %v3232, 4294901760
        %v3234 = vsub.f32 %v3232, %v3233
        %v3235 = vand.u32 %v3234, 4294901760
        %3236 = vmatpush.msra.mxu0 %v3235
        %v3237 = vand.u32 %v3090, 4294901760
        %v3238 = vsub.f32 %v3090, %v3237
        %v3239 = vand.u32 %v3238, 4294901760
        %v3240 = vsub.f32 %v3238, %v3239
        %v3241 = vand.u32 %v3240, 4294901760
        %3242 = vmatpush.msra.mxu0 %v3241
        %v3243 = vand.u32 %v3089, 4294901760
        %v3244 = vsub.f32 %v3089, %v3243
        %v3245 = vand.u32 %v3244, 4294901760
        %v3246 = vsub.f32 %v3244, %v3245
        %v3247 = vand.u32 %v3246, 4294901760
        %3248 = vmatpush.msra.mxu0 %v3247
        %v3249 = vand.u32 %v3088, 4294901760
        %v3250 = vsub.f32 %v3088, %v3249
        %v3251 = vand.u32 %v3250, 4294901760
        %v3252 = vsub.f32 %v3250, %v3251
        %v3253 = vand.u32 %v3252, 4294901760
        %3254 = vmatpush.msra.mxu0 %v3253
        %v3255 = vand.u32 %v3087, 4294901760
        %v3256 = vsub.f32 %v3087, %v3255
        %v3257 = vand.u32 %v3256, 4294901760
        %v3258 = vsub.f32 %v3256, %v3257
        %v3259 = vand.u32 %v3258, 4294901760
        %3260 = vmatpush.msra.mxu0 %v3259
        %v3261 = vand.u32 %v3086, 4294901760
        %v3262 = vsub.f32 %v3086, %v3261
        %v3263 = vand.u32 %v3262, 4294901760
        %v3264 = vsub.f32 %v3262, %v3263
        %v3265 = vand.u32 %v3264, 4294901760
        %3266 = vmatpush.msra.mxu0 %v3265
        %v3267 = vand.u32 %v3080, 4294901760
        %3268 = vmatmul.f32.gmra.mxu0 %v3267
        %v3269 = vpop.f32.mrf.mxu0
        %v3270 = vadd.f32 %v3153, %v3269
        %v3271 = vand.u32 %v3082, 4294901760
        %3272 = vmatmul.f32.gmra.mxu0 %v3271
        %v3273 = vpop.f32.mrf.mxu0
        %v3274 = vadd.f32 %v3161, %v3273
        %v3275 = vand.u32 %v3084, 4294901760
        %3276 = vmatmul.f32.gmra.mxu0 %v3275
        %v3277 = vpop.f32.mrf.mxu0
        %v3278 = vadd.f32 %v3169, %v3277
        %3279 = vdwg.mxu0
        %v3280 = vand.u32 %v3101, 4294901760
        %v3281 = vsub.f32 %v3101, %v3280
        %3282 = vmatpush.msra.mxu0 %v3281
        %v3283 = vand.u32 %v3100, 4294901760
        %v3284 = vsub.f32 %v3100, %v3283
        %3285 = vmatpush.msra.mxu0 %v3284
        %v3286 = vand.u32 %v3099, 4294901760
        %v3287 = vsub.f32 %v3099, %v3286
        %3288 = vmatpush.msra.mxu0 %v3287
        %v3289 = vand.u32 %v3098, 4294901760
        %v3290 = vsub.f32 %v3098, %v3289
        %3291 = vmatpush.msra.mxu0 %v3290
        %v3292 = vand.u32 %v3097, 4294901760
        %v3293 = vsub.f32 %v3097, %v3292
        %3294 = vmatpush.msra.mxu0 %v3293
        %v3295 = vand.u32 %v3096, 4294901760
        %v3296 = vsub.f32 %v3096, %v3295
        %3297 = vmatpush.msra.mxu0 %v3296
        %v3298 = vand.u32 %v3095, 4294901760
        %v3299 = vsub.f32 %v3095, %v3298
        %3300 = vmatpush.msra.mxu0 %v3299
        %v3301 = vand.u32 %v3094, 4294901760
        %v3302 = vsub.f32 %v3094, %v3301
        %3303 = vmatpush.msra.mxu0 %v3302
        %v3304 = vand.u32 %v3093, 4294901760
        %v3305 = vsub.f32 %v3093, %v3304
        %3306 = vmatpush.msra.mxu0 %v3305
        %v3307 = vand.u32 %v3092, 4294901760
        %v3308 = vsub.f32 %v3092, %v3307
        %3309 = vmatpush.msra.mxu0 %v3308
        %v3310 = vand.u32 %v3091, 4294901760
        %v3311 = vsub.f32 %v3091, %v3310
        %3312 = vmatpush.msra.mxu0 %v3311
        %v3313 = vand.u32 %v3090, 4294901760
        %v3314 = vsub.f32 %v3090, %v3313
        %3315 = vmatpush.msra.mxu0 %v3314
        %v3316 = vand.u32 %v3089, 4294901760
        %v3317 = vsub.f32 %v3089, %v3316
        %3318 = vmatpush.msra.mxu0 %v3317
        %v3319 = vand.u32 %v3088, 4294901760
        %v3320 = vsub.f32 %v3088, %v3319
        %3321 = vmatpush.msra.mxu0 %v3320
        %v3322 = vand.u32 %v3087, 4294901760
        %v3323 = vsub.f32 %v3087, %v3322
        %3324 = vmatpush.msra.mxu0 %v3323
        %v3325 = vand.u32 %v3086, 4294901760
        %v3326 = vsub.f32 %v3086, %v3325
        %3327 = vmatpush.msra.mxu0 %v3326
        %v3328 = vand.u32 %v3080, 4294901760
        %v3329 = vsub.f32 %v3080, %v3328
        %3330 = vmatmul.f32.gmra.mxu0 %v3329
        %v3331 = vpop.f32.mrf.mxu0
        %v3332 = vadd.f32 %v3270, %v3331
        %v3333 = vand.u32 %v3082, 4294901760
        %v3334 = vsub.f32 %v3082, %v3333
        %3335 = vmatmul.f32.gmra.mxu0 %v3334
        %v3336 = vpop.f32.mrf.mxu0
        %v3337 = vadd.f32 %v3274, %v3336
        %v3338 = vand.u32 %v3084, 4294901760
        %v3339 = vsub.f32 %v3084, %v3338
        %3340 = vmatmul.f32.gmra.mxu0 %v3339
        %v3341 = vpop.f32.mrf.mxu0
        %v3342 = vadd.f32 %v3278, %v3341
        %3343 = vdwg.mxu0
        %v3344 = vand.u32 %v3101, 4294901760
        %3345 = vmatpush.msra.mxu0 %v3344
        %v3346 = vand.u32 %v3100, 4294901760
        %3347 = vmatpush.msra.mxu0 %v3346
        %v3348 = vand.u32 %v3099, 4294901760
        %3349 = vmatpush.msra.mxu0 %v3348
        %v3350 = vand.u32 %v3098, 4294901760
        %3351 = vmatpush.msra.mxu0 %v3350
        %v3352 = vand.u32 %v3097, 4294901760
        %3353 = vmatpush.msra.mxu0 %v3352
        %v3354 = vand.u32 %v3096, 4294901760
        %3355 = vmatpush.msra.mxu0 %v3354
        %v3356 = vand.u32 %v3095, 4294901760
        %3357 = vmatpush.msra.mxu0 %v3356
        %v3358 = vand.u32 %v3094, 4294901760
        %3359 = vmatpush.msra.mxu0 %v3358
        %v3360 = vand.u32 %v3093, 4294901760
        %3361 = vmatpush.msra.mxu0 %v3360
        %v3362 = vand.u32 %v3092, 4294901760
        %3363 = vmatpush.msra.mxu0 %v3362
        %v3364 = vand.u32 %v3091, 4294901760
        %3365 = vmatpush.msra.mxu0 %v3364
        %v3366 = vand.u32 %v3090, 4294901760
        %3367 = vmatpush.msra.mxu0 %v3366
        %v3368 = vand.u32 %v3089, 4294901760
        %3369 = vmatpush.msra.mxu0 %v3368
        %v3370 = vand.u32 %v3088, 4294901760
        %3371 = vmatpush.msra.mxu0 %v3370
        %v3372 = vand.u32 %v3087, 4294901760
        %3373 = vmatpush.msra.mxu0 %v3372
        %v3374 = vand.u32 %v3086, 4294901760
        %3375 = vmatpush.msra.mxu0 %v3374
        %v3376 = vand.u32 %v3080, 4294901760
        %v3377 = vsub.f32 %v3080, %v3376
        %v3378 = vand.u32 %v3377, 4294901760
        %3379 = vmatmul.f32.gmra.mxu0 %v3378
        %v3380 = vpop.f32.mrf.mxu0
        %v3381 = vadd.f32 %v3332, %v3380
        %v3382 = vand.u32 %v3082, 4294901760
        %v3383 = vsub.f32 %v3082, %v3382
        %v3384 = vand.u32 %v3383, 4294901760
        %3385 = vmatmul.f32.gmra.mxu0 %v3384
        %v3386 = vpop.f32.mrf.mxu0
        %v3387 = vadd.f32 %v3337, %v3386
        %v3388 = vand.u32 %v3084, 4294901760
        %v3389 = vsub.f32 %v3084, %v3388
        %v3390 = vand.u32 %v3389, 4294901760
        %3391 = vmatmul.f32.gmra.mxu0 %v3390
        %v3392 = vpop.f32.mrf.mxu0
        %v3393 = vadd.f32 %v3342, %v3392
        %3394 = vdwg.mxu0
        %v3395 = vand.u32 %v3101, 4294901760
        %v3396 = vsub.f32 %v3101, %v3395
        %v3397 = vand.u32 %v3396, 4294901760
        %3398 = vmatpush.msra.mxu0 %v3397
        %v3399 = vand.u32 %v3100, 4294901760
        %v3400 = vsub.f32 %v3100, %v3399
        %v3401 = vand.u32 %v3400, 4294901760
        %3402 = vmatpush.msra.mxu0 %v3401
        %v3403 = vand.u32 %v3099, 4294901760
        %v3404 = vsub.f32 %v3099, %v3403
        %v3405 = vand.u32 %v3404, 4294901760
        %3406 = vmatpush.msra.mxu0 %v3405
        %v3407 = vand.u32 %v3098, 4294901760
        %v3408 = vsub.f32 %v3098, %v3407
        %v3409 = vand.u32 %v3408, 4294901760
        %3410 = vmatpush.msra.mxu0 %v3409
        %v3411 = vand.u32 %v3097, 4294901760
        %v3412 = vsub.f32 %v3097, %v3411
        %v3413 = vand.u32 %v3412, 4294901760
        %3414 = vmatpush.msra.mxu0 %v3413
        %v3415 = vand.u32 %v3096, 4294901760
        %v3416 = vsub.f32 %v3096, %v3415
        %v3417 = vand.u32 %v3416, 4294901760
        %3418 = vmatpush.msra.mxu0 %v3417
        %v3419 = vand.u32 %v3095, 4294901760
        %v3420 = vsub.f32 %v3095, %v3419
        %v3421 = vand.u32 %v3420, 4294901760
        %3422 = vmatpush.msra.mxu0 %v3421
        %v3423 = vand.u32 %v3094, 4294901760
        %v3424 = vsub.f32 %v3094, %v3423
        %v3425 = vand.u32 %v3424, 4294901760
        %3426 = vmatpush.msra.mxu0 %v3425
        %v3427 = vand.u32 %v3093, 4294901760
        %v3428 = vsub.f32 %v3093, %v3427
        %v3429 = vand.u32 %v3428, 4294901760
        %3430 = vmatpush.msra.mxu0 %v3429
        %v3431 = vand.u32 %v3092, 4294901760
        %v3432 = vsub.f32 %v3092, %v3431
        %v3433 = vand.u32 %v3432, 4294901760
        %3434 = vmatpush.msra.mxu0 %v3433
        %v3435 = vand.u32 %v3091, 4294901760
        %v3436 = vsub.f32 %v3091, %v3435
        %v3437 = vand.u32 %v3436, 4294901760
        %3438 = vmatpush.msra.mxu0 %v3437
        %v3439 = vand.u32 %v3090, 4294901760
        %v3440 = vsub.f32 %v3090, %v3439
        %v3441 = vand.u32 %v3440, 4294901760
        %3442 = vmatpush.msra.mxu0 %v3441
        %v3443 = vand.u32 %v3089, 4294901760
        %v3444 = vsub.f32 %v3089, %v3443
        %v3445 = vand.u32 %v3444, 4294901760
        %3446 = vmatpush.msra.mxu0 %v3445
        %v3447 = vand.u32 %v3088, 4294901760
        %v3448 = vsub.f32 %v3088, %v3447
        %v3449 = vand.u32 %v3448, 4294901760
        %3450 = vmatpush.msra.mxu0 %v3449
        %v3451 = vand.u32 %v3087, 4294901760
        %v3452 = vsub.f32 %v3087, %v3451
        %v3453 = vand.u32 %v3452, 4294901760
        %3454 = vmatpush.msra.mxu0 %v3453
        %v3455 = vand.u32 %v3086, 4294901760
        %v3456 = vsub.f32 %v3086, %v3455
        %v3457 = vand.u32 %v3456, 4294901760
        %3458 = vmatpush.msra.mxu0 %v3457
        %v3459 = vand.u32 %v3080, 4294901760
        %3460 = vmatmul.f32.gmra.mxu0 %v3459
        %v3461 = vpop.f32.mrf.mxu0
        %v3462 = vadd.f32 %v3381, %v3461
        %v3463 = vand.u32 %v3082, 4294901760
        %3464 = vmatmul.f32.gmra.mxu0 %v3463
        %v3465 = vpop.f32.mrf.mxu0
        %v3466 = vadd.f32 %v3387, %v3465
        %v3467 = vand.u32 %v3084, 4294901760
        %3468 = vmatmul.f32.gmra.mxu0 %v3467
        %v3469 = vpop.f32.mrf.mxu0
        %v3470 = vadd.f32 %v3393, %v3469
        %3471 = vdwg.mxu0
        %v3472 = vand.u32 %v3101, 4294901760
        %3473 = vmatpush.msra.mxu0 %v3472
        %v3474 = vand.u32 %v3100, 4294901760
        %3475 = vmatpush.msra.mxu0 %v3474
        %v3476 = vand.u32 %v3099, 4294901760
        %3477 = vmatpush.msra.mxu0 %v3476
        %v3478 = vand.u32 %v3098, 4294901760
        %3479 = vmatpush.msra.mxu0 %v3478
        %v3480 = vand.u32 %v3097, 4294901760
        %3481 = vmatpush.msra.mxu0 %v3480
        %v3482 = vand.u32 %v3096, 4294901760
        %3483 = vmatpush.msra.mxu0 %v3482
        %v3484 = vand.u32 %v3095, 4294901760
        %3485 = vmatpush.msra.mxu0 %v3484
        %v3486 = vand.u32 %v3094, 4294901760
        %3487 = vmatpush.msra.mxu0 %v3486
        %v3488 = vand.u32 %v3093, 4294901760
        %3489 = vmatpush.msra.mxu0 %v3488
        %v3490 = vand.u32 %v3092, 4294901760
        %3491 = vmatpush.msra.mxu0 %v3490
        %v3492 = vand.u32 %v3091, 4294901760
        %3493 = vmatpush.msra.mxu0 %v3492
        %v3494 = vand.u32 %v3090, 4294901760
        %3495 = vmatpush.msra.mxu0 %v3494
        %v3496 = vand.u32 %v3089, 4294901760
        %3497 = vmatpush.msra.mxu0 %v3496
        %v3498 = vand.u32 %v3088, 4294901760
        %3499 = vmatpush.msra.mxu0 %v3498
        %v3500 = vand.u32 %v3087, 4294901760
        %3501 = vmatpush.msra.mxu0 %v3500
        %v3502 = vand.u32 %v3086, 4294901760
        %3503 = vmatpush.msra.mxu0 %v3502
        %v3504 = vand.u32 %v3080, 4294901760
        %3505 = vmatmul.f32.gmra.mxu0 %v3504
        %v3506 = vpop.f32.mrf.mxu0
        %v3507 = vadd.f32 %v3462, %v3506
        %v3508 = vand.u32 %v3082, 4294901760
        %3509 = vmatmul.f32.gmra.mxu0 %v3508
        %v3510 = vpop.f32.mrf.mxu0
        %v3511 = vadd.f32 %v3466, %v3510
        %v3512 = vand.u32 %v3084, 4294901760
        %3513 = vmatmul.f32.gmra.mxu0 %v3512
        %v3514 = vpop.f32.mrf.mxu0
        %v3515 = vadd.f32 %v3470, %v3514
        %3516 = vdwg.mxu0
        %3517 = vmatpush.msra.mxu0 0.0
        %3518 = vmatpush.msra.mxu0 0.0
        %3519 = vmatpush.msra.mxu0 0.0
        %3520 = vmatpush.msra.mxu0 0.0
        %3521 = vmatpush.msra.mxu0 0.0
        %3522 = vmatpush.msra.mxu0 0.0
        %3523 = vmatpush.msra.mxu0 0.0
        %3524 = vmatpush.msra.mxu0 0.0
        %3525 = vmatpush.msra.mxu0 0.0
        %3526 = vmatpush.msra.mxu0 0.0
        %3527 = vmatpush.msra.mxu0 0.0
        %3528 = vmatpush.msra.mxu0 0.0
        %3529 = vmatpush.msra.mxu0 0.0
        %3530 = vmatpush.msra.mxu0 0.0
        %v3531 = vand.u32 %v3103, 4294901760
        %3532 = vmatpush.msra.mxu0 %v3531
        %v3533 = vand.u32 %v3102, 4294901760
        %3534 = vmatpush.msra.mxu0 %v3533
        %v3535 = vand.u32 %v3106, 4294901760
        %v3536 = vsub.f32 %v3106, %v3535
        %v3537 = vand.u32 %v3536, 4294901760
        %v3538 = vsub.f32 %v3536, %v3537
        %v3539 = vand.u32 %v3538, 4294901760
        %3540 = vmatmul.f32.gmra.mxu0 %v3539
        %v3541 = vpop.f32.mrf.mxu0
        %v3542 = vadd.f32 %v3507, %v3541
        %v3543 = vand.u32 %v3109, 4294901760
        %v3544 = vsub.f32 %v3109, %v3543
        %v3545 = vand.u32 %v3544, 4294901760
        %v3546 = vsub.f32 %v3544, %v3545
        %v3547 = vand.u32 %v3546, 4294901760
        %3548 = vmatmul.f32.gmra.mxu0 %v3547
        %v3549 = vpop.f32.mrf.mxu0
        %v3550 = vadd.f32 %v3511, %v3549
        %v3551 = vand.u32 %v3112, 4294901760
        %v3552 = vsub.f32 %v3112, %v3551
        %v3553 = vand.u32 %v3552, 4294901760
        %v3554 = vsub.f32 %v3552, %v3553
        %v3555 = vand.u32 %v3554, 4294901760
        %3556 = vmatmul.f32.gmra.mxu0 %v3555
        %v3557 = vpop.f32.mrf.mxu0
        %v3558 = vadd.f32 %v3515, %v3557
        %3559 = vdwg.mxu0
        %3560 = vmatpush.msra.mxu0 0.0
        %3561 = vmatpush.msra.mxu0 0.0
        %3562 = vmatpush.msra.mxu0 0.0
        %3563 = vmatpush.msra.mxu0 0.0
        %3564 = vmatpush.msra.mxu0 0.0
        %3565 = vmatpush.msra.mxu0 0.0
        %3566 = vmatpush.msra.mxu0 0.0
        %3567 = vmatpush.msra.mxu0 0.0
        %3568 = vmatpush.msra.mxu0 0.0
        %3569 = vmatpush.msra.mxu0 0.0
        %3570 = vmatpush.msra.mxu0 0.0
        %3571 = vmatpush.msra.mxu0 0.0
        %3572 = vmatpush.msra.mxu0 0.0
        %3573 = vmatpush.msra.mxu0 0.0
        %v3574 = vand.u32 %v3103, 4294901760
        %v3575 = vsub.f32 %v3103, %v3574
        %v3576 = vand.u32 %v3575, 4294901760
        %v3577 = vsub.f32 %v3575, %v3576
        %v3578 = vand.u32 %v3577, 4294901760
        %3579 = vmatpush.msra.mxu0 %v3578
        %v3580 = vand.u32 %v3102, 4294901760
        %v3581 = vsub.f32 %v3102, %v3580
        %v3582 = vand.u32 %v3581, 4294901760
        %v3583 = vsub.f32 %v3581, %v3582
        %v3584 = vand.u32 %v3583, 4294901760
        %3585 = vmatpush.msra.mxu0 %v3584
        %v3586 = vand.u32 %v3106, 4294901760
        %3587 = vmatmul.f32.gmra.mxu0 %v3586
        %v3588 = vpop.f32.mrf.mxu0
        %v3589 = vadd.f32 %v3542, %v3588
        %v3590 = vand.u32 %v3109, 4294901760
        %3591 = vmatmul.f32.gmra.mxu0 %v3590
        %v3592 = vpop.f32.mrf.mxu0
        %v3593 = vadd.f32 %v3550, %v3592
        %v3594 = vand.u32 %v3112, 4294901760
        %3595 = vmatmul.f32.gmra.mxu0 %v3594
        %v3596 = vpop.f32.mrf.mxu0
        %v3597 = vadd.f32 %v3558, %v3596
        %3598 = vdwg.mxu0
        %3599 = vmatpush.msra.mxu0 0.0
        %3600 = vmatpush.msra.mxu0 0.0
        %3601 = vmatpush.msra.mxu0 0.0
        %3602 = vmatpush.msra.mxu0 0.0
        %3603 = vmatpush.msra.mxu0 0.0
        %3604 = vmatpush.msra.mxu0 0.0
        %3605 = vmatpush.msra.mxu0 0.0
        %3606 = vmatpush.msra.mxu0 0.0
        %3607 = vmatpush.msra.mxu0 0.0
        %3608 = vmatpush.msra.mxu0 0.0
        %3609 = vmatpush.msra.mxu0 0.0
        %3610 = vmatpush.msra.mxu0 0.0
        %3611 = vmatpush.msra.mxu0 0.0
        %3612 = vmatpush.msra.mxu0 0.0
        %v3613 = vand.u32 %v3103, 4294901760
        %v3614 = vsub.f32 %v3103, %v3613
        %3615 = vmatpush.msra.mxu0 %v3614
        %v3616 = vand.u32 %v3102, 4294901760
        %v3617 = vsub.f32 %v3102, %v3616
        %3618 = vmatpush.msra.mxu0 %v3617
        %v3619 = vand.u32 %v3106, 4294901760
        %v3620 = vsub.f32 %v3106, %v3619
        %3621 = vmatmul.f32.gmra.mxu0 %v3620
        %v3622 = vpop.f32.mrf.mxu0
        %v3623 = vadd.f32 %v3589, %v3622
        %v3624 = vand.u32 %v3109, 4294901760
        %v3625 = vsub.f32 %v3109, %v3624
        %3626 = vmatmul.f32.gmra.mxu0 %v3625
        %v3627 = vpop.f32.mrf.mxu0
        %v3628 = vadd.f32 %v3593, %v3627
        %v3629 = vand.u32 %v3112, 4294901760
        %v3630 = vsub.f32 %v3112, %v3629
        %3631 = vmatmul.f32.gmra.mxu0 %v3630
        %v3632 = vpop.f32.mrf.mxu0
        %v3633 = vadd.f32 %v3597, %v3632
        %3634 = vdwg.mxu0
        %3635 = vmatpush.msra.mxu0 0.0
        %3636 = vmatpush.msra.mxu0 0.0
        %3637 = vmatpush.msra.mxu0 0.0
        %3638 = vmatpush.msra.mxu0 0.0
        %3639 = vmatpush.msra.mxu0 0.0
        %3640 = vmatpush.msra.mxu0 0.0
        %3641 = vmatpush.msra.mxu0 0.0
        %3642 = vmatpush.msra.mxu0 0.0
        %3643 = vmatpush.msra.mxu0 0.0
        %3644 = vmatpush.msra.mxu0 0.0
        %3645 = vmatpush.msra.mxu0 0.0
        %3646 = vmatpush.msra.mxu0 0.0
        %3647 = vmatpush.msra.mxu0 0.0
        %3648 = vmatpush.msra.mxu0 0.0
        %v3649 = vand.u32 %v3103, 4294901760
        %3650 = vmatpush.msra.mxu0 %v3649
        %v3651 = vand.u32 %v3102, 4294901760
        %3652 = vmatpush.msra.mxu0 %v3651
        %v3653 = vand.u32 %v3106, 4294901760
        %v3654 = vsub.f32 %v3106, %v3653
        %v3655 = vand.u32 %v3654, 4294901760
        %3656 = vmatmul.f32.gmra.mxu0 %v3655
        %v3657 = vpop.f32.mrf.mxu0
        %v3658 = vadd.f32 %v3623, %v3657
        %v3659 = vand.u32 %v3109, 4294901760
        %v3660 = vsub.f32 %v3109, %v3659
        %v3661 = vand.u32 %v3660, 4294901760
        %3662 = vmatmul.f32.gmra.mxu0 %v3661
        %v3663 = vpop.f32.mrf.mxu0
        %v3664 = vadd.f32 %v3628, %v3663
        %v3665 = vand.u32 %v3112, 4294901760
        %v3666 = vsub.f32 %v3112, %v3665
        %v3667 = vand.u32 %v3666, 4294901760
        %3668 = vmatmul.f32.gmra.mxu0 %v3667
        %v3669 = vpop.f32.mrf.mxu0
        %v3670 = vadd.f32 %v3633, %v3669
        %3671 = vdwg.mxu0
        %3672 = vmatpush.msra.mxu0 0.0
        %3673 = vmatpush.msra.mxu0 0.0
        %3674 = vmatpush.msra.mxu0 0.0
        %3675 = vmatpush.msra.mxu0 0.0
        %3676 = vmatpush.msra.mxu0 0.0
        %3677 = vmatpush.msra.mxu0 0.0
        %3678 = vmatpush.msra.mxu0 0.0
        %3679 = vmatpush.msra.mxu0 0.0
        %3680 = vmatpush.msra.mxu0 0.0
        %3681 = vmatpush.msra.mxu0 0.0
        %3682 = vmatpush.msra.mxu0 0.0
        %3683 = vmatpush.msra.mxu0 0.0
        %3684 = vmatpush.msra.mxu0 0.0
        %3685 = vmatpush.msra.mxu0 0.0
        %v3686 = vand.u32 %v3103, 4294901760
        %v3687 = vsub.f32 %v3103, %v3686
        %v3688 = vand.u32 %v3687, 4294901760
        %3689 = vmatpush.msra.mxu0 %v3688
        %v3690 = vand.u32 %v3102, 4294901760
        %v3691 = vsub.f32 %v3102, %v3690
        %v3692 = vand.u32 %v3691, 4294901760
        %3693 = vmatpush.msra.mxu0 %v3692
        %v3694 = vand.u32 %v3106, 4294901760
        %3695 = vmatmul.f32.gmra.mxu0 %v3694
        %v3696 = vpop.f32.mrf.mxu0
        %v3697 = vadd.f32 %v3658, %v3696
        %v3698 = vand.u32 %v3109, 4294901760
        %3699 = vmatmul.f32.gmra.mxu0 %v3698
        %v3700 = vpop.f32.mrf.mxu0
        %v3701 = vadd.f32 %v3664, %v3700
        %v3702 = vand.u32 %v3112, 4294901760
        %3703 = vmatmul.f32.gmra.mxu0 %v3702
        %v3704 = vpop.f32.mrf.mxu0
        %v3705 = vadd.f32 %v3670, %v3704
        %3706 = vdwg.mxu0
        %3707 = vmatpush.msra.mxu0 0.0
        %3708 = vmatpush.msra.mxu0 0.0
        %3709 = vmatpush.msra.mxu0 0.0
        %3710 = vmatpush.msra.mxu0 0.0
        %3711 = vmatpush.msra.mxu0 0.0
        %3712 = vmatpush.msra.mxu0 0.0
        %3713 = vmatpush.msra.mxu0 0.0
        %3714 = vmatpush.msra.mxu0 0.0
        %3715 = vmatpush.msra.mxu0 0.0
        %3716 = vmatpush.msra.mxu0 0.0
        %3717 = vmatpush.msra.mxu0 0.0
        %3718 = vmatpush.msra.mxu0 0.0
        %3719 = vmatpush.msra.mxu0 0.0
        %3720 = vmatpush.msra.mxu0 0.0
        %v3721 = vand.u32 %v3103, 4294901760
        %3722 = vmatpush.msra.mxu0 %v3721
        %v3723 = vand.u32 %v3102, 4294901760
        %3724 = vmatpush.msra.mxu0 %v3723
        %v3725 = vand.u32 %v3106, 4294901760
        %3726 = vmatmul.f32.gmra.mxu0 %v3725
        %v3727 = vpop.f32.mrf.mxu0
        %v3728 = vadd.f32 %v3697, %v3727
        %v3729 = vand.u32 %v3109, 4294901760
        %3730 = vmatmul.f32.gmra.mxu0 %v3729
        %v3731 = vpop.f32.mrf.mxu0
        %v3732 = vadd.f32 %v3701, %v3731
        %v3733 = vand.u32 %v3112, 4294901760
        %3734 = vmatmul.f32.gmra.mxu0 %v3733
        %v3735 = vpop.f32.mrf.mxu0
        %v3736 = vadd.f32 %v3705, %v3735
        %3737 = vdwg.mxu0
        %v3738 = vld [vmem:[%s4] sm:$0xff]
        %v3739 = vld [vmem:[%s4 + $0x8] sm:$0xff]
        %v3740 = vld [vmem:[%s4 + $0x10] sm:$0xff]
        %v3741 = vld [vmem:[%s4 + $0x18] sm:$0xff]
        %v3742 = vld [vmem:[%s4 + $0x20] sm:$0xff]
        %v3743 = vld [vmem:[%s4 + $0x28] sm:$0xff]
        %v3744 = vld [vmem:[%s4 + $0x30] sm:$0xff]
        %v3745 = vld [vmem:[%s4 + $0x38] sm:$0xff]
        %v3746 = vld [vmem:[%s4 + $0x40] sm:$0xff]
        %v3747 = vld [vmem:[%s4 + $0x48] sm:$0xff]
        %v3748 = vld [vmem:[%s4 + $0x50] sm:$0xff]
        %v3749 = vld [vmem:[%s4 + $0x58] sm:$0xff]
        %v3750 = vld [vmem:[%s4 + $0x60] sm:$0xff]
        %v3751 = vld [vmem:[%s4 + $0x68] sm:$0xff]
        %v3752 = vld [vmem:[%s4 + $0x70] sm:$0xff]
        %v3753 = vld [vmem:[%s4 + $0x78] sm:$0xff]
        %v3754 = vld [vmem:[%s4 + $0x80] sm:$0xff]
        %v3755 = vld [vmem:[%s4 + $0x88] sm:$0xff]
        %v3756 = vand.u32 %v3753, 4294901760
        %3757 = vmatpush.msra.mxu0 %v3756
        %v3758 = vand.u32 %v3752, 4294901760
        %3759 = vmatpush.msra.mxu0 %v3758
        %v3760 = vand.u32 %v3751, 4294901760
        %3761 = vmatpush.msra.mxu0 %v3760
        %v3762 = vand.u32 %v3750, 4294901760
        %3763 = vmatpush.msra.mxu0 %v3762
        %v3764 = vand.u32 %v3749, 4294901760
        %3765 = vmatpush.msra.mxu0 %v3764
        %v3766 = vand.u32 %v3748, 4294901760
        %3767 = vmatpush.msra.mxu0 %v3766
        %v3768 = vand.u32 %v3747, 4294901760
        %3769 = vmatpush.msra.mxu0 %v3768
        %v3770 = vand.u32 %v3746, 4294901760
        %3771 = vmatpush.msra.mxu0 %v3770
        %v3772 = vand.u32 %v3745, 4294901760
        %3773 = vmatpush.msra.mxu0 %v3772
        %v3774 = vand.u32 %v3744, 4294901760
        %3775 = vmatpush.msra.mxu0 %v3774
        %v3776 = vand.u32 %v3743, 4294901760
        %3777 = vmatpush.msra.mxu0 %v3776
        %v3778 = vand.u32 %v3742, 4294901760
        %3779 = vmatpush.msra.mxu0 %v3778
        %v3780 = vand.u32 %v3741, 4294901760
        %3781 = vmatpush.msra.mxu0 %v3780
        %v3782 = vand.u32 %v3740, 4294901760
        %3783 = vmatpush.msra.mxu0 %v3782
        %v3784 = vand.u32 %v3739, 4294901760
        %3785 = vmatpush.msra.mxu0 %v3784
        %v3786 = vand.u32 %v3738, 4294901760
        %3787 = vmatpush.msra.mxu0 %v3786
        %v3788 = vand.u32 %v3080, 4294901760
        %v3789 = vsub.f32 %v3080, %v3788
        %v3790 = vand.u32 %v3789, 4294901760
        %v3791 = vsub.f32 %v3789, %v3790
        %v3792 = vand.u32 %v3791, 4294901760
        %3793 = vmatmul.f32.gmra.mxu0 %v3792
        %v3794 = vpop.f32.mrf.mxu0
        %v3795 = vadd.f32 0.0, %v3794
        %v3796 = vand.u32 %v3082, 4294901760
        %v3797 = vsub.f32 %v3082, %v3796
        %v3798 = vand.u32 %v3797, 4294901760
        %v3799 = vsub.f32 %v3797, %v3798
        %v3800 = vand.u32 %v3799, 4294901760
        %3801 = vmatmul.f32.gmra.mxu0 %v3800
        %v3802 = vpop.f32.mrf.mxu0
        %v3803 = vadd.f32 0.0, %v3802
        %v3804 = vand.u32 %v3084, 4294901760
        %v3805 = vsub.f32 %v3084, %v3804
        %v3806 = vand.u32 %v3805, 4294901760
        %v3807 = vsub.f32 %v3805, %v3806
        %v3808 = vand.u32 %v3807, 4294901760
        %3809 = vmatmul.f32.gmra.mxu0 %v3808
        %v3810 = vpop.f32.mrf.mxu0
        %v3811 = vadd.f32 0.0, %v3810
        %3812 = vdwg.mxu0
        %v3813 = vand.u32 %v3753, 4294901760
        %v3814 = vsub.f32 %v3753, %v3813
        %v3815 = vand.u32 %v3814, 4294901760
        %v3816 = vsub.f32 %v3814, %v3815
        %v3817 = vand.u32 %v3816, 4294901760
        %3818 = vmatpush.msra.mxu0 %v3817
        %v3819 = vand.u32 %v3752, 4294901760
        %v3820 = vsub.f32 %v3752, %v3819
        %v3821 = vand.u32 %v3820, 4294901760
        %v3822 = vsub.f32 %v3820, %v3821
        %v3823 = vand.u32 %v3822, 4294901760
        %3824 = vmatpush.msra.mxu0 %v3823
        %v3825 = vand.u32 %v3751, 4294901760
        %v3826 = vsub.f32 %v3751, %v3825
        %v3827 = vand.u32 %v3826, 4294901760
        %v3828 = vsub.f32 %v3826, %v3827
        %v3829 = vand.u32 %v3828, 4294901760
        %3830 = vmatpush.msra.mxu0 %v3829
        %v3831 = vand.u32 %v3750, 4294901760
        %v3832 = vsub.f32 %v3750, %v3831
        %v3833 = vand.u32 %v3832, 4294901760
        %v3834 = vsub.f32 %v3832, %v3833
        %v3835 = vand.u32 %v3834, 4294901760
        %3836 = vmatpush.msra.mxu0 %v3835
        %v3837 = vand.u32 %v3749, 4294901760
        %v3838 = vsub.f32 %v3749, %v3837
        %v3839 = vand.u32 %v3838, 4294901760
        %v3840 = vsub.f32 %v3838, %v3839
        %v3841 = vand.u32 %v3840, 4294901760
        %3842 = vmatpush.msra.mxu0 %v3841
        %v3843 = vand.u32 %v3748, 4294901760
        %v3844 = vsub.f32 %v3748, %v3843
        %v3845 = vand.u32 %v3844, 4294901760
        %v3846 = vsub.f32 %v3844, %v3845
        %v3847 = vand.u32 %v3846, 4294901760
        %3848 = vmatpush.msra.mxu0 %v3847
        %v3849 = vand.u32 %v3747, 4294901760
        %v3850 = vsub.f32 %v3747, %v3849
        %v3851 = vand.u32 %v3850, 4294901760
        %v3852 = vsub.f32 %v3850, %v3851
        %v3853 = vand.u32 %v3852, 4294901760
        %3854 = vmatpush.msra.mxu0 %v3853
        %v3855 = vand.u32 %v3746, 4294901760
        %v3856 = vsub.f32 %v3746, %v3855
        %v3857 = vand.u32 %v3856, 4294901760
        %v3858 = vsub.f32 %v3856, %v3857
        %v3859 = vand.u32 %v3858, 4294901760
        %3860 = vmatpush.msra.mxu0 %v3859
        %v3861 = vand.u32 %v3745, 4294901760
        %v3862 = vsub.f32 %v3745, %v3861
        %v3863 = vand.u32 %v3862, 4294901760
        %v3864 = vsub.f32 %v3862, %v3863
        %v3865 = vand.u32 %v3864, 4294901760
        %3866 = vmatpush.msra.mxu0 %v3865
        %v3867 = vand.u32 %v3744, 4294901760
        %v3868 = vsub.f32 %v3744, %v3867
        %v3869 = vand.u32 %v3868, 4294901760
        %v3870 = vsub.f32 %v3868, %v3869
        %v3871 = vand.u32 %v3870, 4294901760
        %3872 = vmatpush.msra.mxu0 %v3871
        %v3873 = vand.u32 %v3743, 4294901760
        %v3874 = vsub.f32 %v3743, %v3873
        %v3875 = vand.u32 %v3874, 4294901760
        %v3876 = vsub.f32 %v3874, %v3875
        %v3877 = vand.u32 %v3876, 4294901760
        %3878 = vmatpush.msra.mxu0 %v3877
        %v3879 = vand.u32 %v3742, 4294901760
        %v3880 = vsub.f32 %v3742, %v3879
        %v3881 = vand.u32 %v3880, 4294901760
        %v3882 = vsub.f32 %v3880, %v3881
        %v3883 = vand.u32 %v3882, 4294901760
        %3884 = vmatpush.msra.mxu0 %v3883
        %v3885 = vand.u32 %v3741, 4294901760
        %v3886 = vsub.f32 %v3741, %v3885
        %v3887 = vand.u32 %v3886, 4294901760
        %v3888 = vsub.f32 %v3886, %v3887
        %v3889 = vand.u32 %v3888, 4294901760
        %3890 = vmatpush.msra.mxu0 %v3889
        %v3891 = vand.u32 %v3740, 4294901760
        %v3892 = vsub.f32 %v3740, %v3891
        %v3893 = vand.u32 %v3892, 4294901760
        %v3894 = vsub.f32 %v3892, %v3893
        %v3895 = vand.u32 %v3894, 4294901760
        %3896 = vmatpush.msra.mxu0 %v3895
        %v3897 = vand.u32 %v3739, 4294901760
        %v3898 = vsub.f32 %v3739, %v3897
        %v3899 = vand.u32 %v3898, 4294901760
        %v3900 = vsub.f32 %v3898, %v3899
        %v3901 = vand.u32 %v3900, 4294901760
        %3902 = vmatpush.msra.mxu0 %v3901
        %v3903 = vand.u32 %v3738, 4294901760
        %v3904 = vsub.f32 %v3738, %v3903
        %v3905 = vand.u32 %v3904, 4294901760
        %v3906 = vsub.f32 %v3904, %v3905
        %v3907 = vand.u32 %v3906, 4294901760
        %3908 = vmatpush.msra.mxu0 %v3907
        %v3909 = vand.u32 %v3080, 4294901760
        %3910 = vmatmul.f32.gmra.mxu0 %v3909
        %v3911 = vpop.f32.mrf.mxu0
        %v3912 = vadd.f32 %v3795, %v3911
        %v3913 = vand.u32 %v3082, 4294901760
        %3914 = vmatmul.f32.gmra.mxu0 %v3913
        %v3915 = vpop.f32.mrf.mxu0
        %v3916 = vadd.f32 %v3803, %v3915
        %v3917 = vand.u32 %v3084, 4294901760
        %3918 = vmatmul.f32.gmra.mxu0 %v3917
        %v3919 = vpop.f32.mrf.mxu0
        %v3920 = vadd.f32 %v3811, %v3919
        %3921 = vdwg.mxu0
        %v3922 = vand.u32 %v3753, 4294901760
        %v3923 = vsub.f32 %v3753, %v3922
        %3924 = vmatpush.msra.mxu0 %v3923
        %v3925 = vand.u32 %v3752, 4294901760
        %v3926 = vsub.f32 %v3752, %v3925
        %3927 = vmatpush.msra.mxu0 %v3926
        %v3928 = vand.u32 %v3751, 4294901760
        %v3929 = vsub.f32 %v3751, %v3928
        %3930 = vmatpush.msra.mxu0 %v3929
        %v3931 = vand.u32 %v3750, 4294901760
        %v3932 = vsub.f32 %v3750, %v3931
        %3933 = vmatpush.msra.mxu0 %v3932
        %v3934 = vand.u32 %v3749, 4294901760
        %v3935 = vsub.f32 %v3749, %v3934
        %3936 = vmatpush.msra.mxu0 %v3935
        %v3937 = vand.u32 %v3748, 4294901760
        %v3938 = vsub.f32 %v3748, %v3937
        %3939 = vmatpush.msra.mxu0 %v3938
        %v3940 = vand.u32 %v3747, 4294901760
        %v3941 = vsub.f32 %v3747, %v3940
        %3942 = vmatpush.msra.mxu0 %v3941
        %v3943 = vand.u32 %v3746, 4294901760
        %v3944 = vsub.f32 %v3746, %v3943
        %3945 = vmatpush.msra.mxu0 %v3944
        %v3946 = vand.u32 %v3745, 4294901760
        %v3947 = vsub.f32 %v3745, %v3946
        %3948 = vmatpush.msra.mxu0 %v3947
        %v3949 = vand.u32 %v3744, 4294901760
        %v3950 = vsub.f32 %v3744, %v3949
        %3951 = vmatpush.msra.mxu0 %v3950
        %v3952 = vand.u32 %v3743, 4294901760
        %v3953 = vsub.f32 %v3743, %v3952
        %3954 = vmatpush.msra.mxu0 %v3953
        %v3955 = vand.u32 %v3742, 4294901760
        %v3956 = vsub.f32 %v3742, %v3955
        %3957 = vmatpush.msra.mxu0 %v3956
        %v3958 = vand.u32 %v3741, 4294901760
        %v3959 = vsub.f32 %v3741, %v3958
        %3960 = vmatpush.msra.mxu0 %v3959
        %v3961 = vand.u32 %v3740, 4294901760
        %v3962 = vsub.f32 %v3740, %v3961
        %3963 = vmatpush.msra.mxu0 %v3962
        %v3964 = vand.u32 %v3739, 4294901760
        %v3965 = vsub.f32 %v3739, %v3964
        %3966 = vmatpush.msra.mxu0 %v3965
        %v3967 = vand.u32 %v3738, 4294901760
        %v3968 = vsub.f32 %v3738, %v3967
        %3969 = vmatpush.msra.mxu0 %v3968
        %v3970 = vand.u32 %v3080, 4294901760
        %v3971 = vsub.f32 %v3080, %v3970
        %3972 = vmatmul.f32.gmra.mxu0 %v3971
        %v3973 = vpop.f32.mrf.mxu0
        %v3974 = vadd.f32 %v3912, %v3973
        %v3975 = vand.u32 %v3082, 4294901760
        %v3976 = vsub.f32 %v3082, %v3975
        %3977 = vmatmul.f32.gmra.mxu0 %v3976
        %v3978 = vpop.f32.mrf.mxu0
        %v3979 = vadd.f32 %v3916, %v3978
        %v3980 = vand.u32 %v3084, 4294901760
        %v3981 = vsub.f32 %v3084, %v3980
        %3982 = vmatmul.f32.gmra.mxu0 %v3981
        %v3983 = vpop.f32.mrf.mxu0
        %v3984 = vadd.f32 %v3920, %v3983
        %3985 = vdwg.mxu0
        %v3986 = vand.u32 %v3753, 4294901760
        %3987 = vmatpush.msra.mxu0 %v3986
        %v3988 = vand.u32 %v3752, 4294901760
        %3989 = vmatpush.msra.mxu0 %v3988
        %v3990 = vand.u32 %v3751, 4294901760
        %3991 = vmatpush.msra.mxu0 %v3990
        %v3992 = vand.u32 %v3750, 4294901760
        %3993 = vmatpush.msra.mxu0 %v3992
        %v3994 = vand.u32 %v3749, 4294901760
        %3995 = vmatpush.msra.mxu0 %v3994
        %v3996 = vand.u32 %v3748, 4294901760
        %3997 = vmatpush.msra.mxu0 %v3996
        %v3998 = vand.u32 %v3747, 4294901760
        %3999 = vmatpush.msra.mxu0 %v3998
        %v4000 = vand.u32 %v3746, 4294901760
        %4001 = vmatpush.msra.mxu0 %v4000
        %v4002 = vand.u32 %v3745, 4294901760
        %4003 = vmatpush.msra.mxu0 %v4002
        %v4004 = vand.u32 %v3744, 4294901760
        %4005 = vmatpush.msra.mxu0 %v4004
        %v4006 = vand.u32 %v3743, 4294901760
        %4007 = vmatpush.msra.mxu0 %v4006
        %v4008 = vand.u32 %v3742, 4294901760
        %4009 = vmatpush.msra.mxu0 %v4008
        %v4010 = vand.u32 %v3741, 4294901760
        %4011 = vmatpush.msra.mxu0 %v4010
        %v4012 = vand.u32 %v3740, 4294901760
        %4013 = vmatpush.msra.mxu0 %v4012
        %v4014 = vand.u32 %v3739, 4294901760
        %4015 = vmatpush.msra.mxu0 %v4014
        %v4016 = vand.u32 %v3738, 4294901760
        %4017 = vmatpush.msra.mxu0 %v4016
        %v4018 = vand.u32 %v3080, 4294901760
        %v4019 = vsub.f32 %v3080, %v4018
        %v4020 = vand.u32 %v4019, 4294901760
        %4021 = vmatmul.f32.gmra.mxu0 %v4020
        %v4022 = vpop.f32.mrf.mxu0
        %v4023 = vadd.f32 %v3974, %v4022
        %v4024 = vand.u32 %v3082, 4294901760
        %v4025 = vsub.f32 %v3082, %v4024
        %v4026 = vand.u32 %v4025, 4294901760
        %4027 = vmatmul.f32.gmra.mxu0 %v4026
        %v4028 = vpop.f32.mrf.mxu0
        %v4029 = vadd.f32 %v3979, %v4028
        %v4030 = vand.u32 %v3084, 4294901760
        %v4031 = vsub.f32 %v3084, %v4030
        %v4032 = vand.u32 %v4031, 4294901760
        %4033 = vmatmul.f32.gmra.mxu0 %v4032
        %v4034 = vpop.f32.mrf.mxu0
        %v4035 = vadd.f32 %v3984, %v4034
        %4036 = vdwg.mxu0
        %v4037 = vand.u32 %v3753, 4294901760
        %v4038 = vsub.f32 %v3753, %v4037
        %v4039 = vand.u32 %v4038, 4294901760
        %4040 = vmatpush.msra.mxu0 %v4039
        %v4041 = vand.u32 %v3752, 4294901760
        %v4042 = vsub.f32 %v3752, %v4041
        %v4043 = vand.u32 %v4042, 4294901760
        %4044 = vmatpush.msra.mxu0 %v4043
        %v4045 = vand.u32 %v3751, 4294901760
        %v4046 = vsub.f32 %v3751, %v4045
        %v4047 = vand.u32 %v4046, 4294901760
        %4048 = vmatpush.msra.mxu0 %v4047
        %v4049 = vand.u32 %v3750, 4294901760
        %v4050 = vsub.f32 %v3750, %v4049
        %v4051 = vand.u32 %v4050, 4294901760
        %4052 = vmatpush.msra.mxu0 %v4051
        %v4053 = vand.u32 %v3749, 4294901760
        %v4054 = vsub.f32 %v3749, %v4053
        %v4055 = vand.u32 %v4054, 4294901760
        %4056 = vmatpush.msra.mxu0 %v4055
        %v4057 = vand.u32 %v3748, 4294901760
        %v4058 = vsub.f32 %v3748, %v4057
        %v4059 = vand.u32 %v4058, 4294901760
        %4060 = vmatpush.msra.mxu0 %v4059
        %v4061 = vand.u32 %v3747, 4294901760
        %v4062 = vsub.f32 %v3747, %v4061
        %v4063 = vand.u32 %v4062, 4294901760
        %4064 = vmatpush.msra.mxu0 %v4063
        %v4065 = vand.u32 %v3746, 4294901760
        %v4066 = vsub.f32 %v3746, %v4065
        %v4067 = vand.u32 %v4066, 4294901760
        %4068 = vmatpush.msra.mxu0 %v4067
        %v4069 = vand.u32 %v3745, 4294901760
        %v4070 = vsub.f32 %v3745, %v4069
        %v4071 = vand.u32 %v4070, 4294901760
        %4072 = vmatpush.msra.mxu0 %v4071
        %v4073 = vand.u32 %v3744, 4294901760
        %v4074 = vsub.f32 %v3744, %v4073
        %v4075 = vand.u32 %v4074, 4294901760
        %4076 = vmatpush.msra.mxu0 %v4075
        %v4077 = vand.u32 %v3743, 4294901760
        %v4078 = vsub.f32 %v3743, %v4077
        %v4079 = vand.u32 %v4078, 4294901760
        %4080 = vmatpush.msra.mxu0 %v4079
        %v4081 = vand.u32 %v3742, 4294901760
        %v4082 = vsub.f32 %v3742, %v4081
        %v4083 = vand.u32 %v4082, 4294901760
        %4084 = vmatpush.msra.mxu0 %v4083
        %v4085 = vand.u32 %v3741, 4294901760
        %v4086 = vsub.f32 %v3741, %v4085
        %v4087 = vand.u32 %v4086, 4294901760
        %4088 = vmatpush.msra.mxu0 %v4087
        %v4089 = vand.u32 %v3740, 4294901760
        %v4090 = vsub.f32 %v3740, %v4089
        %v4091 = vand.u32 %v4090, 4294901760
        %4092 = vmatpush.msra.mxu0 %v4091
        %v4093 = vand.u32 %v3739, 4294901760
        %v4094 = vsub.f32 %v3739, %v4093
        %v4095 = vand.u32 %v4094, 4294901760
        %4096 = vmatpush.msra.mxu0 %v4095
        %v4097 = vand.u32 %v3738, 4294901760
        %v4098 = vsub.f32 %v3738, %v4097
        %v4099 = vand.u32 %v4098, 4294901760
        %4100 = vmatpush.msra.mxu0 %v4099
        %v4101 = vand.u32 %v3080, 4294901760
        %4102 = vmatmul.f32.gmra.mxu0 %v4101
        %v4103 = vpop.f32.mrf.mxu0
        %v4104 = vadd.f32 %v4023, %v4103
        %v4105 = vand.u32 %v3082, 4294901760
        %4106 = vmatmul.f32.gmra.mxu0 %v4105
        %v4107 = vpop.f32.mrf.mxu0
        %v4108 = vadd.f32 %v4029, %v4107
        %v4109 = vand.u32 %v3084, 4294901760
        %4110 = vmatmul.f32.gmra.mxu0 %v4109
        %v4111 = vpop.f32.mrf.mxu0
        %v4112 = vadd.f32 %v4035, %v4111
        %4113 = vdwg.mxu0
        %v4114 = vand.u32 %v3753, 4294901760
        %4115 = vmatpush.msra.mxu0 %v4114
        %v4116 = vand.u32 %v3752, 4294901760
        %4117 = vmatpush.msra.mxu0 %v4116
        %v4118 = vand.u32 %v3751, 4294901760
        %4119 = vmatpush.msra.mxu0 %v4118
        %v4120 = vand.u32 %v3750, 4294901760
        %4121 = vmatpush.msra.mxu0 %v4120
        %v4122 = vand.u32 %v3749, 4294901760
        %4123 = vmatpush.msra.mxu0 %v4122
        %v4124 = vand.u32 %v3748, 4294901760
        %4125 = vmatpush.msra.mxu0 %v4124
        %v4126 = vand.u32 %v3747, 4294901760
        %4127 = vmatpush.msra.mxu0 %v4126
        %v4128 = vand.u32 %v3746, 4294901760
        %4129 = vmatpush.msra.mxu0 %v4128
        %v4130 = vand.u32 %v3745, 4294901760
        %4131 = vmatpush.msra.mxu0 %v4130
        %v4132 = vand.u32 %v3744, 4294901760
        %4133 = vmatpush.msra.mxu0 %v4132
        %v4134 = vand.u32 %v3743, 4294901760
        %4135 = vmatpush.msra.mxu0 %v4134
        %v4136 = vand.u32 %v3742, 4294901760
        %4137 = vmatpush.msra.mxu0 %v4136
        %v4138 = vand.u32 %v3741, 4294901760
        %4139 = vmatpush.msra.mxu0 %v4138
        %v4140 = vand.u32 %v3740, 4294901760
        %4141 = vmatpush.msra.mxu0 %v4140
        %v4142 = vand.u32 %v3739, 4294901760
        %4143 = vmatpush.msra.mxu0 %v4142
        %v4144 = vand.u32 %v3738, 4294901760
        %4145 = vmatpush.msra.mxu0 %v4144
        %v4146 = vand.u32 %v3080, 4294901760
        %4147 = vmatmul.f32.gmra.mxu0 %v4146
        %v4148 = vpop.f32.mrf.mxu0
        %v4149 = vadd.f32 %v4104, %v4148
        %v4150 = vand.u32 %v3082, 4294901760
        %4151 = vmatmul.f32.gmra.mxu0 %v4150
        %v4152 = vpop.f32.mrf.mxu0
        %v4153 = vadd.f32 %v4108, %v4152
        %v4154 = vand.u32 %v3084, 4294901760
        %4155 = vmatmul.f32.gmra.mxu0 %v4154
        %v4156 = vpop.f32.mrf.mxu0
        %v4157 = vadd.f32 %v4112, %v4156
        %4158 = vdwg.mxu0
        %4159 = vmatpush.msra.mxu0 0.0
        %4160 = vmatpush.msra.mxu0 0.0
        %4161 = vmatpush.msra.mxu0 0.0
        %4162 = vmatpush.msra.mxu0 0.0
        %4163 = vmatpush.msra.mxu0 0.0
        %4164 = vmatpush.msra.mxu0 0.0
        %4165 = vmatpush.msra.mxu0 0.0
        %4166 = vmatpush.msra.mxu0 0.0
        %4167 = vmatpush.msra.mxu0 0.0
        %4168 = vmatpush.msra.mxu0 0.0
        %4169 = vmatpush.msra.mxu0 0.0
        %4170 = vmatpush.msra.mxu0 0.0
        %4171 = vmatpush.msra.mxu0 0.0
        %4172 = vmatpush.msra.mxu0 0.0
        %v4173 = vand.u32 %v3755, 4294901760
        %4174 = vmatpush.msra.mxu0 %v4173
        %v4175 = vand.u32 %v3754, 4294901760
        %4176 = vmatpush.msra.mxu0 %v4175
        %v4177 = vand.u32 %v3106, 4294901760
        %v4178 = vsub.f32 %v3106, %v4177
        %v4179 = vand.u32 %v4178, 4294901760
        %v4180 = vsub.f32 %v4178, %v4179
        %v4181 = vand.u32 %v4180, 4294901760
        %4182 = vmatmul.f32.gmra.mxu0 %v4181
        %v4183 = vpop.f32.mrf.mxu0
        %v4184 = vadd.f32 %v4149, %v4183
        %v4185 = vand.u32 %v3109, 4294901760
        %v4186 = vsub.f32 %v3109, %v4185
        %v4187 = vand.u32 %v4186, 4294901760
        %v4188 = vsub.f32 %v4186, %v4187
        %v4189 = vand.u32 %v4188, 4294901760
        %4190 = vmatmul.f32.gmra.mxu0 %v4189
        %v4191 = vpop.f32.mrf.mxu0
        %v4192 = vadd.f32 %v4153, %v4191
        %v4193 = vand.u32 %v3112, 4294901760
        %v4194 = vsub.f32 %v3112, %v4193
        %v4195 = vand.u32 %v4194, 4294901760
        %v4196 = vsub.f32 %v4194, %v4195
        %v4197 = vand.u32 %v4196, 4294901760
        %4198 = vmatmul.f32.gmra.mxu0 %v4197
        %v4199 = vpop.f32.mrf.mxu0
        %v4200 = vadd.f32 %v4157, %v4199
        %4201 = vdwg.mxu0
        %4202 = vmatpush.msra.mxu0 0.0
        %4203 = vmatpush.msra.mxu0 0.0
        %4204 = vmatpush.msra.mxu0 0.0
        %4205 = vmatpush.msra.mxu0 0.0
        %4206 = vmatpush.msra.mxu0 0.0
        %4207 = vmatpush.msra.mxu0 0.0
        %4208 = vmatpush.msra.mxu0 0.0
        %4209 = vmatpush.msra.mxu0 0.0
        %4210 = vmatpush.msra.mxu0 0.0
        %4211 = vmatpush.msra.mxu0 0.0
        %4212 = vmatpush.msra.mxu0 0.0
        %4213 = vmatpush.msra.mxu0 0.0
        %4214 = vmatpush.msra.mxu0 0.0
        %4215 = vmatpush.msra.mxu0 0.0
        %v4216 = vand.u32 %v3755, 4294901760
        %v4217 = vsub.f32 %v3755, %v4216
        %v4218 = vand.u32 %v4217, 4294901760
        %v4219 = vsub.f32 %v4217, %v4218
        %v4220 = vand.u32 %v4219, 4294901760
        %4221 = vmatpush.msra.mxu0 %v4220
        %v4222 = vand.u32 %v3754, 4294901760
        %v4223 = vsub.f32 %v3754, %v4222
        %v4224 = vand.u32 %v4223, 4294901760
        %v4225 = vsub.f32 %v4223, %v4224
        %v4226 = vand.u32 %v4225, 4294901760
        %4227 = vmatpush.msra.mxu0 %v4226
        %v4228 = vand.u32 %v3106, 4294901760
        %4229 = vmatmul.f32.gmra.mxu0 %v4228
        %v4230 = vpop.f32.mrf.mxu0
        %v4231 = vadd.f32 %v4184, %v4230
        %v4232 = vand.u32 %v3109, 4294901760
        %4233 = vmatmul.f32.gmra.mxu0 %v4232
        %v4234 = vpop.f32.mrf.mxu0
        %v4235 = vadd.f32 %v4192, %v4234
        %v4236 = vand.u32 %v3112, 4294901760
        %4237 = vmatmul.f32.gmra.mxu0 %v4236
        %v4238 = vpop.f32.mrf.mxu0
        %v4239 = vadd.f32 %v4200, %v4238
        %4240 = vdwg.mxu0
        %4241 = vmatpush.msra.mxu0 0.0
        %4242 = vmatpush.msra.mxu0 0.0
        %4243 = vmatpush.msra.mxu0 0.0
        %4244 = vmatpush.msra.mxu0 0.0
        %4245 = vmatpush.msra.mxu0 0.0
        %4246 = vmatpush.msra.mxu0 0.0
        %4247 = vmatpush.msra.mxu0 0.0
        %4248 = vmatpush.msra.mxu0 0.0
        %4249 = vmatpush.msra.mxu0 0.0
        %4250 = vmatpush.msra.mxu0 0.0
        %4251 = vmatpush.msra.mxu0 0.0
        %4252 = vmatpush.msra.mxu0 0.0
        %4253 = vmatpush.msra.mxu0 0.0
        %4254 = vmatpush.msra.mxu0 0.0
        %v4255 = vand.u32 %v3755, 4294901760
        %v4256 = vsub.f32 %v3755, %v4255
        %4257 = vmatpush.msra.mxu0 %v4256
        %v4258 = vand.u32 %v3754, 4294901760
        %v4259 = vsub.f32 %v3754, %v4258
        %4260 = vmatpush.msra.mxu0 %v4259
        %v4261 = vand.u32 %v3106, 4294901760
        %v4262 = vsub.f32 %v3106, %v4261
        %4263 = vmatmul.f32.gmra.mxu0 %v4262
        %v4264 = vpop.f32.mrf.mxu0
        %v4265 = vadd.f32 %v4231, %v4264
        %v4266 = vand.u32 %v3109, 4294901760
        %v4267 = vsub.f32 %v3109, %v4266
        %4268 = vmatmul.f32.gmra.mxu0 %v4267
        %v4269 = vpop.f32.mrf.mxu0
        %v4270 = vadd.f32 %v4235, %v4269
        %v4271 = vand.u32 %v3112, 4294901760
        %v4272 = vsub.f32 %v3112, %v4271
        %4273 = vmatmul.f32.gmra.mxu0 %v4272
        %v4274 = vpop.f32.mrf.mxu0
        %v4275 = vadd.f32 %v4239, %v4274
        %4276 = vdwg.mxu0
        %4277 = vmatpush.msra.mxu0 0.0
        %4278 = vmatpush.msra.mxu0 0.0
        %4279 = vmatpush.msra.mxu0 0.0
        %4280 = vmatpush.msra.mxu0 0.0
        %4281 = vmatpush.msra.mxu0 0.0
        %4282 = vmatpush.msra.mxu0 0.0
        %4283 = vmatpush.msra.mxu0 0.0
        %4284 = vmatpush.msra.mxu0 0.0
        %4285 = vmatpush.msra.mxu0 0.0
        %4286 = vmatpush.msra.mxu0 0.0
        %4287 = vmatpush.msra.mxu0 0.0
        %4288 = vmatpush.msra.mxu0 0.0
        %4289 = vmatpush.msra.mxu0 0.0
        %4290 = vmatpush.msra.mxu0 0.0
        %v4291 = vand.u32 %v3755, 4294901760
        %4292 = vmatpush.msra.mxu0 %v4291
        %v4293 = vand.u32 %v3754, 4294901760
        %4294 = vmatpush.msra.mxu0 %v4293
        %v4295 = vand.u32 %v3106, 4294901760
        %v4296 = vsub.f32 %v3106, %v4295
        %v4297 = vand.u32 %v4296, 4294901760
        %4298 = vmatmul.f32.gmra.mxu0 %v4297
        %v4299 = vpop.f32.mrf.mxu0
        %v4300 = vadd.f32 %v4265, %v4299
        %v4301 = vand.u32 %v3109, 4294901760
        %v4302 = vsub.f32 %v3109, %v4301
        %v4303 = vand.u32 %v4302, 4294901760
        %4304 = vmatmul.f32.gmra.mxu0 %v4303
        %v4305 = vpop.f32.mrf.mxu0
        %v4306 = vadd.f32 %v4270, %v4305
        %v4307 = vand.u32 %v3112, 4294901760
        %v4308 = vsub.f32 %v3112, %v4307
        %v4309 = vand.u32 %v4308, 4294901760
        %4310 = vmatmul.f32.gmra.mxu0 %v4309
        %v4311 = vpop.f32.mrf.mxu0
        %v4312 = vadd.f32 %v4275, %v4311
        %4313 = vdwg.mxu0
        %4314 = vmatpush.msra.mxu0 0.0
        %4315 = vmatpush.msra.mxu0 0.0
        %4316 = vmatpush.msra.mxu0 0.0
        %4317 = vmatpush.msra.mxu0 0.0
        %4318 = vmatpush.msra.mxu0 0.0
        %4319 = vmatpush.msra.mxu0 0.0
        %4320 = vmatpush.msra.mxu0 0.0
        %4321 = vmatpush.msra.mxu0 0.0
        %4322 = vmatpush.msra.mxu0 0.0
        %4323 = vmatpush.msra.mxu0 0.0
        %4324 = vmatpush.msra.mxu0 0.0
        %4325 = vmatpush.msra.mxu0 0.0
        %4326 = vmatpush.msra.mxu0 0.0
        %4327 = vmatpush.msra.mxu0 0.0
        %v4328 = vand.u32 %v3755, 4294901760
        %v4329 = vsub.f32 %v3755, %v4328
        %v4330 = vand.u32 %v4329, 4294901760
        %4331 = vmatpush.msra.mxu0 %v4330
        %v4332 = vand.u32 %v3754, 4294901760
        %v4333 = vsub.f32 %v3754, %v4332
        %v4334 = vand.u32 %v4333, 4294901760
        %4335 = vmatpush.msra.mxu0 %v4334
        %v4336 = vand.u32 %v3106, 4294901760
        %4337 = vmatmul.f32.gmra.mxu0 %v4336
        %v4338 = vpop.f32.mrf.mxu0
        %v4339 = vadd.f32 %v4300, %v4338
        %v4340 = vand.u32 %v3109, 4294901760
        %4341 = vmatmul.f32.gmra.mxu0 %v4340
        %v4342 = vpop.f32.mrf.mxu0
        %v4343 = vadd.f32 %v4306, %v4342
        %v4344 = vand.u32 %v3112, 4294901760
        %4345 = vmatmul.f32.gmra.mxu0 %v4344
        %v4346 = vpop.f32.mrf.mxu0
        %v4347 = vadd.f32 %v4312, %v4346
        %4348 = vdwg.mxu0
        %4349 = vmatpush.msra.mxu0 0.0
        %4350 = vmatpush.msra.mxu0 0.0
        %4351 = vmatpush.msra.mxu0 0.0
        %4352 = vmatpush.msra.mxu0 0.0
        %4353 = vmatpush.msra.mxu0 0.0
        %4354 = vmatpush.msra.mxu0 0.0
        %4355 = vmatpush.msra.mxu0 0.0
        %4356 = vmatpush.msra.mxu0 0.0
        %4357 = vmatpush.msra.mxu0 0.0
        %4358 = vmatpush.msra.mxu0 0.0
        %4359 = vmatpush.msra.mxu0 0.0
        %4360 = vmatpush.msra.mxu0 0.0
        %4361 = vmatpush.msra.mxu0 0.0
        %4362 = vmatpush.msra.mxu0 0.0
        %v4363 = vand.u32 %v3755, 4294901760
        %4364 = vmatpush.msra.mxu0 %v4363
        %v4365 = vand.u32 %v3754, 4294901760
        %4366 = vmatpush.msra.mxu0 %v4365
        %v4367 = vand.u32 %v3106, 4294901760
        %4368 = vmatmul.f32.gmra.mxu0 %v4367
        %v4369 = vpop.f32.mrf.mxu0
        %v4370 = vadd.f32 %v4339, %v4369
        %v4371 = vand.u32 %v3109, 4294901760
        %4372 = vmatmul.f32.gmra.mxu0 %v4371
        %v4373 = vpop.f32.mrf.mxu0
        %v4374 = vadd.f32 %v4343, %v4373
        %v4375 = vand.u32 %v3112, 4294901760
        %4376 = vmatmul.f32.gmra.mxu0 %v4375
        %v4377 = vpop.f32.mrf.mxu0
        %v4378 = vadd.f32 %v4347, %v4377
        %4379 = vdwg.mxu0
        %v4380 = vmax.f32 %v3728, %v4370
        %v4381 = vmax.f32 %v3732, %v4374
        %v4382 = vmax.f32 %v3736, %v4378
        %vm4383 = vcmask 588800
        %4384 = vst.msk [vmem:[#allocation2] sm:$0xff] %vm4383, %v4380
        %4385 = vst.msk [vmem:[#allocation2 + $0x8] sm:$0xff] %vm4383, %v4381
        %4386 = vst.msk [vmem:[#allocation2 + $0x10] sm:$0xff] %vm4383, %v4382
        %v4387 = vld [vmem:[#allocation2] ss:$2 sm:$0xff]
        %s4388 = scalar_lea.vmem [#allocation2], 16
        %v4389 = vld [vmem:[%s4388] ss:$2 sm:$0xf]
        %s4390 = scalar_lea.vmem [#allocation2], 1
        %v4391 = vld [vmem:[%s4390] ss:$2 sm:$0xff]
        %s4392 = scalar_lea.vmem [#allocation2], 17
        %v4393 = vld [vmem:[%s4392] ss:$2 sm:$0xf]
        %v4394 = vmax.f32 %v4387, %v4391
        %v4395 = vmax.f32 %v4389, %v4393
        %4396 = vst.msk [vmem:[#allocation3] sm:$0xff] %vm4383, %v4394
        %vm4397 = vcmask 584704
        %4398 = vst.msk [vmem:[#allocation3 + $0x8] sm:$0xf] %vm4397, %v4395
        %v4399 = vld [vmem:[%s6] sm:$0x1]
        %v4401 = vperm.slane %v4399, 0
        %v4403 = vld [vmem:[#allocation3] sm:$0xff]
        %v4404 = vld [vmem:[%s5] sm:$0xff]
        %v4405 = vld [vmem:[%s5 + $0x8] sm:$0xff]
        %v4406 = vld [vmem:[%s5 + $0x10] sm:$0xff]
        %v4407 = vld [vmem:[%s5 + $0x18] sm:$0xff]
        %v4408 = vld [vmem:[%s5 + $0x20] sm:$0xff]
        %v4409 = vld [vmem:[%s5 + $0x28] sm:$0xff]
        %v4410 = vld [vmem:[%s5 + $0x30] sm:$0xff]
        %v4411 = vld [vmem:[%s5 + $0x38] sm:$0xff]
        %v4412 = vld [vmem:[%s5 + $0x40] sm:$0xff]
        %v4414 = vsel %vm4383, %v4403, 0
        %4416 = vmatpush.msra.mxu0 0.0
        %4417 = vmatpush.msra.mxu0 0.0
        %4418 = vmatpush.msra.mxu0 0.0
        %4419 = vmatpush.msra.mxu0 0.0
        %4420 = vmatpush.msra.mxu0 0.0
        %4421 = vmatpush.msra.mxu0 0.0
        %4422 = vmatpush.msra.mxu0 0.0
        %v4423 = vand.u32 %v4412, 4294901760
        %4424 = vmatpush.msra.mxu0 %v4423
        %v4425 = vand.u32 %v4411, 4294901760
        %4426 = vmatpush.msra.mxu0 %v4425
        %v4427 = vand.u32 %v4410, 4294901760
        %4428 = vmatpush.msra.mxu0 %v4427
        %v4429 = vand.u32 %v4409, 4294901760
        %4430 = vmatpush.msra.mxu0 %v4429
        %v4431 = vand.u32 %v4408, 4294901760
        %4432 = vmatpush.msra.mxu0 %v4431
        %v4433 = vand.u32 %v4407, 4294901760
        %4434 = vmatpush.msra.mxu0 %v4433
        %v4435 = vand.u32 %v4406, 4294901760
        %4436 = vmatpush.msra.mxu0 %v4435
        %v4437 = vand.u32 %v4405, 4294901760
        %4438 = vmatpush.msra.mxu0 %v4437
        %v4439 = vand.u32 %v4404, 4294901760
        %4440 = vmatpush.msra.mxu0 %v4439
        %v4441 = vand.u32 %v4414, 4294901760
        %v4442 = vsub.f32 %v4414, %v4441
        %v4443 = vand.u32 %v4442, 4294901760
        %v4444 = vsub.f32 %v4442, %v4443
        %v4445 = vand.u32 %v4444, 4294901760
        %4446 = vmatmul.f32.gmra.mxu0 %v4445
        %v4447 = vpop.f32.mrf.mxu0
        %v4448 = vadd.f32 0.0, %v4447
        %4449 = vdwg.mxu0
        %4450 = vmatpush.msra.mxu0 0.0
        %4451 = vmatpush.msra.mxu0 0.0
        %4452 = vmatpush.msra.mxu0 0.0
        %4453 = vmatpush.msra.mxu0 0.0
        %4454 = vmatpush.msra.mxu0 0.0
        %4455 = vmatpush.msra.mxu0 0.0
        %4456 = vmatpush.msra.mxu0 0.0
        %v4457 = vand.u32 %v4412, 4294901760
        %v4458 = vsub.f32 %v4412, %v4457
        %v4459 = vand.u32 %v4458, 4294901760
        %v4460 = vsub.f32 %v4458, %v4459
        %v4461 = vand.u32 %v4460, 4294901760
        %4462 = vmatpush.msra.mxu0 %v4461
        %v4463 = vand.u32 %v4411, 4294901760
        %v4464 = vsub.f32 %v4411, %v4463
        %v4465 = vand.u32 %v4464, 4294901760
        %v4466 = vsub.f32 %v4464, %v4465
        %v4467 = vand.u32 %v4466, 4294901760
        %4468 = vmatpush.msra.mxu0 %v4467
        %v4469 = vand.u32 %v4410, 4294901760
        %v4470 = vsub.f32 %v4410, %v4469
        %v4471 = vand.u32 %v4470, 4294901760
        %v4472 = vsub.f32 %v4470, %v4471
        %v4473 = vand.u32 %v4472, 4294901760
        %4474 = vmatpush.msra.mxu0 %v4473
        %v4475 = vand.u32 %v4409, 4294901760
        %v4476 = vsub.f32 %v4409, %v4475
        %v4477 = vand.u32 %v4476, 4294901760
        %v4478 = vsub.f32 %v4476, %v4477
        %v4479 = vand.u32 %v4478, 4294901760
        %4480 = vmatpush.msra.mxu0 %v4479
        %v4481 = vand.u32 %v4408, 4294901760
        %v4482 = vsub.f32 %v4408, %v4481
        %v4483 = vand.u32 %v4482, 4294901760
        %v4484 = vsub.f32 %v4482, %v4483
        %v4485 = vand.u32 %v4484, 4294901760
        %4486 = vmatpush.msra.mxu0 %v4485
        %v4487 = vand.u32 %v4407, 4294901760
        %v4488 = vsub.f32 %v4407, %v4487
        %v4489 = vand.u32 %v4488, 4294901760
        %v4490 = vsub.f32 %v4488, %v4489
        %v4491 = vand.u32 %v4490, 4294901760
        %4492 = vmatpush.msra.mxu0 %v4491
        %v4493 = vand.u32 %v4406, 4294901760
        %v4494 = vsub.f32 %v4406, %v4493
        %v4495 = vand.u32 %v4494, 4294901760
        %v4496 = vsub.f32 %v4494, %v4495
        %v4497 = vand.u32 %v4496, 4294901760
        %4498 = vmatpush.msra.mxu0 %v4497
        %v4499 = vand.u32 %v4405, 4294901760
        %v4500 = vsub.f32 %v4405, %v4499
        %v4501 = vand.u32 %v4500, 4294901760
        %v4502 = vsub.f32 %v4500, %v4501
        %v4503 = vand.u32 %v4502, 4294901760
        %4504 = vmatpush.msra.mxu0 %v4503
        %v4505 = vand.u32 %v4404, 4294901760
        %v4506 = vsub.f32 %v4404, %v4505
        %v4507 = vand.u32 %v4506, 4294901760
        %v4508 = vsub.f32 %v4506, %v4507
        %v4509 = vand.u32 %v4508, 4294901760
        %4510 = vmatpush.msra.mxu0 %v4509
        %v4511 = vand.u32 %v4414, 4294901760
        %4512 = vmatmul.f32.gmra.mxu0 %v4511
        %v4513 = vpop.f32.mrf.mxu0
        %v4514 = vadd.f32 %v4448, %v4513
        %4515 = vdwg.mxu0
        %4516 = vmatpush.msra.mxu0 0.0
        %4517 = vmatpush.msra.mxu0 0.0
        %4518 = vmatpush.msra.mxu0 0.0
        %4519 = vmatpush.msra.mxu0 0.0
        %4520 = vmatpush.msra.mxu0 0.0
        %4521 = vmatpush.msra.mxu0 0.0
        %4522 = vmatpush.msra.mxu0 0.0
        %v4523 = vand.u32 %v4412, 4294901760
        %v4524 = vsub.f32 %v4412, %v4523
        %4525 = vmatpush.msra.mxu0 %v4524
        %v4526 = vand.u32 %v4411, 4294901760
        %v4527 = vsub.f32 %v4411, %v4526
        %4528 = vmatpush.msra.mxu0 %v4527
        %v4529 = vand.u32 %v4410, 4294901760
        %v4530 = vsub.f32 %v4410, %v4529
        %4531 = vmatpush.msra.mxu0 %v4530
        %v4532 = vand.u32 %v4409, 4294901760
        %v4533 = vsub.f32 %v4409, %v4532
        %4534 = vmatpush.msra.mxu0 %v4533
        %v4535 = vand.u32 %v4408, 4294901760
        %v4536 = vsub.f32 %v4408, %v4535
        %4537 = vmatpush.msra.mxu0 %v4536
        %v4538 = vand.u32 %v4407, 4294901760
        %v4539 = vsub.f32 %v4407, %v4538
        %4540 = vmatpush.msra.mxu0 %v4539
        %v4541 = vand.u32 %v4406, 4294901760
        %v4542 = vsub.f32 %v4406, %v4541
        %4543 = vmatpush.msra.mxu0 %v4542
        %v4544 = vand.u32 %v4405, 4294901760
        %v4545 = vsub.f32 %v4405, %v4544
        %4546 = vmatpush.msra.mxu0 %v4545
        %v4547 = vand.u32 %v4404, 4294901760
        %v4548 = vsub.f32 %v4404, %v4547
        %4549 = vmatpush.msra.mxu0 %v4548
        %v4550 = vand.u32 %v4414, 4294901760
        %v4551 = vsub.f32 %v4414, %v4550
        %4552 = vmatmul.f32.gmra.mxu0 %v4551
        %v4553 = vpop.f32.mrf.mxu0
        %v4554 = vadd.f32 %v4514, %v4553
        %4555 = vdwg.mxu0
        %4556 = vmatpush.msra.mxu0 0.0
        %4557 = vmatpush.msra.mxu0 0.0
        %4558 = vmatpush.msra.mxu0 0.0
        %4559 = vmatpush.msra.mxu0 0.0
        %4560 = vmatpush.msra.mxu0 0.0
        %4561 = vmatpush.msra.mxu0 0.0
        %4562 = vmatpush.msra.mxu0 0.0
        %v4563 = vand.u32 %v4412, 4294901760
        %4564 = vmatpush.msra.mxu0 %v4563
        %v4565 = vand.u32 %v4411, 4294901760
        %4566 = vmatpush.msra.mxu0 %v4565
        %v4567 = vand.u32 %v4410, 4294901760
        %4568 = vmatpush.msra.mxu0 %v4567
        %v4569 = vand.u32 %v4409, 4294901760
        %4570 = vmatpush.msra.mxu0 %v4569
        %v4571 = vand.u32 %v4408, 4294901760
        %4572 = vmatpush.msra.mxu0 %v4571
        %v4573 = vand.u32 %v4407, 4294901760
        %4574 = vmatpush.msra.mxu0 %v4573
        %v4575 = vand.u32 %v4406, 4294901760
        %4576 = vmatpush.msra.mxu0 %v4575
        %v4577 = vand.u32 %v4405, 4294901760
        %4578 = vmatpush.msra.mxu0 %v4577
        %v4579 = vand.u32 %v4404, 4294901760
        %4580 = vmatpush.msra.mxu0 %v4579
        %v4581 = vand.u32 %v4414, 4294901760
        %v4582 = vsub.f32 %v4414, %v4581
        %v4583 = vand.u32 %v4582, 4294901760
        %4584 = vmatmul.f32.gmra.mxu0 %v4583
        %v4585 = vpop.f32.mrf.mxu0
        %v4586 = vadd.f32 %v4554, %v4585
        %4587 = vdwg.mxu0
        %4588 = vmatpush.msra.mxu0 0.0
        %4589 = vmatpush.msra.mxu0 0.0
        %4590 = vmatpush.msra.mxu0 0.0
        %4591 = vmatpush.msra.mxu0 0.0
        %4592 = vmatpush.msra.mxu0 0.0
        %4593 = vmatpush.msra.mxu0 0.0
        %4594 = vmatpush.msra.mxu0 0.0
        %v4595 = vand.u32 %v4412, 4294901760
        %v4596 = vsub.f32 %v4412, %v4595
        %v4597 = vand.u32 %v4596, 4294901760
        %4598 = vmatpush.msra.mxu0 %v4597
        %v4599 = vand.u32 %v4411, 4294901760
        %v4600 = vsub.f32 %v4411, %v4599
        %v4601 = vand.u32 %v4600, 4294901760
        %4602 = vmatpush.msra.mxu0 %v4601
        %v4603 = vand.u32 %v4410, 4294901760
        %v4604 = vsub.f32 %v4410, %v4603
        %v4605 = vand.u32 %v4604, 4294901760
        %4606 = vmatpush.msra.mxu0 %v4605
        %v4607 = vand.u32 %v4409, 4294901760
        %v4608 = vsub.f32 %v4409, %v4607
        %v4609 = vand.u32 %v4608, 4294901760
        %4610 = vmatpush.msra.mxu0 %v4609
        %v4611 = vand.u32 %v4408, 4294901760
        %v4612 = vsub.f32 %v4408, %v4611
        %v4613 = vand.u32 %v4612, 4294901760
        %4614 = vmatpush.msra.mxu0 %v4613
        %v4615 = vand.u32 %v4407, 4294901760
        %v4616 = vsub.f32 %v4407, %v4615
        %v4617 = vand.u32 %v4616, 4294901760
        %4618 = vmatpush.msra.mxu0 %v4617
        %v4619 = vand.u32 %v4406, 4294901760
        %v4620 = vsub.f32 %v4406, %v4619
        %v4621 = vand.u32 %v4620, 4294901760
        %4622 = vmatpush.msra.mxu0 %v4621
        %v4623 = vand.u32 %v4405, 4294901760
        %v4624 = vsub.f32 %v4405, %v4623
        %v4625 = vand.u32 %v4624, 4294901760
        %4626 = vmatpush.msra.mxu0 %v4625
        %v4627 = vand.u32 %v4404, 4294901760
        %v4628 = vsub.f32 %v4404, %v4627
        %v4629 = vand.u32 %v4628, 4294901760
        %4630 = vmatpush.msra.mxu0 %v4629
        %v4631 = vand.u32 %v4414, 4294901760
        %4632 = vmatmul.f32.gmra.mxu0 %v4631
        %v4633 = vpop.f32.mrf.mxu0
        %v4634 = vadd.f32 %v4586, %v4633
        %4635 = vdwg.mxu0
        %4636 = vmatpush.msra.mxu0 0.0
        %4637 = vmatpush.msra.mxu0 0.0
        %4638 = vmatpush.msra.mxu0 0.0
        %4639 = vmatpush.msra.mxu0 0.0
        %4640 = vmatpush.msra.mxu0 0.0
        %4641 = vmatpush.msra.mxu0 0.0
        %4642 = vmatpush.msra.mxu0 0.0
        %v4643 = vand.u32 %v4412, 4294901760
        %4644 = vmatpush.msra.mxu0 %v4643
        %v4645 = vand.u32 %v4411, 4294901760
        %4646 = vmatpush.msra.mxu0 %v4645
        %v4647 = vand.u32 %v4410, 4294901760
        %4648 = vmatpush.msra.mxu0 %v4647
        %v4649 = vand.u32 %v4409, 4294901760
        %4650 = vmatpush.msra.mxu0 %v4649
        %v4651 = vand.u32 %v4408, 4294901760
        %4652 = vmatpush.msra.mxu0 %v4651
        %v4653 = vand.u32 %v4407, 4294901760
        %4654 = vmatpush.msra.mxu0 %v4653
        %v4655 = vand.u32 %v4406, 4294901760
        %4656 = vmatpush.msra.mxu0 %v4655
        %v4657 = vand.u32 %v4405, 4294901760
        %4658 = vmatpush.msra.mxu0 %v4657
        %v4659 = vand.u32 %v4404, 4294901760
        %4660 = vmatpush.msra.mxu0 %v4659
        %v4661 = vand.u32 %v4414, 4294901760
        %4662 = vmatmul.f32.gmra.mxu0 %v4661
        %v4663 = vpop.f32.mrf.mxu0
        %v4664 = vadd.f32 %v4634, %v4663
        %4665 = vdwg.mxu0
        %v4666 = vadd.f32 %v4401, %v4664
        %v4667 = vld [vmem:[#allocation3 + $0x1] sm:$0xff]
        %s4668 = scalar_lea.vmem %s5, 72
        %v4669 = vld [vmem:[%s4668] sm:$0xff]
        %v4670 = vld [vmem:[%s4668 + $0x8] sm:$0xff]
        %v4671 = vld [vmem:[%s4668 + $0x10] sm:$0xff]
        %v4672 = vld [vmem:[%s4668 + $0x18] sm:$0xff]
        %v4673 = vld [vmem:[%s4668 + $0x20] sm:$0xff]
        %v4674 = vld [vmem:[%s4668 + $0x28] sm:$0xff]
        %v4675 = vld [vmem:[%s4668 + $0x30] sm:$0xff]
        %v4676 = vld [vmem:[%s4668 + $0x38] sm:$0xff]
        %v4677 = vld [vmem:[%s4668 + $0x40] sm:$0xff]
        %v4679 = vsel %vm4383, %v4667, 0
        %4681 = vmatpush.msra.mxu0 0.0
        %4682 = vmatpush.msra.mxu0 0.0
        %4683 = vmatpush.msra.mxu0 0.0
        %4684 = vmatpush.msra.mxu0 0.0
        %4685 = vmatpush.msra.mxu0 0.0
        %4686 = vmatpush.msra.mxu0 0.0
        %4687 = vmatpush.msra.mxu0 0.0
        %v4688 = vand.u32 %v4677, 4294901760
        %4689 = vmatpush.msra.mxu0 %v4688
        %v4690 = vand.u32 %v4676, 4294901760
        %4691 = vmatpush.msra.mxu0 %v4690
        %v4692 = vand.u32 %v4675, 4294901760
        %4693 = vmatpush.msra.mxu0 %v4692
        %v4694 = vand.u32 %v4674, 4294901760
        %4695 = vmatpush.msra.mxu0 %v4694
        %v4696 = vand.u32 %v4673, 4294901760
        %4697 = vmatpush.msra.mxu0 %v4696
        %v4698 = vand.u32 %v4672, 4294901760
        %4699 = vmatpush.msra.mxu0 %v4698
        %v4700 = vand.u32 %v4671, 4294901760
        %4701 = vmatpush.msra.mxu0 %v4700
        %v4702 = vand.u32 %v4670, 4294901760
        %4703 = vmatpush.msra.mxu0 %v4702
        %v4704 = vand.u32 %v4669, 4294901760
        %4705 = vmatpush.msra.mxu0 %v4704
        %v4706 = vand.u32 %v4679, 4294901760
        %v4707 = vsub.f32 %v4679, %v4706
        %v4708 = vand.u32 %v4707, 4294901760
        %v4709 = vsub.f32 %v4707, %v4708
        %v4710 = vand.u32 %v4709, 4294901760
        %4711 = vmatmul.f32.gmra.mxu0 %v4710
        %v4712 = vpop.f32.mrf.mxu0
        %v4713 = vadd.f32 0.0, %v4712
        %4714 = vdwg.mxu0
        %4715 = vmatpush.msra.mxu0 0.0
        %4716 = vmatpush.msra.mxu0 0.0
        %4717 = vmatpush.msra.mxu0 0.0
        %4718 = vmatpush.msra.mxu0 0.0
        %4719 = vmatpush.msra.mxu0 0.0
        %4720 = vmatpush.msra.mxu0 0.0
        %4721 = vmatpush.msra.mxu0 0.0
        %v4722 = vand.u32 %v4677, 4294901760
        %v4723 = vsub.f32 %v4677, %v4722
        %v4724 = vand.u32 %v4723, 4294901760
        %v4725 = vsub.f32 %v4723, %v4724
        %v4726 = vand.u32 %v4725, 4294901760
        %4727 = vmatpush.msra.mxu0 %v4726
        %v4728 = vand.u32 %v4676, 4294901760
        %v4729 = vsub.f32 %v4676, %v4728
        %v4730 = vand.u32 %v4729, 4294901760
        %v4731 = vsub.f32 %v4729, %v4730
        %v4732 = vand.u32 %v4731, 4294901760
        %4733 = vmatpush.msra.mxu0 %v4732
        %v4734 = vand.u32 %v4675, 4294901760
        %v4735 = vsub.f32 %v4675, %v4734
        %v4736 = vand.u32 %v4735, 4294901760
        %v4737 = vsub.f32 %v4735, %v4736
        %v4738 = vand.u32 %v4737, 4294901760
        %4739 = vmatpush.msra.mxu0 %v4738
        %v4740 = vand.u32 %v4674, 4294901760
        %v4741 = vsub.f32 %v4674, %v4740
        %v4742 = vand.u32 %v4741, 4294901760
        %v4743 = vsub.f32 %v4741, %v4742
        %v4744 = vand.u32 %v4743, 4294901760
        %4745 = vmatpush.msra.mxu0 %v4744
        %v4746 = vand.u32 %v4673, 4294901760
        %v4747 = vsub.f32 %v4673, %v4746
        %v4748 = vand.u32 %v4747, 4294901760
        %v4749 = vsub.f32 %v4747, %v4748
        %v4750 = vand.u32 %v4749, 4294901760
        %4751 = vmatpush.msra.mxu0 %v4750
        %v4752 = vand.u32 %v4672, 4294901760
        %v4753 = vsub.f32 %v4672, %v4752
        %v4754 = vand.u32 %v4753, 4294901760
        %v4755 = vsub.f32 %v4753, %v4754
        %v4756 = vand.u32 %v4755, 4294901760
        %4757 = vmatpush.msra.mxu0 %v4756
        %v4758 = vand.u32 %v4671, 4294901760
        %v4759 = vsub.f32 %v4671, %v4758
        %v4760 = vand.u32 %v4759, 4294901760
        %v4761 = vsub.f32 %v4759, %v4760
        %v4762 = vand.u32 %v4761, 4294901760
        %4763 = vmatpush.msra.mxu0 %v4762
        %v4764 = vand.u32 %v4670, 4294901760
        %v4765 = vsub.f32 %v4670, %v4764
        %v4766 = vand.u32 %v4765, 4294901760
        %v4767 = vsub.f32 %v4765, %v4766
        %v4768 = vand.u32 %v4767, 4294901760
        %4769 = vmatpush.msra.mxu0 %v4768
        %v4770 = vand.u32 %v4669, 4294901760
        %v4771 = vsub.f32 %v4669, %v4770
        %v4772 = vand.u32 %v4771, 4294901760
        %v4773 = vsub.f32 %v4771, %v4772
        %v4774 = vand.u32 %v4773, 4294901760
        %4775 = vmatpush.msra.mxu0 %v4774
        %v4776 = vand.u32 %v4679, 4294901760
        %4777 = vmatmul.f32.gmra.mxu0 %v4776
        %v4778 = vpop.f32.mrf.mxu0
        %v4779 = vadd.f32 %v4713, %v4778
        %4780 = vdwg.mxu0
        %4781 = vmatpush.msra.mxu0 0.0
        %4782 = vmatpush.msra.mxu0 0.0
        %4783 = vmatpush.msra.mxu0 0.0
        %4784 = vmatpush.msra.mxu0 0.0
        %4785 = vmatpush.msra.mxu0 0.0
        %4786 = vmatpush.msra.mxu0 0.0
        %4787 = vmatpush.msra.mxu0 0.0
        %v4788 = vand.u32 %v4677, 4294901760
        %v4789 = vsub.f32 %v4677, %v4788
        %4790 = vmatpush.msra.mxu0 %v4789
        %v4791 = vand.u32 %v4676, 4294901760
        %v4792 = vsub.f32 %v4676, %v4791
        %4793 = vmatpush.msra.mxu0 %v4792
        %v4794 = vand.u32 %v4675, 4294901760
        %v4795 = vsub.f32 %v4675, %v4794
        %4796 = vmatpush.msra.mxu0 %v4795
        %v4797 = vand.u32 %v4674, 4294901760
        %v4798 = vsub.f32 %v4674, %v4797
        %4799 = vmatpush.msra.mxu0 %v4798
        %v4800 = vand.u32 %v4673, 4294901760
        %v4801 = vsub.f32 %v4673, %v4800
        %4802 = vmatpush.msra.mxu0 %v4801
        %v4803 = vand.u32 %v4672, 4294901760
        %v4804 = vsub.f32 %v4672, %v4803
        %4805 = vmatpush.msra.mxu0 %v4804
        %v4806 = vand.u32 %v4671, 4294901760
        %v4807 = vsub.f32 %v4671, %v4806
        %4808 = vmatpush.msra.mxu0 %v4807
        %v4809 = vand.u32 %v4670, 4294901760
        %v4810 = vsub.f32 %v4670, %v4809
        %4811 = vmatpush.msra.mxu0 %v4810
        %v4812 = vand.u32 %v4669, 4294901760
        %v4813 = vsub.f32 %v4669, %v4812
        %4814 = vmatpush.msra.mxu0 %v4813
        %v4815 = vand.u32 %v4679, 4294901760
        %v4816 = vsub.f32 %v4679, %v4815
        %4817 = vmatmul.f32.gmra.mxu0 %v4816
        %v4818 = vpop.f32.mrf.mxu0
        %v4819 = vadd.f32 %v4779, %v4818
        %4820 = vdwg.mxu0
        %4821 = vmatpush.msra.mxu0 0.0
        %4822 = vmatpush.msra.mxu0 0.0
        %4823 = vmatpush.msra.mxu0 0.0
        %4824 = vmatpush.msra.mxu0 0.0
        %4825 = vmatpush.msra.mxu0 0.0
        %4826 = vmatpush.msra.mxu0 0.0
        %4827 = vmatpush.msra.mxu0 0.0
        %v4828 = vand.u32 %v4677, 4294901760
        %4829 = vmatpush.msra.mxu0 %v4828
        %v4830 = vand.u32 %v4676, 4294901760
        %4831 = vmatpush.msra.mxu0 %v4830
        %v4832 = vand.u32 %v4675, 4294901760
        %4833 = vmatpush.msra.mxu0 %v4832
        %v4834 = vand.u32 %v4674, 4294901760
        %4835 = vmatpush.msra.mxu0 %v4834
        %v4836 = vand.u32 %v4673, 4294901760
        %4837 = vmatpush.msra.mxu0 %v4836
        %v4838 = vand.u32 %v4672, 4294901760
        %4839 = vmatpush.msra.mxu0 %v4838
        %v4840 = vand.u32 %v4671, 4294901760
        %4841 = vmatpush.msra.mxu0 %v4840
        %v4842 = vand.u32 %v4670, 4294901760
        %4843 = vmatpush.msra.mxu0 %v4842
        %v4844 = vand.u32 %v4669, 4294901760
        %4845 = vmatpush.msra.mxu0 %v4844
        %v4846 = vand.u32 %v4679, 4294901760
        %v4847 = vsub.f32 %v4679, %v4846
        %v4848 = vand.u32 %v4847, 4294901760
        %4849 = vmatmul.f32.gmra.mxu0 %v4848
        %v4850 = vpop.f32.mrf.mxu0
        %v4851 = vadd.f32 %v4819, %v4850
        %4852 = vdwg.mxu0
        %4853 = vmatpush.msra.mxu0 0.0
        %4854 = vmatpush.msra.mxu0 0.0
        %4855 = vmatpush.msra.mxu0 0.0
        %4856 = vmatpush.msra.mxu0 0.0
        %4857 = vmatpush.msra.mxu0 0.0
        %4858 = vmatpush.msra.mxu0 0.0
        %4859 = vmatpush.msra.mxu0 0.0
        %v4860 = vand.u32 %v4677, 4294901760
        %v4861 = vsub.f32 %v4677, %v4860
        %v4862 = vand.u32 %v4861, 4294901760
        %4863 = vmatpush.msra.mxu0 %v4862
        %v4864 = vand.u32 %v4676, 4294901760
        %v4865 = vsub.f32 %v4676, %v4864
        %v4866 = vand.u32 %v4865, 4294901760
        %4867 = vmatpush.msra.mxu0 %v4866
        %v4868 = vand.u32 %v4675, 4294901760
        %v4869 = vsub.f32 %v4675, %v4868
        %v4870 = vand.u32 %v4869, 4294901760
        %4871 = vmatpush.msra.mxu0 %v4870
        %v4872 = vand.u32 %v4674, 4294901760
        %v4873 = vsub.f32 %v4674, %v4872
        %v4874 = vand.u32 %v4873, 4294901760
        %4875 = vmatpush.msra.mxu0 %v4874
        %v4876 = vand.u32 %v4673, 4294901760
        %v4877 = vsub.f32 %v4673, %v4876
        %v4878 = vand.u32 %v4877, 4294901760
        %4879 = vmatpush.msra.mxu0 %v4878
        %v4880 = vand.u32 %v4672, 4294901760
        %v4881 = vsub.f32 %v4672, %v4880
        %v4882 = vand.u32 %v4881, 4294901760
        %4883 = vmatpush.msra.mxu0 %v4882
        %v4884 = vand.u32 %v4671, 4294901760
        %v4885 = vsub.f32 %v4671, %v4884
        %v4886 = vand.u32 %v4885, 4294901760
        %4887 = vmatpush.msra.mxu0 %v4886
        %v4888 = vand.u32 %v4670, 4294901760
        %v4889 = vsub.f32 %v4670, %v4888
        %v4890 = vand.u32 %v4889, 4294901760
        %4891 = vmatpush.msra.mxu0 %v4890
        %v4892 = vand.u32 %v4669, 4294901760
        %v4893 = vsub.f32 %v4669, %v4892
        %v4894 = vand.u32 %v4893, 4294901760
        %4895 = vmatpush.msra.mxu0 %v4894
        %v4896 = vand.u32 %v4679, 4294901760
        %4897 = vmatmul.f32.gmra.mxu0 %v4896
        %v4898 = vpop.f32.mrf.mxu0
        %v4899 = vadd.f32 %v4851, %v4898
        %4900 = vdwg.mxu0
        %4901 = vmatpush.msra.mxu0 0.0
        %4902 = vmatpush.msra.mxu0 0.0
        %4903 = vmatpush.msra.mxu0 0.0
        %4904 = vmatpush.msra.mxu0 0.0
        %4905 = vmatpush.msra.mxu0 0.0
        %4906 = vmatpush.msra.mxu0 0.0
        %4907 = vmatpush.msra.mxu0 0.0
        %v4908 = vand.u32 %v4677, 4294901760
        %4909 = vmatpush.msra.mxu0 %v4908
        %v4910 = vand.u32 %v4676, 4294901760
        %4911 = vmatpush.msra.mxu0 %v4910
        %v4912 = vand.u32 %v4675, 4294901760
        %4913 = vmatpush.msra.mxu0 %v4912
        %v4914 = vand.u32 %v4674, 4294901760
        %4915 = vmatpush.msra.mxu0 %v4914
        %v4916 = vand.u32 %v4673, 4294901760
        %4917 = vmatpush.msra.mxu0 %v4916
        %v4918 = vand.u32 %v4672, 4294901760
        %4919 = vmatpush.msra.mxu0 %v4918
        %v4920 = vand.u32 %v4671, 4294901760
        %4921 = vmatpush.msra.mxu0 %v4920
        %v4922 = vand.u32 %v4670, 4294901760
        %4923 = vmatpush.msra.mxu0 %v4922
        %v4924 = vand.u32 %v4669, 4294901760
        %4925 = vmatpush.msra.mxu0 %v4924
        %v4926 = vand.u32 %v4679, 4294901760
        %4927 = vmatmul.f32.gmra.mxu0 %v4926
        %v4928 = vpop.f32.mrf.mxu0
        %v4929 = vadd.f32 %v4899, %v4928
        %4930 = vdwg.mxu0
        %v4931 = vadd.f32 %v4666, %v4929
        %v4932 = vld [vmem:[#allocation3 + $0x2] sm:$0xff]
        %s4933 = scalar_lea.vmem %s5, 144
        %v4934 = vld [vmem:[%s4933] sm:$0xff]
        %v4935 = vld [vmem:[%s4933 + $0x8] sm:$0xff]
        %v4936 = vld [vmem:[%s4933 + $0x10] sm:$0xff]
        %v4937 = vld [vmem:[%s4933 + $0x18] sm:$0xff]
        %v4938 = vld [vmem:[%s4933 + $0x20] sm:$0xff]
        %v4939 = vld [vmem:[%s4933 + $0x28] sm:$0xff]
        %v4940 = vld [vmem:[%s4933 + $0x30] sm:$0xff]
        %v4941 = vld [vmem:[%s4933 + $0x38] sm:$0xff]
        %v4942 = vld [vmem:[%s4933 + $0x40] sm:$0xff]
        %v4944 = vsel %vm4383, %v4932, 0
        %4946 = vmatpush.msra.mxu0 0.0
        %4947 = vmatpush.msra.mxu0 0.0
        %4948 = vmatpush.msra.mxu0 0.0
        %4949 = vmatpush.msra.mxu0 0.0
        %4950 = vmatpush.msra.mxu0 0.0
        %4951 = vmatpush.msra.mxu0 0.0
        %4952 = vmatpush.msra.mxu0 0.0
        %v4953 = vand.u32 %v4942, 4294901760
        %4954 = vmatpush.msra.mxu0 %v4953
        %v4955 = vand.u32 %v4941, 4294901760
        %4956 = vmatpush.msra.mxu0 %v4955
        %v4957 = vand.u32 %v4940, 4294901760
        %4958 = vmatpush.msra.mxu0 %v4957
        %v4959 = vand.u32 %v4939, 4294901760
        %4960 = vmatpush.msra.mxu0 %v4959
        %v4961 = vand.u32 %v4938, 4294901760
        %4962 = vmatpush.msra.mxu0 %v4961
        %v4963 = vand.u32 %v4937, 4294901760
        %4964 = vmatpush.msra.mxu0 %v4963
        %v4965 = vand.u32 %v4936, 4294901760
        %4966 = vmatpush.msra.mxu0 %v4965
        %v4967 = vand.u32 %v4935, 4294901760
        %4968 = vmatpush.msra.mxu0 %v4967
        %v4969 = vand.u32 %v4934, 4294901760
        %4970 = vmatpush.msra.mxu0 %v4969
        %v4971 = vand.u32 %v4944, 4294901760
        %v4972 = vsub.f32 %v4944, %v4971
        %v4973 = vand.u32 %v4972, 4294901760
        %v4974 = vsub.f32 %v4972, %v4973
        %v4975 = vand.u32 %v4974, 4294901760
        %4976 = vmatmul.f32.gmra.mxu0 %v4975
        %v4977 = vpop.f32.mrf.mxu0
        %v4978 = vadd.f32 0.0, %v4977
        %4979 = vdwg.mxu0
        %4980 = vmatpush.msra.mxu0 0.0
        %4981 = vmatpush.msra.mxu0 0.0
        %4982 = vmatpush.msra.mxu0 0.0
        %4983 = vmatpush.msra.mxu0 0.0
        %4984 = vmatpush.msra.mxu0 0.0
        %4985 = vmatpush.msra.mxu0 0.0
        %4986 = vmatpush.msra.mxu0 0.0
        %v4987 = vand.u32 %v4942, 4294901760
        %v4988 = vsub.f32 %v4942, %v4987
        %v4989 = vand.u32 %v4988, 4294901760
        %v4990 = vsub.f32 %v4988, %v4989
        %v4991 = vand.u32 %v4990, 4294901760
        %4992 = vmatpush.msra.mxu0 %v4991
        %v4993 = vand.u32 %v4941, 4294901760
        %v4994 = vsub.f32 %v4941, %v4993
        %v4995 = vand.u32 %v4994, 4294901760
        %v4996 = vsub.f32 %v4994, %v4995
        %v4997 = vand.u32 %v4996, 4294901760
        %4998 = vmatpush.msra.mxu0 %v4997
        %v4999 = vand.u32 %v4940, 4294901760
        %v5000 = vsub.f32 %v4940, %v4999
        %v5001 = vand.u32 %v5000, 4294901760
        %v5002 = vsub.f32 %v5000, %v5001
        %v5003 = vand.u32 %v5002, 4294901760
        %5004 = vmatpush.msra.mxu0 %v5003
        %v5005 = vand.u32 %v4939, 4294901760
        %v5006 = vsub.f32 %v4939, %v5005
        %v5007 = vand.u32 %v5006, 4294901760
        %v5008 = vsub.f32 %v5006, %v5007
        %v5009 = vand.u32 %v5008, 4294901760
        %5010 = vmatpush.msra.mxu0 %v5009
        %v5011 = vand.u32 %v4938, 4294901760
        %v5012 = vsub.f32 %v4938, %v5011
        %v5013 = vand.u32 %v5012, 4294901760
        %v5014 = vsub.f32 %v5012, %v5013
        %v5015 = vand.u32 %v5014, 4294901760
        %5016 = vmatpush.msra.mxu0 %v5015
        %v5017 = vand.u32 %v4937, 4294901760
        %v5018 = vsub.f32 %v4937, %v5017
        %v5019 = vand.u32 %v5018, 4294901760
        %v5020 = vsub.f32 %v5018, %v5019
        %v5021 = vand.u32 %v5020, 4294901760
        %5022 = vmatpush.msra.mxu0 %v5021
        %v5023 = vand.u32 %v4936, 4294901760
        %v5024 = vsub.f32 %v4936, %v5023
        %v5025 = vand.u32 %v5024, 4294901760
        %v5026 = vsub.f32 %v5024, %v5025
        %v5027 = vand.u32 %v5026, 4294901760
        %5028 = vmatpush.msra.mxu0 %v5027
        %v5029 = vand.u32 %v4935, 4294901760
        %v5030 = vsub.f32 %v4935, %v5029
        %v5031 = vand.u32 %v5030, 4294901760
        %v5032 = vsub.f32 %v5030, %v5031
        %v5033 = vand.u32 %v5032, 4294901760
        %5034 = vmatpush.msra.mxu0 %v5033
        %v5035 = vand.u32 %v4934, 4294901760
        %v5036 = vsub.f32 %v4934, %v5035
        %v5037 = vand.u32 %v5036, 4294901760
        %v5038 = vsub.f32 %v5036, %v5037
        %v5039 = vand.u32 %v5038, 4294901760
        %5040 = vmatpush.msra.mxu0 %v5039
        %v5041 = vand.u32 %v4944, 4294901760
        %5042 = vmatmul.f32.gmra.mxu0 %v5041
        %v5043 = vpop.f32.mrf.mxu0
        %v5044 = vadd.f32 %v4978, %v5043
        %5045 = vdwg.mxu0
        %5046 = vmatpush.msra.mxu0 0.0
        %5047 = vmatpush.msra.mxu0 0.0
        %5048 = vmatpush.msra.mxu0 0.0
        %5049 = vmatpush.msra.mxu0 0.0
        %5050 = vmatpush.msra.mxu0 0.0
        %5051 = vmatpush.msra.mxu0 0.0
        %5052 = vmatpush.msra.mxu0 0.0
        %v5053 = vand.u32 %v4942, 4294901760
        %v5054 = vsub.f32 %v4942, %v5053
        %5055 = vmatpush.msra.mxu0 %v5054
        %v5056 = vand.u32 %v4941, 4294901760
        %v5057 = vsub.f32 %v4941, %v5056
        %5058 = vmatpush.msra.mxu0 %v5057
        %v5059 = vand.u32 %v4940, 4294901760
        %v5060 = vsub.f32 %v4940, %v5059
        %5061 = vmatpush.msra.mxu0 %v5060
        %v5062 = vand.u32 %v4939, 4294901760
        %v5063 = vsub.f32 %v4939, %v5062
        %5064 = vmatpush.msra.mxu0 %v5063
        %v5065 = vand.u32 %v4938, 4294901760
        %v5066 = vsub.f32 %v4938, %v5065
        %5067 = vmatpush.msra.mxu0 %v5066
        %v5068 = vand.u32 %v4937, 4294901760
        %v5069 = vsub.f32 %v4937, %v5068
        %5070 = vmatpush.msra.mxu0 %v5069
        %v5071 = vand.u32 %v4936, 4294901760
        %v5072 = vsub.f32 %v4936, %v5071
        %5073 = vmatpush.msra.mxu0 %v5072
        %v5074 = vand.u32 %v4935, 4294901760
        %v5075 = vsub.f32 %v4935, %v5074
        %5076 = vmatpush.msra.mxu0 %v5075
        %v5077 = vand.u32 %v4934, 4294901760
        %v5078 = vsub.f32 %v4934, %v5077
        %5079 = vmatpush.msra.mxu0 %v5078
        %v5080 = vand.u32 %v4944, 4294901760
        %v5081 = vsub.f32 %v4944, %v5080
        %5082 = vmatmul.f32.gmra.mxu0 %v5081
        %v5083 = vpop.f32.mrf.mxu0
        %v5084 = vadd.f32 %v5044, %v5083
        %5085 = vdwg.mxu0
        %5086 = vmatpush.msra.mxu0 0.0
        %5087 = vmatpush.msra.mxu0 0.0
        %5088 = vmatpush.msra.mxu0 0.0
        %5089 = vmatpush.msra.mxu0 0.0
        %5090 = vmatpush.msra.mxu0 0.0
        %5091 = vmatpush.msra.mxu0 0.0
        %5092 = vmatpush.msra.mxu0 0.0
        %v5093 = vand.u32 %v4942, 4294901760
        %5094 = vmatpush.msra.mxu0 %v5093
        %v5095 = vand.u32 %v4941, 4294901760
        %5096 = vmatpush.msra.mxu0 %v5095
        %v5097 = vand.u32 %v4940, 4294901760
        %5098 = vmatpush.msra.mxu0 %v5097
        %v5099 = vand.u32 %v4939, 4294901760
        %5100 = vmatpush.msra.mxu0 %v5099
        %v5101 = vand.u32 %v4938, 4294901760
        %5102 = vmatpush.msra.mxu0 %v5101
        %v5103 = vand.u32 %v4937, 4294901760
        %5104 = vmatpush.msra.mxu0 %v5103
        %v5105 = vand.u32 %v4936, 4294901760
        %5106 = vmatpush.msra.mxu0 %v5105
        %v5107 = vand.u32 %v4935, 4294901760
        %5108 = vmatpush.msra.mxu0 %v5107
        %v5109 = vand.u32 %v4934, 4294901760
        %5110 = vmatpush.msra.mxu0 %v5109
        %v5111 = vand.u32 %v4944, 4294901760
        %v5112 = vsub.f32 %v4944, %v5111
        %v5113 = vand.u32 %v5112, 4294901760
        %5114 = vmatmul.f32.gmra.mxu0 %v5113
        %v5115 = vpop.f32.mrf.mxu0
        %v5116 = vadd.f32 %v5084, %v5115
        %5117 = vdwg.mxu0
        %5118 = vmatpush.msra.mxu0 0.0
        %5119 = vmatpush.msra.mxu0 0.0
        %5120 = vmatpush.msra.mxu0 0.0
        %5121 = vmatpush.msra.mxu0 0.0
        %5122 = vmatpush.msra.mxu0 0.0
        %5123 = vmatpush.msra.mxu0 0.0
        %5124 = vmatpush.msra.mxu0 0.0
        %v5125 = vand.u32 %v4942, 4294901760
        %v5126 = vsub.f32 %v4942, %v5125
        %v5127 = vand.u32 %v5126, 4294901760
        %5128 = vmatpush.msra.mxu0 %v5127
        %v5129 = vand.u32 %v4941, 4294901760
        %v5130 = vsub.f32 %v4941, %v5129
        %v5131 = vand.u32 %v5130, 4294901760
        %5132 = vmatpush.msra.mxu0 %v5131
        %v5133 = vand.u32 %v4940, 4294901760
        %v5134 = vsub.f32 %v4940, %v5133
        %v5135 = vand.u32 %v5134, 4294901760
        %5136 = vmatpush.msra.mxu0 %v5135
        %v5137 = vand.u32 %v4939, 4294901760
        %v5138 = vsub.f32 %v4939, %v5137
        %v5139 = vand.u32 %v5138, 4294901760
        %5140 = vmatpush.msra.mxu0 %v5139
        %v5141 = vand.u32 %v4938, 4294901760
        %v5142 = vsub.f32 %v4938, %v5141
        %v5143 = vand.u32 %v5142, 4294901760
        %5144 = vmatpush.msra.mxu0 %v5143
        %v5145 = vand.u32 %v4937, 4294901760
        %v5146 = vsub.f32 %v4937, %v5145
        %v5147 = vand.u32 %v5146, 4294901760
        %5148 = vmatpush.msra.mxu0 %v5147
        %v5149 = vand.u32 %v4936, 4294901760
        %v5150 = vsub.f32 %v4936, %v5149
        %v5151 = vand.u32 %v5150, 4294901760
        %5152 = vmatpush.msra.mxu0 %v5151
        %v5153 = vand.u32 %v4935, 4294901760
        %v5154 = vsub.f32 %v4935, %v5153
        %v5155 = vand.u32 %v5154, 4294901760
        %5156 = vmatpush.msra.mxu0 %v5155
        %v5157 = vand.u32 %v4934, 4294901760
        %v5158 = vsub.f32 %v4934, %v5157
        %v5159 = vand.u32 %v5158, 4294901760
        %5160 = vmatpush.msra.mxu0 %v5159
        %v5161 = vand.u32 %v4944, 4294901760
        %5162 = vmatmul.f32.gmra.mxu0 %v5161
        %v5163 = vpop.f32.mrf.mxu0
        %v5164 = vadd.f32 %v5116, %v5163
        %5165 = vdwg.mxu0
        %5166 = vmatpush.msra.mxu0 0.0
        %5167 = vmatpush.msra.mxu0 0.0
        %5168 = vmatpush.msra.mxu0 0.0
        %5169 = vmatpush.msra.mxu0 0.0
        %5170 = vmatpush.msra.mxu0 0.0
        %5171 = vmatpush.msra.mxu0 0.0
        %5172 = vmatpush.msra.mxu0 0.0
        %v5173 = vand.u32 %v4942, 4294901760
        %5174 = vmatpush.msra.mxu0 %v5173
        %v5175 = vand.u32 %v4941, 4294901760
        %5176 = vmatpush.msra.mxu0 %v5175
        %v5177 = vand.u32 %v4940, 4294901760
        %5178 = vmatpush.msra.mxu0 %v5177
        %v5179 = vand.u32 %v4939, 4294901760
        %5180 = vmatpush.msra.mxu0 %v5179
        %v5181 = vand.u32 %v4938, 4294901760
        %5182 = vmatpush.msra.mxu0 %v5181
        %v5183 = vand.u32 %v4937, 4294901760
        %5184 = vmatpush.msra.mxu0 %v5183
        %v5185 = vand.u32 %v4936, 4294901760
        %5186 = vmatpush.msra.mxu0 %v5185
        %v5187 = vand.u32 %v4935, 4294901760
        %5188 = vmatpush.msra.mxu0 %v5187
        %v5189 = vand.u32 %v4934, 4294901760
        %5190 = vmatpush.msra.mxu0 %v5189
        %v5191 = vand.u32 %v4944, 4294901760
        %5192 = vmatmul.f32.gmra.mxu0 %v5191
        %v5193 = vpop.f32.mrf.mxu0
        %v5194 = vadd.f32 %v5164, %v5193
        %5195 = vdwg.mxu0
        %v5196 = vadd.f32 %v4931, %v5194
        %v5197 = vld [vmem:[#allocation3 + $0x3] sm:$0xff]
        %s5198 = scalar_lea.vmem %s5, 216
        %v5199 = vld [vmem:[%s5198] sm:$0xff]
        %v5200 = vld [vmem:[%s5198 + $0x8] sm:$0xff]
        %v5201 = vld [vmem:[%s5198 + $0x10] sm:$0xff]
        %v5202 = vld [vmem:[%s5198 + $0x18] sm:$0xff]
        %v5203 = vld [vmem:[%s5198 + $0x20] sm:$0xff]
        %v5204 = vld [vmem:[%s5198 + $0x28] sm:$0xff]
        %v5205 = vld [vmem:[%s5198 + $0x30] sm:$0xff]
        %v5206 = vld [vmem:[%s5198 + $0x38] sm:$0xff]
        %v5207 = vld [vmem:[%s5198 + $0x40] sm:$0xff]
        %v5209 = vsel %vm4383, %v5197, 0
        %5211 = vmatpush.msra.mxu0 0.0
        %5212 = vmatpush.msra.mxu0 0.0
        %5213 = vmatpush.msra.mxu0 0.0
        %5214 = vmatpush.msra.mxu0 0.0
        %5215 = vmatpush.msra.mxu0 0.0
        %5216 = vmatpush.msra.mxu0 0.0
        %5217 = vmatpush.msra.mxu0 0.0
        %v5218 = vand.u32 %v5207, 4294901760
        %5219 = vmatpush.msra.mxu0 %v5218
        %v5220 = vand.u32 %v5206, 4294901760
        %5221 = vmatpush.msra.mxu0 %v5220
        %v5222 = vand.u32 %v5205, 4294901760
        %5223 = vmatpush.msra.mxu0 %v5222
        %v5224 = vand.u32 %v5204, 4294901760
        %5225 = vmatpush.msra.mxu0 %v5224
        %v5226 = vand.u32 %v5203, 4294901760
        %5227 = vmatpush.msra.mxu0 %v5226
        %v5228 = vand.u32 %v5202, 4294901760
        %5229 = vmatpush.msra.mxu0 %v5228
        %v5230 = vand.u32 %v5201, 4294901760
        %5231 = vmatpush.msra.mxu0 %v5230
        %v5232 = vand.u32 %v5200, 4294901760
        %5233 = vmatpush.msra.mxu0 %v5232
        %v5234 = vand.u32 %v5199, 4294901760
        %5235 = vmatpush.msra.mxu0 %v5234
        %v5236 = vand.u32 %v5209, 4294901760
        %v5237 = vsub.f32 %v5209, %v5236
        %v5238 = vand.u32 %v5237, 4294901760
        %v5239 = vsub.f32 %v5237, %v5238
        %v5240 = vand.u32 %v5239, 4294901760
        %5241 = vmatmul.f32.gmra.mxu0 %v5240
        %v5242 = vpop.f32.mrf.mxu0
        %v5243 = vadd.f32 0.0, %v5242
        %5244 = vdwg.mxu0
        %5245 = vmatpush.msra.mxu0 0.0
        %5246 = vmatpush.msra.mxu0 0.0
        %5247 = vmatpush.msra.mxu0 0.0
        %5248 = vmatpush.msra.mxu0 0.0
        %5249 = vmatpush.msra.mxu0 0.0
        %5250 = vmatpush.msra.mxu0 0.0
        %5251 = vmatpush.msra.mxu0 0.0
        %v5252 = vand.u32 %v5207, 4294901760
        %v5253 = vsub.f32 %v5207, %v5252
        %v5254 = vand.u32 %v5253, 4294901760
        %v5255 = vsub.f32 %v5253, %v5254
        %v5256 = vand.u32 %v5255, 4294901760
        %5257 = vmatpush.msra.mxu0 %v5256
        %v5258 = vand.u32 %v5206, 4294901760
        %v5259 = vsub.f32 %v5206, %v5258
        %v5260 = vand.u32 %v5259, 4294901760
        %v5261 = vsub.f32 %v5259, %v5260
        %v5262 = vand.u32 %v5261, 4294901760
        %5263 = vmatpush.msra.mxu0 %v5262
        %v5264 = vand.u32 %v5205, 4294901760
        %v5265 = vsub.f32 %v5205, %v5264
        %v5266 = vand.u32 %v5265, 4294901760
        %v5267 = vsub.f32 %v5265, %v5266
        %v5268 = vand.u32 %v5267, 4294901760
        %5269 = vmatpush.msra.mxu0 %v5268
        %v5270 = vand.u32 %v5204, 4294901760
        %v5271 = vsub.f32 %v5204, %v5270
        %v5272 = vand.u32 %v5271, 4294901760
        %v5273 = vsub.f32 %v5271, %v5272
        %v5274 = vand.u32 %v5273, 4294901760
        %5275 = vmatpush.msra.mxu0 %v5274
        %v5276 = vand.u32 %v5203, 4294901760
        %v5277 = vsub.f32 %v5203, %v5276
        %v5278 = vand.u32 %v5277, 4294901760
        %v5279 = vsub.f32 %v5277, %v5278
        %v5280 = vand.u32 %v5279, 4294901760
        %5281 = vmatpush.msra.mxu0 %v5280
        %v5282 = vand.u32 %v5202, 4294901760
        %v5283 = vsub.f32 %v5202, %v5282
        %v5284 = vand.u32 %v5283, 4294901760
        %v5285 = vsub.f32 %v5283, %v5284
        %v5286 = vand.u32 %v5285, 4294901760
        %5287 = vmatpush.msra.mxu0 %v5286
        %v5288 = vand.u32 %v5201, 4294901760
        %v5289 = vsub.f32 %v5201, %v5288
        %v5290 = vand.u32 %v5289, 4294901760
        %v5291 = vsub.f32 %v5289, %v5290
        %v5292 = vand.u32 %v5291, 4294901760
        %5293 = vmatpush.msra.mxu0 %v5292
        %v5294 = vand.u32 %v5200, 4294901760
        %v5295 = vsub.f32 %v5200, %v5294
        %v5296 = vand.u32 %v5295, 4294901760
        %v5297 = vsub.f32 %v5295, %v5296
        %v5298 = vand.u32 %v5297, 4294901760
        %5299 = vmatpush.msra.mxu0 %v5298
        %v5300 = vand.u32 %v5199, 4294901760
        %v5301 = vsub.f32 %v5199, %v5300
        %v5302 = vand.u32 %v5301, 4294901760
        %v5303 = vsub.f32 %v5301, %v5302
        %v5304 = vand.u32 %v5303, 4294901760
        %5305 = vmatpush.msra.mxu0 %v5304
        %v5306 = vand.u32 %v5209, 4294901760
        %5307 = vmatmul.f32.gmra.mxu0 %v5306
        %v5308 = vpop.f32.mrf.mxu0
        %v5309 = vadd.f32 %v5243, %v5308
        %5310 = vdwg.mxu0
        %5311 = vmatpush.msra.mxu0 0.0
        %5312 = vmatpush.msra.mxu0 0.0
        %5313 = vmatpush.msra.mxu0 0.0
        %5314 = vmatpush.msra.mxu0 0.0
        %5315 = vmatpush.msra.mxu0 0.0
        %5316 = vmatpush.msra.mxu0 0.0
        %5317 = vmatpush.msra.mxu0 0.0
        %v5318 = vand.u32 %v5207, 4294901760
        %v5319 = vsub.f32 %v5207, %v5318
        %5320 = vmatpush.msra.mxu0 %v5319
        %v5321 = vand.u32 %v5206, 4294901760
        %v5322 = vsub.f32 %v5206, %v5321
        %5323 = vmatpush.msra.mxu0 %v5322
        %v5324 = vand.u32 %v5205, 4294901760
        %v5325 = vsub.f32 %v5205, %v5324
        %5326 = vmatpush.msra.mxu0 %v5325
        %v5327 = vand.u32 %v5204, 4294901760
        %v5328 = vsub.f32 %v5204, %v5327
        %5329 = vmatpush.msra.mxu0 %v5328
        %v5330 = vand.u32 %v5203, 4294901760
        %v5331 = vsub.f32 %v5203, %v5330
        %5332 = vmatpush.msra.mxu0 %v5331
        %v5333 = vand.u32 %v5202, 4294901760
        %v5334 = vsub.f32 %v5202, %v5333
        %5335 = vmatpush.msra.mxu0 %v5334
        %v5336 = vand.u32 %v5201, 4294901760
        %v5337 = vsub.f32 %v5201, %v5336
        %5338 = vmatpush.msra.mxu0 %v5337
        %v5339 = vand.u32 %v5200, 4294901760
        %v5340 = vsub.f32 %v5200, %v5339
        %5341 = vmatpush.msra.mxu0 %v5340
        %v5342 = vand.u32 %v5199, 4294901760
        %v5343 = vsub.f32 %v5199, %v5342
        %5344 = vmatpush.msra.mxu0 %v5343
        %v5345 = vand.u32 %v5209, 4294901760
        %v5346 = vsub.f32 %v5209, %v5345
        %5347 = vmatmul.f32.gmra.mxu0 %v5346
        %v5348 = vpop.f32.mrf.mxu0
        %v5349 = vadd.f32 %v5309, %v5348
        %5350 = vdwg.mxu0
        %5351 = vmatpush.msra.mxu0 0.0
        %5352 = vmatpush.msra.mxu0 0.0
        %5353 = vmatpush.msra.mxu0 0.0
        %5354 = vmatpush.msra.mxu0 0.0
        %5355 = vmatpush.msra.mxu0 0.0
        %5356 = vmatpush.msra.mxu0 0.0
        %5357 = vmatpush.msra.mxu0 0.0
        %v5358 = vand.u32 %v5207, 4294901760
        %5359 = vmatpush.msra.mxu0 %v5358
        %v5360 = vand.u32 %v5206, 4294901760
        %5361 = vmatpush.msra.mxu0 %v5360
        %v5362 = vand.u32 %v5205, 4294901760
        %5363 = vmatpush.msra.mxu0 %v5362
        %v5364 = vand.u32 %v5204, 4294901760
        %5365 = vmatpush.msra.mxu0 %v5364
        %v5366 = vand.u32 %v5203, 4294901760
        %5367 = vmatpush.msra.mxu0 %v5366
        %v5368 = vand.u32 %v5202, 4294901760
        %5369 = vmatpush.msra.mxu0 %v5368
        %v5370 = vand.u32 %v5201, 4294901760
        %5371 = vmatpush.msra.mxu0 %v5370
        %v5372 = vand.u32 %v5200, 4294901760
        %5373 = vmatpush.msra.mxu0 %v5372
        %v5374 = vand.u32 %v5199, 4294901760
        %5375 = vmatpush.msra.mxu0 %v5374
        %v5376 = vand.u32 %v5209, 4294901760
        %v5377 = vsub.f32 %v5209, %v5376
        %v5378 = vand.u32 %v5377, 4294901760
        %5379 = vmatmul.f32.gmra.mxu0 %v5378
        %v5380 = vpop.f32.mrf.mxu0
        %v5381 = vadd.f32 %v5349, %v5380
        %5382 = vdwg.mxu0
        %5383 = vmatpush.msra.mxu0 0.0
        %5384 = vmatpush.msra.mxu0 0.0
        %5385 = vmatpush.msra.mxu0 0.0
        %5386 = vmatpush.msra.mxu0 0.0
        %5387 = vmatpush.msra.mxu0 0.0
        %5388 = vmatpush.msra.mxu0 0.0
        %5389 = vmatpush.msra.mxu0 0.0
        %v5390 = vand.u32 %v5207, 4294901760
        %v5391 = vsub.f32 %v5207, %v5390
        %v5392 = vand.u32 %v5391, 4294901760
        %5393 = vmatpush.msra.mxu0 %v5392
        %v5394 = vand.u32 %v5206, 4294901760
        %v5395 = vsub.f32 %v5206, %v5394
        %v5396 = vand.u32 %v5395, 4294901760
        %5397 = vmatpush.msra.mxu0 %v5396
        %v5398 = vand.u32 %v5205, 4294901760
        %v5399 = vsub.f32 %v5205, %v5398
        %v5400 = vand.u32 %v5399, 4294901760
        %5401 = vmatpush.msra.mxu0 %v5400
        %v5402 = vand.u32 %v5204, 4294901760
        %v5403 = vsub.f32 %v5204, %v5402
        %v5404 = vand.u32 %v5403, 4294901760
        %5405 = vmatpush.msra.mxu0 %v5404
        %v5406 = vand.u32 %v5203, 4294901760
        %v5407 = vsub.f32 %v5203, %v5406
        %v5408 = vand.u32 %v5407, 4294901760
        %5409 = vmatpush.msra.mxu0 %v5408
        %v5410 = vand.u32 %v5202, 4294901760
        %v5411 = vsub.f32 %v5202, %v5410
        %v5412 = vand.u32 %v5411, 4294901760
        %5413 = vmatpush.msra.mxu0 %v5412
        %v5414 = vand.u32 %v5201, 4294901760
        %v5415 = vsub.f32 %v5201, %v5414
        %v5416 = vand.u32 %v5415, 4294901760
        %5417 = vmatpush.msra.mxu0 %v5416
        %v5418 = vand.u32 %v5200, 4294901760
        %v5419 = vsub.f32 %v5200, %v5418
        %v5420 = vand.u32 %v5419, 4294901760
        %5421 = vmatpush.msra.mxu0 %v5420
        %v5422 = vand.u32 %v5199, 4294901760
        %v5423 = vsub.f32 %v5199, %v5422
        %v5424 = vand.u32 %v5423, 4294901760
        %5425 = vmatpush.msra.mxu0 %v5424
        %v5426 = vand.u32 %v5209, 4294901760
        %5427 = vmatmul.f32.gmra.mxu0 %v5426
        %v5428 = vpop.f32.mrf.mxu0
        %v5429 = vadd.f32 %v5381, %v5428
        %5430 = vdwg.mxu0
        %5431 = vmatpush.msra.mxu0 0.0
        %5432 = vmatpush.msra.mxu0 0.0
        %5433 = vmatpush.msra.mxu0 0.0
        %5434 = vmatpush.msra.mxu0 0.0
        %5435 = vmatpush.msra.mxu0 0.0
        %5436 = vmatpush.msra.mxu0 0.0
        %5437 = vmatpush.msra.mxu0 0.0
        %v5438 = vand.u32 %v5207, 4294901760
        %5439 = vmatpush.msra.mxu0 %v5438
        %v5440 = vand.u32 %v5206, 4294901760
        %5441 = vmatpush.msra.mxu0 %v5440
        %v5442 = vand.u32 %v5205, 4294901760
        %5443 = vmatpush.msra.mxu0 %v5442
        %v5444 = vand.u32 %v5204, 4294901760
        %5445 = vmatpush.msra.mxu0 %v5444
        %v5446 = vand.u32 %v5203, 4294901760
        %5447 = vmatpush.msra.mxu0 %v5446
        %v5448 = vand.u32 %v5202, 4294901760
        %5449 = vmatpush.msra.mxu0 %v5448
        %v5450 = vand.u32 %v5201, 4294901760
        %5451 = vmatpush.msra.mxu0 %v5450
        %v5452 = vand.u32 %v5200, 4294901760
        %5453 = vmatpush.msra.mxu0 %v5452
        %v5454 = vand.u32 %v5199, 4294901760
        %5455 = vmatpush.msra.mxu0 %v5454
        %v5456 = vand.u32 %v5209, 4294901760
        %5457 = vmatmul.f32.gmra.mxu0 %v5456
        %v5458 = vpop.f32.mrf.mxu0
        %v5459 = vadd.f32 %v5429, %v5458
        %5460 = vdwg.mxu0
        %v5461 = vadd.f32 %v5196, %v5459
        %v5462 = vld [vmem:[#allocation3 + $0x4] sm:$0xff]
        %s5463 = scalar_lea.vmem %s5, 288
        %v5464 = vld [vmem:[%s5463] sm:$0xff]
        %v5465 = vld [vmem:[%s5463 + $0x8] sm:$0xff]
        %v5466 = vld [vmem:[%s5463 + $0x10] sm:$0xff]
        %v5467 = vld [vmem:[%s5463 + $0x18] sm:$0xff]
        %v5468 = vld [vmem:[%s5463 + $0x20] sm:$0xff]
        %v5469 = vld [vmem:[%s5463 + $0x28] sm:$0xff]
        %v5470 = vld [vmem:[%s5463 + $0x30] sm:$0xff]
        %v5471 = vld [vmem:[%s5463 + $0x38] sm:$0xff]
        %v5472 = vld [vmem:[%s5463 + $0x40] sm:$0xff]
        %v5474 = vsel %vm4383, %v5462, 0
        %5476 = vmatpush.msra.mxu0 0.0
        %5477 = vmatpush.msra.mxu0 0.0
        %5478 = vmatpush.msra.mxu0 0.0
        %5479 = vmatpush.msra.mxu0 0.0
        %5480 = vmatpush.msra.mxu0 0.0
        %5481 = vmatpush.msra.mxu0 0.0
        %5482 = vmatpush.msra.mxu0 0.0
        %v5483 = vand.u32 %v5472, 4294901760
        %5484 = vmatpush.msra.mxu0 %v5483
        %v5485 = vand.u32 %v5471, 4294901760
        %5486 = vmatpush.msra.mxu0 %v5485
        %v5487 = vand.u32 %v5470, 4294901760
        %5488 = vmatpush.msra.mxu0 %v5487
        %v5489 = vand.u32 %v5469, 4294901760
        %5490 = vmatpush.msra.mxu0 %v5489
        %v5491 = vand.u32 %v5468, 4294901760
        %5492 = vmatpush.msra.mxu0 %v5491
        %v5493 = vand.u32 %v5467, 4294901760
        %5494 = vmatpush.msra.mxu0 %v5493
        %v5495 = vand.u32 %v5466, 4294901760
        %5496 = vmatpush.msra.mxu0 %v5495
        %v5497 = vand.u32 %v5465, 4294901760
        %5498 = vmatpush.msra.mxu0 %v5497
        %v5499 = vand.u32 %v5464, 4294901760
        %5500 = vmatpush.msra.mxu0 %v5499
        %v5501 = vand.u32 %v5474, 4294901760
        %v5502 = vsub.f32 %v5474, %v5501
        %v5503 = vand.u32 %v5502, 4294901760
        %v5504 = vsub.f32 %v5502, %v5503
        %v5505 = vand.u32 %v5504, 4294901760
        %5506 = vmatmul.f32.gmra.mxu0 %v5505
        %v5507 = vpop.f32.mrf.mxu0
        %v5508 = vadd.f32 0.0, %v5507
        %5509 = vdwg.mxu0
        %5510 = vmatpush.msra.mxu0 0.0
        %5511 = vmatpush.msra.mxu0 0.0
        %5512 = vmatpush.msra.mxu0 0.0
        %5513 = vmatpush.msra.mxu0 0.0
        %5514 = vmatpush.msra.mxu0 0.0
        %5515 = vmatpush.msra.mxu0 0.0
        %5516 = vmatpush.msra.mxu0 0.0
        %v5517 = vand.u32 %v5472, 4294901760
        %v5518 = vsub.f32 %v5472, %v5517
        %v5519 = vand.u32 %v5518, 4294901760
        %v5520 = vsub.f32 %v5518, %v5519
        %v5521 = vand.u32 %v5520, 4294901760
        %5522 = vmatpush.msra.mxu0 %v5521
        %v5523 = vand.u32 %v5471, 4294901760
        %v5524 = vsub.f32 %v5471, %v5523
        %v5525 = vand.u32 %v5524, 4294901760
        %v5526 = vsub.f32 %v5524, %v5525
        %v5527 = vand.u32 %v5526, 4294901760
        %5528 = vmatpush.msra.mxu0 %v5527
        %v5529 = vand.u32 %v5470, 4294901760
        %v5530 = vsub.f32 %v5470, %v5529
        %v5531 = vand.u32 %v5530, 4294901760
        %v5532 = vsub.f32 %v5530, %v5531
        %v5533 = vand.u32 %v5532, 4294901760
        %5534 = vmatpush.msra.mxu0 %v5533
        %v5535 = vand.u32 %v5469, 4294901760
        %v5536 = vsub.f32 %v5469, %v5535
        %v5537 = vand.u32 %v5536, 4294901760
        %v5538 = vsub.f32 %v5536, %v5537
        %v5539 = vand.u32 %v5538, 4294901760
        %5540 = vmatpush.msra.mxu0 %v5539
        %v5541 = vand.u32 %v5468, 4294901760
        %v5542 = vsub.f32 %v5468, %v5541
        %v5543 = vand.u32 %v5542, 4294901760
        %v5544 = vsub.f32 %v5542, %v5543
        %v5545 = vand.u32 %v5544, 4294901760
        %5546 = vmatpush.msra.mxu0 %v5545
        %v5547 = vand.u32 %v5467, 4294901760
        %v5548 = vsub.f32 %v5467, %v5547
        %v5549 = vand.u32 %v5548, 4294901760
        %v5550 = vsub.f32 %v5548, %v5549
        %v5551 = vand.u32 %v5550, 4294901760
        %5552 = vmatpush.msra.mxu0 %v5551
        %v5553 = vand.u32 %v5466, 4294901760
        %v5554 = vsub.f32 %v5466, %v5553
        %v5555 = vand.u32 %v5554, 4294901760
        %v5556 = vsub.f32 %v5554, %v5555
        %v5557 = vand.u32 %v5556, 4294901760
        %5558 = vmatpush.msra.mxu0 %v5557
        %v5559 = vand.u32 %v5465, 4294901760
        %v5560 = vsub.f32 %v5465, %v5559
        %v5561 = vand.u32 %v5560, 4294901760
        %v5562 = vsub.f32 %v5560, %v5561
        %v5563 = vand.u32 %v5562, 4294901760
        %5564 = vmatpush.msra.mxu0 %v5563
        %v5565 = vand.u32 %v5464, 4294901760
        %v5566 = vsub.f32 %v5464, %v5565
        %v5567 = vand.u32 %v5566, 4294901760
        %v5568 = vsub.f32 %v5566, %v5567
        %v5569 = vand.u32 %v5568, 4294901760
        %5570 = vmatpush.msra.mxu0 %v5569
        %v5571 = vand.u32 %v5474, 4294901760
        %5572 = vmatmul.f32.gmra.mxu0 %v5571
        %v5573 = vpop.f32.mrf.mxu0
        %v5574 = vadd.f32 %v5508, %v5573
        %5575 = vdwg.mxu0
        %5576 = vmatpush.msra.mxu0 0.0
        %5577 = vmatpush.msra.mxu0 0.0
        %5578 = vmatpush.msra.mxu0 0.0
        %5579 = vmatpush.msra.mxu0 0.0
        %5580 = vmatpush.msra.mxu0 0.0
        %5581 = vmatpush.msra.mxu0 0.0
        %5582 = vmatpush.msra.mxu0 0.0
        %v5583 = vand.u32 %v5472, 4294901760
        %v5584 = vsub.f32 %v5472, %v5583
        %5585 = vmatpush.msra.mxu0 %v5584
        %v5586 = vand.u32 %v5471, 4294901760
        %v5587 = vsub.f32 %v5471, %v5586
        %5588 = vmatpush.msra.mxu0 %v5587
        %v5589 = vand.u32 %v5470, 4294901760
        %v5590 = vsub.f32 %v5470, %v5589
        %5591 = vmatpush.msra.mxu0 %v5590
        %v5592 = vand.u32 %v5469, 4294901760
        %v5593 = vsub.f32 %v5469, %v5592
        %5594 = vmatpush.msra.mxu0 %v5593
        %v5595 = vand.u32 %v5468, 4294901760
        %v5596 = vsub.f32 %v5468, %v5595
        %5597 = vmatpush.msra.mxu0 %v5596
        %v5598 = vand.u32 %v5467, 4294901760
        %v5599 = vsub.f32 %v5467, %v5598
        %5600 = vmatpush.msra.mxu0 %v5599
        %v5601 = vand.u32 %v5466, 4294901760
        %v5602 = vsub.f32 %v5466, %v5601
        %5603 = vmatpush.msra.mxu0 %v5602
        %v5604 = vand.u32 %v5465, 4294901760
        %v5605 = vsub.f32 %v5465, %v5604
        %5606 = vmatpush.msra.mxu0 %v5605
        %v5607 = vand.u32 %v5464, 4294901760
        %v5608 = vsub.f32 %v5464, %v5607
        %5609 = vmatpush.msra.mxu0 %v5608
        %v5610 = vand.u32 %v5474, 4294901760
        %v5611 = vsub.f32 %v5474, %v5610
        %5612 = vmatmul.f32.gmra.mxu0 %v5611
        %v5613 = vpop.f32.mrf.mxu0
        %v5614 = vadd.f32 %v5574, %v5613
        %5615 = vdwg.mxu0
        %5616 = vmatpush.msra.mxu0 0.0
        %5617 = vmatpush.msra.mxu0 0.0
        %5618 = vmatpush.msra.mxu0 0.0
        %5619 = vmatpush.msra.mxu0 0.0
        %5620 = vmatpush.msra.mxu0 0.0
        %5621 = vmatpush.msra.mxu0 0.0
        %5622 = vmatpush.msra.mxu0 0.0
        %v5623 = vand.u32 %v5472, 4294901760
        %5624 = vmatpush.msra.mxu0 %v5623
        %v5625 = vand.u32 %v5471, 4294901760
        %5626 = vmatpush.msra.mxu0 %v5625
        %v5627 = vand.u32 %v5470, 4294901760
        %5628 = vmatpush.msra.mxu0 %v5627
        %v5629 = vand.u32 %v5469, 4294901760
        %5630 = vmatpush.msra.mxu0 %v5629
        %v5631 = vand.u32 %v5468, 4294901760
        %5632 = vmatpush.msra.mxu0 %v5631
        %v5633 = vand.u32 %v5467, 4294901760
        %5634 = vmatpush.msra.mxu0 %v5633
        %v5635 = vand.u32 %v5466, 4294901760
        %5636 = vmatpush.msra.mxu0 %v5635
        %v5637 = vand.u32 %v5465, 4294901760
        %5638 = vmatpush.msra.mxu0 %v5637
        %v5639 = vand.u32 %v5464, 4294901760
        %5640 = vmatpush.msra.mxu0 %v5639
        %v5641 = vand.u32 %v5474, 4294901760
        %v5642 = vsub.f32 %v5474, %v5641
        %v5643 = vand.u32 %v5642, 4294901760
        %5644 = vmatmul.f32.gmra.mxu0 %v5643
        %v5645 = vpop.f32.mrf.mxu0
        %v5646 = vadd.f32 %v5614, %v5645
        %5647 = vdwg.mxu0
        %5648 = vmatpush.msra.mxu0 0.0
        %5649 = vmatpush.msra.mxu0 0.0
        %5650 = vmatpush.msra.mxu0 0.0
        %5651 = vmatpush.msra.mxu0 0.0
        %5652 = vmatpush.msra.mxu0 0.0
        %5653 = vmatpush.msra.mxu0 0.0
        %5654 = vmatpush.msra.mxu0 0.0
        %v5655 = vand.u32 %v5472, 4294901760
        %v5656 = vsub.f32 %v5472, %v5655
        %v5657 = vand.u32 %v5656, 4294901760
        %5658 = vmatpush.msra.mxu0 %v5657
        %v5659 = vand.u32 %v5471, 4294901760
        %v5660 = vsub.f32 %v5471, %v5659
        %v5661 = vand.u32 %v5660, 4294901760
        %5662 = vmatpush.msra.mxu0 %v5661
        %v5663 = vand.u32 %v5470, 4294901760
        %v5664 = vsub.f32 %v5470, %v5663
        %v5665 = vand.u32 %v5664, 4294901760
        %5666 = vmatpush.msra.mxu0 %v5665
        %v5667 = vand.u32 %v5469, 4294901760
        %v5668 = vsub.f32 %v5469, %v5667
        %v5669 = vand.u32 %v5668, 4294901760
        %5670 = vmatpush.msra.mxu0 %v5669
        %v5671 = vand.u32 %v5468, 4294901760
        %v5672 = vsub.f32 %v5468, %v5671
        %v5673 = vand.u32 %v5672, 4294901760
        %5674 = vmatpush.msra.mxu0 %v5673
        %v5675 = vand.u32 %v5467, 4294901760
        %v5676 = vsub.f32 %v5467, %v5675
        %v5677 = vand.u32 %v5676, 4294901760
        %5678 = vmatpush.msra.mxu0 %v5677
        %v5679 = vand.u32 %v5466, 4294901760
        %v5680 = vsub.f32 %v5466, %v5679
        %v5681 = vand.u32 %v5680, 4294901760
        %5682 = vmatpush.msra.mxu0 %v5681
        %v5683 = vand.u32 %v5465, 4294901760
        %v5684 = vsub.f32 %v5465, %v5683
        %v5685 = vand.u32 %v5684, 4294901760
        %5686 = vmatpush.msra.mxu0 %v5685
        %v5687 = vand.u32 %v5464, 4294901760
        %v5688 = vsub.f32 %v5464, %v5687
        %v5689 = vand.u32 %v5688, 4294901760
        %5690 = vmatpush.msra.mxu0 %v5689
        %v5691 = vand.u32 %v5474, 4294901760
        %5692 = vmatmul.f32.gmra.mxu0 %v5691
        %v5693 = vpop.f32.mrf.mxu0
        %v5694 = vadd.f32 %v5646, %v5693
        %5695 = vdwg.mxu0
        %5696 = vmatpush.msra.mxu0 0.0
        %5697 = vmatpush.msra.mxu0 0.0
        %5698 = vmatpush.msra.mxu0 0.0
        %5699 = vmatpush.msra.mxu0 0.0
        %5700 = vmatpush.msra.mxu0 0.0
        %5701 = vmatpush.msra.mxu0 0.0
        %5702 = vmatpush.msra.mxu0 0.0
        %v5703 = vand.u32 %v5472, 4294901760
        %5704 = vmatpush.msra.mxu0 %v5703
        %v5705 = vand.u32 %v5471, 4294901760
        %5706 = vmatpush.msra.mxu0 %v5705
        %v5707 = vand.u32 %v5470, 4294901760
        %5708 = vmatpush.msra.mxu0 %v5707
        %v5709 = vand.u32 %v5469, 4294901760
        %5710 = vmatpush.msra.mxu0 %v5709
        %v5711 = vand.u32 %v5468, 4294901760
        %5712 = vmatpush.msra.mxu0 %v5711
        %v5713 = vand.u32 %v5467, 4294901760
        %5714 = vmatpush.msra.mxu0 %v5713
        %v5715 = vand.u32 %v5466, 4294901760
        %5716 = vmatpush.msra.mxu0 %v5715
        %v5717 = vand.u32 %v5465, 4294901760
        %5718 = vmatpush.msra.mxu0 %v5717
        %v5719 = vand.u32 %v5464, 4294901760
        %5720 = vmatpush.msra.mxu0 %v5719
        %v5721 = vand.u32 %v5474, 4294901760
        %5722 = vmatmul.f32.gmra.mxu0 %v5721
        %v5723 = vpop.f32.mrf.mxu0
        %v5724 = vadd.f32 %v5694, %v5723
        %5725 = vdwg.mxu0
        %v5726 = vadd.f32 %v5461, %v5724
        %v5727 = vmax.f32 %v5726, 0.0
        %v5728 = vld [vmem:[%s7] sm:$0xff]
        %v5729 = vld [vmem:[%s7 + $0x8] sm:$0xff]
        %v5730 = vld [vmem:[%s7 + $0x10] sm:$0xff]
        %v5731 = vld [vmem:[%s7 + $0x18] sm:$0xff]
        %v5732 = vld [vmem:[%s7 + $0x20] sm:$0xff]
        %v5733 = vld [vmem:[%s7 + $0x28] sm:$0xff]
        %vm5734 = vcmask 392192
        %v5736 = vsel %vm5734, %v5727, 0
        %5738 = vmatpush.msra.mxu0 0.0
        %5739 = vmatpush.msra.mxu0 0.0
        %5740 = vmatpush.msra.mxu0 0.0
        %5741 = vmatpush.msra.mxu0 0.0
        %5742 = vmatpush.msra.mxu0 0.0
        %5743 = vmatpush.msra.mxu0 0.0
        %5744 = vmatpush.msra.mxu0 0.0
        %5745 = vmatpush.msra.mxu0 0.0
        %5746 = vmatpush.msra.mxu0 0.0
        %5747 = vmatpush.msra.mxu0 0.0
        %v5748 = vand.u32 %v5733, 4294901760
        %5749 = vmatpush.msra.mxu0 %v5748
        %v5750 = vand.u32 %v5732, 4294901760
        %5751 = vmatpush.msra.mxu0 %v5750
        %v5752 = vand.u32 %v5731, 4294901760
        %5753 = vmatpush.msra.mxu0 %v5752
        %v5754 = vand.u32 %v5730, 4294901760
        %5755 = vmatpush.msra.mxu0 %v5754
        %v5756 = vand.u32 %v5729, 4294901760
        %5757 = vmatpush.msra.mxu0 %v5756
        %v5758 = vand.u32 %v5728, 4294901760
        %5759 = vmatpush.msra.mxu0 %v5758
        %v5760 = vand.u32 %v5736, 4294901760
        %v5761 = vsub.f32 %v5736, %v5760
        %v5762 = vand.u32 %v5761, 4294901760
        %v5763 = vsub.f32 %v5761, %v5762
        %v5764 = vand.u32 %v5763, 4294901760
        %5765 = vmatmul.f32.gmra.mxu0 %v5764
        %v5766 = vpop.f32.mrf.mxu0
        %v5767 = vadd.f32 0.0, %v5766
        %5768 = vdwg.mxu0
        %5769 = vmatpush.msra.mxu0 0.0
        %5770 = vmatpush.msra.mxu0 0.0
        %5771 = vmatpush.msra.mxu0 0.0
        %5772 = vmatpush.msra.mxu0 0.0
        %5773 = vmatpush.msra.mxu0 0.0
        %5774 = vmatpush.msra.mxu0 0.0
        %5775 = vmatpush.msra.mxu0 0.0
        %5776 = vmatpush.msra.mxu0 0.0
        %5777 = vmatpush.msra.mxu0 0.0
        %5778 = vmatpush.msra.mxu0 0.0
        %v5779 = vand.u32 %v5733, 4294901760
        %v5780 = vsub.f32 %v5733, %v5779
        %v5781 = vand.u32 %v5780, 4294901760
        %v5782 = vsub.f32 %v5780, %v5781
        %v5783 = vand.u32 %v5782, 4294901760
        %5784 = vmatpush.msra.mxu0 %v5783
        %v5785 = vand.u32 %v5732, 4294901760
        %v5786 = vsub.f32 %v5732, %v5785
        %v5787 = vand.u32 %v5786, 4294901760
        %v5788 = vsub.f32 %v5786, %v5787
        %v5789 = vand.u32 %v5788, 4294901760
        %5790 = vmatpush.msra.mxu0 %v5789
        %v5791 = vand.u32 %v5731, 4294901760
        %v5792 = vsub.f32 %v5731, %v5791
        %v5793 = vand.u32 %v5792, 4294901760
        %v5794 = vsub.f32 %v5792, %v5793
        %v5795 = vand.u32 %v5794, 4294901760
        %5796 = vmatpush.msra.mxu0 %v5795
        %v5797 = vand.u32 %v5730, 4294901760
        %v5798 = vsub.f32 %v5730, %v5797
        %v5799 = vand.u32 %v5798, 4294901760
        %v5800 = vsub.f32 %v5798, %v5799
        %v5801 = vand.u32 %v5800, 4294901760
        %5802 = vmatpush.msra.mxu0 %v5801
        %v5803 = vand.u32 %v5729, 4294901760
        %v5804 = vsub.f32 %v5729, %v5803
        %v5805 = vand.u32 %v5804, 4294901760
        %v5806 = vsub.f32 %v5804, %v5805
        %v5807 = vand.u32 %v5806, 4294901760
        %5808 = vmatpush.msra.mxu0 %v5807
        %v5809 = vand.u32 %v5728, 4294901760
        %v5810 = vsub.f32 %v5728, %v5809
        %v5811 = vand.u32 %v5810, 4294901760
        %v5812 = vsub.f32 %v5810, %v5811
        %v5813 = vand.u32 %v5812, 4294901760
        %5814 = vmatpush.msra.mxu0 %v5813
        %v5815 = vand.u32 %v5736, 4294901760
        %5816 = vmatmul.f32.gmra.mxu0 %v5815
        %v5817 = vpop.f32.mrf.mxu0
        %v5818 = vadd.f32 %v5767, %v5817
        %5819 = vdwg.mxu0
        %5820 = vmatpush.msra.mxu0 0.0
        %5821 = vmatpush.msra.mxu0 0.0
        %5822 = vmatpush.msra.mxu0 0.0
        %5823 = vmatpush.msra.mxu0 0.0
        %5824 = vmatpush.msra.mxu0 0.0
        %5825 = vmatpush.msra.mxu0 0.0
        %5826 = vmatpush.msra.mxu0 0.0
        %5827 = vmatpush.msra.mxu0 0.0
        %5828 = vmatpush.msra.mxu0 0.0
        %5829 = vmatpush.msra.mxu0 0.0
        %v5830 = vand.u32 %v5733, 4294901760
        %v5831 = vsub.f32 %v5733, %v5830
        %5832 = vmatpush.msra.mxu0 %v5831
        %v5833 = vand.u32 %v5732, 4294901760
        %v5834 = vsub.f32 %v5732, %v5833
        %5835 = vmatpush.msra.mxu0 %v5834
        %v5836 = vand.u32 %v5731, 4294901760
        %v5837 = vsub.f32 %v5731, %v5836
        %5838 = vmatpush.msra.mxu0 %v5837
        %v5839 = vand.u32 %v5730, 4294901760
        %v5840 = vsub.f32 %v5730, %v5839
        %5841 = vmatpush.msra.mxu0 %v5840
        %v5842 = vand.u32 %v5729, 4294901760
        %v5843 = vsub.f32 %v5729, %v5842
        %5844 = vmatpush.msra.mxu0 %v5843
        %v5845 = vand.u32 %v5728, 4294901760
        %v5846 = vsub.f32 %v5728, %v5845
        %5847 = vmatpush.msra.mxu0 %v5846
        %v5848 = vand.u32 %v5736, 4294901760
        %v5849 = vsub.f32 %v5736, %v5848
        %5850 = vmatmul.f32.gmra.mxu0 %v5849
        %v5851 = vpop.f32.mrf.mxu0
        %v5852 = vadd.f32 %v5818, %v5851
        %5853 = vdwg.mxu0
        %5854 = vmatpush.msra.mxu0 0.0
        %5855 = vmatpush.msra.mxu0 0.0
        %5856 = vmatpush.msra.mxu0 0.0
        %5857 = vmatpush.msra.mxu0 0.0
        %5858 = vmatpush.msra.mxu0 0.0
        %5859 = vmatpush.msra.mxu0 0.0
        %5860 = vmatpush.msra.mxu0 0.0
        %5861 = vmatpush.msra.mxu0 0.0
        %5862 = vmatpush.msra.mxu0 0.0
        %5863 = vmatpush.msra.mxu0 0.0
        %v5864 = vand.u32 %v5733, 4294901760
        %5865 = vmatpush.msra.mxu0 %v5864
        %v5866 = vand.u32 %v5732, 4294901760
        %5867 = vmatpush.msra.mxu0 %v5866
        %v5868 = vand.u32 %v5731, 4294901760
        %5869 = vmatpush.msra.mxu0 %v5868
        %v5870 = vand.u32 %v5730, 4294901760
        %5871 = vmatpush.msra.mxu0 %v5870
        %v5872 = vand.u32 %v5729, 4294901760
        %5873 = vmatpush.msra.mxu0 %v5872
        %v5874 = vand.u32 %v5728, 4294901760
        %5875 = vmatpush.msra.mxu0 %v5874
        %v5876 = vand.u32 %v5736, 4294901760
        %v5877 = vsub.f32 %v5736, %v5876
        %v5878 = vand.u32 %v5877, 4294901760
        %5879 = vmatmul.f32.gmra.mxu0 %v5878
        %v5880 = vpop.f32.mrf.mxu0
        %v5881 = vadd.f32 %v5852, %v5880
        %5882 = vdwg.mxu0
        %5883 = vmatpush.msra.mxu0 0.0
        %5884 = vmatpush.msra.mxu0 0.0
        %5885 = vmatpush.msra.mxu0 0.0
        %5886 = vmatpush.msra.mxu0 0.0
        %5887 = vmatpush.msra.mxu0 0.0
        %5888 = vmatpush.msra.mxu0 0.0
        %5889 = vmatpush.msra.mxu0 0.0
        %5890 = vmatpush.msra.mxu0 0.0
        %5891 = vmatpush.msra.mxu0 0.0
        %5892 = vmatpush.msra.mxu0 0.0
        %v5893 = vand.u32 %v5733, 4294901760
        %v5894 = vsub.f32 %v5733, %v5893
        %v5895 = vand.u32 %v5894, 4294901760
        %5896 = vmatpush.msra.mxu0 %v5895
        %v5897 = vand.u32 %v5732, 4294901760
        %v5898 = vsub.f32 %v5732, %v5897
        %v5899 = vand.u32 %v5898, 4294901760
        %5900 = vmatpush.msra.mxu0 %v5899
        %v5901 = vand.u32 %v5731, 4294901760
        %v5902 = vsub.f32 %v5731, %v5901
        %v5903 = vand.u32 %v5902, 4294901760
        %5904 = vmatpush.msra.mxu0 %v5903
        %v5905 = vand.u32 %v5730, 4294901760
        %v5906 = vsub.f32 %v5730, %v5905
        %v5907 = vand.u32 %v5906, 4294901760
        %5908 = vmatpush.msra.mxu0 %v5907
        %v5909 = vand.u32 %v5729, 4294901760
        %v5910 = vsub.f32 %v5729, %v5909
        %v5911 = vand.u32 %v5910, 4294901760
        %5912 = vmatpush.msra.mxu0 %v5911
        %v5913 = vand.u32 %v5728, 4294901760
        %v5914 = vsub.f32 %v5728, %v5913
        %v5915 = vand.u32 %v5914, 4294901760
        %5916 = vmatpush.msra.mxu0 %v5915
        %v5917 = vand.u32 %v5736, 4294901760
        %5918 = vmatmul.f32.gmra.mxu0 %v5917
        %v5919 = vpop.f32.mrf.mxu0
        %v5920 = vadd.f32 %v5881, %v5919
        %5921 = vdwg.mxu0
        %5922 = vmatpush.msra.mxu0 0.0
        %5923 = vmatpush.msra.mxu0 0.0
        %5924 = vmatpush.msra.mxu0 0.0
        %5925 = vmatpush.msra.mxu0 0.0
        %5926 = vmatpush.msra.mxu0 0.0
        %5927 = vmatpush.msra.mxu0 0.0
        %5928 = vmatpush.msra.mxu0 0.0
        %5929 = vmatpush.msra.mxu0 0.0
        %5930 = vmatpush.msra.mxu0 0.0
        %5931 = vmatpush.msra.mxu0 0.0
        %v5932 = vand.u32 %v5733, 4294901760
        %5933 = vmatpush.msra.mxu0 %v5932
        %v5934 = vand.u32 %v5732, 4294901760
        %5935 = vmatpush.msra.mxu0 %v5934
        %v5936 = vand.u32 %v5731, 4294901760
        %5937 = vmatpush.msra.mxu0 %v5936
        %v5938 = vand.u32 %v5730, 4294901760
        %5939 = vmatpush.msra.mxu0 %v5938
        %v5940 = vand.u32 %v5729, 4294901760
        %5941 = vmatpush.msra.mxu0 %v5940
        %v5942 = vand.u32 %v5728, 4294901760
        %5943 = vmatpush.msra.mxu0 %v5942
        %v5944 = vand.u32 %v5736, 4294901760
        %5945 = vmatmul.f32.gmra.mxu0 %v5944
        %v5946 = vpop.f32.mrf.mxu0
        %v5947 = vadd.f32 %v5920, %v5946
        %5948 = vdwg.mxu0
        %v5949 = vld [vmem:[%s8] sm:$0xff]
        %v5950 = vld [vmem:[%s8 + $0x8] sm:$0xff]
        %v5951 = vld [vmem:[%s8 + $0x10] sm:$0xff]
        %v5952 = vld [vmem:[%s8 + $0x18] sm:$0xff]
        %v5953 = vld [vmem:[%s8 + $0x20] sm:$0xff]
        %v5954 = vld [vmem:[%s8 + $0x28] sm:$0xff]
        %5955 = vmatpush.msra.mxu0 0.0
        %5956 = vmatpush.msra.mxu0 0.0
        %5957 = vmatpush.msra.mxu0 0.0
        %5958 = vmatpush.msra.mxu0 0.0
        %5959 = vmatpush.msra.mxu0 0.0
        %5960 = vmatpush.msra.mxu0 0.0
        %5961 = vmatpush.msra.mxu0 0.0
        %5962 = vmatpush.msra.mxu0 0.0
        %5963 = vmatpush.msra.mxu0 0.0
        %5964 = vmatpush.msra.mxu0 0.0
        %v5965 = vand.u32 %v5954, 4294901760
        %5966 = vmatpush.msra.mxu0 %v5965
        %v5967 = vand.u32 %v5953, 4294901760
        %5968 = vmatpush.msra.mxu0 %v5967
        %v5969 = vand.u32 %v5952, 4294901760
        %5970 = vmatpush.msra.mxu0 %v5969
        %v5971 = vand.u32 %v5951, 4294901760
        %5972 = vmatpush.msra.mxu0 %v5971
        %v5973 = vand.u32 %v5950, 4294901760
        %5974 = vmatpush.msra.mxu0 %v5973
        %v5975 = vand.u32 %v5949, 4294901760
        %5976 = vmatpush.msra.mxu0 %v5975
        %v5977 = vand.u32 %v5736, 4294901760
        %v5978 = vsub.f32 %v5736, %v5977
        %v5979 = vand.u32 %v5978, 4294901760
        %v5980 = vsub.f32 %v5978, %v5979
        %v5981 = vand.u32 %v5980, 4294901760
        %5982 = vmatmul.f32.gmra.mxu0 %v5981
        %v5983 = vpop.f32.mrf.mxu0
        %v5984 = vadd.f32 0.0, %v5983
        %5985 = vdwg.mxu0
        %5986 = vmatpush.msra.mxu0 0.0
        %5987 = vmatpush.msra.mxu0 0.0
        %5988 = vmatpush.msra.mxu0 0.0
        %5989 = vmatpush.msra.mxu0 0.0
        %5990 = vmatpush.msra.mxu0 0.0
        %5991 = vmatpush.msra.mxu0 0.0
        %5992 = vmatpush.msra.mxu0 0.0
        %5993 = vmatpush.msra.mxu0 0.0
        %5994 = vmatpush.msra.mxu0 0.0
        %5995 = vmatpush.msra.mxu0 0.0
        %v5996 = vand.u32 %v5954, 4294901760
        %v5997 = vsub.f32 %v5954, %v5996
        %v5998 = vand.u32 %v5997, 4294901760
        %v5999 = vsub.f32 %v5997, %v5998
        %v6000 = vand.u32 %v5999, 4294901760
        %6001 = vmatpush.msra.mxu0 %v6000
        %v6002 = vand.u32 %v5953, 4294901760
        %v6003 = vsub.f32 %v5953, %v6002
        %v6004 = vand.u32 %v6003, 4294901760
        %v6005 = vsub.f32 %v6003, %v6004
        %v6006 = vand.u32 %v6005, 4294901760
        %6007 = vmatpush.msra.mxu0 %v6006
        %v6008 = vand.u32 %v5952, 4294901760
        %v6009 = vsub.f32 %v5952, %v6008
        %v6010 = vand.u32 %v6009, 4294901760
        %v6011 = vsub.f32 %v6009, %v6010
        %v6012 = vand.u32 %v6011, 4294901760
        %6013 = vmatpush.msra.mxu0 %v6012
        %v6014 = vand.u32 %v5951, 4294901760
        %v6015 = vsub.f32 %v5951, %v6014
        %v6016 = vand.u32 %v6015, 4294901760
        %v6017 = vsub.f32 %v6015, %v6016
        %v6018 = vand.u32 %v6017, 4294901760
        %6019 = vmatpush.msra.mxu0 %v6018
        %v6020 = vand.u32 %v5950, 4294901760
        %v6021 = vsub.f32 %v5950, %v6020
        %v6022 = vand.u32 %v6021, 4294901760
        %v6023 = vsub.f32 %v6021, %v6022
        %v6024 = vand.u32 %v6023, 4294901760
        %6025 = vmatpush.msra.mxu0 %v6024
        %v6026 = vand.u32 %v5949, 4294901760
        %v6027 = vsub.f32 %v5949, %v6026
        %v6028 = vand.u32 %v6027, 4294901760
        %v6029 = vsub.f32 %v6027, %v6028
        %v6030 = vand.u32 %v6029, 4294901760
        %6031 = vmatpush.msra.mxu0 %v6030
        %v6032 = vand.u32 %v5736, 4294901760
        %6033 = vmatmul.f32.gmra.mxu0 %v6032
        %v6034 = vpop.f32.mrf.mxu0
        %v6035 = vadd.f32 %v5984, %v6034
        %6036 = vdwg.mxu0
        %6037 = vmatpush.msra.mxu0 0.0
        %6038 = vmatpush.msra.mxu0 0.0
        %6039 = vmatpush.msra.mxu0 0.0
        %6040 = vmatpush.msra.mxu0 0.0
        %6041 = vmatpush.msra.mxu0 0.0
        %6042 = vmatpush.msra.mxu0 0.0
        %6043 = vmatpush.msra.mxu0 0.0
        %6044 = vmatpush.msra.mxu0 0.0
        %6045 = vmatpush.msra.mxu0 0.0
        %6046 = vmatpush.msra.mxu0 0.0
        %v6047 = vand.u32 %v5954, 4294901760
        %v6048 = vsub.f32 %v5954, %v6047
        %6049 = vmatpush.msra.mxu0 %v6048
        %v6050 = vand.u32 %v5953, 4294901760
        %v6051 = vsub.f32 %v5953, %v6050
        %6052 = vmatpush.msra.mxu0 %v6051
        %v6053 = vand.u32 %v5952, 4294901760
        %v6054 = vsub.f32 %v5952, %v6053
        %6055 = vmatpush.msra.mxu0 %v6054
        %v6056 = vand.u32 %v5951, 4294901760
        %v6057 = vsub.f32 %v5951, %v6056
        %6058 = vmatpush.msra.mxu0 %v6057
        %v6059 = vand.u32 %v5950, 4294901760
        %v6060 = vsub.f32 %v5950, %v6059
        %6061 = vmatpush.msra.mxu0 %v6060
        %v6062 = vand.u32 %v5949, 4294901760
        %v6063 = vsub.f32 %v5949, %v6062
        %6064 = vmatpush.msra.mxu0 %v6063
        %v6065 = vand.u32 %v5736, 4294901760
        %v6066 = vsub.f32 %v5736, %v6065
        %6067 = vmatmul.f32.gmra.mxu0 %v6066
        %v6068 = vpop.f32.mrf.mxu0
        %v6069 = vadd.f32 %v6035, %v6068
        %6070 = vdwg.mxu0
        %6071 = vmatpush.msra.mxu0 0.0
        %6072 = vmatpush.msra.mxu0 0.0
        %6073 = vmatpush.msra.mxu0 0.0
        %6074 = vmatpush.msra.mxu0 0.0
        %6075 = vmatpush.msra.mxu0 0.0
        %6076 = vmatpush.msra.mxu0 0.0
        %6077 = vmatpush.msra.mxu0 0.0
        %6078 = vmatpush.msra.mxu0 0.0
        %6079 = vmatpush.msra.mxu0 0.0
        %6080 = vmatpush.msra.mxu0 0.0
        %v6081 = vand.u32 %v5954, 4294901760
        %6082 = vmatpush.msra.mxu0 %v6081
        %v6083 = vand.u32 %v5953, 4294901760
        %6084 = vmatpush.msra.mxu0 %v6083
        %v6085 = vand.u32 %v5952, 4294901760
        %6086 = vmatpush.msra.mxu0 %v6085
        %v6087 = vand.u32 %v5951, 4294901760
        %6088 = vmatpush.msra.mxu0 %v6087
        %v6089 = vand.u32 %v5950, 4294901760
        %6090 = vmatpush.msra.mxu0 %v6089
        %v6091 = vand.u32 %v5949, 4294901760
        %6092 = vmatpush.msra.mxu0 %v6091
        %v6093 = vand.u32 %v5736, 4294901760
        %v6094 = vsub.f32 %v5736, %v6093
        %v6095 = vand.u32 %v6094, 4294901760
        %6096 = vmatmul.f32.gmra.mxu0 %v6095
        %v6097 = vpop.f32.mrf.mxu0
        %v6098 = vadd.f32 %v6069, %v6097
        %6099 = vdwg.mxu0
        %6100 = vmatpush.msra.mxu0 0.0
        %6101 = vmatpush.msra.mxu0 0.0
        %6102 = vmatpush.msra.mxu0 0.0
        %6103 = vmatpush.msra.mxu0 0.0
        %6104 = vmatpush.msra.mxu0 0.0
        %6105 = vmatpush.msra.mxu0 0.0
        %6106 = vmatpush.msra.mxu0 0.0
        %6107 = vmatpush.msra.mxu0 0.0
        %6108 = vmatpush.msra.mxu0 0.0
        %6109 = vmatpush.msra.mxu0 0.0
        %v6110 = vand.u32 %v5954, 4294901760
        %v6111 = vsub.f32 %v5954, %v6110
        %v6112 = vand.u32 %v6111, 4294901760
        %6113 = vmatpush.msra.mxu0 %v6112
        %v6114 = vand.u32 %v5953, 4294901760
        %v6115 = vsub.f32 %v5953, %v6114
        %v6116 = vand.u32 %v6115, 4294901760
        %6117 = vmatpush.msra.mxu0 %v6116
        %v6118 = vand.u32 %v5952, 4294901760
        %v6119 = vsub.f32 %v5952, %v6118
        %v6120 = vand.u32 %v6119, 4294901760
        %6121 = vmatpush.msra.mxu0 %v6120
        %v6122 = vand.u32 %v5951, 4294901760
        %v6123 = vsub.f32 %v5951, %v6122
        %v6124 = vand.u32 %v6123, 4294901760
        %6125 = vmatpush.msra.mxu0 %v6124
        %v6126 = vand.u32 %v5950, 4294901760
        %v6127 = vsub.f32 %v5950, %v6126
        %v6128 = vand.u32 %v6127, 4294901760
        %6129 = vmatpush.msra.mxu0 %v6128
        %v6130 = vand.u32 %v5949, 4294901760
        %v6131 = vsub.f32 %v5949, %v6130
        %v6132 = vand.u32 %v6131, 4294901760
        %6133 = vmatpush.msra.mxu0 %v6132
        %v6134 = vand.u32 %v5736, 4294901760
        %6135 = vmatmul.f32.gmra.mxu0 %v6134
        %v6136 = vpop.f32.mrf.mxu0
        %v6137 = vadd.f32 %v6098, %v6136
        %6138 = vdwg.mxu0
        %6139 = vmatpush.msra.mxu0 0.0
        %6140 = vmatpush.msra.mxu0 0.0
        %6141 = vmatpush.msra.mxu0 0.0
        %6142 = vmatpush.msra.mxu0 0.0
        %6143 = vmatpush.msra.mxu0 0.0
        %6144 = vmatpush.msra.mxu0 0.0
        %6145 = vmatpush.msra.mxu0 0.0
        %6146 = vmatpush.msra.mxu0 0.0
        %6147 = vmatpush.msra.mxu0 0.0
        %6148 = vmatpush.msra.mxu0 0.0
        %v6149 = vand.u32 %v5954, 4294901760
        %6150 = vmatpush.msra.mxu0 %v6149
        %v6151 = vand.u32 %v5953, 4294901760
        %6152 = vmatpush.msra.mxu0 %v6151
        %v6153 = vand.u32 %v5952, 4294901760
        %6154 = vmatpush.msra.mxu0 %v6153
        %v6155 = vand.u32 %v5951, 4294901760
        %6156 = vmatpush.msra.mxu0 %v6155
        %v6157 = vand.u32 %v5950, 4294901760
        %6158 = vmatpush.msra.mxu0 %v6157
        %v6159 = vand.u32 %v5949, 4294901760
        %6160 = vmatpush.msra.mxu0 %v6159
        %v6161 = vand.u32 %v5736, 4294901760
        %6162 = vmatmul.f32.gmra.mxu0 %v6161
        %v6163 = vpop.f32.mrf.mxu0
        %v6164 = vadd.f32 %v6137, %v6163
        %6165 = vdwg.mxu0
        %v6166 = vmax.f32 %v5947, %v6164
        %vm6167 = vcmask 195584
        %6168 = vst.msk [vmem:[#allocation4] sm:$0xff] %vm6167, %v6166
        %v6169 = vld [vmem:[#allocation4] sm:$0x1]
        %v6170 = vld [vmem:[#allocation4 + $0x1] sm:$0x1]
        %v6171 = vmax.f32 %v6169, %v6170
        %vm6172 = vcmask 188416
        %6173 = vst.msk [vmem:[#allocation5] sm:$0x1] %vm6172, %v6171
        %v6174 = vld [vmem:[#allocation4 + $0x2] sm:$0x1]
        %v6175 = vld [vmem:[#allocation4 + $0x3] sm:$0x1]
        %v6176 = vmax.f32 %v6174, %v6175
        %6178 = vrot.lane.b32.xlu0 %v6176, 24
        %v6179 = vpop.permute.xlu0 %6178
        %vm6181 = vcmask 385216
        %6182 = vst.msk [vmem:[#allocation5] sm:$0x1] %vm6181, %v6179
        %v6183 = vld [vmem:[#allocation4 + $0x4] sm:$0x1]
        %v6184 = vld [vmem:[#allocation4 + $0x5] sm:$0x1]
        %v6185 = vmax.f32 %v6183, %v6184
        %6187 = vrot.lane.b32.xlu0 %v6185, 48
        %v6188 = vpop.permute.xlu0 %6187
        %vm6190 = vcmask 582016
        %6191 = vst.msk [vmem:[#allocation5] sm:$0x1] %vm6190, %v6188
        %v6192 = vld [vmem:[#allocation4 + $0x6] sm:$0x1]
        %v6193 = vld [vmem:[#allocation4 + $0x7] sm:$0x1]
        %v6194 = vmax.f32 %v6192, %v6193
        %6196 = vrot.lane.b32.xlu0 %v6194, 72
        %v6197 = vpop.permute.xlu0 %6196
        %vm6199 = vcmask 778816
        %6200 = vst.msk [vmem:[#allocation5] sm:$0x1] %vm6199, %v6197
        %v6201 = vld [vmem:[#allocation5] sm:$0x1]
        %v6202 = vld [vmem:[%s9] sm:$0xff]
        %v6203 = vld [vmem:[%s9 + $0x8] sm:$0xff]
        %v6204 = vld [vmem:[%s9 + $0x10] sm:$0xff]
        %v6205 = vld [vmem:[%s9 + $0x18] sm:$0xff]
        %v6206 = vld [vmem:[%s9 + $0x20] sm:$0xff]
        %v6207 = vld [vmem:[%s9 + $0x28] sm:$0xff]
        %v6208 = vld [vmem:[%s9 + $0x30] sm:$0xff]
        %v6209 = vld [vmem:[%s9 + $0x38] sm:$0xff]
        %v6210 = vld [vmem:[%s9 + $0x40] sm:$0xff]
        %v6211 = vld [vmem:[%s9 + $0x48] sm:$0xff]
        %v6212 = vld [vmem:[%s9 + $0x50] sm:$0xff]
        %v6213 = vld [vmem:[%s9 + $0x58] sm:$0xff]
        %v6214 = vld [vmem:[%s10] sm:$0x1]
        %vm6215 = vcmask 785408
        %v6217 = vsel %vm6215, %v6201, 0
        %6219 = vmatpush.msra.mxu0 0.0
        %6220 = vmatpush.msra.mxu0 0.0
        %6221 = vmatpush.msra.mxu0 0.0
        %6222 = vmatpush.msra.mxu0 0.0
        %v6223 = vand.u32 %v6213, 4294901760
        %6224 = vmatpush.msra.mxu0 %v6223
        %v6225 = vand.u32 %v6212, 4294901760
        %6226 = vmatpush.msra.mxu0 %v6225
        %v6227 = vand.u32 %v6211, 4294901760
        %6228 = vmatpush.msra.mxu0 %v6227
        %v6229 = vand.u32 %v6210, 4294901760
        %6230 = vmatpush.msra.mxu0 %v6229
        %v6231 = vand.u32 %v6209, 4294901760
        %6232 = vmatpush.msra.mxu0 %v6231
        %v6233 = vand.u32 %v6208, 4294901760
        %6234 = vmatpush.msra.mxu0 %v6233
        %v6235 = vand.u32 %v6207, 4294901760
        %6236 = vmatpush.msra.mxu0 %v6235
        %v6237 = vand.u32 %v6206, 4294901760
        %6238 = vmatpush.msra.mxu0 %v6237
        %v6239 = vand.u32 %v6205, 4294901760
        %6240 = vmatpush.msra.mxu0 %v6239
        %v6241 = vand.u32 %v6204, 4294901760
        %6242 = vmatpush.msra.mxu0 %v6241
        %v6243 = vand.u32 %v6203, 4294901760
        %6244 = vmatpush.msra.mxu0 %v6243
        %v6245 = vand.u32 %v6202, 4294901760
        %6246 = vmatpush.msra.mxu0 %v6245
        %v6247 = vand.u32 %v6217, 4294901760
        %v6248 = vsub.f32 %v6217, %v6247
        %v6249 = vand.u32 %v6248, 4294901760
        %v6250 = vsub.f32 %v6248, %v6249
        %v6251 = vand.u32 %v6250, 4294901760
        %6252 = vmatmul.f32.gmra.mxu0 %v6251
        %v6253 = vpop.f32.mrf.mxu0
        %v6254 = vadd.f32 %v6214, %v6253
        %6255 = vdwg.mxu0
        %6256 = vmatpush.msra.mxu0 0.0
        %6257 = vmatpush.msra.mxu0 0.0
        %6258 = vmatpush.msra.mxu0 0.0
        %6259 = vmatpush.msra.mxu0 0.0
        %v6260 = vand.u32 %v6213, 4294901760
        %v6261 = vsub.f32 %v6213, %v6260
        %v6262 = vand.u32 %v6261, 4294901760
        %v6263 = vsub.f32 %v6261, %v6262
        %v6264 = vand.u32 %v6263, 4294901760
        %6265 = vmatpush.msra.mxu0 %v6264
        %v6266 = vand.u32 %v6212, 4294901760
        %v6267 = vsub.f32 %v6212, %v6266
        %v6268 = vand.u32 %v6267, 4294901760
        %v6269 = vsub.f32 %v6267, %v6268
        %v6270 = vand.u32 %v6269, 4294901760
        %6271 = vmatpush.msra.mxu0 %v6270
        %v6272 = vand.u32 %v6211, 4294901760
        %v6273 = vsub.f32 %v6211, %v6272
        %v6274 = vand.u32 %v6273, 4294901760
        %v6275 = vsub.f32 %v6273, %v6274
        %v6276 = vand.u32 %v6275, 4294901760
        %6277 = vmatpush.msra.mxu0 %v6276
        %v6278 = vand.u32 %v6210, 4294901760
        %v6279 = vsub.f32 %v6210, %v6278
        %v6280 = vand.u32 %v6279, 4294901760
        %v6281 = vsub.f32 %v6279, %v6280
        %v6282 = vand.u32 %v6281, 4294901760
        %6283 = vmatpush.msra.mxu0 %v6282
        %v6284 = vand.u32 %v6209, 4294901760
        %v6285 = vsub.f32 %v6209, %v6284
        %v6286 = vand.u32 %v6285, 4294901760
        %v6287 = vsub.f32 %v6285, %v6286
        %v6288 = vand.u32 %v6287, 4294901760
        %6289 = vmatpush.msra.mxu0 %v6288
        %v6290 = vand.u32 %v6208, 4294901760
        %v6291 = vsub.f32 %v6208, %v6290
        %v6292 = vand.u32 %v6291, 4294901760
        %v6293 = vsub.f32 %v6291, %v6292
        %v6294 = vand.u32 %v6293, 4294901760
        %6295 = vmatpush.msra.mxu0 %v6294
        %v6296 = vand.u32 %v6207, 4294901760
        %v6297 = vsub.f32 %v6207, %v6296
        %v6298 = vand.u32 %v6297, 4294901760
        %v6299 = vsub.f32 %v6297, %v6298
        %v6300 = vand.u32 %v6299, 4294901760
        %6301 = vmatpush.msra.mxu0 %v6300
        %v6302 = vand.u32 %v6206, 4294901760
        %v6303 = vsub.f32 %v6206, %v6302
        %v6304 = vand.u32 %v6303, 4294901760
        %v6305 = vsub.f32 %v6303, %v6304
        %v6306 = vand.u32 %v6305, 4294901760
        %6307 = vmatpush.msra.mxu0 %v6306
        %v6308 = vand.u32 %v6205, 4294901760
        %v6309 = vsub.f32 %v6205, %v6308
        %v6310 = vand.u32 %v6309, 4294901760
        %v6311 = vsub.f32 %v6309, %v6310
        %v6312 = vand.u32 %v6311, 4294901760
        %6313 = vmatpush.msra.mxu0 %v6312
        %v6314 = vand.u32 %v6204, 4294901760
        %v6315 = vsub.f32 %v6204, %v6314
        %v6316 = vand.u32 %v6315, 4294901760
        %v6317 = vsub.f32 %v6315, %v6316
        %v6318 = vand.u32 %v6317, 4294901760
        %6319 = vmatpush.msra.mxu0 %v6318
        %v6320 = vand.u32 %v6203, 4294901760
        %v6321 = vsub.f32 %v6203, %v6320
        %v6322 = vand.u32 %v6321, 4294901760
        %v6323 = vsub.f32 %v6321, %v6322
        %v6324 = vand.u32 %v6323, 4294901760
        %6325 = vmatpush.msra.mxu0 %v6324
        %v6326 = vand.u32 %v6202, 4294901760
        %v6327 = vsub.f32 %v6202, %v6326
        %v6328 = vand.u32 %v6327, 4294901760
        %v6329 = vsub.f32 %v6327, %v6328
        %v6330 = vand.u32 %v6329, 4294901760
        %6331 = vmatpush.msra.mxu0 %v6330
        %v6332 = vand.u32 %v6217, 4294901760
        %6333 = vmatmul.f32.gmra.mxu0 %v6332
        %v6334 = vpop.f32.mrf.mxu0
        %v6335 = vadd.f32 %v6254, %v6334
        %6336 = vdwg.mxu0
        %6337 = vmatpush.msra.mxu0 0.0
        %6338 = vmatpush.msra.mxu0 0.0
        %6339 = vmatpush.msra.mxu0 0.0
        %6340 = vmatpush.msra.mxu0 0.0
        %v6341 = vand.u32 %v6213, 4294901760
        %v6342 = vsub.f32 %v6213, %v6341
        %6343 = vmatpush.msra.mxu0 %v6342
        %v6344 = vand.u32 %v6212, 4294901760
        %v6345 = vsub.f32 %v6212, %v6344
        %6346 = vmatpush.msra.mxu0 %v6345
        %v6347 = vand.u32 %v6211, 4294901760
        %v6348 = vsub.f32 %v6211, %v6347
        %6349 = vmatpush.msra.mxu0 %v6348
        %v6350 = vand.u32 %v6210, 4294901760
        %v6351 = vsub.f32 %v6210, %v6350
        %6352 = vmatpush.msra.mxu0 %v6351
        %v6353 = vand.u32 %v6209, 4294901760
        %v6354 = vsub.f32 %v6209, %v6353
        %6355 = vmatpush.msra.mxu0 %v6354
        %v6356 = vand.u32 %v6208, 4294901760
        %v6357 = vsub.f32 %v6208, %v6356
        %6358 = vmatpush.msra.mxu0 %v6357
        %v6359 = vand.u32 %v6207, 4294901760
        %v6360 = vsub.f32 %v6207, %v6359
        %6361 = vmatpush.msra.mxu0 %v6360
        %v6362 = vand.u32 %v6206, 4294901760
        %v6363 = vsub.f32 %v6206, %v6362
        %6364 = vmatpush.msra.mxu0 %v6363
        %v6365 = vand.u32 %v6205, 4294901760
        %v6366 = vsub.f32 %v6205, %v6365
        %6367 = vmatpush.msra.mxu0 %v6366
        %v6368 = vand.u32 %v6204, 4294901760
        %v6369 = vsub.f32 %v6204, %v6368
        %6370 = vmatpush.msra.mxu0 %v6369
        %v6371 = vand.u32 %v6203, 4294901760
        %v6372 = vsub.f32 %v6203, %v6371
        %6373 = vmatpush.msra.mxu0 %v6372
        %v6374 = vand.u32 %v6202, 4294901760
        %v6375 = vsub.f32 %v6202, %v6374
        %6376 = vmatpush.msra.mxu0 %v6375
        %v6377 = vand.u32 %v6217, 4294901760
        %v6378 = vsub.f32 %v6217, %v6377
        %6379 = vmatmul.f32.gmra.mxu0 %v6378
        %v6380 = vpop.f32.mrf.mxu0
        %v6381 = vadd.f32 %v6335, %v6380
        %6382 = vdwg.mxu0
        %6383 = vmatpush.msra.mxu0 0.0
        %6384 = vmatpush.msra.mxu0 0.0
        %6385 = vmatpush.msra.mxu0 0.0
        %6386 = vmatpush.msra.mxu0 0.0
        %v6387 = vand.u32 %v6213, 4294901760
        %6388 = vmatpush.msra.mxu0 %v6387
        %v6389 = vand.u32 %v6212, 4294901760
        %6390 = vmatpush.msra.mxu0 %v6389
        %v6391 = vand.u32 %v6211, 4294901760
        %6392 = vmatpush.msra.mxu0 %v6391
        %v6393 = vand.u32 %v6210, 4294901760
        %6394 = vmatpush.msra.mxu0 %v6393
        %v6395 = vand.u32 %v6209, 4294901760
        %6396 = vmatpush.msra.mxu0 %v6395
        %v6397 = vand.u32 %v6208, 4294901760
        %6398 = vmatpush.msra.mxu0 %v6397
        %v6399 = vand.u32 %v6207, 4294901760
        %6400 = vmatpush.msra.mxu0 %v6399
        %v6401 = vand.u32 %v6206, 4294901760
        %6402 = vmatpush.msra.mxu0 %v6401
        %v6403 = vand.u32 %v6205, 4294901760
        %6404 = vmatpush.msra.mxu0 %v6403
        %v6405 = vand.u32 %v6204, 4294901760
        %6406 = vmatpush.msra.mxu0 %v6405
        %v6407 = vand.u32 %v6203, 4294901760
        %6408 = vmatpush.msra.mxu0 %v6407
        %v6409 = vand.u32 %v6202, 4294901760
        %6410 = vmatpush.msra.mxu0 %v6409
        %v6411 = vand.u32 %v6217, 4294901760
        %v6412 = vsub.f32 %v6217, %v6411
        %v6413 = vand.u32 %v6412, 4294901760
        %6414 = vmatmul.f32.gmra.mxu0 %v6413
        %v6415 = vpop.f32.mrf.mxu0
        %v6416 = vadd.f32 %v6381, %v6415
        %6417 = vdwg.mxu0
        %6418 = vmatpush.msra.mxu0 0.0
        %6419 = vmatpush.msra.mxu0 0.0
        %6420 = vmatpush.msra.mxu0 0.0
        %6421 = vmatpush.msra.mxu0 0.0
        %v6422 = vand.u32 %v6213, 4294901760
        %v6423 = vsub.f32 %v6213, %v6422
        %v6424 = vand.u32 %v6423, 4294901760
        %6425 = vmatpush.msra.mxu0 %v6424
        %v6426 = vand.u32 %v6212, 4294901760
        %v6427 = vsub.f32 %v6212, %v6426
        %v6428 = vand.u32 %v6427, 4294901760
        %6429 = vmatpush.msra.mxu0 %v6428
        %v6430 = vand.u32 %v6211, 4294901760
        %v6431 = vsub.f32 %v6211, %v6430
        %v6432 = vand.u32 %v6431, 4294901760
        %6433 = vmatpush.msra.mxu0 %v6432
        %v6434 = vand.u32 %v6210, 4294901760
        %v6435 = vsub.f32 %v6210, %v6434
        %v6436 = vand.u32 %v6435, 4294901760
        %6437 = vmatpush.msra.mxu0 %v6436
        %v6438 = vand.u32 %v6209, 4294901760
        %v6439 = vsub.f32 %v6209, %v6438
        %v6440 = vand.u32 %v6439, 4294901760
        %6441 = vmatpush.msra.mxu0 %v6440
        %v6442 = vand.u32 %v6208, 4294901760
        %v6443 = vsub.f32 %v6208, %v6442
        %v6444 = vand.u32 %v6443, 4294901760
        %6445 = vmatpush.msra.mxu0 %v6444
        %v6446 = vand.u32 %v6207, 4294901760
        %v6447 = vsub.f32 %v6207, %v6446
        %v6448 = vand.u32 %v6447, 4294901760
        %6449 = vmatpush.msra.mxu0 %v6448
        %v6450 = vand.u32 %v6206, 4294901760
        %v6451 = vsub.f32 %v6206, %v6450
        %v6452 = vand.u32 %v6451, 4294901760
        %6453 = vmatpush.msra.mxu0 %v6452
        %v6454 = vand.u32 %v6205, 4294901760
        %v6455 = vsub.f32 %v6205, %v6454
        %v6456 = vand.u32 %v6455, 4294901760
        %6457 = vmatpush.msra.mxu0 %v6456
        %v6458 = vand.u32 %v6204, 4294901760
        %v6459 = vsub.f32 %v6204, %v6458
        %v6460 = vand.u32 %v6459, 4294901760
        %6461 = vmatpush.msra.mxu0 %v6460
        %v6462 = vand.u32 %v6203, 4294901760
        %v6463 = vsub.f32 %v6203, %v6462
        %v6464 = vand.u32 %v6463, 4294901760
        %6465 = vmatpush.msra.mxu0 %v6464
        %v6466 = vand.u32 %v6202, 4294901760
        %v6467 = vsub.f32 %v6202, %v6466
        %v6468 = vand.u32 %v6467, 4294901760
        %6469 = vmatpush.msra.mxu0 %v6468
        %v6470 = vand.u32 %v6217, 4294901760
        %6471 = vmatmul.f32.gmra.mxu0 %v6470
        %v6472 = vpop.f32.mrf.mxu0
        %v6473 = vadd.f32 %v6416, %v6472
        %6474 = vdwg.mxu0
        %6475 = vmatpush.msra.mxu0 0.0
        %6476 = vmatpush.msra.mxu0 0.0
        %6477 = vmatpush.msra.mxu0 0.0
        %6478 = vmatpush.msra.mxu0 0.0
        %v6479 = vand.u32 %v6213, 4294901760
        %6480 = vmatpush.msra.mxu0 %v6479
        %v6481 = vand.u32 %v6212, 4294901760
        %6482 = vmatpush.msra.mxu0 %v6481
        %v6483 = vand.u32 %v6211, 4294901760
        %6484 = vmatpush.msra.mxu0 %v6483
        %v6485 = vand.u32 %v6210, 4294901760
        %6486 = vmatpush.msra.mxu0 %v6485
        %v6487 = vand.u32 %v6209, 4294901760
        %6488 = vmatpush.msra.mxu0 %v6487
        %v6489 = vand.u32 %v6208, 4294901760
        %6490 = vmatpush.msra.mxu0 %v6489
        %v6491 = vand.u32 %v6207, 4294901760
        %6492 = vmatpush.msra.mxu0 %v6491
        %v6493 = vand.u32 %v6206, 4294901760
        %6494 = vmatpush.msra.mxu0 %v6493
        %v6495 = vand.u32 %v6205, 4294901760
        %6496 = vmatpush.msra.mxu0 %v6495
        %v6497 = vand.u32 %v6204, 4294901760
        %6498 = vmatpush.msra.mxu0 %v6497
        %v6499 = vand.u32 %v6203, 4294901760
        %6500 = vmatpush.msra.mxu0 %v6499
        %v6501 = vand.u32 %v6202, 4294901760
        %6502 = vmatpush.msra.mxu0 %v6501
        %v6503 = vand.u32 %v6217, 4294901760
        %6504 = vmatmul.f32.gmra.mxu0 %v6503
        %v6505 = vpop.f32.mrf.mxu0
        %v6506 = vadd.f32 %v6473, %v6505
        %6507 = vdwg.mxu0
        %v6508 = vmax.f32 %v6506, 0.0
        %v6509 = vld [vmem:[%s11] sm:$0xff]
        %v6510 = vld [vmem:[%s11 + $0x8] sm:$0xff]
        %v6511 = vld [vmem:[%s11 + $0x10] sm:$0xff]
        %v6512 = vld [vmem:[%s11 + $0x18] sm:$0xff]
        %v6513 = vld [vmem:[%s11 + $0x20] sm:$0xff]
        %v6514 = vld [vmem:[%s11 + $0x28] sm:$0xff]
        %v6515 = vld [vmem:[%s11 + $0x30] sm:$0x3]
        %v6516 = vld [vmem:[%s12] sm:$0x1]
        %vm6517 = vcmask 408576
        %v6519 = vsel %vm6517, %v6508, 0
        %vm6521 = vcmask 1041408
        %v6523 = vsel %vm6521, %v6515, 0
        %6525 = vmatpush.msra.mxu0 0.0
        %6526 = vmatpush.msra.mxu0 0.0
        %6527 = vmatpush.msra.mxu0 0.0
        %6528 = vmatpush.msra.mxu0 0.0
        %6529 = vmatpush.msra.mxu0 0.0
        %6530 = vmatpush.msra.mxu0 0.0
        %6531 = vmatpush.msra.mxu0 0.0
        %6532 = vmatpush.msra.mxu0 0.0
        %6533 = vmatpush.msra.mxu0 0.0
        %v6534 = vand.u32 %v6523, 4294901760
        %6535 = vmatpush.msra.mxu0 %v6534
        %v6536 = vand.u32 %v6514, 4294901760
        %6537 = vmatpush.msra.mxu0 %v6536
        %v6538 = vand.u32 %v6513, 4294901760
        %6539 = vmatpush.msra.mxu0 %v6538
        %v6540 = vand.u32 %v6512, 4294901760
        %6541 = vmatpush.msra.mxu0 %v6540
        %v6542 = vand.u32 %v6511, 4294901760
        %6543 = vmatpush.msra.mxu0 %v6542
        %v6544 = vand.u32 %v6510, 4294901760
        %6545 = vmatpush.msra.mxu0 %v6544
        %v6546 = vand.u32 %v6509, 4294901760
        %6547 = vmatpush.msra.mxu0 %v6546
        %v6548 = vand.u32 %v6519, 4294901760
        %v6549 = vsub.f32 %v6519, %v6548
        %v6550 = vand.u32 %v6549, 4294901760
        %v6551 = vsub.f32 %v6549, %v6550
        %v6552 = vand.u32 %v6551, 4294901760
        %6553 = vmatmul.f32.gmra.mxu0 %v6552
        %v6554 = vpop.f32.mrf.mxu0
        %v6555 = vadd.f32 %v6516, %v6554
        %6556 = vdwg.mxu0
        %6557 = vmatpush.msra.mxu0 0.0
        %6558 = vmatpush.msra.mxu0 0.0
        %6559 = vmatpush.msra.mxu0 0.0
        %6560 = vmatpush.msra.mxu0 0.0
        %6561 = vmatpush.msra.mxu0 0.0
        %6562 = vmatpush.msra.mxu0 0.0
        %6563 = vmatpush.msra.mxu0 0.0
        %6564 = vmatpush.msra.mxu0 0.0
        %6565 = vmatpush.msra.mxu0 0.0
        %v6566 = vand.u32 %v6523, 4294901760
        %v6567 = vsub.f32 %v6523, %v6566
        %v6568 = vand.u32 %v6567, 4294901760
        %v6569 = vsub.f32 %v6567, %v6568
        %v6570 = vand.u32 %v6569, 4294901760
        %6571 = vmatpush.msra.mxu0 %v6570
        %v6572 = vand.u32 %v6514, 4294901760
        %v6573 = vsub.f32 %v6514, %v6572
        %v6574 = vand.u32 %v6573, 4294901760
        %v6575 = vsub.f32 %v6573, %v6574
        %v6576 = vand.u32 %v6575, 4294901760
        %6577 = vmatpush.msra.mxu0 %v6576
        %v6578 = vand.u32 %v6513, 4294901760
        %v6579 = vsub.f32 %v6513, %v6578
        %v6580 = vand.u32 %v6579, 4294901760
        %v6581 = vsub.f32 %v6579, %v6580
        %v6582 = vand.u32 %v6581, 4294901760
        %6583 = vmatpush.msra.mxu0 %v6582
        %v6584 = vand.u32 %v6512, 4294901760
        %v6585 = vsub.f32 %v6512, %v6584
        %v6586 = vand.u32 %v6585, 4294901760
        %v6587 = vsub.f32 %v6585, %v6586
        %v6588 = vand.u32 %v6587, 4294901760
        %6589 = vmatpush.msra.mxu0 %v6588
        %v6590 = vand.u32 %v6511, 4294901760
        %v6591 = vsub.f32 %v6511, %v6590
        %v6592 = vand.u32 %v6591, 4294901760
        %v6593 = vsub.f32 %v6591, %v6592
        %v6594 = vand.u32 %v6593, 4294901760
        %6595 = vmatpush.msra.mxu0 %v6594
        %v6596 = vand.u32 %v6510, 4294901760
        %v6597 = vsub.f32 %v6510, %v6596
        %v6598 = vand.u32 %v6597, 4294901760
        %v6599 = vsub.f32 %v6597, %v6598
        %v6600 = vand.u32 %v6599, 4294901760
        %6601 = vmatpush.msra.mxu0 %v6600
        %v6602 = vand.u32 %v6509, 4294901760
        %v6603 = vsub.f32 %v6509, %v6602
        %v6604 = vand.u32 %v6603, 4294901760
        %v6605 = vsub.f32 %v6603, %v6604
        %v6606 = vand.u32 %v6605, 4294901760
        %6607 = vmatpush.msra.mxu0 %v6606
        %v6608 = vand.u32 %v6519, 4294901760
        %6609 = vmatmul.f32.gmra.mxu0 %v6608
        %v6610 = vpop.f32.mrf.mxu0
        %v6611 = vadd.f32 %v6555, %v6610
        %6612 = vdwg.mxu0
        %6613 = vmatpush.msra.mxu0 0.0
        %6614 = vmatpush.msra.mxu0 0.0
        %6615 = vmatpush.msra.mxu0 0.0
        %6616 = vmatpush.msra.mxu0 0.0
        %6617 = vmatpush.msra.mxu0 0.0
        %6618 = vmatpush.msra.mxu0 0.0
        %6619 = vmatpush.msra.mxu0 0.0
        %6620 = vmatpush.msra.mxu0 0.0
        %6621 = vmatpush.msra.mxu0 0.0
        %v6622 = vand.u32 %v6523, 4294901760
        %v6623 = vsub.f32 %v6523, %v6622
        %6624 = vmatpush.msra.mxu0 %v6623
        %v6625 = vand.u32 %v6514, 4294901760
        %v6626 = vsub.f32 %v6514, %v6625
        %6627 = vmatpush.msra.mxu0 %v6626
        %v6628 = vand.u32 %v6513, 4294901760
        %v6629 = vsub.f32 %v6513, %v6628
        %6630 = vmatpush.msra.mxu0 %v6629
        %v6631 = vand.u32 %v6512, 4294901760
        %v6632 = vsub.f32 %v6512, %v6631
        %6633 = vmatpush.msra.mxu0 %v6632
        %v6634 = vand.u32 %v6511, 4294901760
        %v6635 = vsub.f32 %v6511, %v6634
        %6636 = vmatpush.msra.mxu0 %v6635
        %v6637 = vand.u32 %v6510, 4294901760
        %v6638 = vsub.f32 %v6510, %v6637
        %6639 = vmatpush.msra.mxu0 %v6638
        %v6640 = vand.u32 %v6509, 4294901760
        %v6641 = vsub.f32 %v6509, %v6640
        %6642 = vmatpush.msra.mxu0 %v6641
        %v6643 = vand.u32 %v6519, 4294901760
        %v6644 = vsub.f32 %v6519, %v6643
        %6645 = vmatmul.f32.gmra.mxu0 %v6644
        %v6646 = vpop.f32.mrf.mxu0
        %v6647 = vadd.f32 %v6611, %v6646
        %6648 = vdwg.mxu0
        %6649 = vmatpush.msra.mxu0 0.0
        %6650 = vmatpush.msra.mxu0 0.0
        %6651 = vmatpush.msra.mxu0 0.0
        %6652 = vmatpush.msra.mxu0 0.0
        %6653 = vmatpush.msra.mxu0 0.0
        %6654 = vmatpush.msra.mxu0 0.0
        %6655 = vmatpush.msra.mxu0 0.0
        %6656 = vmatpush.msra.mxu0 0.0
        %6657 = vmatpush.msra.mxu0 0.0
        %v6658 = vand.u32 %v6523, 4294901760
        %6659 = vmatpush.msra.mxu0 %v6658
        %v6660 = vand.u32 %v6514, 4294901760
        %6661 = vmatpush.msra.mxu0 %v6660
        %v6662 = vand.u32 %v6513, 4294901760
        %6663 = vmatpush.msra.mxu0 %v6662
        %v6664 = vand.u32 %v6512, 4294901760
        %6665 = vmatpush.msra.mxu0 %v6664
        %v6666 = vand.u32 %v6511, 4294901760
        %6667 = vmatpush.msra.mxu0 %v6666
        %v6668 = vand.u32 %v6510, 4294901760
        %6669 = vmatpush.msra.mxu0 %v6668
        %v6670 = vand.u32 %v6509, 4294901760
        %6671 = vmatpush.msra.mxu0 %v6670
        %v6672 = vand.u32 %v6519, 4294901760
        %v6673 = vsub.f32 %v6519, %v6672
        %v6674 = vand.u32 %v6673, 4294901760
        %6675 = vmatmul.f32.gmra.mxu0 %v6674
        %v6676 = vpop.f32.mrf.mxu0
        %v6677 = vadd.f32 %v6647, %v6676
        %6678 = vdwg.mxu0
        %6679 = vmatpush.msra.mxu0 0.0
        %6680 = vmatpush.msra.mxu0 0.0
        %6681 = vmatpush.msra.mxu0 0.0
        %6682 = vmatpush.msra.mxu0 0.0
        %6683 = vmatpush.msra.mxu0 0.0
        %6684 = vmatpush.msra.mxu0 0.0
        %6685 = vmatpush.msra.mxu0 0.0
        %6686 = vmatpush.msra.mxu0 0.0
        %6687 = vmatpush.msra.mxu0 0.0
        %v6688 = vand.u32 %v6523, 4294901760
        %v6689 = vsub.f32 %v6523, %v6688
        %v6690 = vand.u32 %v6689, 4294901760
        %6691 = vmatpush.msra.mxu0 %v6690
        %v6692 = vand.u32 %v6514, 4294901760
        %v6693 = vsub.f32 %v6514, %v6692
        %v6694 = vand.u32 %v6693, 4294901760
        %6695 = vmatpush.msra.mxu0 %v6694
        %v6696 = vand.u32 %v6513, 4294901760
        %v6697 = vsub.f32 %v6513, %v6696
        %v6698 = vand.u32 %v6697, 4294901760
        %6699 = vmatpush.msra.mxu0 %v6698
        %v6700 = vand.u32 %v6512, 4294901760
        %v6701 = vsub.f32 %v6512, %v6700
        %v6702 = vand.u32 %v6701, 4294901760
        %6703 = vmatpush.msra.mxu0 %v6702
        %v6704 = vand.u32 %v6511, 4294901760
        %v6705 = vsub.f32 %v6511, %v6704
        %v6706 = vand.u32 %v6705, 4294901760
        %6707 = vmatpush.msra.mxu0 %v6706
        %v6708 = vand.u32 %v6510, 4294901760
        %v6709 = vsub.f32 %v6510, %v6708
        %v6710 = vand.u32 %v6709, 4294901760
        %6711 = vmatpush.msra.mxu0 %v6710
        %v6712 = vand.u32 %v6509, 4294901760
        %v6713 = vsub.f32 %v6509, %v6712
        %v6714 = vand.u32 %v6713, 4294901760
        %6715 = vmatpush.msra.mxu0 %v6714
        %v6716 = vand.u32 %v6519, 4294901760
        %6717 = vmatmul.f32.gmra.mxu0 %v6716
        %v6718 = vpop.f32.mrf.mxu0
        %v6719 = vadd.f32 %v6677, %v6718
        %6720 = vdwg.mxu0
        %6721 = vmatpush.msra.mxu0 0.0
        %6722 = vmatpush.msra.mxu0 0.0
        %6723 = vmatpush.msra.mxu0 0.0
        %6724 = vmatpush.msra.mxu0 0.0
        %6725 = vmatpush.msra.mxu0 0.0
        %6726 = vmatpush.msra.mxu0 0.0
        %6727 = vmatpush.msra.mxu0 0.0
        %6728 = vmatpush.msra.mxu0 0.0
        %6729 = vmatpush.msra.mxu0 0.0
        %v6730 = vand.u32 %v6523, 4294901760
        %6731 = vmatpush.msra.mxu0 %v6730
        %v6732 = vand.u32 %v6514, 4294901760
        %6733 = vmatpush.msra.mxu0 %v6732
        %v6734 = vand.u32 %v6513, 4294901760
        %6735 = vmatpush.msra.mxu0 %v6734
        %v6736 = vand.u32 %v6512, 4294901760
        %6737 = vmatpush.msra.mxu0 %v6736
        %v6738 = vand.u32 %v6511, 4294901760
        %6739 = vmatpush.msra.mxu0 %v6738
        %v6740 = vand.u32 %v6510, 4294901760
        %6741 = vmatpush.msra.mxu0 %v6740
        %v6742 = vand.u32 %v6509, 4294901760
        %6743 = vmatpush.msra.mxu0 %v6742
        %v6744 = vand.u32 %v6519, 4294901760
        %6745 = vmatmul.f32.gmra.mxu0 %v6744
        %v6746 = vpop.f32.mrf.mxu0
        %v6747 = vadd.f32 %v6719, %v6746
        %6748 = vdwg.mxu0
        %vm6749 = vcmask 73728
        %6750 = vst.msk [vmem:[%s432] sm:$0x1] %vm6749, %v6747
        %s6751 = sand.u32 %s313, 1
        %s6752 = scalar_lea.sflag [#allocation7], %s6751
        %s6753 = sand.u32 %s313, 1
        %s6754 = scalar_lea.vmem [#allocation6], %s6753
        // Predicated region
        $region73: #{tpu_custom_call.1} parent=71 // pred_check
          %p6755 = pneg %p323
        $region74: #{tpu_custom_call.1} parent=71 // pred_check_branch
          %6757 = sbr.rel (%p6755) target = $region76
        $region75: #{tpu_custom_call.1} parent=71 // pred_region
          %6759 = vsyncadd %s6752, 0
          %s6760 = scalar_lea.hbm %s13, %s27
          %s6762 = sshll.u32 %s6754, 4
          %s6763 = int_to_ptr.vmem [resolvable:$true] %s6762
          %s6764 = sshll.u32 %s6760, 4
          %s6765 = int_to_ptr.hbm [resolvable:$true] %s6764
          %6767 = dma.vmem_to_hbm [thread:$0]  %s6763, 16, %s6765, %s6752
        $region76: #{tpu_custom_call.1} parent=71 // pred_fallthru
          _
      $region72: #{tpu_custom_call.1} parent=5 // pred_fallthru
        _
      %p6768 = scmp.le.s32.totalorder 2, %s22
      // Predicated region
      $region77: #{tpu_custom_call.1} parent=5 // pred_check
        %p6769 = pneg %p6768
      $region78: #{tpu_custom_call.1} parent=5 // pred_check_branch
        %6771 = sbr.rel (%p6769) target = $region80
      $region79: #{tpu_custom_call.1} parent=5 // pred_region
        %s6772 = ssub.s32 %s22, 2
        // Predicated region
        $region81: #{tpu_custom_call.1} parent=79 // pred_check
          %p6773 = pneg %p329
        $region82: #{tpu_custom_call.1} parent=79 // pred_check_branch
          %6775 = sbr.rel (%p6773) target = $region84
        $region83: #{tpu_custom_call.1} parent=79 // pred_region
          %s6776 = sand.u32 %s314, 1
          %s6777 = scalar_lea.sflag [#allocation7], %s6776
          %s6778 = sand.u32 %s314, 1
          %s6779 = scalar_lea.vmem [#allocation6], %s6778
          %6781 = dma.done %s6777, 16
        $region84: #{tpu_custom_call.1} parent=79 // pred_fallthru
          _
      $region80: #{tpu_custom_call.1} parent=5 // pred_fallthru
        _
    $region6: #{tpu_custom_call.1} parent=1 // loop_footer
      %s26 = sadd.s32 1, %s22
    $region7: #{tpu_custom_call.1} parent=1 // loop_footer_branch
      %21 = sbr.rel target = $region3
    $region8: #{tpu_custom_call.1} parent=1 // loop_exit
      _
    %6782 = vsyncpa [#allocation7], 1
    %s6783 = scalar_lea.sflag [#allocation7], 1
    %6784 = vsyncpa %s6783, 1

</llo_original>
